<compile_context>
chip_gen: v5e
topology: v5e:2x2
jax: 0.10.0
libtpu: 0.0.40
codegen_flags: <defaults>
</compile_context>

<pallas_src>
import math
from functools import partial

import jax
import jax.numpy as jnp
from jax import lax
from jax.experimental import pallas as pl
from jax.experimental.pallas import tpu as pltpu

D_PAD = 128     # padded head_dim: full MXU contraction depth, lane-dense stores
TILE_S = 256    # row tile for all three kernels (sweep 256-512 on real shapes)


# --------------------------------------------------------------------------- kernels

def qkv_rope_kernel(x_ref, w_ref, b_ref, cos_ref, sin_ref,
                    q_ref, k_ref, v_ref, *, num_heads, head_dim, d_pad):
    """Fused QKV projection + bias + rotary embedding (+ q scaling via weights).

    Grid: (S_pad // TILE_S,).
      x:       (TS, dim)
      w:       (dim, 3*H*d_pad)  packed, resident in VMEM (constant index_map)
      b:       (1, 3*H*d_pad)    packed, f32
      cos/sin: (TS, d_pad)       zero in lanes >= head_dim and in padded rows
      q, v:    (H, TS, d_pad)    ;  k: (H, d_pad, TS)  (stored transposed)
    """
    qkv = jnp.dot(x_ref[...], w_ref[...],
                  preferred_element_type=jnp.float32) + b_ref[...]
    cos = cos_ref[...]
    sin = sin_ref[...]
    H = num_heads
    half = head_dim // 2
    rows = cos.shape[0]
    tail = d_pad - head_dim
    zeros_tail = jnp.zeros((rows, tail), jnp.float32) if tail else None  # hoisted

    def rope(t):
        # rotate_half restricted to the first head_dim lanes of the padded head;
        # padded lanes are annihilated by cos == sin == 0 there.
        parts = [-t[:, half:head_dim], t[:, :half]]
        if tail:
            parts.append(zeros_tail)
        rot = jnp.concatenate(parts, axis=1)
        return t * cos + rot * sin

    for h in range(H):                               # static unroll over heads
        qh = qkv[:, h * d_pad:(h + 1) * d_pad]       # 128-lane-aligned slices
        kh = qkv[:, (H + h) * d_pad:(H + h + 1) * d_pad]
        vh = qkv[:, (2 * H + h) * d_pad:(2 * H + h + 1) * d_pad]
        q_ref[h] = rope(qh).astype(q_ref.dtype)      # softmax scale pre-folded
        k_ref[h] = rope(kh).T.astype(k_ref.dtype)    # store K^T: (d_pad, TS)
        v_ref[h] = vh.astype(v_ref.dtype)


def flash_attn_kernel(q_ref, kt_ref, v_ref, o_ref, *, seq_len, tkv):
    """Online-softmax attention for one (head, q-block); grid = (H, S_pad//TQ).

    K^T / V blocks cover the whole padded sequence for the current head and have
    a constant index_map over the inner q axis -> they stay resident in VMEM and
    are streamed from HBM once per head.  The kv loop is a static unroll over
    `tkv`-wide chunks (static slices only -> no dynamic lane indexing).
    """
    q = q_ref[0]                                   # (TQ, d_pad)
    tq, d_pad = q.shape
    s_pad = kt_ref.shape[2]
    n_kv = s_pad // tkv

    m = jnp.full((tq, 1), -1e30, jnp.float32)
    l = jnp.zeros((tq, 1), jnp.float32)
    acc = jnp.zeros((tq, d_pad), jnp.float32)
    for i in range(n_kv):                          # static unroll
        kt = kt_ref[0, :, i * tkv:(i + 1) * tkv]   # (d_pad, tkv)
        v = v_ref[0, i * tkv:(i + 1) * tkv, :]     # (tkv, d_pad)
        s = jnp.dot(q, kt, preferred_element_type=jnp.float32)   # (TQ, tkv)
        if (i + 1) * tkv > seq_len:                # only the padded tail chunk
            kidx = i * tkv + lax.broadcasted_iota(jnp.int32, s.shape, 1)
            s = jnp.where(kidx < seq_len, s, -1e30)   # finite mask -> no NaNs
        # TODO(synk): block-diagonal masking from cu_seqlens (flash_forward
        # semantics) would be applied to `s` here; forward() ignores cu_seqlens.
        m_new = jnp.maximum(m, jnp.max(s, axis=-1, keepdims=True))
        alpha = jnp.exp(m - m_new)
        p = jnp.exp(s - m_new)
        l = alpha * l + jnp.sum(p, axis=-1, keepdims=True)
        acc = alpha * acc + jnp.dot(p.astype(v.dtype), v,
                                    preferred_element_type=jnp.float32)
        m = m_new

    o_ref[...] = (acc / l).astype(o_ref.dtype)     # once per tile; cheap & exact


def proj_kernel(a_ref, w_ref, b_ref, o_ref):
    """Output projection: single full-depth (K = H*d_pad) matmul, resident weight."""
    o_ref[...] = (jnp.dot(a_ref[...], w_ref[...],
                          preferred_element_type=jnp.float32)
                  + b_ref[...]).astype(o_ref.dtype)


# --------------------------------------------------------------------------- params

def prepare_params(params, num_heads, d_pad=D_PAD, dtype=None):
    """One-time parameter packing (outside the hot path).

    * qkv weight -> (dim, 3*H*d_pad): nn-form, each head's q/k/v slab starts on a
      128-lane boundary (zero-padded head_dim), softmax scale d^-0.5 folded into
      the q columns and q bias (rotary embedding is linear, so pre-scaling is OK).
    * proj weight -> (H*d_pad, dim): transposed + zero-padded rows to match the
      lane-dense packed attention output.
    """
    qkv_w, qkv_b = params["qkv_w"], params["qkv_b"]
    proj_w, proj_b = params["proj_w"], params["proj_b"]
    dim = proj_w.shape[1]
    H = num_heads
    d = dim // H
    assert d % 2 == 0 and d <= d_pad
    q_scale = float(d) ** -0.5          # (d^-0.25 on q) * (d^-0.25 on k), once

    scale = jnp.array([q_scale, 1.0, 1.0], jnp.float32).reshape(3, 1, 1, 1)
    w = qkv_w.astype(jnp.float32).reshape(3, H, d, dim) * scale
    w = jnp.pad(w, ((0, 0), (0, 0), (0, d_pad - d), (0, 0)))
    w = jnp.transpose(w.reshape(3 * H * d_pad, dim))            # (dim, 3*H*d_pad)

    b = qkv_b.astype(jnp.float32).reshape(3, H, d) * scale[..., 0]
    b = jnp.pad(b, ((0, 0), (0, 0), (0, d_pad - d))).reshape(1, 3 * H * d_pad)

    pw = jnp.transpose(proj_w).reshape(H, d, dim)               # rows = (h, j)
    pw = jnp.pad(pw, ((0, 0), (0, d_pad - d), (0, 0))).reshape(H * d_pad, dim)
    pb = proj_b.astype(jnp.float32).reshape(1, dim)

    if dtype is None:
        dtype = qkv_w.dtype
    # TODO(synk): pass dtype=jnp.bfloat16 here (and feed bf16 x) for v6e/v7x runs.
    return {"qkv_w": w.astype(dtype), "qkv_b": b,
            "proj_w": pw.astype(dtype), "proj_b": pb}


# --------------------------------------------------------------------------- wrapper

def vision_attention_forward(x, cu_seqlens, rotary_pos_emb, kp, num_heads, b=1,
                             tile_s=TILE_S):
    """Pallas implementation of VisionAttention.forward (non-flash path, b=1)."""
    del cu_seqlens, b   # forward() ignores cu_seqlens on the b=1 path
    N, dim = x.shape
    H = num_heads
    d = dim // H
    d_pad = kp["qkv_w"].shape[1] // (3 * H)         # static (derived from shapes)
    dtype = x.dtype

    TS = tile_s
    S_pad = pl.cdiv(N, TS) * TS                     # pad S, never full-extent tiles
    x_p = jnp.pad(x, ((0, S_pad - N), (0, 0)))

    # Rotary tables, padded to (S_pad, d_pad); padded lanes/rows are exactly zero.
    cos = jnp.tile(jnp.cos(rotary_pos_emb), (1, 2)).astype(jnp.float32)
    sin = jnp.tile(jnp.sin(rotary_pos_emb), (1, 2)).astype(jnp.float32)
    cos_p = jnp.pad(cos, ((0, S_pad - N), (0, d_pad - d)))
    sin_p = jnp.pad(sin, ((0, S_pad - N), (0, d_pad - d)))

    # ---------------- fused QKV projection + rotary (resident packed weight) ----
    q, kt, v = pl.pallas_call(
        partial(qkv_rope_kernel, num_heads=H, head_dim=d, d_pad=d_pad),
        grid=(S_pad // TS,),
        in_specs=[
            pl.BlockSpec((TS, dim), lambda i: (i, 0)),               # x rows
            pl.BlockSpec((dim, 3 * H * d_pad), lambda i: (0, 0)),    # Wqkv resident
            pl.BlockSpec((1, 3 * H * d_pad), lambda i: (0, 0)),      # bias
            pl.BlockSpec((TS, d_pad), lambda i: (i, 0)),             # cos
            pl.BlockSpec((TS, d_pad), lambda i: (i, 0)),             # sin
        ],
        out_specs=(
            pl.BlockSpec((H, TS, d_pad), lambda i: (0, i, 0)),       # q (H,S,dp)
            pl.BlockSpec((H, d_pad, TS), lambda i: (0, 0, i)),       # K^T (H,dp,S)
            pl.BlockSpec((H, TS, d_pad), lambda i: (0, i, 0)),       # v (H,S,dp)
        ),
        out_shape=(
            jax.ShapeDtypeStruct((H, S_pad, d_pad), dtype),
            jax.ShapeDtypeStruct((H, d_pad, S_pad), dtype),
            jax.ShapeDtypeStruct((H, S_pad, d_pad), dtype),
        ),
        compiler_params=pltpu.CompilerParams(
            dimension_semantics=("parallel",)),
    )(x_p, kp["qkv_w"], kp["qkv_b"], cos_p, sin_p)

    # ---------------- flash attention (resident per-head K^T / V) ---------------
    attn = pl.pallas_call(
        partial(flash_attn_kernel, seq_len=N, tkv=TS),
        grid=(H, S_pad // TS),
        in_specs=[
            pl.BlockSpec((1, TS, d_pad), lambda h, qi: (h, qi, 0)),
            pl.BlockSpec((1, d_pad, S_pad), lambda h, qi: (h, 0, 0)),  # resident/head
            pl.BlockSpec((1, S_pad, d_pad), lambda h, qi: (h, 0, 0)),  # resident/head
        ],
        out_specs=pl.BlockSpec((TS, d_pad), lambda h, qi: (qi, h)),    # lane-dense
        out_shape=jax.ShapeDtypeStruct((S_pad, H * d_pad), dtype),
        compiler_params=pltpu.CompilerParams(
            dimension_semantics=("parallel", "arbitrary")),
    )(q, kt, v)

    # ---------------- output projection (full-depth contraction) ----------------
    out = pl.pallas_call(
        proj_kernel,
        grid=(S_pad // TS,),
        in_specs=[
            pl.BlockSpec((TS, H * d_pad), lambda i: (i, 0)),
            pl.BlockSpec((H * d_pad, dim), lambda i: (0, 0)),          # resident
            pl.BlockSpec((1, dim), lambda i: (0, 0)),
        ],
        out_specs=pl.BlockSpec((TS, dim), lambda i: (i, 0)),
        out_shape=jax.ShapeDtypeStruct((S_pad, dim), dtype),
        compiler_params=pltpu.CompilerParams(
            dimension_semantics=("parallel",)),
    )(attn, kp["proj_w"], kp["proj_b"])

    return out[:N]


# --------------------------------------------------------------------------- reference

def reference_forward(x, rotary_pos_emb, params, num_heads):
    N, dim = x.shape
    d = dim // num_heads
    qkv = x @ params["qkv_w"].T + params["qkv_b"]
    qkv = qkv.reshape(N, 3, num_heads, d)
    q, k, v = qkv[:, 0], qkv[:, 1], qkv[:, 2]
    cos = jnp.tile(jnp.cos(rotary_pos_emb), (1, 2))[:, None, :]
    sin = jnp.tile(jnp.sin(rotary_pos_emb), (1, 2))[:, None, :]

    def rot_half(t):
        return jnp.concatenate([-t[..., d // 2:], t[..., :d // 2]], axis=-1)

    q = q * cos + rot_half(q) * sin
    k = k * cos + rot_half(k) * sin
    scale = math.pow(d, -0.25)
    q = q.transpose(1, 0, 2) * scale
    k = k.transpose(1, 0, 2) * scale
    v = v.transpose(1, 0, 2)
    s = jnp.einsum("nqd,nkd->nqk", q, k)
    p = jax.nn.softmax(s, axis=-1)
    o = jnp.einsum("nqk,nkd->nqd", p, v)
    o = o.transpose(1, 0, 2).reshape(N, dim)
    return o @ params["proj_w"].T + params["proj_b"]


# --------------------------------------------------------------------------- main

if __name__ == "__main__":
    dim = 32
    num_heads = 4
    head_dim = dim // num_heads          # 8
    N = 200                              # not a tile multiple -> exercises padding/masking

    key = jax.random.PRNGKey(0)
    k_x, k_rot, k_qw, k_qb, k_pw, k_pb = jax.random.split(key, 6)

    x = jax.random.normal(k_x, (N, dim), dtype=jnp.float32)
    rotary_pos_emb = jax.random.normal(k_rot, (N, head_dim // 2), dtype=jnp.float32)
    cu_seqlens = jnp.array([0, N], dtype=jnp.int32)

    # Synthetic parameters in PyTorch nn.Linear layout: (out_features, in_features).
    params = {
        "qkv_w": 0.1 * jax.random.normal(k_qw, (3 * dim, dim), dtype=jnp.float32),
        "qkv_b": 0.1 * jax.random.normal(k_qb, (3 * dim,), dtype=jnp.float32),
        "proj_w": 0.1 * jax.random.normal(k_pw, (dim, dim), dtype=jnp.float32),
        "proj_b": 0.1 * jax.random.normal(k_pb, (dim,), dtype=jnp.float32),
    }

    kp = prepare_params(params, num_heads)          # one-time layout prep
    fwd = jax.jit(partial(vision_attention_forward, num_heads=num_heads))

    out = fwd(x, cu_seqlens, rotary_pos_emb, kp)
    out = jax.block_until_ready(out)

    ref = reference_forward(x, rotary_pos_emb, params, num_heads)
    assert out.shape == (N, dim), out.shape
    err = float(jnp.max(jnp.abs(out - ref)))
    assert jnp.allclose(out, ref, atol=5e-3, rtol=5e-3), err

    print("KERNEL_OK")
</pallas_src>

<mosaic_0001>
module attributes {stable_mosaic.version = 11 : i64} {
  func.func @qkv_rope_kernel(%arg0: i32, %arg1: memref<256x32xf32, #tpu.memory_space<vmem>>, %arg2: memref<32x1536xf32, #tpu.memory_space<vmem>>, %arg3: memref<1x1536xf32, #tpu.memory_space<vmem>>, %arg4: memref<256x128xf32, #tpu.memory_space<vmem>>, %arg5: memref<256x128xf32, #tpu.memory_space<vmem>>, %arg6: memref<4x256x128xf32, #tpu.memory_space<vmem>>, %arg7: memref<4x128x256xf32, #tpu.memory_space<vmem>>, %arg8: memref<4x256x128xf32, #tpu.memory_space<vmem>>) attributes {dimension_semantics = [#tpu.dimension_semantics<parallel>], iteration_bounds = array<i64: 1>, scalar_prefetch = 0 : i64, scratch_operands = 0 : i64, tpu.core_type = #tpu.core_type<tc>, window_params = [{transform_indices = @transform_0, window_bounds = array<i64: 256, 32>}, {pipeline_mode = #tpu.pipeline_mode<synchronous>, transform_indices = @transform_1, window_bounds = array<i64: 32, 1536>}, {pipeline_mode = #tpu.pipeline_mode<synchronous>, transform_indices = @transform_2, window_bounds = array<i64: 1, 1536>}, {transform_indices = @transform_3, window_bounds = array<i64: 256, 128>}, {transform_indices = @transform_4, window_bounds = array<i64: 256, 128>}, {transform_indices = @transform_5, window_bounds = array<i64: 4, 256, 128>}, {transform_indices = @transform_6, window_bounds = array<i64: 4, 128, 256>}, {transform_indices = @transform_7, window_bounds = array<i64: 4, 256, 128>}]} {
    %c0 = arith.constant 0 : index
    %c0_0 = arith.constant 0 : index
    %0 = vector.load %arg1[%c0, %c0_0] : memref<256x32xf32, #tpu.memory_space<vmem>>, vector<256x32xf32>
    %c0_1 = arith.constant 0 : index
    %c0_2 = arith.constant 0 : index
    %1 = vector.load %arg2[%c0_1, %c0_2] : memref<32x1536xf32, #tpu.memory_space<vmem>>, vector<32x1536xf32>
    %cst = arith.constant dense<0.000000e+00> : vector<256x1536xf32>
    %2 = tpu.matmul %0, %1, %cst {dimension_numbers = #tpu.dot_dimension_numbers<[1], [0], [0], [1], [0, 0, 1, 1], [], []>} : vector<256x32xf32>, vector<32x1536xf32>, vector<256x1536xf32> -> vector<256x1536xf32>
    %c0_3 = arith.constant 0 : index
    %c0_4 = arith.constant 0 : index
    %3 = vector.load %arg3[%c0_3, %c0_4] : memref<1x1536xf32, #tpu.memory_space<vmem>>, vector<1x1536xf32>
    %4 = vector.broadcast %3 : vector<1x1536xf32> to vector<256x1536xf32>
    %5 = arith.addf %2, %4 : vector<256x1536xf32>
    %c0_5 = arith.constant 0 : index
    %c0_6 = arith.constant 0 : index
    %6 = vector.load %arg4[%c0_5, %c0_6] : memref<256x128xf32, #tpu.memory_space<vmem>>, vector<256x128xf32>
    %c0_7 = arith.constant 0 : index
    %c0_8 = arith.constant 0 : index
    %7 = vector.load %arg5[%c0_7, %c0_8] : memref<256x128xf32, #tpu.memory_space<vmem>>, vector<256x128xf32>
    %cst_9 = arith.constant 0.000000e+00 : f32
    %8 = vector.broadcast %cst_9 : f32 to vector<256x120xf32>
    %9 = vector.extract_strided_slice %5 {offsets = [0, 0], sizes = [256, 128], strides = [1, 1]} : vector<256x1536xf32> to vector<256x128xf32>
    %10 = vector.extract_strided_slice %5 {offsets = [0, 512], sizes = [256, 128], strides = [1, 1]} : vector<256x1536xf32> to vector<256x128xf32>
    %11 = vector.extract_strided_slice %5 {offsets = [0, 1024], sizes = [256, 128], strides = [1, 1]} : vector<256x1536xf32> to vector<256x128xf32>
    %12 = vector.extract_strided_slice %9 {offsets = [0, 4], sizes = [256, 4], strides = [1, 1]} : vector<256x128xf32> to vector<256x4xf32>
    %cst_10 = arith.constant 0.000000e+00 : f32
    %13 = vector.broadcast %cst_10 : f32 to vector<256x4xf32>
    %14 = arith.subf %13, %12 : vector<256x4xf32>
    %15 = vector.extract_strided_slice %9 {offsets = [0, 0], sizes = [256, 4], strides = [1, 1]} : vector<256x128xf32> to vector<256x4xf32>
    %16 = tpu.concatenate %14, %15, %8 in 1 : vector<256x4xf32>, vector<256x4xf32>, vector<256x120xf32> -> vector<256x128xf32>
    %17 = arith.mulf %9, %6 : vector<256x128xf32>
    %18 = arith.mulf %16, %7 : vector<256x128xf32>
    %19 = arith.addf %17, %18 : vector<256x128xf32>
    %c0_11 = arith.constant 0 : index
    %c0_12 = arith.constant 0 : index
    %c0_13 = arith.constant 0 : index
    %20 = vector.load %arg6[%c0_11, %c0_12, %c0_13] : memref<4x256x128xf32, #tpu.memory_space<vmem>>, vector<1x256x128xf32>
    %21 = vector.shape_cast %20 : vector<1x256x128xf32> to vector<256x128xf32>
    %22 = vector.shape_cast %19 : vector<256x128xf32> to vector<1x256x128xf32>
    tpu.vector_store %arg6[%c0_11, %c0_12, %c0_13], %22 {strides = array<i32>} : memref<4x256x128xf32, #tpu.memory_space<vmem>>, vector<1x256x128xf32>,
    %23 = vector.extract_strided_slice %10 {offsets = [0, 4], sizes = [256, 4], strides = [1, 1]} : vector<256x128xf32> to vector<256x4xf32>
    %cst_14 = arith.constant 0.000000e+00 : f32
    %24 = vector.broadcast %cst_14 : f32 to vector<256x4xf32>
    %25 = arith.subf %24, %23 : vector<256x4xf32>
    %26 = vector.extract_strided_slice %10 {offsets = [0, 0], sizes = [256, 4], strides = [1, 1]} : vector<256x128xf32> to vector<256x4xf32>
    %27 = tpu.concatenate %25, %26, %8 in 1 : vector<256x4xf32>, vector<256x4xf32>, vector<256x120xf32> -> vector<256x128xf32>
    %28 = arith.mulf %10, %6 : vector<256x128xf32>
    %29 = arith.mulf %27, %7 : vector<256x128xf32>
    %30 = arith.addf %28, %29 : vector<256x128xf32>
    %31 = tpu.transpose %30, [1, 0] : vector<256x128xf32> -> vector<128x256xf32>
    %c0_15 = arith.constant 0 : index
    %c0_16 = arith.constant 0 : index
    %c0_17 = arith.constant 0 : index
    %32 = vector.load %arg7[%c0_15, %c0_16, %c0_17] : memref<4x128x256xf32, #tpu.memory_space<vmem>>, vector<1x128x256xf32>
    %33 = vector.shape_cast %32 : vector<1x128x256xf32> to vector<128x256xf32>
    %34 = vector.shape_cast %31 : vector<128x256xf32> to vector<1x128x256xf32>
    tpu.vector_store %arg7[%c0_15, %c0_16, %c0_17], %34 {strides = array<i32>} : memref<4x128x256xf32, #tpu.memory_space<vmem>>, vector<1x128x256xf32>,
    %c0_18 = arith.constant 0 : index
    %c0_19 = arith.constant 0 : index
    %c0_20 = arith.constant 0 : index
    %35 = vector.load %arg8[%c0_18, %c0_19, %c0_20] : memref<4x256x128xf32, #tpu.memory_space<vmem>>, vector<1x256x128xf32>
    %36 = vector.shape_cast %35 : vector<1x256x128xf32> to vector<256x128xf32>
    %37 = vector.shape_cast %11 : vector<256x128xf32> to vector<1x256x128xf32>
    tpu.vector_store %arg8[%c0_18, %c0_19, %c0_20], %37 {strides = array<i32>} : memref<4x256x128xf32, #tpu.memory_space<vmem>>, vector<1x256x128xf32>,
    %38 = vector.extract_strided_slice %5 {offsets = [0, 128], sizes = [256, 128], strides = [1, 1]} : vector<256x1536xf32> to vector<256x128xf32>
    %39 = vector.extract_strided_slice %5 {offsets = [0, 640], sizes = [256, 128], strides = [1, 1]} : vector<256x1536xf32> to vector<256x128xf32>
    %40 = vector.extract_strided_slice %5 {offsets = [0, 1152], sizes = [256, 128], strides = [1, 1]} : vector<256x1536xf32> to vector<256x128xf32>
    %41 = vector.extract_strided_slice %38 {offsets = [0, 4], sizes = [256, 4], strides = [1, 1]} : vector<256x128xf32> to vector<256x4xf32>
    %cst_21 = arith.constant 0.000000e+00 : f32
    %42 = vector.broadcast %cst_21 : f32 to vector<256x4xf32>
    %43 = arith.subf %42, %41 : vector<256x4xf32>
    %44 = vector.extract_strided_slice %38 {offsets = [0, 0], sizes = [256, 4], strides = [1, 1]} : vector<256x128xf32> to vector<256x4xf32>
    %45 = tpu.concatenate %43, %44, %8 in 1 : vector<256x4xf32>, vector<256x4xf32>, vector<256x120xf32> -> vector<256x128xf32>
    %46 = arith.mulf %38, %6 : vector<256x128xf32>
    %47 = arith.mulf %45, %7 : vector<256x128xf32>
    %48 = arith.addf %46, %47 : vector<256x128xf32>
    %c1 = arith.constant 1 : index
    %c0_22 = arith.constant 0 : index
    %c0_23 = arith.constant 0 : index
    %49 = vector.load %arg6[%c1, %c0_22, %c0_23] : memref<4x256x128xf32, #tpu.memory_space<vmem>>, vector<1x256x128xf32>
    %50 = vector.shape_cast %49 : vector<1x256x128xf32> to vector<256x128xf32>
    %51 = vector.shape_cast %48 : vector<256x128xf32> to vector<1x256x128xf32>
    tpu.vector_store %arg6[%c1, %c0_22, %c0_23], %51 {strides = array<i32>} : memref<4x256x128xf32, #tpu.memory_space<vmem>>, vector<1x256x128xf32>,
    %52 = vector.extract_strided_slice %39 {offsets = [0, 4], sizes = [256, 4], strides = [1, 1]} : vector<256x128xf32> to vector<256x4xf32>
    %cst_24 = arith.constant 0.000000e+00 : f32
    %53 = vector.broadcast %cst_24 : f32 to vector<256x4xf32>
    %54 = arith.subf %53, %52 : vector<256x4xf32>
    %55 = vector.extract_strided_slice %39 {offsets = [0, 0], sizes = [256, 4], strides = [1, 1]} : vector<256x128xf32> to vector<256x4xf32>
    %56 = tpu.concatenate %54, %55, %8 in 1 : vector<256x4xf32>, vector<256x4xf32>, vector<256x120xf32> -> vector<256x128xf32>
    %57 = arith.mulf %39, %6 : vector<256x128xf32>
    %58 = arith.mulf %56, %7 : vector<256x128xf32>
    %59 = arith.addf %57, %58 : vector<256x128xf32>
    %60 = tpu.transpose %59, [1, 0] : vector<256x128xf32> -> vector<128x256xf32>
    %c1_25 = arith.constant 1 : index
    %c0_26 = arith.constant 0 : index
    %c0_27 = arith.constant 0 : index
    %61 = vector.load %arg7[%c1_25, %c0_26, %c0_27] : memref<4x128x256xf32, #tpu.memory_space<vmem>>, vector<1x128x256xf32>
    %62 = vector.shape_cast %61 : vector<1x128x256xf32> to vector<128x256xf32>
    %63 = vector.shape_cast %60 : vector<128x256xf32> to vector<1x128x256xf32>
    tpu.vector_store %arg7[%c1_25, %c0_26, %c0_27], %63 {strides = array<i32>} : memref<4x128x256xf32, #tpu.memory_space<vmem>>, vector<1x128x256xf32>,
    %c1_28 = arith.constant 1 : index
    %c0_29 = arith.constant 0 : index
    %c0_30 = arith.constant 0 : index
    %64 = vector.load %arg8[%c1_28, %c0_29, %c0_30] : memref<4x256x128xf32, #tpu.memory_space<vmem>>, vector<1x256x128xf32>
    %65 = vector.shape_cast %64 : vector<1x256x128xf32> to vector<256x128xf32>
    %66 = vector.shape_cast %40 : vector<256x128xf32> to vector<1x256x128xf32>
    tpu.vector_store %arg8[%c1_28, %c0_29, %c0_30], %66 {strides = array<i32>} : memref<4x256x128xf32, #tpu.memory_space<vmem>>, vector<1x256x128xf32>,
    %67 = vector.extract_strided_slice %5 {offsets = [0, 256], sizes = [256, 128], strides = [1, 1]} : vector<256x1536xf32> to vector<256x128xf32>
    %68 = vector.extract_strided_slice %5 {offsets = [0, 768], sizes = [256, 128], strides = [1, 1]} : vector<256x1536xf32> to vector<256x128xf32>
    %69 = vector.extract_strided_slice %5 {offsets = [0, 1280], sizes = [256, 128], strides = [1, 1]} : vector<256x1536xf32> to vector<256x128xf32>
    %70 = vector.extract_strided_slice %67 {offsets = [0, 4], sizes = [256, 4], strides = [1, 1]} : vector<256x128xf32> to vector<256x4xf32>
    %cst_31 = arith.constant 0.000000e+00 : f32
    %71 = vector.broadcast %cst_31 : f32 to vector<256x4xf32>
    %72 = arith.subf %71, %70 : vector<256x4xf32>
    %73 = vector.extract_strided_slice %67 {offsets = [0, 0], sizes = [256, 4], strides = [1, 1]} : vector<256x128xf32> to vector<256x4xf32>
    %74 = tpu.concatenate %72, %73, %8 in 1 : vector<256x4xf32>, vector<256x4xf32>, vector<256x120xf32> -> vector<256x128xf32>
    %75 = arith.mulf %67, %6 : vector<256x128xf32>
    %76 = arith.mulf %74, %7 : vector<256x128xf32>
    %77 = arith.addf %75, %76 : vector<256x128xf32>
    %c2 = arith.constant 2 : index
    %c0_32 = arith.constant 0 : index
    %c0_33 = arith.constant 0 : index
    %78 = vector.load %arg6[%c2, %c0_32, %c0_33] : memref<4x256x128xf32, #tpu.memory_space<vmem>>, vector<1x256x128xf32>
    %79 = vector.shape_cast %78 : vector<1x256x128xf32> to vector<256x128xf32>
    %80 = vector.shape_cast %77 : vector<256x128xf32> to vector<1x256x128xf32>
    tpu.vector_store %arg6[%c2, %c0_32, %c0_33], %80 {strides = array<i32>} : memref<4x256x128xf32, #tpu.memory_space<vmem>>, vector<1x256x128xf32>,
    %81 = vector.extract_strided_slice %68 {offsets = [0, 4], sizes = [256, 4], strides = [1, 1]} : vector<256x128xf32> to vector<256x4xf32>
    %cst_34 = arith.constant 0.000000e+00 : f32
    %82 = vector.broadcast %cst_34 : f32 to vector<256x4xf32>
    %83 = arith.subf %82, %81 : vector<256x4xf32>
    %84 = vector.extract_strided_slice %68 {offsets = [0, 0], sizes = [256, 4], strides = [1, 1]} : vector<256x128xf32> to vector<256x4xf32>
    %85 = tpu.concatenate %83, %84, %8 in 1 : vector<256x4xf32>, vector<256x4xf32>, vector<256x120xf32> -> vector<256x128xf32>
    %86 = arith.mulf %68, %6 : vector<256x128xf32>
    %87 = arith.mulf %85, %7 : vector<256x128xf32>
    %88 = arith.addf %86, %87 : vector<256x128xf32>
    %89 = tpu.transpose %88, [1, 0] : vector<256x128xf32> -> vector<128x256xf32>
    %c2_35 = arith.constant 2 : index
    %c0_36 = arith.constant 0 : index
    %c0_37 = arith.constant 0 : index
    %90 = vector.load %arg7[%c2_35, %c0_36, %c0_37] : memref<4x128x256xf32, #tpu.memory_space<vmem>>, vector<1x128x256xf32>
    %91 = vector.shape_cast %90 : vector<1x128x256xf32> to vector<128x256xf32>
    %92 = vector.shape_cast %89 : vector<128x256xf32> to vector<1x128x256xf32>
    tpu.vector_store %arg7[%c2_35, %c0_36, %c0_37], %92 {strides = array<i32>} : memref<4x128x256xf32, #tpu.memory_space<vmem>>, vector<1x128x256xf32>,
    %c2_38 = arith.constant 2 : index
    %c0_39 = arith.constant 0 : index
    %c0_40 = arith.constant 0 : index
    %93 = vector.load %arg8[%c2_38, %c0_39, %c0_40] : memref<4x256x128xf32, #tpu.memory_space<vmem>>, vector<1x256x128xf32>
    %94 = vector.shape_cast %93 : vector<1x256x128xf32> to vector<256x128xf32>
    %95 = vector.shape_cast %69 : vector<256x128xf32> to vector<1x256x128xf32>
    tpu.vector_store %arg8[%c2_38, %c0_39, %c0_40], %95 {strides = array<i32>} : memref<4x256x128xf32, #tpu.memory_space<vmem>>, vector<1x256x128xf32>,
    %96 = vector.extract_strided_slice %5 {offsets = [0, 384], sizes = [256, 128], strides = [1, 1]} : vector<256x1536xf32> to vector<256x128xf32>
    %97 = vector.extract_strided_slice %5 {offsets = [0, 896], sizes = [256, 128], strides = [1, 1]} : vector<256x1536xf32> to vector<256x128xf32>
    %98 = vector.extract_strided_slice %5 {offsets = [0, 1408], sizes = [256, 128], strides = [1, 1]} : vector<256x1536xf32> to vector<256x128xf32>
    %99 = vector.extract_strided_slice %96 {offsets = [0, 4], sizes = [256, 4], strides = [1, 1]} : vector<256x128xf32> to vector<256x4xf32>
    %cst_41 = arith.constant 0.000000e+00 : f32
    %100 = vector.broadcast %cst_41 : f32 to vector<256x4xf32>
    %101 = arith.subf %100, %99 : vector<256x4xf32>
    %102 = vector.extract_strided_slice %96 {offsets = [0, 0], sizes = [256, 4], strides = [1, 1]} : vector<256x128xf32> to vector<256x4xf32>
    %103 = tpu.concatenate %101, %102, %8 in 1 : vector<256x4xf32>, vector<256x4xf32>, vector<256x120xf32> -> vector<256x128xf32>
    %104 = arith.mulf %96, %6 : vector<256x128xf32>
    %105 = arith.mulf %103, %7 : vector<256x128xf32>
    %106 = arith.addf %104, %105 : vector<256x128xf32>
    %c3 = arith.constant 3 : index
    %c0_42 = arith.constant 0 : index
    %c0_43 = arith.constant 0 : index
    %107 = vector.load %arg6[%c3, %c0_42, %c0_43] : memref<4x256x128xf32, #tpu.memory_space<vmem>>, vector<1x256x128xf32>
    %108 = vector.shape_cast %107 : vector<1x256x128xf32> to vector<256x128xf32>
    %109 = vector.shape_cast %106 : vector<256x128xf32> to vector<1x256x128xf32>
    tpu.vector_store %arg6[%c3, %c0_42, %c0_43], %109 {strides = array<i32>} : memref<4x256x128xf32, #tpu.memory_space<vmem>>, vector<1x256x128xf32>,
    %110 = vector.extract_strided_slice %97 {offsets = [0, 4], sizes = [256, 4], strides = [1, 1]} : vector<256x128xf32> to vector<256x4xf32>
    %cst_44 = arith.constant 0.000000e+00 : f32
    %111 = vector.broadcast %cst_44 : f32 to vector<256x4xf32>
    %112 = arith.subf %111, %110 : vector<256x4xf32>
    %113 = vector.extract_strided_slice %97 {offsets = [0, 0], sizes = [256, 4], strides = [1, 1]} : vector<256x128xf32> to vector<256x4xf32>
    %114 = tpu.concatenate %112, %113, %8 in 1 : vector<256x4xf32>, vector<256x4xf32>, vector<256x120xf32> -> vector<256x128xf32>
    %115 = arith.mulf %97, %6 : vector<256x128xf32>
    %116 = arith.mulf %114, %7 : vector<256x128xf32>
    %117 = arith.addf %115, %116 : vector<256x128xf32>
    %118 = tpu.transpose %117, [1, 0] : vector<256x128xf32> -> vector<128x256xf32>
    %c3_45 = arith.constant 3 : index
    %c0_46 = arith.constant 0 : index
    %c0_47 = arith.constant 0 : index
    %119 = vector.load %arg7[%c3_45, %c0_46, %c0_47] : memref<4x128x256xf32, #tpu.memory_space<vmem>>, vector<1x128x256xf32>
    %120 = vector.shape_cast %119 : vector<1x128x256xf32> to vector<128x256xf32>
    %121 = vector.shape_cast %118 : vector<128x256xf32> to vector<1x128x256xf32>
    tpu.vector_store %arg7[%c3_45, %c0_46, %c0_47], %121 {strides = array<i32>} : memref<4x128x256xf32, #tpu.memory_space<vmem>>, vector<1x128x256xf32>,
    %c3_48 = arith.constant 3 : index
    %c0_49 = arith.constant 0 : index
    %c0_50 = arith.constant 0 : index
    %122 = vector.load %arg8[%c3_48, %c0_49, %c0_50] : memref<4x256x128xf32, #tpu.memory_space<vmem>>, vector<1x256x128xf32>
    %123 = vector.shape_cast %122 : vector<1x256x128xf32> to vector<256x128xf32>
    %124 = vector.shape_cast %98 : vector<256x128xf32> to vector<1x256x128xf32>
    tpu.vector_store %arg8[%c3_48, %c0_49, %c0_50], %124 {strides = array<i32>} : memref<4x256x128xf32, #tpu.memory_space<vmem>>, vector<1x256x128xf32>,
    return
  }
  func.func @transform_0(%arg0: i32) -> (i32, i32) {
    %c0_i32 = arith.constant 0 : i32
    %c0_i32_0 = arith.constant 0 : i32
    return %arg0, %c0_i32 : i32, i32
  }
  func.func @transform_1(%arg0: i32) -> (i32, i32) {
    %c0_i32 = arith.constant 0 : i32
    %c0_i32_0 = arith.constant 0 : i32
    %c0_i32_1 = arith.constant 0 : i32
    return %c0_i32, %c0_i32_0 : i32, i32
  }
  func.func @transform_2(%arg0: i32) -> (i32, i32) {
    %c0_i32 = arith.constant 0 : i32
    %c0_i32_0 = arith.constant 0 : i32
    %c0_i32_1 = arith.constant 0 : i32
    return %c0_i32, %c0_i32_0 : i32, i32
  }
  func.func @transform_3(%arg0: i32) -> (i32, i32) {
    %c0_i32 = arith.constant 0 : i32
    %c0_i32_0 = arith.constant 0 : i32
    return %arg0, %c0_i32 : i32, i32
  }
  func.func @transform_4(%arg0: i32) -> (i32, i32) {
    %c0_i32 = arith.constant 0 : i32
    %c0_i32_0 = arith.constant 0 : i32
    return %arg0, %c0_i32 : i32, i32
  }
  func.func @transform_5(%arg0: i32) -> (i32, i32, i32) {
    %c0_i32 = arith.constant 0 : i32
    %c0_i32_0 = arith.constant 0 : i32
    %c0_i32_1 = arith.constant 0 : i32
    return %c0_i32, %arg0, %c0_i32_0 : i32, i32, i32
  }
  func.func @transform_6(%arg0: i32) -> (i32, i32, i32) {
    %c0_i32 = arith.constant 0 : i32
    %c0_i32_0 = arith.constant 0 : i32
    %c0_i32_1 = arith.constant 0 : i32
    return %c0_i32, %c0_i32_0, %arg0 : i32, i32, i32
  }
  func.func @transform_7(%arg0: i32) -> (i32, i32, i32) {
    %c0_i32 = arith.constant 0 : i32
    %c0_i32_0 = arith.constant 0 : i32
    %c0_i32_1 = arith.constant 0 : i32
    return %c0_i32, %arg0, %c0_i32_0 : i32, i32, i32
  }
}

module attributes {stable_mosaic.version = 11 : i64} {
  func.func @proj_kernel(%arg0: i32, %arg1: memref<256x512xf32, #tpu.memory_space<vmem>>, %arg2: memref<512x32xf32, #tpu.memory_space<vmem>>, %arg3: memref<1x32xf32, #tpu.memory_space<vmem>>, %arg4: memref<256x32xf32, #tpu.memory_space<vmem>>) attributes {dimension_semantics = [#tpu.dimension_semantics<parallel>], iteration_bounds = array<i64: 1>, scalar_prefetch = 0 : i64, scratch_operands = 0 : i64, tpu.core_type = #tpu.core_type<tc>, window_params = [{transform_indices = @transform_0, window_bounds = array<i64: 256, 512>}, {pipeline_mode = #tpu.pipeline_mode<synchronous>, transform_indices = @transform_1, window_bounds = array<i64: 512, 32>}, {pipeline_mode = #tpu.pipeline_mode<synchronous>, transform_indices = @transform_2, window_bounds = array<i64: 1, 32>}, {transform_indices = @transform_3, window_bounds = array<i64: 256, 32>}]} {
    %c0 = arith.constant 0 : index
    %c0_0 = arith.constant 0 : index
    %0 = vector.load %arg1[%c0, %c0_0] : memref<256x512xf32, #tpu.memory_space<vmem>>, vector<256x512xf32>
    %c0_1 = arith.constant 0 : index
    %c0_2 = arith.constant 0 : index
    %1 = vector.load %arg2[%c0_1, %c0_2] : memref<512x32xf32, #tpu.memory_space<vmem>>, vector<512x32xf32>
    %cst = arith.constant dense<0.000000e+00> : vector<256x32xf32>
    %2 = tpu.matmul %0, %1, %cst {dimension_numbers = #tpu.dot_dimension_numbers<[1], [0], [0], [1], [0, 0, 1, 1], [], []>} : vector<256x512xf32>, vector<512x32xf32>, vector<256x32xf32> -> vector<256x32xf32>
    %c0_3 = arith.constant 0 : index
    %c0_4 = arith.constant 0 : index
    %3 = vector.load %arg3[%c0_3, %c0_4] : memref<1x32xf32, #tpu.memory_space<vmem>>, vector<1x32xf32>
    %4 = vector.broadcast %3 : vector<1x32xf32> to vector<256x32xf32>
    %5 = arith.addf %2, %4 : vector<256x32xf32>
    %c0_5 = arith.constant 0 : index
    %c0_6 = arith.constant 0 : index
    %6 = vector.load %arg4[%c0_5, %c0_6] : memref<256x32xf32, #tpu.memory_space<vmem>>, vector<256x32xf32>
    tpu.vector_store %arg4[%c0_5, %c0_6], %5 {strides = array<i32>} : memref<256x32xf32, #tpu.memory_space<vmem>>, vector<256x32xf32>,
    return
  }
  func.func @transform_0(%arg0: i32) -> (i32, i32) {
    %c0_i32 = arith.constant 0 : i32
    %c0_i32_0 = arith.constant 0 : i32
    return %arg0, %c0_i32 : i32, i32
  }
  func.func @transform_1(%arg0: i32) -> (i32, i32) {
    %c0_i32 = arith.constant 0 : i32
    %c0_i32_0 = arith.constant 0 : i32
    %c0_i32_1 = arith.constant 0 : i32
    return %c0_i32, %c0_i32_0 : i32, i32
  }
  func.func @transform_2(%arg0: i32) -> (i32, i32) {
    %c0_i32 = arith.constant 0 : i32
    %c0_i32_0 = arith.constant 0 : i32
    %c0_i32_1 = arith.constant 0 : i32
    return %c0_i32, %c0_i32_0 : i32, i32
  }
  func.func @transform_3(%arg0: i32) -> (i32, i32) {
    %c0_i32 = arith.constant 0 : i32
    %c0_i32_0 = arith.constant 0 : i32
    return %arg0, %c0_i32 : i32, i32
  }
}

module attributes {stable_mosaic.version = 11 : i64} {
  func.func @flash_attn_kernel(%arg0: i32, %arg1: i32, %arg2: memref<1x256x128xf32, #tpu.memory_space<vmem>>, %arg3: memref<1x128x256xf32, #tpu.memory_space<vmem>>, %arg4: memref<1x256x128xf32, #tpu.memory_space<vmem>>, %arg5: memref<256x128xf32, #tpu.memory_space<vmem>>) attributes {dimension_semantics = [#tpu.dimension_semantics<parallel>, #tpu.dimension_semantics<arbitrary>], iteration_bounds = array<i64: 4, 1>, scalar_prefetch = 0 : i64, scratch_operands = 0 : i64, tpu.core_type = #tpu.core_type<tc>, window_params = [{transform_indices = @transform_0, window_bounds = array<i64: 1, 256, 128>}, {transform_indices = @transform_1, window_bounds = array<i64: 1, 128, 256>}, {transform_indices = @transform_2, window_bounds = array<i64: 1, 256, 128>}, {transform_indices = @transform_3, window_bounds = array<i64: 256, 128>}]} {
    %c0 = arith.constant 0 : index
    %c0_0 = arith.constant 0 : index
    %c0_1 = arith.constant 0 : index
    %0 = vector.load %arg2[%c0, %c0_0, %c0_1] : memref<1x256x128xf32, #tpu.memory_space<vmem>>, vector<1x256x128xf32>
    %1 = vector.shape_cast %0 : vector<1x256x128xf32> to vector<256x128xf32>
    %cst = arith.constant -1.000000e+30 : f32
    %2 = vector.broadcast %cst : f32 to vector<256x1xf32>
    %cst_2 = arith.constant 0.000000e+00 : f32
    %3 = vector.broadcast %cst_2 : f32 to vector<256x1xf32>
    %cst_3 = arith.constant 0.000000e+00 : f32
    %4 = vector.broadcast %cst_3 : f32 to vector<256x128xf32>
    %c0_4 = arith.constant 0 : index
    %c0_5 = arith.constant 0 : index
    %c0_6 = arith.constant 0 : index
    %5 = vector.load %arg3[%c0_4, %c0_5, %c0_6] : memref<1x128x256xf32, #tpu.memory_space<vmem>>, vector<1x128x256xf32>
    %6 = vector.shape_cast %5 : vector<1x128x256xf32> to vector<128x256xf32>
    %c0_7 = arith.constant 0 : index
    %c0_8 = arith.constant 0 : index
    %c0_9 = arith.constant 0 : index
    %7 = vector.load %arg4[%c0_7, %c0_8, %c0_9] : memref<1x256x128xf32, #tpu.memory_space<vmem>>, vector<1x256x128xf32>
    %8 = vector.shape_cast %7 : vector<1x256x128xf32> to vector<256x128xf32>
    %cst_10 = arith.constant dense<0.000000e+00> : vector<256x256xf32>
    %9 = tpu.matmul %1, %6, %cst_10 {dimension_numbers = #tpu.dot_dimension_numbers<[1], [0], [0], [1], [0, 0, 1, 1], [], []>} : vector<256x128xf32>, vector<128x256xf32>, vector<256x256xf32> -> vector<256x256xf32>
    %10 = tpu.iota {dimensions = array<i32: 1>} : vector<256x256xi32>
    %c0_i32 = arith.constant 0 : i32
    %11 = vector.broadcast %c0_i32 : i32 to vector<256x256xi32>
    %12 = arith.addi %11, %10 : vector<256x256xi32>
    %c200_i32 = arith.constant 200 : i32
    %13 = vector.broadcast %c200_i32 : i32 to vector<256x256xi32>
    %14 = arith.cmpi slt, %12, %13 : vector<256x256xi32>
    %cst_11 = arith.constant -1.000000e+30 : f32
    %15 = vector.broadcast %cst_11 : f32 to vector<256x256xf32>
    %16 = arith.select %14, %9, %15 : vector<256x256xi1>, vector<256x256xf32>
    %cst_12 = arith.constant dense<0xFF800000> : vector<256xf32>
    %17 = vector.multi_reduction <maximumf>, %16, %cst_12 [1] : vector<256x256xf32> to vector<256xf32>
    %18 = vector.shape_cast %17 : vector<256xf32> to vector<256x1xf32>
    %19 = arith.maximumf %2, %18 : vector<256x1xf32>
    %20 = arith.subf %2, %19 : vector<256x1xf32>
    %21 = math.exp %20 : vector<256x1xf32>
    %22 = vector.broadcast %19 : vector<256x1xf32> to vector<256x256xf32>
    %23 = arith.subf %16, %22 : vector<256x256xf32>
    %24 = math.exp %23 : vector<256x256xf32>
    %25 = arith.mulf %21, %3 : vector<256x1xf32>
    %cst_13 = arith.constant dense<0.000000e+00> : vector<256xf32>
    %26 = vector.multi_reduction <add>, %24, %cst_13 [1] : vector<256x256xf32> to vector<256xf32>
    %27 = vector.shape_cast %26 : vector<256xf32> to vector<256x1xf32>
    %28 = arith.addf %25, %27 : vector<256x1xf32>
    %29 = vector.broadcast %21 : vector<256x1xf32> to vector<256x128xf32>
    %30 = arith.mulf %29, %4 : vector<256x128xf32>
    %cst_14 = arith.constant dense<0.000000e+00> : vector<256x128xf32>
    %31 = tpu.matmul %24, %8, %cst_14 {dimension_numbers = #tpu.dot_dimension_numbers<[1], [0], [0], [1], [0, 0, 1, 1], [], []>} : vector<256x256xf32>, vector<256x128xf32>, vector<256x128xf32> -> vector<256x128xf32>
    %32 = arith.addf %30, %31 : vector<256x128xf32>
    %33 = vector.broadcast %28 : vector<256x1xf32> to vector<256x128xf32>
    %34 = arith.divf %32, %33 : vector<256x128xf32>
    %c0_15 = arith.constant 0 : index
    %c0_16 = arith.constant 0 : index
    %35 = vector.load %arg5[%c0_15, %c0_16] : memref<256x128xf32, #tpu.memory_space<vmem>>, vector<256x128xf32>
    tpu.vector_store %arg5[%c0_15, %c0_16], %34 {strides = array<i32>} : memref<256x128xf32, #tpu.memory_space<vmem>>, vector<256x128xf32>,
    return
  }
  func.func @transform_0(%arg0: i32, %arg1: i32) -> (i32, i32, i32) {
    %c0_i32 = arith.constant 0 : i32
    %c0_i32_0 = arith.constant 0 : i32
    return %arg0, %arg1, %c0_i32 : i32, i32, i32
  }
  func.func @transform_1(%arg0: i32, %arg1: i32) -> (i32, i32, i32) {
    %c0_i32 = arith.constant 0 : i32
    %c0_i32_0 = arith.constant 0 : i32
    %c0_i32_1 = arith.constant 0 : i32
    return %arg0, %c0_i32, %c0_i32_0 : i32, i32, i32
  }
  func.func @transform_2(%arg0: i32, %arg1: i32) -> (i32, i32, i32) {
    %c0_i32 = arith.constant 0 : i32
    %c0_i32_0 = arith.constant 0 : i32
    %c0_i32_1 = arith.constant 0 : i32
    return %arg0, %c0_i32, %c0_i32_0 : i32, i32, i32
  }
  func.func @transform_3(%arg0: i32, %arg1: i32) -> (i32, i32) {
    %c0_i32 = arith.constant 0 : i32
    return %arg1, %arg0 : i32, i32
  }
}

</mosaic_0001>

<llo_original>
// kernel: tile.14
$region0: #{tile.14}
  %s0 = inlined_call_operand.vmem [shape: f32[200,2,4], index: 0, kind: input, shape index: {}]
  %s1 = inlined_call_operand.vmem [shape: f32[200,8], index: 1, kind: output, shape index: {}]
  $region1: #{tile.14} parent=0
    #allocation0 [shape = 'u8[16384]{0}', space=vmem, size = 0x4000, scoped, tag = 'scoped mem for input reshape']
    %s3 = ssub.s32 16, 1
    %s4 = scalar_lea.vmem %s0, 12
    %v5 = vld [vmem:[%s4] sm:%s3]
    %s6 = scalar_lea.vmem [#allocation0], 24
    %7 = vst [vmem:[%s6] sm:%s3] %v5
    %s8 = scalar_lea.vmem %s0, 8
    %v9 = vld [vmem:[%s8] sm:%s3]
    %s10 = scalar_lea.vmem [#allocation0], 16
    %11 = vst [vmem:[%s10] sm:%s3] %v9
    %s12 = scalar_lea.vmem %s0, 4
    %v13 = vld [vmem:[%s12] sm:%s3]
    %s14 = scalar_lea.vmem [#allocation0], 8
    %15 = vst [vmem:[%s14] sm:%s3] %v13
    %v16 = vld [vmem:[%s0] sm:%s3]
    %17 = vst [vmem:[#allocation0] sm:%s3] %v16
    %s18 = scalar_lea.vmem [#allocation0], 8
    %v19 = vld [vmem:[%s18] sm:$0xf]
    %vm20 = vcmask 588800
    %s21 = scalar_lea.vmem %s1, 8
    %22 = vst.msk [vmem:[%s21] sm:$0xf] %vm20, %v19
    %s23 = scalar_lea.vmem [#allocation0], 24
    %v24 = vld [vmem:[%s23] sm:$0xf]
    %vm25 = vcmask 588800
    %s26 = scalar_lea.vmem %s1, 12
    %27 = vst.msk [vmem:[%s26] sm:$0xf] %vm25, %v24
    %v28 = vld [vmem:[#allocation0] sm:$0xf]
    %29 = vst [vmem:[%s1] sm:$0xf] %v28
    %s30 = scalar_lea.vmem [#allocation0], 16
    %v31 = vld [vmem:[%s30] sm:$0xf]
    %s32 = scalar_lea.vmem %s1, 4
    %33 = vst [vmem:[%s32] sm:$0xf] %v31

// kernel: vision_attention_forward.4
$region0: #{vision_attention_forward.4}
  #allocation0 [shape = 'u32[]', space=smem, size = 0x4, offset = 0x4, fixed_abs, tag = 'smem constant byte address 0x4 - core index']
  #allocation1 [shape = 'u32[72,128]{1,0:T(1,128)}', space=vmem, size = 0x9000, scoped, tag = 'internal scratch']
  %s0 = inlined_call_operand.vmem [shape: f32[4,256,128], index: 0, kind: input, shape index: {}]
  %s1 = inlined_call_operand.vmem [shape: f32[4,128,256], index: 1, kind: input, shape index: {}]
  %s2 = inlined_call_operand.vmem [shape: f32[4,256,128], index: 2, kind: input, shape index: {}]
  %s3 = inlined_call_operand.vmem [shape: f32[256,512], index: 3, kind: output, shape index: {}]
  %s4 = sld [smem:[#allocation0]]
  $region79: #{vision_attention_forward.4} parent=0
    _
  %s6 = ssub.s32 1, %s4
  %s7 = scalar_select 0, %s6, %s4
  $region1: #{vision_attention_forward.4} parent=0
    #allocation2 [shape = 'u8[262144]{0}', space=vmem, size = 0x40000, scoped, tag = 'output window, operand 0']
    loop: start=0, step=1, limit=6
    $region2: #{vision_attention_forward.4} parent=1 // loop_pre_header
      _
    $region3: #{vision_attention_forward.4} parent=1 // loop_header
      %s9 = sphi 0, %s13
      %p10 = scmp.ge.s32.totalorder %s9, 6
      %s16 = sphi 0, %s28
      %s17 = sphi 0, %s24
      %s18 = sphi 0, %s16
      %s19 = sphi 0, %s17
      %s20 = sphi 0, %s18
      %s21 = sphi 0, %s19
      %s33 = sphi 0, %s35
      %s36 = sphi 0, %s33
      %s37 = sphi 0, %s36
      %s53 = sphi 0, %s37
      %s59 = sphi 0, %s61
      %s62 = sphi 0, %s59
      %s63 = sphi 0, %s62
      %s79 = sphi 0, %s63
      %s85 = sphi 0, %s87
      %s88 = sphi 0, %s85
      %s89 = sphi 0, %s88
      %s105 = sphi 0, %s89
      %s113 = sphi 0, %s115
      %s116 = sphi 0, %s113
      %s117 = sphi 0, %s116
      %s133 = sphi 0, %s117
    $region4: #{vision_attention_forward.4} parent=1 // loop_header_branch
      %12 = sbr.rel (%p10) target = $region8
    $region5: #{vision_attention_forward.4} parent=1 // loop_body
      %s14 = ssub.s32 %s9, 1
      %s15 = ssub.s32 %s9, 2
      %s22 = sadd.s32 1, %s17
      %p23 = scmp.ge.s32.totalorder %s22, 1
      %s24 = scalar_select %p23, 0, %s22
      %s25 = sadd.s32 1, %s16
      %s26 = scalar_select %p23, %s25, %s16
      %p27 = scmp.ge.s32.totalorder %s26, 4
      %s28 = scalar_select %p27, 0, %s26
      %s29 = ssub.s32 %s16, %s28
      %s30 = ssub.s32 %s17, %s24
      %s31 = sor.u32 %s29, %s30
      %p32 = scmp.eq.s32.totalorder %s31, 0
      %s34 = sadd.s32 %s33, 1
      %s35 = scalar_select %p32, %s33, %s34
      %p38 = pneg %p32
      %p39 = scmp.eq.s32.totalorder %s9, 3
      %p40 = por %p38, %p39
      %p41 = scmp.ne.s32.totalorder %s33, %s36
      %p42 = scmp.eq.s32.totalorder %s9, 0
      %p43 = por %p41, %p42
      %p44 = scmp.ne.s32.totalorder %s33, %s36
      %p45 = scmp.eq.s32.totalorder %s14, 3
      %p46 = por %p44, %p45
      %p47 = scmp.ne.s32.totalorder %s36, %s37
      %p48 = scmp.eq.s32.totalorder %s14, 0
      %p49 = por %p47, %p48
      %p50 = scmp.ne.s32.totalorder %s36, %s37
      %p51 = scmp.eq.s32.totalorder %s15, 3
      %p52 = por %p50, %p51
      %p54 = scmp.ne.s32.totalorder %s37, %s53
      %p55 = scmp.eq.s32.totalorder %s15, 0
      %p56 = por %p54, %p55
      %s57 = ssub.s32 %s16, %s28
      %p58 = scmp.eq.s32.totalorder %s57, 0
      %s60 = sadd.s32 %s59, 1
      %s61 = scalar_select %p58, %s59, %s60
      %p64 = pneg %p58
      %p65 = scmp.eq.s32.totalorder %s9, 3
      %p66 = por %p64, %p65
      %p67 = scmp.ne.s32.totalorder %s59, %s62
      %p68 = scmp.eq.s32.totalorder %s9, 0
      %p69 = por %p67, %p68
      %p70 = scmp.ne.s32.totalorder %s59, %s62
      %p71 = scmp.eq.s32.totalorder %s14, 3
      %p72 = por %p70, %p71
      %p73 = scmp.ne.s32.totalorder %s62, %s63
      %p74 = scmp.eq.s32.totalorder %s14, 0
      %p75 = por %p73, %p74
      %p76 = scmp.ne.s32.totalorder %s62, %s63
      %p77 = scmp.eq.s32.totalorder %s15, 3
      %p78 = por %p76, %p77
      %p80 = scmp.ne.s32.totalorder %s63, %s79
      %p81 = scmp.eq.s32.totalorder %s15, 0
      %p82 = por %p80, %p81
      %s83 = ssub.s32 %s16, %s28
      %p84 = scmp.eq.s32.totalorder %s83, 0
      %s86 = sadd.s32 %s85, 1
      %s87 = scalar_select %p84, %s85, %s86
      %p90 = pneg %p84
      %p91 = scmp.eq.s32.totalorder %s9, 3
      %p92 = por %p90, %p91
      %p93 = scmp.ne.s32.totalorder %s85, %s88
      %p94 = scmp.eq.s32.totalorder %s9, 0
      %p95 = por %p93, %p94
      %p96 = scmp.ne.s32.totalorder %s85, %s88
      %p97 = scmp.eq.s32.totalorder %s14, 3
      %p98 = por %p96, %p97
      %p99 = scmp.ne.s32.totalorder %s88, %s89
      %p100 = scmp.eq.s32.totalorder %s14, 0
      %p101 = por %p99, %p100
      %p102 = scmp.ne.s32.totalorder %s88, %s89
      %p103 = scmp.eq.s32.totalorder %s15, 3
      %p104 = por %p102, %p103
      %p106 = scmp.ne.s32.totalorder %s89, %s105
      %p107 = scmp.eq.s32.totalorder %s15, 0
      %p108 = por %p106, %p107
      %s109 = ssub.s32 %s17, %s24
      %s110 = ssub.s32 %s16, %s28
      %s111 = sor.u32 %s109, %s110
      %p112 = scmp.eq.s32.totalorder %s111, 0
      %s114 = sadd.s32 %s113, 1
      %s115 = scalar_select %p112, %s113, %s114
      %p118 = pneg %p112
      %p119 = scmp.eq.s32.totalorder %s9, 3
      %p120 = por %p118, %p119
      %p121 = scmp.ne.s32.totalorder %s113, %s116
      %p122 = scmp.eq.s32.totalorder %s9, 0
      %p123 = por %p121, %p122
      %p124 = scmp.ne.s32.totalorder %s113, %s116
      %p125 = scmp.eq.s32.totalorder %s14, 3
      %p126 = por %p124, %p125
      %p127 = scmp.ne.s32.totalorder %s116, %s117
      %p128 = scmp.eq.s32.totalorder %s14, 0
      %p129 = por %p127, %p128
      %p130 = scmp.ne.s32.totalorder %s116, %s117
      %p131 = scmp.eq.s32.totalorder %s15, 3
      %p132 = por %p130, %p131
      %p134 = scmp.ne.s32.totalorder %s117, %s133
      %p135 = scmp.eq.s32.totalorder %s15, 0
      %p136 = por %p134, %p135
      %p137 = scmp.le.s32.totalorder 1, %s9
      %p138 = scmp.lt.s32.totalorder %s9, 5
      %p139 = pnand %p137, %p138
      %p140 = pneg %p139
      // Predicated region
      $region9: #{vision_attention_forward.4} parent=5 // pred_check
        _
      $region10: #{vision_attention_forward.4} parent=5 // pred_check_branch
        %142 = sbr.rel (%p139) target = $region12
      $region11: #{vision_attention_forward.4} parent=5 // pred_region
        %s143 = ssub.s32 %s9, 1
      $region12: #{vision_attention_forward.4} parent=5 // pred_fallthru
        _
      %p144 = scmp.lt.s32.totalorder %s9, 4
      // Predicated region
      $region13: #{vision_attention_forward.4} parent=5 // pred_check
        %p145 = pneg %p144
      $region14: #{vision_attention_forward.4} parent=5 // pred_check_branch
        %147 = sbr.rel (%p145) target = $region16
      $region15: #{vision_attention_forward.4} parent=5 // pred_region
        // Predicated region
        $region17: #{vision_attention_forward.4} parent=15 // pred_check
          %p148 = pneg %p43
        $region18: #{vision_attention_forward.4} parent=15 // pred_check_branch
          %150 = sbr.rel (%p148) target = $region20
        $region19: #{vision_attention_forward.4} parent=15 // pred_region
          %s151 = smul.u32 32, %s17
          %p152 = scmp.lt.s32.totalorder %s16, 3
          %s153 = scalar_select %p152, %s16, 3
          %p154 = scmp.lt.s32.totalorder %s151, 31
          %s155 = scalar_select %p154, %s151, 31
          %s156 = smul.addr %s153, 32
          %s157 = sadd.s32 %s155, %s156
          %s158 = smul.addr %s157, 8
          %s159 = scalar_lea.vmem %s0, %s158
          %s160 = smul.u32 32, %s17
        $region20: #{vision_attention_forward.4} parent=15 // pred_fallthru
          _
        // Predicated region
        $region21: #{vision_attention_forward.4} parent=15 // pred_check
          %p161 = pneg %p69
        $region22: #{vision_attention_forward.4} parent=15 // pred_check_branch
          %163 = sbr.rel (%p161) target = $region24
        $region23: #{vision_attention_forward.4} parent=15 // pred_region
          %p164 = scmp.lt.s32.totalorder %s16, 3
          %s165 = scalar_select %p164, %s16, 3
          %s166 = smul.addr %s165, 32
          %s167 = smul.addr %s166, 8
          %s168 = scalar_lea.vmem %s1, %s167
        $region24: #{vision_attention_forward.4} parent=15 // pred_fallthru
          _
        // Predicated region
        $region25: #{vision_attention_forward.4} parent=15 // pred_check
          %p169 = pneg %p95
        $region26: #{vision_attention_forward.4} parent=15 // pred_check_branch
          %171 = sbr.rel (%p169) target = $region28
        $region27: #{vision_attention_forward.4} parent=15 // pred_region
          %p172 = scmp.lt.s32.totalorder %s16, 3
          %s173 = scalar_select %p172, %s16, 3
          %s174 = smul.addr %s173, 32
          %s175 = smul.addr %s174, 8
          %s176 = scalar_lea.vmem %s2, %s175
        $region28: #{vision_attention_forward.4} parent=15 // pred_fallthru
          _
      $region16: #{vision_attention_forward.4} parent=5 // pred_fallthru
        _
      %p177 = scmp.le.s32.totalorder 1, %s9
      %p178 = scmp.lt.s32.totalorder %s9, 5
      %p179 = pnand %p177, %p178
      %p180 = pneg %p179
      // Predicated region
      $region29: #{vision_attention_forward.4} parent=5 // pred_check
        _
      $region30: #{vision_attention_forward.4} parent=5 // pred_check_branch
        %182 = sbr.rel (%p179) target = $region32
      $region31: #{vision_attention_forward.4} parent=5 // pred_region
        %s183 = ssub.s32 %s9, 1
        %s184 = smul.u32 32, %s19
        %p185 = scmp.lt.s32.totalorder %s18, 3
        %s186 = scalar_select %p185, %s18, 3
        %p187 = scmp.lt.s32.totalorder %s184, 31
        %s188 = scalar_select %p187, %s184, 31
        %s189 = smul.addr %s186, 32
        %s190 = sadd.s32 %s188, %s189
        %s191 = smul.addr %s190, 8
        %s192 = scalar_lea.vmem %s0, %s191
        %p193 = pneg %p49
        %p194 = pneg %p46
        %p195 = scmp.lt.s32.totalorder %s18, 3
        %s196 = scalar_select %p195, %s18, 3
        %s197 = smul.addr %s196, 32
        %s198 = smul.addr %s197, 8
        %s199 = scalar_lea.vmem %s1, %s198
        %p200 = pneg %p75
        %p201 = pneg %p72
        %p202 = scmp.lt.s32.totalorder %s18, 3
        %s203 = scalar_select %p202, %s18, 3
        %s204 = smul.addr %s203, 32
        %s205 = smul.addr %s204, 8
        %s206 = scalar_lea.vmem %s2, %s205
        %p207 = pneg %p101
        %p208 = pneg %p98
        %p209 = pneg %p129
        %p210 = pneg %p126
        %s211 = sand.u32 %s116, 1
        %s212 = sand.u32 %s116, 1
        %s213 = smul.addr %s212, 256
        %s214 = scalar_lea.vmem [#allocation2], %s213
        %s215 = smul.u32 32, %s19
        %p216 = scmp.lt.s32.totalorder %s18, 3
        %s217 = scalar_select %p216, %s18, 3
        %p218 = scmp.lt.s32.totalorder %s215, 31
        %s219 = scalar_select %p218, %s215, 31
        %s220 = smul.addr %s217, 32
        %s221 = sadd.s32 %s219, %s220
        %s222 = smul.addr %s221, 8
        %s223 = scalar_lea.vmem %s0, %s222
        %s224 = smul.u32 32, %s19
        %p225 = scmp.lt.s32.totalorder %s18, 3
        %s226 = scalar_select %p225, %s18, 3
        %s227 = smul.addr %s226, 32
        %s228 = smul.addr %s227, 8
        %s229 = scalar_lea.vmem %s1, %s228
        %p230 = scmp.lt.s32.totalorder %s18, 3
        %s231 = scalar_select %p230, %s18, 3
        %s232 = smul.addr %s231, 32
        %s233 = smul.addr %s232, 8
        %s234 = scalar_lea.vmem %s2, %s233
        %s235 = smul.u32 32, %s19
        %v236 = vld [vmem:[%s223] sm:$0xff]
        %v237 = vld [vmem:[%s223 + $0x8] sm:$0xff]
        %v238 = vld [vmem:[%s223 + $0x10] sm:$0xff]
        %v239 = vld [vmem:[%s223 + $0x18] sm:$0xff]
        %v240 = vld [vmem:[%s223 + $0x20] sm:$0xff]
        %v241 = vld [vmem:[%s223 + $0x28] sm:$0xff]
        %v242 = vld [vmem:[%s223 + $0x30] sm:$0xff]
        %v243 = vld [vmem:[%s223 + $0x38] sm:$0xff]
        %v244 = vld [vmem:[%s223 + $0x40] sm:$0xff]
        %v245 = vld [vmem:[%s223 + $0x48] sm:$0xff]
        %v246 = vld [vmem:[%s223 + $0x50] sm:$0xff]
        %v247 = vld [vmem:[%s223 + $0x58] sm:$0xff]
        %v248 = vld [vmem:[%s223 + $0x60] sm:$0xff]
        %v249 = vld [vmem:[%s223 + $0x68] sm:$0xff]
        %v250 = vld [vmem:[%s223 + $0x70] sm:$0xff]
        %v251 = vld [vmem:[%s223 + $0x78] sm:$0xff]
        %v252 = vld [vmem:[%s223 + $0x80] sm:$0xff]
        %v253 = vld [vmem:[%s223 + $0x88] sm:$0xff]
        %v254 = vld [vmem:[%s223 + $0x90] sm:$0xff]
        %v255 = vld [vmem:[%s223 + $0x98] sm:$0xff]
        %v256 = vld [vmem:[%s223 + $0xa0] sm:$0xff]
        %v257 = vld [vmem:[%s223 + $0xa8] sm:$0xff]
        %v258 = vld [vmem:[%s223 + $0xb0] sm:$0xff]
        %v259 = vld [vmem:[%s223 + $0xb8] sm:$0xff]
        %v260 = vld [vmem:[%s223 + $0xc0] sm:$0xff]
        %v261 = vld [vmem:[%s223 + $0xc8] sm:$0xff]
        %v262 = vld [vmem:[%s223 + $0xd0] sm:$0xff]
        %v263 = vld [vmem:[%s223 + $0xd8] sm:$0xff]
        %v264 = vld [vmem:[%s223 + $0xe0] sm:$0xff]
        %v265 = vld [vmem:[%s223 + $0xe8] sm:$0xff]
        %v266 = vld [vmem:[%s223 + $0xf0] sm:$0xff]
        %v267 = vld [vmem:[%s223 + $0xf8] sm:$0xff]
        %v268 = vld [vmem:[%s229] sm:$0xff]
        %v269 = vld [vmem:[%s229 + $0x8] sm:$0xff]
        %v270 = vld [vmem:[%s229 + $0x10] sm:$0xff]
        %v271 = vld [vmem:[%s229 + $0x18] sm:$0xff]
        %v272 = vld [vmem:[%s229 + $0x20] sm:$0xff]
        %v273 = vld [vmem:[%s229 + $0x28] sm:$0xff]
        %v274 = vld [vmem:[%s229 + $0x30] sm:$0xff]
        %v275 = vld [vmem:[%s229 + $0x38] sm:$0xff]
        %v276 = vld [vmem:[%s229 + $0x40] sm:$0xff]
        %v277 = vld [vmem:[%s229 + $0x48] sm:$0xff]
        %v278 = vld [vmem:[%s229 + $0x50] sm:$0xff]
        %v279 = vld [vmem:[%s229 + $0x58] sm:$0xff]
        %v280 = vld [vmem:[%s229 + $0x60] sm:$0xff]
        %v281 = vld [vmem:[%s229 + $0x68] sm:$0xff]
        %v282 = vld [vmem:[%s229 + $0x70] sm:$0xff]
        %v283 = vld [vmem:[%s229 + $0x78] sm:$0xff]
        %v284 = vld [vmem:[%s229 + $0x80] sm:$0xff]
        %v285 = vld [vmem:[%s229 + $0x88] sm:$0xff]
        %v286 = vld [vmem:[%s229 + $0x90] sm:$0xff]
        %v287 = vld [vmem:[%s229 + $0x98] sm:$0xff]
        %v288 = vld [vmem:[%s229 + $0xa0] sm:$0xff]
        %v289 = vld [vmem:[%s229 + $0xa8] sm:$0xff]
        %v290 = vld [vmem:[%s229 + $0xb0] sm:$0xff]
        %v291 = vld [vmem:[%s229 + $0xb8] sm:$0xff]
        %v292 = vld [vmem:[%s229 + $0xc0] sm:$0xff]
        %v293 = vld [vmem:[%s229 + $0xc8] sm:$0xff]
        %v294 = vld [vmem:[%s229 + $0xd0] sm:$0xff]
        %v295 = vld [vmem:[%s229 + $0xd8] sm:$0xff]
        %v296 = vld [vmem:[%s229 + $0xe0] sm:$0xff]
        %v297 = vld [vmem:[%s229 + $0xe8] sm:$0xff]
        %v298 = vld [vmem:[%s229 + $0xf0] sm:$0xff]
        %v299 = vld [vmem:[%s229 + $0xf8] sm:$0xff]
        %v300 = vld [vmem:[%s234] sm:$0xff]
        %v301 = vld [vmem:[%s234 + $0x8] sm:$0xff]
        %v302 = vld [vmem:[%s234 + $0x10] sm:$0xff]
        %v303 = vld [vmem:[%s234 + $0x18] sm:$0xff]
        %v304 = vld [vmem:[%s234 + $0x20] sm:$0xff]
        %v305 = vld [vmem:[%s234 + $0x28] sm:$0xff]
        %v306 = vld [vmem:[%s234 + $0x30] sm:$0xff]
        %v307 = vld [vmem:[%s234 + $0x38] sm:$0xff]
        %v308 = vld [vmem:[%s234 + $0x40] sm:$0xff]
        %v309 = vld [vmem:[%s234 + $0x48] sm:$0xff]
        %v310 = vld [vmem:[%s234 + $0x50] sm:$0xff]
        %v311 = vld [vmem:[%s234 + $0x58] sm:$0xff]
        %v312 = vld [vmem:[%s234 + $0x60] sm:$0xff]
        %v313 = vld [vmem:[%s234 + $0x68] sm:$0xff]
        %v314 = vld [vmem:[%s234 + $0x70] sm:$0xff]
        %v315 = vld [vmem:[%s234 + $0x78] sm:$0xff]
        %v316 = vld [vmem:[%s234 + $0x80] sm:$0xff]
        %v317 = vld [vmem:[%s234 + $0x88] sm:$0xff]
        %v318 = vld [vmem:[%s234 + $0x90] sm:$0xff]
        %v319 = vld [vmem:[%s234 + $0x98] sm:$0xff]
        %v320 = vld [vmem:[%s234 + $0xa0] sm:$0xff]
        %v321 = vld [vmem:[%s234 + $0xa8] sm:$0xff]
        %v322 = vld [vmem:[%s234 + $0xb0] sm:$0xff]
        %v323 = vld [vmem:[%s234 + $0xb8] sm:$0xff]
        %v324 = vld [vmem:[%s234 + $0xc0] sm:$0xff]
        %v325 = vld [vmem:[%s234 + $0xc8] sm:$0xff]
        %v326 = vld [vmem:[%s234 + $0xd0] sm:$0xff]
        %v327 = vld [vmem:[%s234 + $0xd8] sm:$0xff]
        %v328 = vld [vmem:[%s234 + $0xe0] sm:$0xff]
        %v329 = vld [vmem:[%s234 + $0xe8] sm:$0xff]
        %v330 = vld [vmem:[%s234 + $0xf0] sm:$0xff]
        %v331 = vld [vmem:[%s234 + $0xf8] sm:$0xff]
        %332 = vmatpush.msra.mxu0 %v298
        %333 = vmatpush.msra.mxu0 %v296
        %334 = vmatpush.msra.mxu0 %v294
        %335 = vmatpush.msra.mxu0 %v292
        %336 = vmatpush.msra.mxu0 %v290
        %337 = vmatpush.msra.mxu0 %v288
        %338 = vmatpush.msra.mxu0 %v286
        %339 = vmatpush.msra.mxu0 %v284
        %340 = vmatpush.msra.mxu0 %v282
        %341 = vmatpush.msra.mxu0 %v280
        %342 = vmatpush.msra.mxu0 %v278
        %343 = vmatpush.msra.mxu0 %v276
        %344 = vmatpush.msra.mxu0 %v274
        %345 = vmatpush.msra.mxu0 %v272
        %346 = vmatpush.msra.mxu0 %v270
        %347 = vmatpush.msra.mxu0 %v268
        %348 = vmatmul.f32.gmra.mxu0 %v236
        %v349 = vpop.f32.mrf.mxu0
        %v350 = vadd.f32 0.0, %v349
        %351 = vmatmul.f32.gmra.mxu0 %v237
        %v352 = vpop.f32.mrf.mxu0
        %v353 = vadd.f32 0.0, %v352
        %354 = vmatmul.f32.gmra.mxu0 %v238
        %v355 = vpop.f32.mrf.mxu0
        %v356 = vadd.f32 0.0, %v355
        %357 = vmatmul.f32.gmra.mxu0 %v239
        %v358 = vpop.f32.mrf.mxu0
        %v359 = vadd.f32 0.0, %v358
        %360 = vmatmul.f32.gmra.mxu0 %v240
        %v361 = vpop.f32.mrf.mxu0
        %v362 = vadd.f32 0.0, %v361
        %363 = vmatmul.f32.gmra.mxu0 %v241
        %v364 = vpop.f32.mrf.mxu0
        %v365 = vadd.f32 0.0, %v364
        %366 = vmatmul.f32.gmra.mxu0 %v242
        %v367 = vpop.f32.mrf.mxu0
        %v368 = vadd.f32 0.0, %v367
        %369 = vmatmul.f32.gmra.mxu0 %v243
        %v370 = vpop.f32.mrf.mxu0
        %v371 = vadd.f32 0.0, %v370
        %372 = vmatmul.f32.gmra.mxu0 %v244
        %v373 = vpop.f32.mrf.mxu0
        %v374 = vadd.f32 0.0, %v373
        %375 = vmatmul.f32.gmra.mxu0 %v245
        %v376 = vpop.f32.mrf.mxu0
        %v377 = vadd.f32 0.0, %v376
        %378 = vmatmul.f32.gmra.mxu0 %v246
        %v379 = vpop.f32.mrf.mxu0
        %v380 = vadd.f32 0.0, %v379
        %381 = vmatmul.f32.gmra.mxu0 %v247
        %v382 = vpop.f32.mrf.mxu0
        %v383 = vadd.f32 0.0, %v382
        %384 = vmatmul.f32.gmra.mxu0 %v248
        %v385 = vpop.f32.mrf.mxu0
        %v386 = vadd.f32 0.0, %v385
        %387 = vmatmul.f32.gmra.mxu0 %v249
        %v388 = vpop.f32.mrf.mxu0
        %v389 = vadd.f32 0.0, %v388
        %390 = vmatmul.f32.gmra.mxu0 %v250
        %v391 = vpop.f32.mrf.mxu0
        %v392 = vadd.f32 0.0, %v391
        %393 = vmatmul.f32.gmra.mxu0 %v251
        %v394 = vpop.f32.mrf.mxu0
        %v395 = vadd.f32 0.0, %v394
        %396 = vmatmul.f32.gmra.mxu0 %v252
        %v397 = vpop.f32.mrf.mxu0
        %v398 = vadd.f32 0.0, %v397
        %399 = vmatmul.f32.gmra.mxu0 %v253
        %v400 = vpop.f32.mrf.mxu0
        %v401 = vadd.f32 0.0, %v400
        %402 = vmatmul.f32.gmra.mxu0 %v254
        %v403 = vpop.f32.mrf.mxu0
        %v404 = vadd.f32 0.0, %v403
        %405 = vmatmul.f32.gmra.mxu0 %v255
        %v406 = vpop.f32.mrf.mxu0
        %v407 = vadd.f32 0.0, %v406
        %408 = vmatmul.f32.gmra.mxu0 %v256
        %v409 = vpop.f32.mrf.mxu0
        %v410 = vadd.f32 0.0, %v409
        %411 = vmatmul.f32.gmra.mxu0 %v257
        %v412 = vpop.f32.mrf.mxu0
        %v413 = vadd.f32 0.0, %v412
        %414 = vmatmul.f32.gmra.mxu0 %v258
        %v415 = vpop.f32.mrf.mxu0
        %v416 = vadd.f32 0.0, %v415
        %417 = vmatmul.f32.gmra.mxu0 %v259
        %v418 = vpop.f32.mrf.mxu0
        %v419 = vadd.f32 0.0, %v418
        %420 = vmatmul.f32.gmra.mxu0 %v260
        %v421 = vpop.f32.mrf.mxu0
        %v422 = vadd.f32 0.0, %v421
        %423 = vmatmul.f32.gmra.mxu0 %v261
        %v424 = vpop.f32.mrf.mxu0
        %v425 = vadd.f32 0.0, %v424
        %426 = vmatmul.f32.gmra.mxu0 %v262
        %v427 = vpop.f32.mrf.mxu0
        %v428 = vadd.f32 0.0, %v427
        %429 = vmatmul.f32.gmra.mxu0 %v263
        %v430 = vpop.f32.mrf.mxu0
        %v431 = vadd.f32 0.0, %v430
        %432 = vmatmul.f32.gmra.mxu0 %v264
        %v433 = vpop.f32.mrf.mxu0
        %v434 = vadd.f32 0.0, %v433
        %435 = vmatmul.f32.gmra.mxu0 %v265
        %v436 = vpop.f32.mrf.mxu0
        %v437 = vadd.f32 0.0, %v436
        %438 = vmatmul.f32.gmra.mxu0 %v266
        %v439 = vpop.f32.mrf.mxu0
        %v440 = vadd.f32 0.0, %v439
        %441 = vmatmul.f32.gmra.mxu0 %v267
        %v442 = vpop.f32.mrf.mxu0
        %v443 = vadd.f32 0.0, %v442
        %444 = vdwg.mxu0
        %445 = vmatpush.msra.mxu0 %v299
        %446 = vmatpush.msra.mxu0 %v297
        %447 = vmatpush.msra.mxu0 %v295
        %448 = vmatpush.msra.mxu0 %v293
        %449 = vmatpush.msra.mxu0 %v291
        %450 = vmatpush.msra.mxu0 %v289
        %451 = vmatpush.msra.mxu0 %v287
        %452 = vmatpush.msra.mxu0 %v285
        %453 = vmatpush.msra.mxu0 %v283
        %454 = vmatpush.msra.mxu0 %v281
        %455 = vmatpush.msra.mxu0 %v279
        %456 = vmatpush.msra.mxu0 %v277
        %457 = vmatpush.msra.mxu0 %v275
        %458 = vmatpush.msra.mxu0 %v273
        %459 = vmatpush.msra.mxu0 %v271
        %460 = vmatpush.msra.mxu0 %v269
        %461 = vmatmul.f32.gmra.mxu0 %v236
        %v462 = vpop.f32.mrf.mxu0
        %v463 = vadd.f32 0.0, %v462
        %464 = vmatmul.f32.gmra.mxu0 %v237
        %v465 = vpop.f32.mrf.mxu0
        %v466 = vadd.f32 0.0, %v465
        %467 = vmatmul.f32.gmra.mxu0 %v238
        %v468 = vpop.f32.mrf.mxu0
        %v469 = vadd.f32 0.0, %v468
        %470 = vmatmul.f32.gmra.mxu0 %v239
        %v471 = vpop.f32.mrf.mxu0
        %v472 = vadd.f32 0.0, %v471
        %473 = vmatmul.f32.gmra.mxu0 %v240
        %v474 = vpop.f32.mrf.mxu0
        %v475 = vadd.f32 0.0, %v474
        %476 = vmatmul.f32.gmra.mxu0 %v241
        %v477 = vpop.f32.mrf.mxu0
        %v478 = vadd.f32 0.0, %v477
        %479 = vmatmul.f32.gmra.mxu0 %v242
        %v480 = vpop.f32.mrf.mxu0
        %v481 = vadd.f32 0.0, %v480
        %482 = vmatmul.f32.gmra.mxu0 %v243
        %v483 = vpop.f32.mrf.mxu0
        %v484 = vadd.f32 0.0, %v483
        %485 = vmatmul.f32.gmra.mxu0 %v244
        %v486 = vpop.f32.mrf.mxu0
        %v487 = vadd.f32 0.0, %v486
        %488 = vmatmul.f32.gmra.mxu0 %v245
        %v489 = vpop.f32.mrf.mxu0
        %v490 = vadd.f32 0.0, %v489
        %491 = vmatmul.f32.gmra.mxu0 %v246
        %v492 = vpop.f32.mrf.mxu0
        %v493 = vadd.f32 0.0, %v492
        %494 = vmatmul.f32.gmra.mxu0 %v247
        %v495 = vpop.f32.mrf.mxu0
        %v496 = vadd.f32 0.0, %v495
        %497 = vmatmul.f32.gmra.mxu0 %v248
        %v498 = vpop.f32.mrf.mxu0
        %v499 = vadd.f32 0.0, %v498
        %500 = vmatmul.f32.gmra.mxu0 %v249
        %v501 = vpop.f32.mrf.mxu0
        %v502 = vadd.f32 0.0, %v501
        %503 = vmatmul.f32.gmra.mxu0 %v250
        %v504 = vpop.f32.mrf.mxu0
        %v505 = vadd.f32 0.0, %v504
        %506 = vmatmul.f32.gmra.mxu0 %v251
        %v507 = vpop.f32.mrf.mxu0
        %v508 = vadd.f32 0.0, %v507
        %509 = vmatmul.f32.gmra.mxu0 %v252
        %v510 = vpop.f32.mrf.mxu0
        %v511 = vadd.f32 0.0, %v510
        %512 = vmatmul.f32.gmra.mxu0 %v253
        %v513 = vpop.f32.mrf.mxu0
        %v514 = vadd.f32 0.0, %v513
        %515 = vmatmul.f32.gmra.mxu0 %v254
        %v516 = vpop.f32.mrf.mxu0
        %v517 = vadd.f32 0.0, %v516
        %518 = vmatmul.f32.gmra.mxu0 %v255
        %v519 = vpop.f32.mrf.mxu0
        %v520 = vadd.f32 0.0, %v519
        %521 = vmatmul.f32.gmra.mxu0 %v256
        %v522 = vpop.f32.mrf.mxu0
        %v523 = vadd.f32 0.0, %v522
        %524 = vmatmul.f32.gmra.mxu0 %v257
        %v525 = vpop.f32.mrf.mxu0
        %v526 = vadd.f32 0.0, %v525
        %527 = vmatmul.f32.gmra.mxu0 %v258
        %v528 = vpop.f32.mrf.mxu0
        %v529 = vadd.f32 0.0, %v528
        %530 = vmatmul.f32.gmra.mxu0 %v259
        %v531 = vpop.f32.mrf.mxu0
        %v532 = vadd.f32 0.0, %v531
        %533 = vmatmul.f32.gmra.mxu0 %v260
        %v534 = vpop.f32.mrf.mxu0
        %v535 = vadd.f32 0.0, %v534
        %536 = vmatmul.f32.gmra.mxu0 %v261
        %v537 = vpop.f32.mrf.mxu0
        %v538 = vadd.f32 0.0, %v537
        %539 = vmatmul.f32.gmra.mxu0 %v262
        %v540 = vpop.f32.mrf.mxu0
        %v541 = vadd.f32 0.0, %v540
        %542 = vmatmul.f32.gmra.mxu0 %v263
        %v543 = vpop.f32.mrf.mxu0
        %v544 = vadd.f32 0.0, %v543
        %545 = vmatmul.f32.gmra.mxu0 %v264
        %v546 = vpop.f32.mrf.mxu0
        %v547 = vadd.f32 0.0, %v546
        %548 = vmatmul.f32.gmra.mxu0 %v265
        %v549 = vpop.f32.mrf.mxu0
        %v550 = vadd.f32 0.0, %v549
        %551 = vmatmul.f32.gmra.mxu0 %v266
        %v552 = vpop.f32.mrf.mxu0
        %v553 = vadd.f32 0.0, %v552
        %554 = vmatmul.f32.gmra.mxu0 %v267
        %v555 = vpop.f32.mrf.mxu0
        %v556 = vadd.f32 0.0, %v555
        %557 = vdwg.mxu0
        %v558 = vlaneseq
        %v559 = vand.u32 %v558, 127
        %v560 = vadd.s32 %v559, 128
        %vm561 = vcmp.lt.s32.totalorder %v559, 200
        %vm562 = vcmp.lt.s32.totalorder %v560, 200
        %v563 = vsel %vm561, %v350, -1e+30
        %v564 = vsel %vm562, %v463, -1e+30
        %v565 = vsel %vm561, %v353, -1e+30
        %v566 = vsel %vm562, %v466, -1e+30
        %v567 = vsel %vm561, %v356, -1e+30
        %v568 = vsel %vm562, %v469, -1e+30
        %v569 = vsel %vm561, %v359, -1e+30
        %v570 = vsel %vm562, %v472, -1e+30
        %v571 = vsel %vm561, %v362, -1e+30
        %v572 = vsel %vm562, %v475, -1e+30
        %v573 = vsel %vm561, %v365, -1e+30
        %v574 = vsel %vm562, %v478, -1e+30
        %v575 = vsel %vm561, %v368, -1e+30
        %v576 = vsel %vm562, %v481, -1e+30
        %v577 = vsel %vm561, %v371, -1e+30
        %v578 = vsel %vm562, %v484, -1e+30
        %v579 = vsel %vm561, %v374, -1e+30
        %v580 = vsel %vm562, %v487, -1e+30
        %v581 = vsel %vm561, %v377, -1e+30
        %v582 = vsel %vm562, %v490, -1e+30
        %v583 = vsel %vm561, %v380, -1e+30
        %v584 = vsel %vm562, %v493, -1e+30
        %v585 = vsel %vm561, %v383, -1e+30
        %v586 = vsel %vm562, %v496, -1e+30
        %v587 = vsel %vm561, %v386, -1e+30
        %v588 = vsel %vm562, %v499, -1e+30
        %v589 = vsel %vm561, %v389, -1e+30
        %v590 = vsel %vm562, %v502, -1e+30
        %v591 = vsel %vm561, %v392, -1e+30
        %v592 = vsel %vm562, %v505, -1e+30
        %v593 = vsel %vm561, %v395, -1e+30
        %v594 = vsel %vm562, %v508, -1e+30
        %v595 = vsel %vm561, %v398, -1e+30
        %v596 = vsel %vm562, %v511, -1e+30
        %v597 = vsel %vm561, %v401, -1e+30
        %v598 = vsel %vm562, %v514, -1e+30
        %v599 = vsel %vm561, %v404, -1e+30
        %v600 = vsel %vm562, %v517, -1e+30
        %v601 = vsel %vm561, %v407, -1e+30
        %v602 = vsel %vm562, %v520, -1e+30
        %v603 = vsel %vm561, %v410, -1e+30
        %v604 = vsel %vm562, %v523, -1e+30
        %v605 = vsel %vm561, %v413, -1e+30
        %v606 = vsel %vm562, %v526, -1e+30
        %v607 = vsel %vm561, %v416, -1e+30
        %v608 = vsel %vm562, %v529, -1e+30
        %v609 = vsel %vm561, %v419, -1e+30
        %v610 = vsel %vm562, %v532, -1e+30
        %v611 = vsel %vm561, %v422, -1e+30
        %v612 = vsel %vm562, %v535, -1e+30
        %v613 = vsel %vm561, %v425, -1e+30
        %v614 = vsel %vm562, %v538, -1e+30
        %v615 = vsel %vm561, %v428, -1e+30
        %v616 = vsel %vm562, %v541, -1e+30
        %v617 = vsel %vm561, %v431, -1e+30
        %v618 = vsel %vm562, %v544, -1e+30
        %v619 = vsel %vm561, %v434, -1e+30
        %v620 = vsel %vm562, %v547, -1e+30
        %v621 = vsel %vm561, %v437, -1e+30
        %v622 = vsel %vm562, %v550, -1e+30
        %v623 = vsel %vm561, %v440, -1e+30
        %v624 = vsel %vm562, %v553, -1e+30
        %v625 = vsel %vm561, %v443, -1e+30
        %v626 = vsel %vm562, %v556, -1e+30
        %v627 = vmax.f32 %v563, %v564
        %628 = vmax.xlane.f32.xlu0 %v627
        %v629 = vpop.xlane.xlu0 %628
        %v630 = vmax.f32 %v565, %v566
        %631 = vmax.xlane.f32.xlu0 %v630
        %v632 = vpop.xlane.xlu0 %631
        %v633 = vmax.f32 %v567, %v568
        %634 = vmax.xlane.f32.xlu0 %v633
        %v635 = vpop.xlane.xlu0 %634
        %v636 = vmax.f32 %v569, %v570
        %637 = vmax.xlane.f32.xlu0 %v636
        %v638 = vpop.xlane.xlu0 %637
        %v639 = vmax.f32 %v571, %v572
        %640 = vmax.xlane.f32.xlu0 %v639
        %v641 = vpop.xlane.xlu0 %640
        %v642 = vmax.f32 %v573, %v574
        %643 = vmax.xlane.f32.xlu0 %v642
        %v644 = vpop.xlane.xlu0 %643
        %v645 = vmax.f32 %v575, %v576
        %646 = vmax.xlane.f32.xlu0 %v645
        %v647 = vpop.xlane.xlu0 %646
        %v648 = vmax.f32 %v577, %v578
        %649 = vmax.xlane.f32.xlu0 %v648
        %v650 = vpop.xlane.xlu0 %649
        %v651 = vmax.f32 %v579, %v580
        %652 = vmax.xlane.f32.xlu0 %v651
        %v653 = vpop.xlane.xlu0 %652
        %v654 = vmax.f32 %v581, %v582
        %655 = vmax.xlane.f32.xlu0 %v654
        %v656 = vpop.xlane.xlu0 %655
        %v657 = vmax.f32 %v583, %v584
        %658 = vmax.xlane.f32.xlu0 %v657
        %v659 = vpop.xlane.xlu0 %658
        %v660 = vmax.f32 %v585, %v586
        %661 = vmax.xlane.f32.xlu0 %v660
        %v662 = vpop.xlane.xlu0 %661
        %v663 = vmax.f32 %v587, %v588
        %664 = vmax.xlane.f32.xlu0 %v663
        %v665 = vpop.xlane.xlu0 %664
        %v666 = vmax.f32 %v589, %v590
        %667 = vmax.xlane.f32.xlu0 %v666
        %v668 = vpop.xlane.xlu0 %667
        %v669 = vmax.f32 %v591, %v592
        %670 = vmax.xlane.f32.xlu0 %v669
        %v671 = vpop.xlane.xlu0 %670
        %v672 = vmax.f32 %v593, %v594
        %673 = vmax.xlane.f32.xlu0 %v672
        %v674 = vpop.xlane.xlu0 %673
        %v675 = vmax.f32 %v595, %v596
        %676 = vmax.xlane.f32.xlu0 %v675
        %v677 = vpop.xlane.xlu0 %676
        %v678 = vmax.f32 %v597, %v598
        %679 = vmax.xlane.f32.xlu0 %v678
        %v680 = vpop.xlane.xlu0 %679
        %v681 = vmax.f32 %v599, %v600
        %682 = vmax.xlane.f32.xlu0 %v681
        %v683 = vpop.xlane.xlu0 %682
        %v684 = vmax.f32 %v601, %v602
        %685 = vmax.xlane.f32.xlu0 %v684
        %v686 = vpop.xlane.xlu0 %685
        %v687 = vmax.f32 %v603, %v604
        %688 = vmax.xlane.f32.xlu0 %v687
        %v689 = vpop.xlane.xlu0 %688
        %v690 = vmax.f32 %v605, %v606
        %691 = vmax.xlane.f32.xlu0 %v690
        %v692 = vpop.xlane.xlu0 %691
        %v693 = vmax.f32 %v607, %v608
        %694 = vmax.xlane.f32.xlu0 %v693
        %v695 = vpop.xlane.xlu0 %694
        %v696 = vmax.f32 %v609, %v610
        %697 = vmax.xlane.f32.xlu0 %v696
        %v698 = vpop.xlane.xlu0 %697
        %v699 = vmax.f32 %v611, %v612
        %700 = vmax.xlane.f32.xlu0 %v699
        %v701 = vpop.xlane.xlu0 %700
        %v702 = vmax.f32 %v613, %v614
        %703 = vmax.xlane.f32.xlu0 %v702
        %v704 = vpop.xlane.xlu0 %703
        %v705 = vmax.f32 %v615, %v616
        %706 = vmax.xlane.f32.xlu0 %v705
        %v707 = vpop.xlane.xlu0 %706
        %v708 = vmax.f32 %v617, %v618
        %709 = vmax.xlane.f32.xlu0 %v708
        %v710 = vpop.xlane.xlu0 %709
        %v711 = vmax.f32 %v619, %v620
        %712 = vmax.xlane.f32.xlu0 %v711
        %v713 = vpop.xlane.xlu0 %712
        %v714 = vmax.f32 %v621, %v622
        %715 = vmax.xlane.f32.xlu0 %v714
        %v716 = vpop.xlane.xlu0 %715
        %v717 = vmax.f32 %v623, %v624
        %718 = vmax.xlane.f32.xlu0 %v717
        %v719 = vpop.xlane.xlu0 %718
        %v720 = vmax.f32 %v625, %v626
        %721 = vmax.xlane.f32.xlu0 %v720
        %v722 = vpop.xlane.xlu0 %721
        %v723 = vmax.f32 %v629, -1e+30
        %v724 = vmax.f32 %v632, -1e+30
        %v725 = vmax.f32 %v635, -1e+30
        %v726 = vmax.f32 %v638, -1e+30
        %v727 = vmax.f32 %v641, -1e+30
        %v728 = vmax.f32 %v644, -1e+30
        %v729 = vmax.f32 %v647, -1e+30
        %v730 = vmax.f32 %v650, -1e+30
        %v731 = vmax.f32 %v653, -1e+30
        %v732 = vmax.f32 %v656, -1e+30
        %v733 = vmax.f32 %v659, -1e+30
        %v734 = vmax.f32 %v662, -1e+30
        %v735 = vmax.f32 %v665, -1e+30
        %v736 = vmax.f32 %v668, -1e+30
        %v737 = vmax.f32 %v671, -1e+30
        %v738 = vmax.f32 %v674, -1e+30
        %v739 = vmax.f32 %v677, -1e+30
        %v740 = vmax.f32 %v680, -1e+30
        %v741 = vmax.f32 %v683, -1e+30
        %v742 = vmax.f32 %v686, -1e+30
        %v743 = vmax.f32 %v689, -1e+30
        %v744 = vmax.f32 %v692, -1e+30
        %v745 = vmax.f32 %v695, -1e+30
        %v746 = vmax.f32 %v698, -1e+30
        %v747 = vmax.f32 %v701, -1e+30
        %v748 = vmax.f32 %v704, -1e+30
        %v749 = vmax.f32 %v707, -1e+30
        %v750 = vmax.f32 %v710, -1e+30
        %v751 = vmax.f32 %v713, -1e+30
        %v752 = vmax.f32 %v716, -1e+30
        %v753 = vmax.f32 %v719, -1e+30
        %v754 = vmax.f32 %v722, -1e+30
        %v755 = vsub.f32 -1e+30, %v723
        %v756 = vsub.f32 -1e+30, %v724
        %v757 = vsub.f32 -1e+30, %v725
        %v758 = vsub.f32 -1e+30, %v726
        %v759 = vsub.f32 -1e+30, %v727
        %v760 = vsub.f32 -1e+30, %v728
        %v761 = vsub.f32 -1e+30, %v729
        %v762 = vsub.f32 -1e+30, %v730
        %v763 = vsub.f32 -1e+30, %v731
        %v764 = vsub.f32 -1e+30, %v732
        %v765 = vsub.f32 -1e+30, %v733
        %v766 = vsub.f32 -1e+30, %v734
        %v767 = vsub.f32 -1e+30, %v735
        %v768 = vsub.f32 -1e+30, %v736
        %v769 = vsub.f32 -1e+30, %v737
        %v770 = vsub.f32 -1e+30, %v738
        %v771 = vsub.f32 -1e+30, %v739
        %v772 = vsub.f32 -1e+30, %v740
        %v773 = vsub.f32 -1e+30, %v741
        %v774 = vsub.f32 -1e+30, %v742
        %v775 = vsub.f32 -1e+30, %v743
        %v776 = vsub.f32 -1e+30, %v744
        %v777 = vsub.f32 -1e+30, %v745
        %v778 = vsub.f32 -1e+30, %v746
        %v779 = vsub.f32 -1e+30, %v747
        %v780 = vsub.f32 -1e+30, %v748
        %v781 = vsub.f32 -1e+30, %v749
        %v782 = vsub.f32 -1e+30, %v750
        %v783 = vsub.f32 -1e+30, %v751
        %v784 = vsub.f32 -1e+30, %v752
        %v785 = vsub.f32 -1e+30, %v753
        %v786 = vsub.f32 -1e+30, %v754
        %v787 = vmul.f32 %v755, 1.442695
        %v788 = vpow.pop %v787
        %v789 = vmul.f32 %v756, 1.442695
        %v790 = vpow.pop %v789
        %v791 = vmul.f32 %v757, 1.442695
        %v792 = vpow.pop %v791
        %v793 = vmul.f32 %v758, 1.442695
        %v794 = vpow.pop %v793
        %v795 = vmul.f32 %v759, 1.442695
        %v796 = vpow.pop %v795
        %v797 = vmul.f32 %v760, 1.442695
        %v798 = vpow.pop %v797
        %v799 = vmul.f32 %v761, 1.442695
        %v800 = vpow.pop %v799
        %v801 = vmul.f32 %v762, 1.442695
        %v802 = vpow.pop %v801
        %v803 = vmul.f32 %v763, 1.442695
        %v804 = vpow.pop %v803
        %v805 = vmul.f32 %v764, 1.442695
        %v806 = vpow.pop %v805
        %v807 = vmul.f32 %v765, 1.442695
        %v808 = vpow.pop %v807
        %v809 = vmul.f32 %v766, 1.442695
        %v810 = vpow.pop %v809
        %v811 = vmul.f32 %v767, 1.442695
        %v812 = vpow.pop %v811
        %v813 = vmul.f32 %v768, 1.442695
        %v814 = vpow.pop %v813
        %v815 = vmul.f32 %v769, 1.442695
        %v816 = vpow.pop %v815
        %v817 = vmul.f32 %v770, 1.442695
        %v818 = vpow.pop %v817
        %v819 = vmul.f32 %v771, 1.442695
        %v820 = vpow.pop %v819
        %v821 = vmul.f32 %v772, 1.442695
        %v822 = vpow.pop %v821
        %v823 = vmul.f32 %v773, 1.442695
        %v824 = vpow.pop %v823
        %v825 = vmul.f32 %v774, 1.442695
        %v826 = vpow.pop %v825
        %v827 = vmul.f32 %v775, 1.442695
        %v828 = vpow.pop %v827
        %v829 = vmul.f32 %v776, 1.442695
        %v830 = vpow.pop %v829
        %v831 = vmul.f32 %v777, 1.442695
        %v832 = vpow.pop %v831
        %v833 = vmul.f32 %v778, 1.442695
        %v834 = vpow.pop %v833
        %v835 = vmul.f32 %v779, 1.442695
        %v836 = vpow.pop %v835
        %v837 = vmul.f32 %v780, 1.442695
        %v838 = vpow.pop %v837
        %v839 = vmul.f32 %v781, 1.442695
        %v840 = vpow.pop %v839
        %v841 = vmul.f32 %v782, 1.442695
        %v842 = vpow.pop %v841
        %v843 = vmul.f32 %v783, 1.442695
        %v844 = vpow.pop %v843
        %v845 = vmul.f32 %v784, 1.442695
        %v846 = vpow.pop %v845
        %v847 = vmul.f32 %v785, 1.442695
        %v848 = vpow.pop %v847
        %v849 = vmul.f32 %v786, 1.442695
        %v850 = vpow.pop %v849
        %v851 = vsub.f32 %v563, %v723
        %v852 = vsub.f32 %v564, %v723
        %v853 = vsub.f32 %v565, %v724
        %v854 = vsub.f32 %v566, %v724
        %v855 = vsub.f32 %v567, %v725
        %v856 = vsub.f32 %v568, %v725
        %v857 = vsub.f32 %v569, %v726
        %v858 = vsub.f32 %v570, %v726
        %v859 = vsub.f32 %v571, %v727
        %v860 = vsub.f32 %v572, %v727
        %v861 = vsub.f32 %v573, %v728
        %v862 = vsub.f32 %v574, %v728
        %v863 = vsub.f32 %v575, %v729
        %v864 = vsub.f32 %v576, %v729
        %v865 = vsub.f32 %v577, %v730
        %v866 = vsub.f32 %v578, %v730
        %v867 = vsub.f32 %v579, %v731
        %v868 = vsub.f32 %v580, %v731
        %v869 = vsub.f32 %v581, %v732
        %v870 = vsub.f32 %v582, %v732
        %v871 = vsub.f32 %v583, %v733
        %v872 = vsub.f32 %v584, %v733
        %v873 = vsub.f32 %v585, %v734
        %v874 = vsub.f32 %v586, %v734
        %v875 = vsub.f32 %v587, %v735
        %v876 = vsub.f32 %v588, %v735
        %v877 = vsub.f32 %v589, %v736
        %v878 = vsub.f32 %v590, %v736
        %v879 = vsub.f32 %v591, %v737
        %v880 = vsub.f32 %v592, %v737
        %v881 = vsub.f32 %v593, %v738
        %v882 = vsub.f32 %v594, %v738
        %v883 = vsub.f32 %v595, %v739
        %v884 = vsub.f32 %v596, %v739
        %v885 = vsub.f32 %v597, %v740
        %v886 = vsub.f32 %v598, %v740
        %v887 = vsub.f32 %v599, %v741
        %v888 = vsub.f32 %v600, %v741
        %v889 = vsub.f32 %v601, %v742
        %v890 = vsub.f32 %v602, %v742
        %v891 = vsub.f32 %v603, %v743
        %v892 = vsub.f32 %v604, %v743
        %v893 = vsub.f32 %v605, %v744
        %v894 = vsub.f32 %v606, %v744
        %v895 = vsub.f32 %v607, %v745
        %v896 = vsub.f32 %v608, %v745
        %v897 = vsub.f32 %v609, %v746
        %v898 = vsub.f32 %v610, %v746
        %v899 = vsub.f32 %v611, %v747
        %v900 = vsub.f32 %v612, %v747
        %v901 = vsub.f32 %v613, %v748
        %v902 = vsub.f32 %v614, %v748
        %v903 = vsub.f32 %v615, %v749
        %v904 = vsub.f32 %v616, %v749
        %v905 = vsub.f32 %v617, %v750
        %v906 = vsub.f32 %v618, %v750
        %v907 = vsub.f32 %v619, %v751
        %v908 = vsub.f32 %v620, %v751
        %v909 = vsub.f32 %v621, %v752
        %v910 = vsub.f32 %v622, %v752
        %v911 = vsub.f32 %v623, %v753
        %v912 = vsub.f32 %v624, %v753
        %v913 = vsub.f32 %v625, %v754
        %v914 = vsub.f32 %v626, %v754
        %v915 = vmul.f32 %v851, 1.442695
        %v916 = vpow.pop %v915
        %v917 = vmul.f32 %v852, 1.442695
        %v918 = vpow.pop %v917
        %v919 = vmul.f32 %v853, 1.442695
        %v920 = vpow.pop %v919
        %v921 = vmul.f32 %v854, 1.442695
        %v922 = vpow.pop %v921
        %v923 = vmul.f32 %v855, 1.442695
        %v924 = vpow.pop %v923
        %v925 = vmul.f32 %v856, 1.442695
        %v926 = vpow.pop %v925
        %v927 = vmul.f32 %v857, 1.442695
        %v928 = vpow.pop %v927
        %v929 = vmul.f32 %v858, 1.442695
        %v930 = vpow.pop %v929
        %v931 = vmul.f32 %v859, 1.442695
        %v932 = vpow.pop %v931
        %v933 = vmul.f32 %v860, 1.442695
        %v934 = vpow.pop %v933
        %v935 = vmul.f32 %v861, 1.442695
        %v936 = vpow.pop %v935
        %v937 = vmul.f32 %v862, 1.442695
        %v938 = vpow.pop %v937
        %v939 = vmul.f32 %v863, 1.442695
        %v940 = vpow.pop %v939
        %v941 = vmul.f32 %v864, 1.442695
        %v942 = vpow.pop %v941
        %v943 = vmul.f32 %v865, 1.442695
        %v944 = vpow.pop %v943
        %v945 = vmul.f32 %v866, 1.442695
        %v946 = vpow.pop %v945
        %v947 = vmul.f32 %v867, 1.442695
        %v948 = vpow.pop %v947
        %v949 = vmul.f32 %v868, 1.442695
        %v950 = vpow.pop %v949
        %v951 = vmul.f32 %v869, 1.442695
        %v952 = vpow.pop %v951
        %v953 = vmul.f32 %v870, 1.442695
        %v954 = vpow.pop %v953
        %v955 = vmul.f32 %v871, 1.442695
        %v956 = vpow.pop %v955
        %v957 = vmul.f32 %v872, 1.442695
        %v958 = vpow.pop %v957
        %v959 = vmul.f32 %v873, 1.442695
        %v960 = vpow.pop %v959
        %v961 = vmul.f32 %v874, 1.442695
        %v962 = vpow.pop %v961
        %v963 = vmul.f32 %v875, 1.442695
        %v964 = vpow.pop %v963
        %v965 = vmul.f32 %v876, 1.442695
        %v966 = vpow.pop %v965
        %v967 = vmul.f32 %v877, 1.442695
        %v968 = vpow.pop %v967
        %v969 = vmul.f32 %v878, 1.442695
        %v970 = vpow.pop %v969
        %v971 = vmul.f32 %v879, 1.442695
        %v972 = vpow.pop %v971
        %v973 = vmul.f32 %v880, 1.442695
        %v974 = vpow.pop %v973
        %v975 = vmul.f32 %v881, 1.442695
        %v976 = vpow.pop %v975
        %v977 = vmul.f32 %v882, 1.442695
        %v978 = vpow.pop %v977
        %v979 = vmul.f32 %v883, 1.442695
        %v980 = vpow.pop %v979
        %v981 = vmul.f32 %v884, 1.442695
        %v982 = vpow.pop %v981
        %v983 = vmul.f32 %v885, 1.442695
        %v984 = vpow.pop %v983
        %v985 = vmul.f32 %v886, 1.442695
        %v986 = vpow.pop %v985
        %v987 = vmul.f32 %v887, 1.442695
        %v988 = vpow.pop %v987
        %v989 = vmul.f32 %v888, 1.442695
        %v990 = vpow.pop %v989
        %v991 = vmul.f32 %v889, 1.442695
        %v992 = vpow.pop %v991
        %v993 = vmul.f32 %v890, 1.442695
        %v994 = vpow.pop %v993
        %v995 = vmul.f32 %v891, 1.442695
        %v996 = vpow.pop %v995
        %v997 = vmul.f32 %v892, 1.442695
        %v998 = vpow.pop %v997
        %v999 = vmul.f32 %v893, 1.442695
        %v1000 = vpow.pop %v999
        %v1001 = vmul.f32 %v894, 1.442695
        %v1002 = vpow.pop %v1001
        %v1003 = vmul.f32 %v895, 1.442695
        %v1004 = vpow.pop %v1003
        %v1005 = vmul.f32 %v896, 1.442695
        %v1006 = vpow.pop %v1005
        %v1007 = vmul.f32 %v897, 1.442695
        %v1008 = vpow.pop %v1007
        %v1009 = vmul.f32 %v898, 1.442695
        %v1010 = vpow.pop %v1009
        %v1011 = vmul.f32 %v899, 1.442695
        %v1012 = vpow.pop %v1011
        %v1013 = vmul.f32 %v900, 1.442695
        %v1014 = vpow.pop %v1013
        %v1015 = vmul.f32 %v901, 1.442695
        %v1016 = vpow.pop %v1015
        %v1017 = vmul.f32 %v902, 1.442695
        %v1018 = vpow.pop %v1017
        %v1019 = vmul.f32 %v903, 1.442695
        %v1020 = vpow.pop %v1019
        %v1021 = vmul.f32 %v904, 1.442695
        %v1022 = vpow.pop %v1021
        %v1023 = vmul.f32 %v905, 1.442695
        %v1024 = vpow.pop %v1023
        %v1025 = vmul.f32 %v906, 1.442695
        %v1026 = vpow.pop %v1025
        %v1027 = vmul.f32 %v907, 1.442695
        %v1028 = vpow.pop %v1027
        %v1029 = vmul.f32 %v908, 1.442695
        %v1030 = vpow.pop %v1029
        %v1031 = vmul.f32 %v909, 1.442695
        %v1032 = vpow.pop %v1031
        %v1033 = vmul.f32 %v910, 1.442695
        %v1034 = vpow.pop %v1033
        %v1035 = vmul.f32 %v911, 1.442695
        %v1036 = vpow.pop %v1035
        %v1037 = vmul.f32 %v912, 1.442695
        %v1038 = vpow.pop %v1037
        %v1039 = vmul.f32 %v913, 1.442695
        %v1040 = vpow.pop %v1039
        %v1041 = vmul.f32 %v914, 1.442695
        %v1042 = vpow.pop %v1041
        %v1043 = vmul.f32 %v788, 0.0
        %v1044 = vmul.f32 %v790, 0.0
        %v1045 = vmul.f32 %v792, 0.0
        %v1046 = vmul.f32 %v794, 0.0
        %v1047 = vmul.f32 %v796, 0.0
        %v1048 = vmul.f32 %v798, 0.0
        %v1049 = vmul.f32 %v800, 0.0
        %v1050 = vmul.f32 %v802, 0.0
        %v1051 = vmul.f32 %v804, 0.0
        %v1052 = vmul.f32 %v806, 0.0
        %v1053 = vmul.f32 %v808, 0.0
        %v1054 = vmul.f32 %v810, 0.0
        %v1055 = vmul.f32 %v812, 0.0
        %v1056 = vmul.f32 %v814, 0.0
        %v1057 = vmul.f32 %v816, 0.0
        %v1058 = vmul.f32 %v818, 0.0
        %v1059 = vmul.f32 %v820, 0.0
        %v1060 = vmul.f32 %v822, 0.0
        %v1061 = vmul.f32 %v824, 0.0
        %v1062 = vmul.f32 %v826, 0.0
        %v1063 = vmul.f32 %v828, 0.0
        %v1064 = vmul.f32 %v830, 0.0
        %v1065 = vmul.f32 %v832, 0.0
        %v1066 = vmul.f32 %v834, 0.0
        %v1067 = vmul.f32 %v836, 0.0
        %v1068 = vmul.f32 %v838, 0.0
        %v1069 = vmul.f32 %v840, 0.0
        %v1070 = vmul.f32 %v842, 0.0
        %v1071 = vmul.f32 %v844, 0.0
        %v1072 = vmul.f32 %v846, 0.0
        %v1073 = vmul.f32 %v848, 0.0
        %v1074 = vmul.f32 %v850, 0.0
        %v1075 = vadd.f32 %v916, %v918
        %1076 = vadd.xlane.f32.xlu0 %v1075
        %v1077 = vpop.xlane.xlu0 %1076
        %v1078 = vadd.f32 %v920, %v922
        %1079 = vadd.xlane.f32.xlu0 %v1078
        %v1080 = vpop.xlane.xlu0 %1079
        %v1081 = vadd.f32 %v924, %v926
        %1082 = vadd.xlane.f32.xlu0 %v1081
        %v1083 = vpop.xlane.xlu0 %1082
        %v1084 = vadd.f32 %v928, %v930
        %1085 = vadd.xlane.f32.xlu0 %v1084
        %v1086 = vpop.xlane.xlu0 %1085
        %v1087 = vadd.f32 %v932, %v934
        %1088 = vadd.xlane.f32.xlu0 %v1087
        %v1089 = vpop.xlane.xlu0 %1088
        %v1090 = vadd.f32 %v936, %v938
        %1091 = vadd.xlane.f32.xlu0 %v1090
        %v1092 = vpop.xlane.xlu0 %1091
        %v1093 = vadd.f32 %v940, %v942
        %1094 = vadd.xlane.f32.xlu0 %v1093
        %v1095 = vpop.xlane.xlu0 %1094
        %v1096 = vadd.f32 %v944, %v946
        %1097 = vadd.xlane.f32.xlu0 %v1096
        %v1098 = vpop.xlane.xlu0 %1097
        %v1099 = vadd.f32 %v948, %v950
        %1100 = vadd.xlane.f32.xlu0 %v1099
        %v1101 = vpop.xlane.xlu0 %1100
        %v1102 = vadd.f32 %v952, %v954
        %1103 = vadd.xlane.f32.xlu0 %v1102
        %v1104 = vpop.xlane.xlu0 %1103
        %v1105 = vadd.f32 %v956, %v958
        %1106 = vadd.xlane.f32.xlu0 %v1105
        %v1107 = vpop.xlane.xlu0 %1106
        %v1108 = vadd.f32 %v960, %v962
        %1109 = vadd.xlane.f32.xlu0 %v1108
        %v1110 = vpop.xlane.xlu0 %1109
        %v1111 = vadd.f32 %v964, %v966
        %1112 = vadd.xlane.f32.xlu0 %v1111
        %v1113 = vpop.xlane.xlu0 %1112
        %v1114 = vadd.f32 %v968, %v970
        %1115 = vadd.xlane.f32.xlu0 %v1114
        %v1116 = vpop.xlane.xlu0 %1115
        %v1117 = vadd.f32 %v972, %v974
        %1118 = vadd.xlane.f32.xlu0 %v1117
        %v1119 = vpop.xlane.xlu0 %1118
        %v1120 = vadd.f32 %v976, %v978
        %1121 = vadd.xlane.f32.xlu0 %v1120
        %v1122 = vpop.xlane.xlu0 %1121
        %v1123 = vadd.f32 %v980, %v982
        %1124 = vadd.xlane.f32.xlu0 %v1123
        %v1125 = vpop.xlane.xlu0 %1124
        %v1126 = vadd.f32 %v984, %v986
        %1127 = vadd.xlane.f32.xlu0 %v1126
        %v1128 = vpop.xlane.xlu0 %1127
        %v1129 = vadd.f32 %v988, %v990
        %1130 = vadd.xlane.f32.xlu0 %v1129
        %v1131 = vpop.xlane.xlu0 %1130
        %v1132 = vadd.f32 %v992, %v994
        %1133 = vadd.xlane.f32.xlu0 %v1132
        %v1134 = vpop.xlane.xlu0 %1133
        %v1135 = vadd.f32 %v996, %v998
        %1136 = vadd.xlane.f32.xlu0 %v1135
        %v1137 = vpop.xlane.xlu0 %1136
        %v1138 = vadd.f32 %v1000, %v1002
        %1139 = vadd.xlane.f32.xlu0 %v1138
        %v1140 = vpop.xlane.xlu0 %1139
        %v1141 = vadd.f32 %v1004, %v1006
        %1142 = vadd.xlane.f32.xlu0 %v1141
        %v1143 = vpop.xlane.xlu0 %1142
        %v1144 = vadd.f32 %v1008, %v1010
        %1145 = vadd.xlane.f32.xlu0 %v1144
        %v1146 = vpop.xlane.xlu0 %1145
        %v1147 = vadd.f32 %v1012, %v1014
        %1148 = vadd.xlane.f32.xlu0 %v1147
        %v1149 = vpop.xlane.xlu0 %1148
        %v1150 = vadd.f32 %v1016, %v1018
        %1151 = vadd.xlane.f32.xlu0 %v1150
        %v1152 = vpop.xlane.xlu0 %1151
        %v1153 = vadd.f32 %v1020, %v1022
        %1154 = vadd.xlane.f32.xlu0 %v1153
        %v1155 = vpop.xlane.xlu0 %1154
        %v1156 = vadd.f32 %v1024, %v1026
        %1157 = vadd.xlane.f32.xlu0 %v1156
        %v1158 = vpop.xlane.xlu0 %1157
        %v1159 = vadd.f32 %v1028, %v1030
        %1160 = vadd.xlane.f32.xlu0 %v1159
        %v1161 = vpop.xlane.xlu0 %1160
        %v1162 = vadd.f32 %v1032, %v1034
        %1163 = vadd.xlane.f32.xlu0 %v1162
        %v1164 = vpop.xlane.xlu0 %1163
        %v1165 = vadd.f32 %v1036, %v1038
        %1166 = vadd.xlane.f32.xlu0 %v1165
        %v1167 = vpop.xlane.xlu0 %1166
        %v1168 = vadd.f32 %v1040, %v1042
        %1169 = vadd.xlane.f32.xlu0 %v1168
        %v1170 = vpop.xlane.xlu0 %1169
        %v1171 = vadd.f32 %v1043, %v1077
        %v1172 = vadd.f32 %v1044, %v1080
        %v1173 = vadd.f32 %v1045, %v1083
        %v1174 = vadd.f32 %v1046, %v1086
        %v1175 = vadd.f32 %v1047, %v1089
        %v1176 = vadd.f32 %v1048, %v1092
        %v1177 = vadd.f32 %v1049, %v1095
        %v1178 = vadd.f32 %v1050, %v1098
        %v1179 = vadd.f32 %v1051, %v1101
        %v1180 = vadd.f32 %v1052, %v1104
        %v1181 = vadd.f32 %v1053, %v1107
        %v1182 = vadd.f32 %v1054, %v1110
        %v1183 = vadd.f32 %v1055, %v1113
        %v1184 = vadd.f32 %v1056, %v1116
        %v1185 = vadd.f32 %v1057, %v1119
        %v1186 = vadd.f32 %v1058, %v1122
        %v1187 = vadd.f32 %v1059, %v1125
        %v1188 = vadd.f32 %v1060, %v1128
        %v1189 = vadd.f32 %v1061, %v1131
        %v1190 = vadd.f32 %v1062, %v1134
        %v1191 = vadd.f32 %v1063, %v1137
        %v1192 = vadd.f32 %v1064, %v1140
        %v1193 = vadd.f32 %v1065, %v1143
        %v1194 = vadd.f32 %v1066, %v1146
        %v1195 = vadd.f32 %v1067, %v1149
        %v1196 = vadd.f32 %v1068, %v1152
        %v1197 = vadd.f32 %v1069, %v1155
        %v1198 = vadd.f32 %v1070, %v1158
        %v1199 = vadd.f32 %v1071, %v1161
        %v1200 = vadd.f32 %v1072, %v1164
        %v1201 = vadd.f32 %v1073, %v1167
        %v1202 = vadd.f32 %v1074, %v1170
        %1203 = vmatpush.msra.mxu0 %v315
        %1204 = vmatpush.msra.mxu0 %v314
        %1205 = vmatpush.msra.mxu0 %v313
        %1206 = vmatpush.msra.mxu0 %v312
        %1207 = vmatpush.msra.mxu0 %v311
        %1208 = vmatpush.msra.mxu0 %v310
        %1209 = vmatpush.msra.mxu0 %v309
        %1210 = vmatpush.msra.mxu0 %v308
        %1211 = vmatpush.msra.mxu0 %v307
        %1212 = vmatpush.msra.mxu0 %v306
        %1213 = vmatpush.msra.mxu0 %v305
        %1214 = vmatpush.msra.mxu0 %v304
        %1215 = vmatpush.msra.mxu0 %v303
        %1216 = vmatpush.msra.mxu0 %v302
        %1217 = vmatpush.msra.mxu0 %v301
        %1218 = vmatpush.msra.mxu0 %v300
        %1219 = vmatmul.f32.gmra.mxu0 %v916
        %v1220 = vpop.f32.mrf.mxu0
        %v1221 = vadd.f32 0.0, %v1220
        %1222 = vmatmul.f32.gmra.mxu0 %v920
        %v1223 = vpop.f32.mrf.mxu0
        %v1224 = vadd.f32 0.0, %v1223
        %1225 = vmatmul.f32.gmra.mxu0 %v924
        %v1226 = vpop.f32.mrf.mxu0
        %v1227 = vadd.f32 0.0, %v1226
        %1228 = vmatmul.f32.gmra.mxu0 %v928
        %v1229 = vpop.f32.mrf.mxu0
        %v1230 = vadd.f32 0.0, %v1229
        %1231 = vmatmul.f32.gmra.mxu0 %v932
        %v1232 = vpop.f32.mrf.mxu0
        %v1233 = vadd.f32 0.0, %v1232
        %1234 = vmatmul.f32.gmra.mxu0 %v936
        %v1235 = vpop.f32.mrf.mxu0
        %v1236 = vadd.f32 0.0, %v1235
        %1237 = vmatmul.f32.gmra.mxu0 %v940
        %v1238 = vpop.f32.mrf.mxu0
        %v1239 = vadd.f32 0.0, %v1238
        %1240 = vmatmul.f32.gmra.mxu0 %v944
        %v1241 = vpop.f32.mrf.mxu0
        %v1242 = vadd.f32 0.0, %v1241
        %1243 = vmatmul.f32.gmra.mxu0 %v948
        %v1244 = vpop.f32.mrf.mxu0
        %v1245 = vadd.f32 0.0, %v1244
        %1246 = vmatmul.f32.gmra.mxu0 %v952
        %v1247 = vpop.f32.mrf.mxu0
        %v1248 = vadd.f32 0.0, %v1247
        %1249 = vmatmul.f32.gmra.mxu0 %v956
        %v1250 = vpop.f32.mrf.mxu0
        %v1251 = vadd.f32 0.0, %v1250
        %1252 = vmatmul.f32.gmra.mxu0 %v960
        %v1253 = vpop.f32.mrf.mxu0
        %v1254 = vadd.f32 0.0, %v1253
        %1255 = vmatmul.f32.gmra.mxu0 %v964
        %v1256 = vpop.f32.mrf.mxu0
        %v1257 = vadd.f32 0.0, %v1256
        %1258 = vmatmul.f32.gmra.mxu0 %v968
        %v1259 = vpop.f32.mrf.mxu0
        %v1260 = vadd.f32 0.0, %v1259
        %1261 = vmatmul.f32.gmra.mxu0 %v972
        %v1262 = vpop.f32.mrf.mxu0
        %v1263 = vadd.f32 0.0, %v1262
        %1264 = vmatmul.f32.gmra.mxu0 %v976
        %v1265 = vpop.f32.mrf.mxu0
        %v1266 = vadd.f32 0.0, %v1265
        %1267 = vmatmul.f32.gmra.mxu0 %v980
        %v1268 = vpop.f32.mrf.mxu0
        %v1269 = vadd.f32 0.0, %v1268
        %1270 = vmatmul.f32.gmra.mxu0 %v984
        %v1271 = vpop.f32.mrf.mxu0
        %v1272 = vadd.f32 0.0, %v1271
        %1273 = vmatmul.f32.gmra.mxu0 %v988
        %v1274 = vpop.f32.mrf.mxu0
        %v1275 = vadd.f32 0.0, %v1274
        %1276 = vmatmul.f32.gmra.mxu0 %v992
        %v1277 = vpop.f32.mrf.mxu0
        %v1278 = vadd.f32 0.0, %v1277
        %1279 = vmatmul.f32.gmra.mxu0 %v996
        %v1280 = vpop.f32.mrf.mxu0
        %v1281 = vadd.f32 0.0, %v1280
        %1282 = vmatmul.f32.gmra.mxu0 %v1000
        %v1283 = vpop.f32.mrf.mxu0
        %v1284 = vadd.f32 0.0, %v1283
        %1285 = vmatmul.f32.gmra.mxu0 %v1004
        %v1286 = vpop.f32.mrf.mxu0
        %v1287 = vadd.f32 0.0, %v1286
        %1288 = vmatmul.f32.gmra.mxu0 %v1008
        %v1289 = vpop.f32.mrf.mxu0
        %v1290 = vadd.f32 0.0, %v1289
        %1291 = vmatmul.f32.gmra.mxu0 %v1012
        %v1292 = vpop.f32.mrf.mxu0
        %v1293 = vadd.f32 0.0, %v1292
        %1294 = vmatmul.f32.gmra.mxu0 %v1016
        %v1295 = vpop.f32.mrf.mxu0
        %v1296 = vadd.f32 0.0, %v1295
        %1297 = vmatmul.f32.gmra.mxu0 %v1020
        %v1298 = vpop.f32.mrf.mxu0
        %v1299 = vadd.f32 0.0, %v1298
        %1300 = vmatmul.f32.gmra.mxu0 %v1024
        %v1301 = vpop.f32.mrf.mxu0
        %v1302 = vadd.f32 0.0, %v1301
        %1303 = vmatmul.f32.gmra.mxu0 %v1028
        %v1304 = vpop.f32.mrf.mxu0
        %v1305 = vadd.f32 0.0, %v1304
        %1306 = vmatmul.f32.gmra.mxu0 %v1032
        %v1307 = vpop.f32.mrf.mxu0
        %v1308 = vadd.f32 0.0, %v1307
        %1309 = vmatmul.f32.gmra.mxu0 %v1036
        %v1310 = vpop.f32.mrf.mxu0
        %v1311 = vadd.f32 0.0, %v1310
        %1312 = vmatmul.f32.gmra.mxu0 %v1040
        %v1313 = vpop.f32.mrf.mxu0
        %v1314 = vadd.f32 0.0, %v1313
        %1315 = vdwg.mxu0
        %1316 = vmatpush.msra.mxu0 %v331
        %1317 = vmatpush.msra.mxu0 %v330
        %1318 = vmatpush.msra.mxu0 %v329
        %1319 = vmatpush.msra.mxu0 %v328
        %1320 = vmatpush.msra.mxu0 %v327
        %1321 = vmatpush.msra.mxu0 %v326
        %1322 = vmatpush.msra.mxu0 %v325
        %1323 = vmatpush.msra.mxu0 %v324
        %1324 = vmatpush.msra.mxu0 %v323
        %1325 = vmatpush.msra.mxu0 %v322
        %1326 = vmatpush.msra.mxu0 %v321
        %1327 = vmatpush.msra.mxu0 %v320
        %1328 = vmatpush.msra.mxu0 %v319
        %1329 = vmatpush.msra.mxu0 %v318
        %1330 = vmatpush.msra.mxu0 %v317
        %1331 = vmatpush.msra.mxu0 %v316
        %1332 = vmatmul.f32.gmra.mxu0 %v918
        %v1333 = vpop.f32.mrf.mxu0
        %v1334 = vadd.f32 %v1221, %v1333
        %1335 = vmatmul.f32.gmra.mxu0 %v922
        %v1336 = vpop.f32.mrf.mxu0
        %v1337 = vadd.f32 %v1224, %v1336
        %1338 = vmatmul.f32.gmra.mxu0 %v926
        %v1339 = vpop.f32.mrf.mxu0
        %v1340 = vadd.f32 %v1227, %v1339
        %1341 = vmatmul.f32.gmra.mxu0 %v930
        %v1342 = vpop.f32.mrf.mxu0
        %v1343 = vadd.f32 %v1230, %v1342
        %1344 = vmatmul.f32.gmra.mxu0 %v934
        %v1345 = vpop.f32.mrf.mxu0
        %v1346 = vadd.f32 %v1233, %v1345
        %1347 = vmatmul.f32.gmra.mxu0 %v938
        %v1348 = vpop.f32.mrf.mxu0
        %v1349 = vadd.f32 %v1236, %v1348
        %1350 = vmatmul.f32.gmra.mxu0 %v942
        %v1351 = vpop.f32.mrf.mxu0
        %v1352 = vadd.f32 %v1239, %v1351
        %1353 = vmatmul.f32.gmra.mxu0 %v946
        %v1354 = vpop.f32.mrf.mxu0
        %v1355 = vadd.f32 %v1242, %v1354
        %1356 = vmatmul.f32.gmra.mxu0 %v950
        %v1357 = vpop.f32.mrf.mxu0
        %v1358 = vadd.f32 %v1245, %v1357
        %1359 = vmatmul.f32.gmra.mxu0 %v954
        %v1360 = vpop.f32.mrf.mxu0
        %v1361 = vadd.f32 %v1248, %v1360
        %1362 = vmatmul.f32.gmra.mxu0 %v958
        %v1363 = vpop.f32.mrf.mxu0
        %v1364 = vadd.f32 %v1251, %v1363
        %1365 = vmatmul.f32.gmra.mxu0 %v962
        %v1366 = vpop.f32.mrf.mxu0
        %v1367 = vadd.f32 %v1254, %v1366
        %1368 = vmatmul.f32.gmra.mxu0 %v966
        %v1369 = vpop.f32.mrf.mxu0
        %v1370 = vadd.f32 %v1257, %v1369
        %1371 = vmatmul.f32.gmra.mxu0 %v970
        %v1372 = vpop.f32.mrf.mxu0
        %v1373 = vadd.f32 %v1260, %v1372
        %1374 = vmatmul.f32.gmra.mxu0 %v974
        %v1375 = vpop.f32.mrf.mxu0
        %v1376 = vadd.f32 %v1263, %v1375
        %1377 = vmatmul.f32.gmra.mxu0 %v978
        %v1378 = vpop.f32.mrf.mxu0
        %v1379 = vadd.f32 %v1266, %v1378
        %1380 = vmatmul.f32.gmra.mxu0 %v982
        %v1381 = vpop.f32.mrf.mxu0
        %v1382 = vadd.f32 %v1269, %v1381
        %1383 = vmatmul.f32.gmra.mxu0 %v986
        %v1384 = vpop.f32.mrf.mxu0
        %v1385 = vadd.f32 %v1272, %v1384
        %1386 = vmatmul.f32.gmra.mxu0 %v990
        %v1387 = vpop.f32.mrf.mxu0
        %v1388 = vadd.f32 %v1275, %v1387
        %1389 = vmatmul.f32.gmra.mxu0 %v994
        %v1390 = vpop.f32.mrf.mxu0
        %v1391 = vadd.f32 %v1278, %v1390
        %1392 = vmatmul.f32.gmra.mxu0 %v998
        %v1393 = vpop.f32.mrf.mxu0
        %v1394 = vadd.f32 %v1281, %v1393
        %1395 = vmatmul.f32.gmra.mxu0 %v1002
        %v1396 = vpop.f32.mrf.mxu0
        %v1397 = vadd.f32 %v1284, %v1396
        %1398 = vmatmul.f32.gmra.mxu0 %v1006
        %v1399 = vpop.f32.mrf.mxu0
        %v1400 = vadd.f32 %v1287, %v1399
        %1401 = vmatmul.f32.gmra.mxu0 %v1010
        %v1402 = vpop.f32.mrf.mxu0
        %v1403 = vadd.f32 %v1290, %v1402
        %1404 = vmatmul.f32.gmra.mxu0 %v1014
        %v1405 = vpop.f32.mrf.mxu0
        %v1406 = vadd.f32 %v1293, %v1405
        %1407 = vmatmul.f32.gmra.mxu0 %v1018
        %v1408 = vpop.f32.mrf.mxu0
        %v1409 = vadd.f32 %v1296, %v1408
        %1410 = vmatmul.f32.gmra.mxu0 %v1022
        %v1411 = vpop.f32.mrf.mxu0
        %v1412 = vadd.f32 %v1299, %v1411
        %1413 = vmatmul.f32.gmra.mxu0 %v1026
        %v1414 = vpop.f32.mrf.mxu0
        %v1415 = vadd.f32 %v1302, %v1414
        %1416 = vmatmul.f32.gmra.mxu0 %v1030
        %v1417 = vpop.f32.mrf.mxu0
        %v1418 = vadd.f32 %v1305, %v1417
        %1419 = vmatmul.f32.gmra.mxu0 %v1034
        %v1420 = vpop.f32.mrf.mxu0
        %v1421 = vadd.f32 %v1308, %v1420
        %1422 = vmatmul.f32.gmra.mxu0 %v1038
        %v1423 = vpop.f32.mrf.mxu0
        %v1424 = vadd.f32 %v1311, %v1423
        %1425 = vmatmul.f32.gmra.mxu0 %v1042
        %v1426 = vpop.f32.mrf.mxu0
        %v1427 = vadd.f32 %v1314, %v1426
        %1428 = vdwg.mxu0
        %v1429 = vadd.f32 %v1043, %v1334
        %v1430 = vadd.f32 %v1044, %v1337
        %v1431 = vadd.f32 %v1045, %v1340
        %v1432 = vadd.f32 %v1046, %v1343
        %v1433 = vadd.f32 %v1047, %v1346
        %v1434 = vadd.f32 %v1048, %v1349
        %v1435 = vadd.f32 %v1049, %v1352
        %v1436 = vadd.f32 %v1050, %v1355
        %v1437 = vadd.f32 %v1051, %v1358
        %v1438 = vadd.f32 %v1052, %v1361
        %v1439 = vadd.f32 %v1053, %v1364
        %v1440 = vadd.f32 %v1054, %v1367
        %v1441 = vadd.f32 %v1055, %v1370
        %v1442 = vadd.f32 %v1056, %v1373
        %v1443 = vadd.f32 %v1057, %v1376
        %v1444 = vadd.f32 %v1058, %v1379
        %v1445 = vadd.f32 %v1059, %v1382
        %v1446 = vadd.f32 %v1060, %v1385
        %v1447 = vadd.f32 %v1061, %v1388
        %v1448 = vadd.f32 %v1062, %v1391
        %v1449 = vadd.f32 %v1063, %v1394
        %v1450 = vadd.f32 %v1064, %v1397
        %v1451 = vadd.f32 %v1065, %v1400
        %v1452 = vadd.f32 %v1066, %v1403
        %v1453 = vadd.f32 %v1067, %v1406
        %v1454 = vadd.f32 %v1068, %v1409
        %v1455 = vadd.f32 %v1069, %v1412
        %v1456 = vadd.f32 %v1070, %v1415
        %v1457 = vadd.f32 %v1071, %v1418
        %v1458 = vadd.f32 %v1072, %v1421
        %v1459 = vadd.f32 %v1073, %v1424
        %v1460 = vadd.f32 %v1074, %v1427
        %v1461 = vrcp.pop %v1171
        %v1462 = vmul.f32 %v1171, %v1461
        %v1463 = vsub.f32 1.0, %v1462
        %v1464 = vmul.f32 %v1461, %v1463
        %v1465 = vadd.f32 %v1461, %v1464
        %vm1466 = vweird.f32 %v1171
        %vm1467 = vweird.f32 %v1461
        %vm1468 = vmor %vm1466, %vm1467
        %v1469 = vsel %vm1468, %v1461, %v1465
        %v1470 = vand.u32 2147483647, %v1171
        %vm1471 = vcmp.eq.f32.partialorder %v1470, 8.507059e+37
        %v1472 = vand.u32 %v1171, 2147483648
        %v1473 = vor.u32 1.1754944e-38, %v1472
        %v1474 = vsel %vm1471, %v1473, %v1469
        %v1475 = vmul.f32 %v1429, %v1474
        %v1476 = vrcp.pop %v1172
        %v1477 = vmul.f32 %v1172, %v1476
        %v1478 = vsub.f32 1.0, %v1477
        %v1479 = vmul.f32 %v1476, %v1478
        %v1480 = vadd.f32 %v1476, %v1479
        %vm1481 = vweird.f32 %v1172
        %vm1482 = vweird.f32 %v1476
        %vm1483 = vmor %vm1481, %vm1482
        %v1484 = vsel %vm1483, %v1476, %v1480
        %v1485 = vand.u32 2147483647, %v1172
        %vm1486 = vcmp.eq.f32.partialorder %v1485, 8.507059e+37
        %v1487 = vand.u32 %v1172, 2147483648
        %v1488 = vor.u32 1.1754944e-38, %v1487
        %v1489 = vsel %vm1486, %v1488, %v1484
        %v1490 = vmul.f32 %v1430, %v1489
        %v1491 = vrcp.pop %v1173
        %v1492 = vmul.f32 %v1173, %v1491
        %v1493 = vsub.f32 1.0, %v1492
        %v1494 = vmul.f32 %v1491, %v1493
        %v1495 = vadd.f32 %v1491, %v1494
        %vm1496 = vweird.f32 %v1173
        %vm1497 = vweird.f32 %v1491
        %vm1498 = vmor %vm1496, %vm1497
        %v1499 = vsel %vm1498, %v1491, %v1495
        %v1500 = vand.u32 2147483647, %v1173
        %vm1501 = vcmp.eq.f32.partialorder %v1500, 8.507059e+37
        %v1502 = vand.u32 %v1173, 2147483648
        %v1503 = vor.u32 1.1754944e-38, %v1502
        %v1504 = vsel %vm1501, %v1503, %v1499
        %v1505 = vmul.f32 %v1431, %v1504
        %v1506 = vrcp.pop %v1174
        %v1507 = vmul.f32 %v1174, %v1506
        %v1508 = vsub.f32 1.0, %v1507
        %v1509 = vmul.f32 %v1506, %v1508
        %v1510 = vadd.f32 %v1506, %v1509
        %vm1511 = vweird.f32 %v1174
        %vm1512 = vweird.f32 %v1506
        %vm1513 = vmor %vm1511, %vm1512
        %v1514 = vsel %vm1513, %v1506, %v1510
        %v1515 = vand.u32 2147483647, %v1174
        %vm1516 = vcmp.eq.f32.partialorder %v1515, 8.507059e+37
        %v1517 = vand.u32 %v1174, 2147483648
        %v1518 = vor.u32 1.1754944e-38, %v1517
        %v1519 = vsel %vm1516, %v1518, %v1514
        %v1520 = vmul.f32 %v1432, %v1519
        %v1521 = vrcp.pop %v1175
        %v1522 = vmul.f32 %v1175, %v1521
        %v1523 = vsub.f32 1.0, %v1522
        %v1524 = vmul.f32 %v1521, %v1523
        %v1525 = vadd.f32 %v1521, %v1524
        %vm1526 = vweird.f32 %v1175
        %vm1527 = vweird.f32 %v1521
        %vm1528 = vmor %vm1526, %vm1527
        %v1529 = vsel %vm1528, %v1521, %v1525
        %v1530 = vand.u32 2147483647, %v1175
        %vm1531 = vcmp.eq.f32.partialorder %v1530, 8.507059e+37
        %v1532 = vand.u32 %v1175, 2147483648
        %v1533 = vor.u32 1.1754944e-38, %v1532
        %v1534 = vsel %vm1531, %v1533, %v1529
        %v1535 = vmul.f32 %v1433, %v1534
        %v1536 = vrcp.pop %v1176
        %v1537 = vmul.f32 %v1176, %v1536
        %v1538 = vsub.f32 1.0, %v1537
        %v1539 = vmul.f32 %v1536, %v1538
        %v1540 = vadd.f32 %v1536, %v1539
        %vm1541 = vweird.f32 %v1176
        %vm1542 = vweird.f32 %v1536
        %vm1543 = vmor %vm1541, %vm1542
        %v1544 = vsel %vm1543, %v1536, %v1540
        %v1545 = vand.u32 2147483647, %v1176
        %vm1546 = vcmp.eq.f32.partialorder %v1545, 8.507059e+37
        %v1547 = vand.u32 %v1176, 2147483648
        %v1548 = vor.u32 1.1754944e-38, %v1547
        %v1549 = vsel %vm1546, %v1548, %v1544
        %v1550 = vmul.f32 %v1434, %v1549
        %v1551 = vrcp.pop %v1177
        %v1552 = vmul.f32 %v1177, %v1551
        %v1553 = vsub.f32 1.0, %v1552
        %v1554 = vmul.f32 %v1551, %v1553
        %v1555 = vadd.f32 %v1551, %v1554
        %vm1556 = vweird.f32 %v1177
        %vm1557 = vweird.f32 %v1551
        %vm1558 = vmor %vm1556, %vm1557
        %v1559 = vsel %vm1558, %v1551, %v1555
        %v1560 = vand.u32 2147483647, %v1177
        %vm1561 = vcmp.eq.f32.partialorder %v1560, 8.507059e+37
        %v1562 = vand.u32 %v1177, 2147483648
        %v1563 = vor.u32 1.1754944e-38, %v1562
        %v1564 = vsel %vm1561, %v1563, %v1559
        %v1565 = vmul.f32 %v1435, %v1564
        %v1566 = vrcp.pop %v1178
        %v1567 = vmul.f32 %v1178, %v1566
        %v1568 = vsub.f32 1.0, %v1567
        %v1569 = vmul.f32 %v1566, %v1568
        %v1570 = vadd.f32 %v1566, %v1569
        %vm1571 = vweird.f32 %v1178
        %vm1572 = vweird.f32 %v1566
        %vm1573 = vmor %vm1571, %vm1572
        %v1574 = vsel %vm1573, %v1566, %v1570
        %v1575 = vand.u32 2147483647, %v1178
        %vm1576 = vcmp.eq.f32.partialorder %v1575, 8.507059e+37
        %v1577 = vand.u32 %v1178, 2147483648
        %v1578 = vor.u32 1.1754944e-38, %v1577
        %v1579 = vsel %vm1576, %v1578, %v1574
        %v1580 = vmul.f32 %v1436, %v1579
        %v1581 = vrcp.pop %v1179
        %v1582 = vmul.f32 %v1179, %v1581
        %v1583 = vsub.f32 1.0, %v1582
        %v1584 = vmul.f32 %v1581, %v1583
        %v1585 = vadd.f32 %v1581, %v1584
        %vm1586 = vweird.f32 %v1179
        %vm1587 = vweird.f32 %v1581
        %vm1588 = vmor %vm1586, %vm1587
        %v1589 = vsel %vm1588, %v1581, %v1585
        %v1590 = vand.u32 2147483647, %v1179
        %vm1591 = vcmp.eq.f32.partialorder %v1590, 8.507059e+37
        %v1592 = vand.u32 %v1179, 2147483648
        %v1593 = vor.u32 1.1754944e-38, %v1592
        %v1594 = vsel %vm1591, %v1593, %v1589
        %v1595 = vmul.f32 %v1437, %v1594
        %v1596 = vrcp.pop %v1180
        %v1597 = vmul.f32 %v1180, %v1596
        %v1598 = vsub.f32 1.0, %v1597
        %v1599 = vmul.f32 %v1596, %v1598
        %v1600 = vadd.f32 %v1596, %v1599
        %vm1601 = vweird.f32 %v1180
        %vm1602 = vweird.f32 %v1596
        %vm1603 = vmor %vm1601, %vm1602
        %v1604 = vsel %vm1603, %v1596, %v1600
        %v1605 = vand.u32 2147483647, %v1180
        %vm1606 = vcmp.eq.f32.partialorder %v1605, 8.507059e+37
        %v1607 = vand.u32 %v1180, 2147483648
        %v1608 = vor.u32 1.1754944e-38, %v1607
        %v1609 = vsel %vm1606, %v1608, %v1604
        %v1610 = vmul.f32 %v1438, %v1609
        %v1611 = vrcp.pop %v1181
        %v1612 = vmul.f32 %v1181, %v1611
        %v1613 = vsub.f32 1.0, %v1612
        %v1614 = vmul.f32 %v1611, %v1613
        %v1615 = vadd.f32 %v1611, %v1614
        %vm1616 = vweird.f32 %v1181
        %vm1617 = vweird.f32 %v1611
        %vm1618 = vmor %vm1616, %vm1617
        %v1619 = vsel %vm1618, %v1611, %v1615
        %v1620 = vand.u32 2147483647, %v1181
        %vm1621 = vcmp.eq.f32.partialorder %v1620, 8.507059e+37
        %v1622 = vand.u32 %v1181, 2147483648
        %v1623 = vor.u32 1.1754944e-38, %v1622
        %v1624 = vsel %vm1621, %v1623, %v1619
        %v1625 = vmul.f32 %v1439, %v1624
        %v1626 = vrcp.pop %v1182
        %v1627 = vmul.f32 %v1182, %v1626
        %v1628 = vsub.f32 1.0, %v1627
        %v1629 = vmul.f32 %v1626, %v1628
        %v1630 = vadd.f32 %v1626, %v1629
        %vm1631 = vweird.f32 %v1182
        %vm1632 = vweird.f32 %v1626
        %vm1633 = vmor %vm1631, %vm1632
        %v1634 = vsel %vm1633, %v1626, %v1630
        %v1635 = vand.u32 2147483647, %v1182
        %vm1636 = vcmp.eq.f32.partialorder %v1635, 8.507059e+37
        %v1637 = vand.u32 %v1182, 2147483648
        %v1638 = vor.u32 1.1754944e-38, %v1637
        %v1639 = vsel %vm1636, %v1638, %v1634
        %v1640 = vmul.f32 %v1440, %v1639
        %v1641 = vrcp.pop %v1183
        %v1642 = vmul.f32 %v1183, %v1641
        %v1643 = vsub.f32 1.0, %v1642
        %v1644 = vmul.f32 %v1641, %v1643
        %v1645 = vadd.f32 %v1641, %v1644
        %vm1646 = vweird.f32 %v1183
        %vm1647 = vweird.f32 %v1641
        %vm1648 = vmor %vm1646, %vm1647
        %v1649 = vsel %vm1648, %v1641, %v1645
        %v1650 = vand.u32 2147483647, %v1183
        %vm1651 = vcmp.eq.f32.partialorder %v1650, 8.507059e+37
        %v1652 = vand.u32 %v1183, 2147483648
        %v1653 = vor.u32 1.1754944e-38, %v1652
        %v1654 = vsel %vm1651, %v1653, %v1649
        %v1655 = vmul.f32 %v1441, %v1654
        %v1656 = vrcp.pop %v1184
        %v1657 = vmul.f32 %v1184, %v1656
        %v1658 = vsub.f32 1.0, %v1657
        %v1659 = vmul.f32 %v1656, %v1658
        %v1660 = vadd.f32 %v1656, %v1659
        %vm1661 = vweird.f32 %v1184
        %vm1662 = vweird.f32 %v1656
        %vm1663 = vmor %vm1661, %vm1662
        %v1664 = vsel %vm1663, %v1656, %v1660
        %v1665 = vand.u32 2147483647, %v1184
        %vm1666 = vcmp.eq.f32.partialorder %v1665, 8.507059e+37
        %v1667 = vand.u32 %v1184, 2147483648
        %v1668 = vor.u32 1.1754944e-38, %v1667
        %v1669 = vsel %vm1666, %v1668, %v1664
        %v1670 = vmul.f32 %v1442, %v1669
        %v1671 = vrcp.pop %v1185
        %v1672 = vmul.f32 %v1185, %v1671
        %v1673 = vsub.f32 1.0, %v1672
        %v1674 = vmul.f32 %v1671, %v1673
        %v1675 = vadd.f32 %v1671, %v1674
        %vm1676 = vweird.f32 %v1185
        %vm1677 = vweird.f32 %v1671
        %vm1678 = vmor %vm1676, %vm1677
        %v1679 = vsel %vm1678, %v1671, %v1675
        %v1680 = vand.u32 2147483647, %v1185
        %vm1681 = vcmp.eq.f32.partialorder %v1680, 8.507059e+37
        %v1682 = vand.u32 %v1185, 2147483648
        %v1683 = vor.u32 1.1754944e-38, %v1682
        %v1684 = vsel %vm1681, %v1683, %v1679
        %v1685 = vmul.f32 %v1443, %v1684
        %v1686 = vrcp.pop %v1186
        %v1687 = vmul.f32 %v1186, %v1686
        %v1688 = vsub.f32 1.0, %v1687
        %v1689 = vmul.f32 %v1686, %v1688
        %v1690 = vadd.f32 %v1686, %v1689
        %vm1691 = vweird.f32 %v1186
        %vm1692 = vweird.f32 %v1686
        %vm1693 = vmor %vm1691, %vm1692
        %v1694 = vsel %vm1693, %v1686, %v1690
        %v1695 = vand.u32 2147483647, %v1186
        %vm1696 = vcmp.eq.f32.partialorder %v1695, 8.507059e+37
        %v1697 = vand.u32 %v1186, 2147483648
        %v1698 = vor.u32 1.1754944e-38, %v1697
        %v1699 = vsel %vm1696, %v1698, %v1694
        %v1700 = vmul.f32 %v1444, %v1699
        %v1701 = vrcp.pop %v1187
        %v1702 = vmul.f32 %v1187, %v1701
        %v1703 = vsub.f32 1.0, %v1702
        %v1704 = vmul.f32 %v1701, %v1703
        %v1705 = vadd.f32 %v1701, %v1704
        %vm1706 = vweird.f32 %v1187
        %vm1707 = vweird.f32 %v1701
        %vm1708 = vmor %vm1706, %vm1707
        %v1709 = vsel %vm1708, %v1701, %v1705
        %v1710 = vand.u32 2147483647, %v1187
        %vm1711 = vcmp.eq.f32.partialorder %v1710, 8.507059e+37
        %v1712 = vand.u32 %v1187, 2147483648
        %v1713 = vor.u32 1.1754944e-38, %v1712
        %v1714 = vsel %vm1711, %v1713, %v1709
        %v1715 = vmul.f32 %v1445, %v1714
        %v1716 = vrcp.pop %v1188
        %v1717 = vmul.f32 %v1188, %v1716
        %v1718 = vsub.f32 1.0, %v1717
        %v1719 = vmul.f32 %v1716, %v1718
        %v1720 = vadd.f32 %v1716, %v1719
        %vm1721 = vweird.f32 %v1188
        %vm1722 = vweird.f32 %v1716
        %vm1723 = vmor %vm1721, %vm1722
        %v1724 = vsel %vm1723, %v1716, %v1720
        %v1725 = vand.u32 2147483647, %v1188
        %vm1726 = vcmp.eq.f32.partialorder %v1725, 8.507059e+37
        %v1727 = vand.u32 %v1188, 2147483648
        %v1728 = vor.u32 1.1754944e-38, %v1727
        %v1729 = vsel %vm1726, %v1728, %v1724
        %v1730 = vmul.f32 %v1446, %v1729
        %v1731 = vrcp.pop %v1189
        %v1732 = vmul.f32 %v1189, %v1731
        %v1733 = vsub.f32 1.0, %v1732
        %v1734 = vmul.f32 %v1731, %v1733
        %v1735 = vadd.f32 %v1731, %v1734
        %vm1736 = vweird.f32 %v1189
        %vm1737 = vweird.f32 %v1731
        %vm1738 = vmor %vm1736, %vm1737
        %v1739 = vsel %vm1738, %v1731, %v1735
        %v1740 = vand.u32 2147483647, %v1189
        %vm1741 = vcmp.eq.f32.partialorder %v1740, 8.507059e+37
        %v1742 = vand.u32 %v1189, 2147483648
        %v1743 = vor.u32 1.1754944e-38, %v1742
        %v1744 = vsel %vm1741, %v1743, %v1739
        %v1745 = vmul.f32 %v1447, %v1744
        %v1746 = vrcp.pop %v1190
        %v1747 = vmul.f32 %v1190, %v1746
        %v1748 = vsub.f32 1.0, %v1747
        %v1749 = vmul.f32 %v1746, %v1748
        %v1750 = vadd.f32 %v1746, %v1749
        %vm1751 = vweird.f32 %v1190
        %vm1752 = vweird.f32 %v1746
        %vm1753 = vmor %vm1751, %vm1752
        %v1754 = vsel %vm1753, %v1746, %v1750
        %v1755 = vand.u32 2147483647, %v1190
        %vm1756 = vcmp.eq.f32.partialorder %v1755, 8.507059e+37
        %v1757 = vand.u32 %v1190, 2147483648
        %v1758 = vor.u32 1.1754944e-38, %v1757
        %v1759 = vsel %vm1756, %v1758, %v1754
        %v1760 = vmul.f32 %v1448, %v1759
        %v1761 = vrcp.pop %v1191
        %v1762 = vmul.f32 %v1191, %v1761
        %v1763 = vsub.f32 1.0, %v1762
        %v1764 = vmul.f32 %v1761, %v1763
        %v1765 = vadd.f32 %v1761, %v1764
        %vm1766 = vweird.f32 %v1191
        %vm1767 = vweird.f32 %v1761
        %vm1768 = vmor %vm1766, %vm1767
        %v1769 = vsel %vm1768, %v1761, %v1765
        %v1770 = vand.u32 2147483647, %v1191
        %vm1771 = vcmp.eq.f32.partialorder %v1770, 8.507059e+37
        %v1772 = vand.u32 %v1191, 2147483648
        %v1773 = vor.u32 1.1754944e-38, %v1772
        %v1774 = vsel %vm1771, %v1773, %v1769
        %v1775 = vmul.f32 %v1449, %v1774
        %v1776 = vrcp.pop %v1192
        %v1777 = vmul.f32 %v1192, %v1776
        %v1778 = vsub.f32 1.0, %v1777
        %v1779 = vmul.f32 %v1776, %v1778
        %v1780 = vadd.f32 %v1776, %v1779
        %vm1781 = vweird.f32 %v1192
        %vm1782 = vweird.f32 %v1776
        %vm1783 = vmor %vm1781, %vm1782
        %v1784 = vsel %vm1783, %v1776, %v1780
        %v1785 = vand.u32 2147483647, %v1192
        %vm1786 = vcmp.eq.f32.partialorder %v1785, 8.507059e+37
        %v1787 = vand.u32 %v1192, 2147483648
        %v1788 = vor.u32 1.1754944e-38, %v1787
        %v1789 = vsel %vm1786, %v1788, %v1784
        %v1790 = vmul.f32 %v1450, %v1789
        %v1791 = vrcp.pop %v1193
        %v1792 = vmul.f32 %v1193, %v1791
        %v1793 = vsub.f32 1.0, %v1792
        %v1794 = vmul.f32 %v1791, %v1793
        %v1795 = vadd.f32 %v1791, %v1794
        %vm1796 = vweird.f32 %v1193
        %vm1797 = vweird.f32 %v1791
        %vm1798 = vmor %vm1796, %vm1797
        %v1799 = vsel %vm1798, %v1791, %v1795
        %v1800 = vand.u32 2147483647, %v1193
        %vm1801 = vcmp.eq.f32.partialorder %v1800, 8.507059e+37
        %v1802 = vand.u32 %v1193, 2147483648
        %v1803 = vor.u32 1.1754944e-38, %v1802
        %v1804 = vsel %vm1801, %v1803, %v1799
        %v1805 = vmul.f32 %v1451, %v1804
        %v1806 = vrcp.pop %v1194
        %v1807 = vmul.f32 %v1194, %v1806
        %v1808 = vsub.f32 1.0, %v1807
        %v1809 = vmul.f32 %v1806, %v1808
        %v1810 = vadd.f32 %v1806, %v1809
        %vm1811 = vweird.f32 %v1194
        %vm1812 = vweird.f32 %v1806
        %vm1813 = vmor %vm1811, %vm1812
        %v1814 = vsel %vm1813, %v1806, %v1810
        %v1815 = vand.u32 2147483647, %v1194
        %vm1816 = vcmp.eq.f32.partialorder %v1815, 8.507059e+37
        %v1817 = vand.u32 %v1194, 2147483648
        %v1818 = vor.u32 1.1754944e-38, %v1817
        %v1819 = vsel %vm1816, %v1818, %v1814
        %v1820 = vmul.f32 %v1452, %v1819
        %v1821 = vrcp.pop %v1195
        %v1822 = vmul.f32 %v1195, %v1821
        %v1823 = vsub.f32 1.0, %v1822
        %v1824 = vmul.f32 %v1821, %v1823
        %v1825 = vadd.f32 %v1821, %v1824
        %vm1826 = vweird.f32 %v1195
        %vm1827 = vweird.f32 %v1821
        %vm1828 = vmor %vm1826, %vm1827
        %v1829 = vsel %vm1828, %v1821, %v1825
        %v1830 = vand.u32 2147483647, %v1195
        %vm1831 = vcmp.eq.f32.partialorder %v1830, 8.507059e+37
        %v1832 = vand.u32 %v1195, 2147483648
        %v1833 = vor.u32 1.1754944e-38, %v1832
        %v1834 = vsel %vm1831, %v1833, %v1829
        %v1835 = vmul.f32 %v1453, %v1834
        %v1836 = vrcp.pop %v1196
        %v1837 = vmul.f32 %v1196, %v1836
        %v1838 = vsub.f32 1.0, %v1837
        %v1839 = vmul.f32 %v1836, %v1838
        %v1840 = vadd.f32 %v1836, %v1839
        %vm1841 = vweird.f32 %v1196
        %vm1842 = vweird.f32 %v1836
        %vm1843 = vmor %vm1841, %vm1842
        %v1844 = vsel %vm1843, %v1836, %v1840
        %v1845 = vand.u32 2147483647, %v1196
        %vm1846 = vcmp.eq.f32.partialorder %v1845, 8.507059e+37
        %v1847 = vand.u32 %v1196, 2147483648
        %v1848 = vor.u32 1.1754944e-38, %v1847
        %v1849 = vsel %vm1846, %v1848, %v1844
        %v1850 = vmul.f32 %v1454, %v1849
        %v1851 = vrcp.pop %v1197
        %v1852 = vmul.f32 %v1197, %v1851
        %v1853 = vsub.f32 1.0, %v1852
        %v1854 = vmul.f32 %v1851, %v1853
        %v1855 = vadd.f32 %v1851, %v1854
        %vm1856 = vweird.f32 %v1197
        %vm1857 = vweird.f32 %v1851
        %vm1858 = vmor %vm1856, %vm1857
        %v1859 = vsel %vm1858, %v1851, %v1855
        %v1860 = vand.u32 2147483647, %v1197
        %vm1861 = vcmp.eq.f32.partialorder %v1860, 8.507059e+37
        %v1862 = vand.u32 %v1197, 2147483648
        %v1863 = vor.u32 1.1754944e-38, %v1862
        %v1864 = vsel %vm1861, %v1863, %v1859
        %v1865 = vmul.f32 %v1455, %v1864
        %v1866 = vrcp.pop %v1198
        %v1867 = vmul.f32 %v1198, %v1866
        %v1868 = vsub.f32 1.0, %v1867
        %v1869 = vmul.f32 %v1866, %v1868
        %v1870 = vadd.f32 %v1866, %v1869
        %vm1871 = vweird.f32 %v1198
        %vm1872 = vweird.f32 %v1866
        %vm1873 = vmor %vm1871, %vm1872
        %v1874 = vsel %vm1873, %v1866, %v1870
        %v1875 = vand.u32 2147483647, %v1198
        %vm1876 = vcmp.eq.f32.partialorder %v1875, 8.507059e+37
        %v1877 = vand.u32 %v1198, 2147483648
        %v1878 = vor.u32 1.1754944e-38, %v1877
        %v1879 = vsel %vm1876, %v1878, %v1874
        %v1880 = vmul.f32 %v1456, %v1879
        %v1881 = vrcp.pop %v1199
        %v1882 = vmul.f32 %v1199, %v1881
        %v1883 = vsub.f32 1.0, %v1882
        %v1884 = vmul.f32 %v1881, %v1883
        %v1885 = vadd.f32 %v1881, %v1884
        %vm1886 = vweird.f32 %v1199
        %vm1887 = vweird.f32 %v1881
        %vm1888 = vmor %vm1886, %vm1887
        %v1889 = vsel %vm1888, %v1881, %v1885
        %v1890 = vand.u32 2147483647, %v1199
        %vm1891 = vcmp.eq.f32.partialorder %v1890, 8.507059e+37
        %v1892 = vand.u32 %v1199, 2147483648
        %v1893 = vor.u32 1.1754944e-38, %v1892
        %v1894 = vsel %vm1891, %v1893, %v1889
        %v1895 = vmul.f32 %v1457, %v1894
        %v1896 = vrcp.pop %v1200
        %v1897 = vmul.f32 %v1200, %v1896
        %v1898 = vsub.f32 1.0, %v1897
        %v1899 = vmul.f32 %v1896, %v1898
        %v1900 = vadd.f32 %v1896, %v1899
        %vm1901 = vweird.f32 %v1200
        %vm1902 = vweird.f32 %v1896
        %vm1903 = vmor %vm1901, %vm1902
        %v1904 = vsel %vm1903, %v1896, %v1900
        %v1905 = vand.u32 2147483647, %v1200
        %vm1906 = vcmp.eq.f32.partialorder %v1905, 8.507059e+37
        %v1907 = vand.u32 %v1200, 2147483648
        %v1908 = vor.u32 1.1754944e-38, %v1907
        %v1909 = vsel %vm1906, %v1908, %v1904
        %v1910 = vmul.f32 %v1458, %v1909
        %v1911 = vrcp.pop %v1201
        %v1912 = vmul.f32 %v1201, %v1911
        %v1913 = vsub.f32 1.0, %v1912
        %v1914 = vmul.f32 %v1911, %v1913
        %v1915 = vadd.f32 %v1911, %v1914
        %vm1916 = vweird.f32 %v1201
        %vm1917 = vweird.f32 %v1911
        %vm1918 = vmor %vm1916, %vm1917
        %v1919 = vsel %vm1918, %v1911, %v1915
        %v1920 = vand.u32 2147483647, %v1201
        %vm1921 = vcmp.eq.f32.partialorder %v1920, 8.507059e+37
        %v1922 = vand.u32 %v1201, 2147483648
        %v1923 = vor.u32 1.1754944e-38, %v1922
        %v1924 = vsel %vm1921, %v1923, %v1919
        %v1925 = vmul.f32 %v1459, %v1924
        %v1926 = vrcp.pop %v1202
        %v1927 = vmul.f32 %v1202, %v1926
        %v1928 = vsub.f32 1.0, %v1927
        %v1929 = vmul.f32 %v1926, %v1928
        %v1930 = vadd.f32 %v1926, %v1929
        %vm1931 = vweird.f32 %v1202
        %vm1932 = vweird.f32 %v1926
        %vm1933 = vmor %vm1931, %vm1932
        %v1934 = vsel %vm1933, %v1926, %v1930
        %v1935 = vand.u32 2147483647, %v1202
        %vm1936 = vcmp.eq.f32.partialorder %v1935, 8.507059e+37
        %v1937 = vand.u32 %v1202, 2147483648
        %v1938 = vor.u32 1.1754944e-38, %v1937
        %v1939 = vsel %vm1936, %v1938, %v1934
        %v1940 = vmul.f32 %v1460, %v1939
        %1941 = vst [vmem:[%s214] sm:$0xff] %v1475
        %1942 = vst [vmem:[%s214 + $0x8] sm:$0xff] %v1490
        %1943 = vst [vmem:[%s214 + $0x10] sm:$0xff] %v1505
        %1944 = vst [vmem:[%s214 + $0x18] sm:$0xff] %v1520
        %1945 = vst [vmem:[%s214 + $0x20] sm:$0xff] %v1535
        %1946 = vst [vmem:[%s214 + $0x28] sm:$0xff] %v1550
        %1947 = vst [vmem:[%s214 + $0x30] sm:$0xff] %v1565
        %1948 = vst [vmem:[%s214 + $0x38] sm:$0xff] %v1580
        %1949 = vst [vmem:[%s214 + $0x40] sm:$0xff] %v1595
        %1950 = vst [vmem:[%s214 + $0x48] sm:$0xff] %v1610
        %1951 = vst [vmem:[%s214 + $0x50] sm:$0xff] %v1625
        %1952 = vst [vmem:[%s214 + $0x58] sm:$0xff] %v1640
        %1953 = vst [vmem:[%s214 + $0x60] sm:$0xff] %v1655
        %1954 = vst [vmem:[%s214 + $0x68] sm:$0xff] %v1670
        %1955 = vst [vmem:[%s214 + $0x70] sm:$0xff] %v1685
        %1956 = vst [vmem:[%s214 + $0x78] sm:$0xff] %v1700
        %1957 = vst [vmem:[%s214 + $0x80] sm:$0xff] %v1715
        %1958 = vst [vmem:[%s214 + $0x88] sm:$0xff] %v1730
        %1959 = vst [vmem:[%s214 + $0x90] sm:$0xff] %v1745
        %1960 = vst [vmem:[%s214 + $0x98] sm:$0xff] %v1760
        %1961 = vst [vmem:[%s214 + $0xa0] sm:$0xff] %v1775
        %1962 = vst [vmem:[%s214 + $0xa8] sm:$0xff] %v1790
        %1963 = vst [vmem:[%s214 + $0xb0] sm:$0xff] %v1805
        %1964 = vst [vmem:[%s214 + $0xb8] sm:$0xff] %v1820
        %1965 = vst [vmem:[%s214 + $0xc0] sm:$0xff] %v1835
        %1966 = vst [vmem:[%s214 + $0xc8] sm:$0xff] %v1850
        %1967 = vst [vmem:[%s214 + $0xd0] sm:$0xff] %v1865
        %1968 = vst [vmem:[%s214 + $0xd8] sm:$0xff] %v1880
        %1969 = vst [vmem:[%s214 + $0xe0] sm:$0xff] %v1895
        %1970 = vst [vmem:[%s214 + $0xe8] sm:$0xff] %v1910
        %1971 = vst [vmem:[%s214 + $0xf0] sm:$0xff] %v1925
        %1972 = vst [vmem:[%s214 + $0xf8] sm:$0xff] %v1940
        %s1973 = sand.u32 %s116, 1
        %s1974 = sand.u32 %s116, 1
        %s1975 = smul.addr %s1974, 256
        %s1976 = scalar_lea.vmem [#allocation2], %s1975
        // Predicated region
        $region33: #{vision_attention_forward.4} parent=31 // pred_check
          %p1977 = pneg %p126
        $region34: #{vision_attention_forward.4} parent=31 // pred_check_branch
          %1979 = sbr.rel (%p1977) target = $region36
        $region35: #{vision_attention_forward.4} parent=31 // pred_region
          %s1980 = smul.u32 32, %s19
          %s1981 = smul.addr %s1980, 4
          %s1982 = sadd.s32 %s18, %s1981
          %s1983 = smul.addr %s1982, 8
          %s1984 = scalar_lea.vmem %s3, %s1983
          // Predicated region
          $region37: #{vision_attention_forward.4} parent=35 // pred_check
            _
          $region38: #{vision_attention_forward.4} parent=35 // pred_check_branch
            %1986 = sbr.rel (0) target = $region40
          $region39: #{vision_attention_forward.4} parent=35 // pred_region
            // Predicated region
            $region41: #{vision_attention_forward.4} parent=39 // pred_check
              _
            $region42: #{vision_attention_forward.4} parent=39 // pred_check_branch
              %1988 = sbr.rel (0) target = $region44
            $region43: #{vision_attention_forward.4} parent=39 // pred_region
              // Predicated region
              $region56: #{vision_attention_forward.4} parent=43 // pred_check
                _
              $region57: #{vision_attention_forward.4} parent=43 // pred_check_branch
                %2066 = sbr.rel (0) target = $region59
              $region58: #{vision_attention_forward.4} parent=43 // pred_region
                loop: start=0, step=1, limit=1
                $region60: #{vision_attention_forward.4} parent=58 // loop_pre_header
                  _
                $region61: #{vision_attention_forward.4} parent=58 // loop_header
                  %s2068 = sphi 0, %s2072
                  %p2069 = scmp.ge.s32.totalorder %s2068, 1
                  %s2073 = sphi %s1976, %s1976
                  %s2074 = sphi %s1984, %s1984
                $region62: #{vision_attention_forward.4} parent=58 // loop_header_branch
                  %2071 = sbr.rel (%p2069) target = $region66
                $region63: #{vision_attention_forward.4} parent=58 // loop_body
                  %v2075 = vld [vmem:[%s2073] sm:$0xff]
                  %2076 = vst [vmem:[%s2074] sm:$0xff] %v2075
                  %v2077 = vld [vmem:[%s2073 + $0x8] sm:$0xff]
                  %2078 = vst [vmem:[%s2074 + $0x20] sm:$0xff] %v2077
                  %v2079 = vld [vmem:[%s2073 + $0x10] sm:$0xff]
                  %2080 = vst [vmem:[%s2074 + $0x40] sm:$0xff] %v2079
                  %v2081 = vld [vmem:[%s2073 + $0x18] sm:$0xff]
                  %2082 = vst [vmem:[%s2074 + $0x60] sm:$0xff] %v2081
                  %v2083 = vld [vmem:[%s2073 + $0x20] sm:$0xff]
                  %2084 = vst [vmem:[%s2074 + $0x80] sm:$0xff] %v2083
                  %v2085 = vld [vmem:[%s2073 + $0x28] sm:$0xff]
                  %2086 = vst [vmem:[%s2074 + $0xa0] sm:$0xff] %v2085
                  %v2087 = vld [vmem:[%s2073 + $0x30] sm:$0xff]
                  %2088 = vst [vmem:[%s2074 + $0xc0] sm:$0xff] %v2087
                  %v2089 = vld [vmem:[%s2073 + $0x38] sm:$0xff]
                  %2090 = vst [vmem:[%s2074 + $0xe0] sm:$0xff] %v2089
                  %v2091 = vld [vmem:[%s2073 + $0x40] sm:$0xff]
                  %2092 = vst [vmem:[%s2074 + $0x100] sm:$0xff] %v2091
                  %v2093 = vld [vmem:[%s2073 + $0x48] sm:$0xff]
                  %2094 = vst [vmem:[%s2074 + $0x120] sm:$0xff] %v2093
                  %v2095 = vld [vmem:[%s2073 + $0x50] sm:$0xff]
                  %2096 = vst [vmem:[%s2074 + $0x140] sm:$0xff] %v2095
                  %v2097 = vld [vmem:[%s2073 + $0x58] sm:$0xff]
                  %2098 = vst [vmem:[%s2074 + $0x160] sm:$0xff] %v2097
                  %v2099 = vld [vmem:[%s2073 + $0x60] sm:$0xff]
                  %2100 = vst [vmem:[%s2074 + $0x180] sm:$0xff] %v2099
                  %v2101 = vld [vmem:[%s2073 + $0x68] sm:$0xff]
                  %2102 = vst [vmem:[%s2074 + $0x1a0] sm:$0xff] %v2101
                  %v2103 = vld [vmem:[%s2073 + $0x70] sm:$0xff]
                  %2104 = vst [vmem:[%s2074 + $0x1c0] sm:$0xff] %v2103
                  %v2105 = vld [vmem:[%s2073 + $0x78] sm:$0xff]
                  %2106 = vst [vmem:[%s2074 + $0x1e0] sm:$0xff] %v2105
                  %v2107 = vld [vmem:[%s2073 + $0x80] sm:$0xff]
                  %2108 = vst [vmem:[%s2074 + $0x200] sm:$0xff] %v2107
                  %v2109 = vld [vmem:[%s2073 + $0x88] sm:$0xff]
                  %2110 = vst [vmem:[%s2074 + $0x220] sm:$0xff] %v2109
                  %v2111 = vld [vmem:[%s2073 + $0x90] sm:$0xff]
                  %2112 = vst [vmem:[%s2074 + $0x240] sm:$0xff] %v2111
                  %v2113 = vld [vmem:[%s2073 + $0x98] sm:$0xff]
                  %2114 = vst [vmem:[%s2074 + $0x260] sm:$0xff] %v2113
                  %v2115 = vld [vmem:[%s2073 + $0xa0] sm:$0xff]
                  %2116 = vst [vmem:[%s2074 + $0x280] sm:$0xff] %v2115
                  %v2117 = vld [vmem:[%s2073 + $0xa8] sm:$0xff]
                  %2118 = vst [vmem:[%s2074 + $0x2a0] sm:$0xff] %v2117
                  %v2119 = vld [vmem:[%s2073 + $0xb0] sm:$0xff]
                  %2120 = vst [vmem:[%s2074 + $0x2c0] sm:$0xff] %v2119
                  %v2121 = vld [vmem:[%s2073 + $0xb8] sm:$0xff]
                  %2122 = vst [vmem:[%s2074 + $0x2e0] sm:$0xff] %v2121
                  %v2123 = vld [vmem:[%s2073 + $0xc0] sm:$0xff]
                  %2124 = vst [vmem:[%s2074 + $0x300] sm:$0xff] %v2123
                  %v2125 = vld [vmem:[%s2073 + $0xc8] sm:$0xff]
                  %2126 = vst [vmem:[%s2074 + $0x320] sm:$0xff] %v2125
                  %v2127 = vld [vmem:[%s2073 + $0xd0] sm:$0xff]
                  %2128 = vst [vmem:[%s2074 + $0x340] sm:$0xff] %v2127
                  %v2129 = vld [vmem:[%s2073 + $0xd8] sm:$0xff]
                  %2130 = vst [vmem:[%s2074 + $0x360] sm:$0xff] %v2129
                  %v2131 = vld [vmem:[%s2073 + $0xe0] sm:$0xff]
                  %2132 = vst [vmem:[%s2074 + $0x380] sm:$0xff] %v2131
                  %v2133 = vld [vmem:[%s2073 + $0xe8] sm:$0xff]
                  %2134 = vst [vmem:[%s2074 + $0x3a0] sm:$0xff] %v2133
                  %v2135 = vld [vmem:[%s2073 + $0xf0] sm:$0xff]
                  %2136 = vst [vmem:[%s2074 + $0x3c0] sm:$0xff] %v2135
                  %v2137 = vld [vmem:[%s2073 + $0xf8] sm:$0xff]
                  %2138 = vst [vmem:[%s2074 + $0x3e0] sm:$0xff] %v2137
                $region64: #{vision_attention_forward.4} parent=58 // loop_footer
                  %s2072 = sadd.s32 1, %s2068
                $region65: #{vision_attention_forward.4} parent=58 // loop_footer_branch
                  %2067 = sbr.rel target = $region61
                $region66: #{vision_attention_forward.4} parent=58 // loop_exit
                  _
              $region59: #{vision_attention_forward.4} parent=43 // pred_fallthru
                _
              // Predicated region
              $region67: #{vision_attention_forward.4} parent=43 // pred_check
                _
              $region68: #{vision_attention_forward.4} parent=43 // pred_check_branch
                %2140 = sbr.rel target = $region70
              $region69: #{vision_attention_forward.4} parent=43 // pred_region
                _
              $region70: #{vision_attention_forward.4} parent=43 // pred_fallthru
                _
            $region44: #{vision_attention_forward.4} parent=39 // pred_fallthru
              _
            // Predicated region
            $region45: #{vision_attention_forward.4} parent=39 // pred_check
              _
            $region46: #{vision_attention_forward.4} parent=39 // pred_check_branch
              %1990 = sbr.rel target = $region48
            $region47: #{vision_attention_forward.4} parent=39 // pred_region
              %s1992 = ssub.s32 256, 1
              loop: start=0, step=1, limit=1
              $region49: #{vision_attention_forward.4} parent=47 // loop_pre_header
                _
              $region50: #{vision_attention_forward.4} parent=47 // loop_header
                %s1994 = sphi 0, %s1998
                %p1995 = scmp.ge.s32.totalorder %s1994, 1
                %s1999 = sphi %s1976, %s1976
                %s2000 = sphi %s1984, %s1984
              $region51: #{vision_attention_forward.4} parent=47 // loop_header_branch
                %1997 = sbr.rel (%p1995) target = $region55
              $region52: #{vision_attention_forward.4} parent=47 // loop_body
                %v2001 = vld [vmem:[%s1999] sm:%s1992]
                %2002 = vst [vmem:[%s2000] sm:%s1992] %v2001
                %v2003 = vld [vmem:[%s1999 + $0x8] sm:%s1992]
                %2004 = vst [vmem:[%s2000 + $0x20] sm:%s1992] %v2003
                %v2005 = vld [vmem:[%s1999 + $0x10] sm:%s1992]
                %2006 = vst [vmem:[%s2000 + $0x40] sm:%s1992] %v2005
                %v2007 = vld [vmem:[%s1999 + $0x18] sm:%s1992]
                %2008 = vst [vmem:[%s2000 + $0x60] sm:%s1992] %v2007
                %v2009 = vld [vmem:[%s1999 + $0x20] sm:%s1992]
                %2010 = vst [vmem:[%s2000 + $0x80] sm:%s1992] %v2009
                %v2011 = vld [vmem:[%s1999 + $0x28] sm:%s1992]
                %2012 = vst [vmem:[%s2000 + $0xa0] sm:%s1992] %v2011
                %v2013 = vld [vmem:[%s1999 + $0x30] sm:%s1992]
                %2014 = vst [vmem:[%s2000 + $0xc0] sm:%s1992] %v2013
                %v2015 = vld [vmem:[%s1999 + $0x38] sm:%s1992]
                %2016 = vst [vmem:[%s2000 + $0xe0] sm:%s1992] %v2015
                %v2017 = vld [vmem:[%s1999 + $0x40] sm:%s1992]
                %2018 = vst [vmem:[%s2000 + $0x100] sm:%s1992] %v2017
                %v2019 = vld [vmem:[%s1999 + $0x48] sm:%s1992]
                %2020 = vst [vmem:[%s2000 + $0x120] sm:%s1992] %v2019
                %v2021 = vld [vmem:[%s1999 + $0x50] sm:%s1992]
                %2022 = vst [vmem:[%s2000 + $0x140] sm:%s1992] %v2021
                %v2023 = vld [vmem:[%s1999 + $0x58] sm:%s1992]
                %2024 = vst [vmem:[%s2000 + $0x160] sm:%s1992] %v2023
                %v2025 = vld [vmem:[%s1999 + $0x60] sm:%s1992]
                %2026 = vst [vmem:[%s2000 + $0x180] sm:%s1992] %v2025
                %v2027 = vld [vmem:[%s1999 + $0x68] sm:%s1992]
                %2028 = vst [vmem:[%s2000 + $0x1a0] sm:%s1992] %v2027
                %v2029 = vld [vmem:[%s1999 + $0x70] sm:%s1992]
                %2030 = vst [vmem:[%s2000 + $0x1c0] sm:%s1992] %v2029
                %v2031 = vld [vmem:[%s1999 + $0x78] sm:%s1992]
                %2032 = vst [vmem:[%s2000 + $0x1e0] sm:%s1992] %v2031
                %v2033 = vld [vmem:[%s1999 + $0x80] sm:%s1992]
                %2034 = vst [vmem:[%s2000 + $0x200] sm:%s1992] %v2033
                %v2035 = vld [vmem:[%s1999 + $0x88] sm:%s1992]
                %2036 = vst [vmem:[%s2000 + $0x220] sm:%s1992] %v2035
                %v2037 = vld [vmem:[%s1999 + $0x90] sm:%s1992]
                %2038 = vst [vmem:[%s2000 + $0x240] sm:%s1992] %v2037
                %v2039 = vld [vmem:[%s1999 + $0x98] sm:%s1992]
                %2040 = vst [vmem:[%s2000 + $0x260] sm:%s1992] %v2039
                %v2041 = vld [vmem:[%s1999 + $0xa0] sm:%s1992]
                %2042 = vst [vmem:[%s2000 + $0x280] sm:%s1992] %v2041
                %v2043 = vld [vmem:[%s1999 + $0xa8] sm:%s1992]
                %2044 = vst [vmem:[%s2000 + $0x2a0] sm:%s1992] %v2043
                %v2045 = vld [vmem:[%s1999 + $0xb0] sm:%s1992]
                %2046 = vst [vmem:[%s2000 + $0x2c0] sm:%s1992] %v2045
                %v2047 = vld [vmem:[%s1999 + $0xb8] sm:%s1992]
                %2048 = vst [vmem:[%s2000 + $0x2e0] sm:%s1992] %v2047
                %v2049 = vld [vmem:[%s1999 + $0xc0] sm:%s1992]
                %2050 = vst [vmem:[%s2000 + $0x300] sm:%s1992] %v2049
                %v2051 = vld [vmem:[%s1999 + $0xc8] sm:%s1992]
                %2052 = vst [vmem:[%s2000 + $0x320] sm:%s1992] %v2051
                %v2053 = vld [vmem:[%s1999 + $0xd0] sm:%s1992]
                %2054 = vst [vmem:[%s2000 + $0x340] sm:%s1992] %v2053
                %v2055 = vld [vmem:[%s1999 + $0xd8] sm:%s1992]
                %2056 = vst [vmem:[%s2000 + $0x360] sm:%s1992] %v2055
                %v2057 = vld [vmem:[%s1999 + $0xe0] sm:%s1992]
                %2058 = vst [vmem:[%s2000 + $0x380] sm:%s1992] %v2057
                %v2059 = vld [vmem:[%s1999 + $0xe8] sm:%s1992]
                %2060 = vst [vmem:[%s2000 + $0x3a0] sm:%s1992] %v2059
                %v2061 = vld [vmem:[%s1999 + $0xf0] sm:%s1992]
                %2062 = vst [vmem:[%s2000 + $0x3c0] sm:%s1992] %v2061
                %v2063 = vld [vmem:[%s1999 + $0xf8] sm:%s1992]
                %2064 = vst [vmem:[%s2000 + $0x3e0] sm:%s1992] %v2063
              $region53: #{vision_attention_forward.4} parent=47 // loop_footer
                %s1998 = sadd.s32 1, %s1994
              $region54: #{vision_attention_forward.4} parent=47 // loop_footer_branch
                %1993 = sbr.rel target = $region50
              $region55: #{vision_attention_forward.4} parent=47 // loop_exit
                _
            $region48: #{vision_attention_forward.4} parent=39 // pred_fallthru
              _
          $region40: #{vision_attention_forward.4} parent=35 // pred_fallthru
            _
          %2141 = vnop
        $region36: #{vision_attention_forward.4} parent=31 // pred_fallthru
          _
      $region32: #{vision_attention_forward.4} parent=5 // pred_fallthru
        _
      %p2142 = scmp.le.s32.totalorder 2, %s9
      // Predicated region
      $region71: #{vision_attention_forward.4} parent=5 // pred_check
        %p2143 = pneg %p2142
      $region72: #{vision_attention_forward.4} parent=5 // pred_check_branch
        %2145 = sbr.rel (%p2143) target = $region74
      $region73: #{vision_attention_forward.4} parent=5 // pred_region
        %s2146 = ssub.s32 %s9, 2
        // Predicated region
        $region75: #{vision_attention_forward.4} parent=73 // pred_check
          %p2147 = pneg %p132
        $region76: #{vision_attention_forward.4} parent=73 // pred_check_branch
          %2149 = sbr.rel (%p2147) target = $region78
        $region77: #{vision_attention_forward.4} parent=73 // pred_region
          %s2150 = sand.u32 %s117, 1
          %s2151 = sand.u32 %s117, 1
          %s2152 = smul.addr %s2151, 256
          %s2153 = scalar_lea.vmem [#allocation2], %s2152
        $region78: #{vision_attention_forward.4} parent=73 // pred_fallthru
          _
      $region74: #{vision_attention_forward.4} parent=5 // pred_fallthru
        _
    $region6: #{vision_attention_forward.4} parent=1 // loop_footer
      %s13 = sadd.s32 1, %s9
    $region7: #{vision_attention_forward.4} parent=1 // loop_footer_branch
      %8 = sbr.rel target = $region3
    $region8: #{vision_attention_forward.4} parent=1 // loop_exit
      _

// kernel: vision_attention_forward.5
$region0: #{vision_attention_forward.5}
  #allocation0 [shape = 'u32[]', space=smem, size = 0x4, offset = 0x4, fixed_abs, tag = 'smem constant byte address 0x4 - core index']
  #allocation1 [shape = 'u32[72,128]{1,0:T(1,128)}', space=vmem, size = 0x9000, scoped, tag = 'internal scratch']
  %s0 = inlined_call_operand.vmem [shape: f32[256,512], index: 0, kind: input, shape index: {}]
  %s1 = inlined_call_operand.vmem [shape: f32[512,32], index: 1, kind: input, shape index: {}]
  %s2 = inlined_call_operand.vmem [shape: f32[1,32], index: 2, kind: input, shape index: {}]
  %s3 = inlined_call_operand.vmem [shape: f32[256,32], index: 3, kind: output, shape index: {}]
  %s4 = sld [smem:[#allocation0]]
  $region22: #{vision_attention_forward.5} parent=0
    _
  %s6 = ssub.s32 1, %s4
  %s7 = scalar_select 0, %s6, %s4
  // Predicated region
  $region2: #{vision_attention_forward.5} parent=0 // pred_check
    _
  $region3: #{vision_attention_forward.5} parent=0 // pred_check_branch
    %9 = sbr.rel (0) target = $region5
  $region4: #{vision_attention_forward.5} parent=0 // pred_region
    _
  $region5: #{vision_attention_forward.5} parent=0 // pred_fallthru
    _
  // Predicated region
  $region6: #{vision_attention_forward.5} parent=0 // pred_check
    _
  $region7: #{vision_attention_forward.5} parent=0 // pred_check_branch
    %11 = sbr.rel (0) target = $region9
  $region8: #{vision_attention_forward.5} parent=0 // pred_region
    _
  $region9: #{vision_attention_forward.5} parent=0 // pred_fallthru
    _
  // Predicated region
  $region10: #{vision_attention_forward.5} parent=0 // pred_check
    _
  $region11: #{vision_attention_forward.5} parent=0 // pred_check_branch
    %13 = sbr.rel (0) target = $region13
  $region12: #{vision_attention_forward.5} parent=0 // pred_region
    _
  $region13: #{vision_attention_forward.5} parent=0 // pred_fallthru
    _
  %v14 = vld [vmem:[%s0] sm:$0xff]
  %v15 = vld [vmem:[%s0 + $0x8] sm:$0xff]
  %v16 = vld [vmem:[%s0 + $0x10] sm:$0xff]
  %v17 = vld [vmem:[%s0 + $0x18] sm:$0xff]
  %v18 = vld [vmem:[%s0 + $0x20] sm:$0xff]
  %v19 = vld [vmem:[%s0 + $0x28] sm:$0xff]
  %v20 = vld [vmem:[%s0 + $0x30] sm:$0xff]
  %v21 = vld [vmem:[%s0 + $0x38] sm:$0xff]
  %v22 = vld [vmem:[%s0 + $0x40] sm:$0xff]
  %v23 = vld [vmem:[%s0 + $0x48] sm:$0xff]
  %v24 = vld [vmem:[%s0 + $0x50] sm:$0xff]
  %v25 = vld [vmem:[%s0 + $0x58] sm:$0xff]
  %v26 = vld [vmem:[%s0 + $0x60] sm:$0xff]
  %v27 = vld [vmem:[%s0 + $0x68] sm:$0xff]
  %v28 = vld [vmem:[%s0 + $0x70] sm:$0xff]
  %v29 = vld [vmem:[%s0 + $0x78] sm:$0xff]
  %v30 = vld [vmem:[%s0 + $0x80] sm:$0xff]
  %v31 = vld [vmem:[%s0 + $0x88] sm:$0xff]
  %v32 = vld [vmem:[%s0 + $0x90] sm:$0xff]
  %v33 = vld [vmem:[%s0 + $0x98] sm:$0xff]
  %v34 = vld [vmem:[%s0 + $0xa0] sm:$0xff]
  %v35 = vld [vmem:[%s0 + $0xa8] sm:$0xff]
  %v36 = vld [vmem:[%s0 + $0xb0] sm:$0xff]
  %v37 = vld [vmem:[%s0 + $0xb8] sm:$0xff]
  %v38 = vld [vmem:[%s0 + $0xc0] sm:$0xff]
  %v39 = vld [vmem:[%s0 + $0xc8] sm:$0xff]
  %v40 = vld [vmem:[%s0 + $0xd0] sm:$0xff]
  %v41 = vld [vmem:[%s0 + $0xd8] sm:$0xff]
  %v42 = vld [vmem:[%s0 + $0xe0] sm:$0xff]
  %v43 = vld [vmem:[%s0 + $0xe8] sm:$0xff]
  %v44 = vld [vmem:[%s0 + $0xf0] sm:$0xff]
  %v45 = vld [vmem:[%s0 + $0xf8] sm:$0xff]
  %v46 = vld [vmem:[%s0 + $0x100] sm:$0xff]
  %v47 = vld [vmem:[%s0 + $0x108] sm:$0xff]
  %v48 = vld [vmem:[%s0 + $0x110] sm:$0xff]
  %v49 = vld [vmem:[%s0 + $0x118] sm:$0xff]
  %v50 = vld [vmem:[%s0 + $0x120] sm:$0xff]
  %v51 = vld [vmem:[%s0 + $0x128] sm:$0xff]
  %v52 = vld [vmem:[%s0 + $0x130] sm:$0xff]
  %v53 = vld [vmem:[%s0 + $0x138] sm:$0xff]
  %v54 = vld [vmem:[%s0 + $0x140] sm:$0xff]
  %v55 = vld [vmem:[%s0 + $0x148] sm:$0xff]
  %v56 = vld [vmem:[%s0 + $0x150] sm:$0xff]
  %v57 = vld [vmem:[%s0 + $0x158] sm:$0xff]
  %v58 = vld [vmem:[%s0 + $0x160] sm:$0xff]
  %v59 = vld [vmem:[%s0 + $0x168] sm:$0xff]
  %v60 = vld [vmem:[%s0 + $0x170] sm:$0xff]
  %v61 = vld [vmem:[%s0 + $0x178] sm:$0xff]
  %v62 = vld [vmem:[%s0 + $0x180] sm:$0xff]
  %v63 = vld [vmem:[%s0 + $0x188] sm:$0xff]
  %v64 = vld [vmem:[%s0 + $0x190] sm:$0xff]
  %v65 = vld [vmem:[%s0 + $0x198] sm:$0xff]
  %v66 = vld [vmem:[%s0 + $0x1a0] sm:$0xff]
  %v67 = vld [vmem:[%s0 + $0x1a8] sm:$0xff]
  %v68 = vld [vmem:[%s0 + $0x1b0] sm:$0xff]
  %v69 = vld [vmem:[%s0 + $0x1b8] sm:$0xff]
  %v70 = vld [vmem:[%s0 + $0x1c0] sm:$0xff]
  %v71 = vld [vmem:[%s0 + $0x1c8] sm:$0xff]
  %v72 = vld [vmem:[%s0 + $0x1d0] sm:$0xff]
  %v73 = vld [vmem:[%s0 + $0x1d8] sm:$0xff]
  %v74 = vld [vmem:[%s0 + $0x1e0] sm:$0xff]
  %v75 = vld [vmem:[%s0 + $0x1e8] sm:$0xff]
  %v76 = vld [vmem:[%s0 + $0x1f0] sm:$0xff]
  %v77 = vld [vmem:[%s0 + $0x1f8] sm:$0xff]
  %v78 = vld [vmem:[%s0 + $0x200] sm:$0xff]
  %v79 = vld [vmem:[%s0 + $0x208] sm:$0xff]
  %v80 = vld [vmem:[%s0 + $0x210] sm:$0xff]
  %v81 = vld [vmem:[%s0 + $0x218] sm:$0xff]
  %v82 = vld [vmem:[%s0 + $0x220] sm:$0xff]
  %v83 = vld [vmem:[%s0 + $0x228] sm:$0xff]
  %v84 = vld [vmem:[%s0 + $0x230] sm:$0xff]
  %v85 = vld [vmem:[%s0 + $0x238] sm:$0xff]
  %v86 = vld [vmem:[%s0 + $0x240] sm:$0xff]
  %v87 = vld [vmem:[%s0 + $0x248] sm:$0xff]
  %v88 = vld [vmem:[%s0 + $0x250] sm:$0xff]
  %v89 = vld [vmem:[%s0 + $0x258] sm:$0xff]
  %v90 = vld [vmem:[%s0 + $0x260] sm:$0xff]
  %v91 = vld [vmem:[%s0 + $0x268] sm:$0xff]
  %v92 = vld [vmem:[%s0 + $0x270] sm:$0xff]
  %v93 = vld [vmem:[%s0 + $0x278] sm:$0xff]
  %v94 = vld [vmem:[%s0 + $0x280] sm:$0xff]
  %v95 = vld [vmem:[%s0 + $0x288] sm:$0xff]
  %v96 = vld [vmem:[%s0 + $0x290] sm:$0xff]
  %v97 = vld [vmem:[%s0 + $0x298] sm:$0xff]
  %v98 = vld [vmem:[%s0 + $0x2a0] sm:$0xff]
  %v99 = vld [vmem:[%s0 + $0x2a8] sm:$0xff]
  %v100 = vld [vmem:[%s0 + $0x2b0] sm:$0xff]
  %v101 = vld [vmem:[%s0 + $0x2b8] sm:$0xff]
  %v102 = vld [vmem:[%s0 + $0x2c0] sm:$0xff]
  %v103 = vld [vmem:[%s0 + $0x2c8] sm:$0xff]
  %v104 = vld [vmem:[%s0 + $0x2d0] sm:$0xff]
  %v105 = vld [vmem:[%s0 + $0x2d8] sm:$0xff]
  %v106 = vld [vmem:[%s0 + $0x2e0] sm:$0xff]
  %v107 = vld [vmem:[%s0 + $0x2e8] sm:$0xff]
  %v108 = vld [vmem:[%s0 + $0x2f0] sm:$0xff]
  %v109 = vld [vmem:[%s0 + $0x2f8] sm:$0xff]
  %v110 = vld [vmem:[%s0 + $0x300] sm:$0xff]
  %v111 = vld [vmem:[%s0 + $0x308] sm:$0xff]
  %v112 = vld [vmem:[%s0 + $0x310] sm:$0xff]
  %v113 = vld [vmem:[%s0 + $0x318] sm:$0xff]
  %v114 = vld [vmem:[%s0 + $0x320] sm:$0xff]
  %v115 = vld [vmem:[%s0 + $0x328] sm:$0xff]
  %v116 = vld [vmem:[%s0 + $0x330] sm:$0xff]
  %v117 = vld [vmem:[%s0 + $0x338] sm:$0xff]
  %v118 = vld [vmem:[%s0 + $0x340] sm:$0xff]
  %v119 = vld [vmem:[%s0 + $0x348] sm:$0xff]
  %v120 = vld [vmem:[%s0 + $0x350] sm:$0xff]
  %v121 = vld [vmem:[%s0 + $0x358] sm:$0xff]
  %v122 = vld [vmem:[%s0 + $0x360] sm:$0xff]
  %v123 = vld [vmem:[%s0 + $0x368] sm:$0xff]
  %v124 = vld [vmem:[%s0 + $0x370] sm:$0xff]
  %v125 = vld [vmem:[%s0 + $0x378] sm:$0xff]
  %v126 = vld [vmem:[%s0 + $0x380] sm:$0xff]
  %v127 = vld [vmem:[%s0 + $0x388] sm:$0xff]
  %v128 = vld [vmem:[%s0 + $0x390] sm:$0xff]
  %v129 = vld [vmem:[%s0 + $0x398] sm:$0xff]
  %v130 = vld [vmem:[%s0 + $0x3a0] sm:$0xff]
  %v131 = vld [vmem:[%s0 + $0x3a8] sm:$0xff]
  %v132 = vld [vmem:[%s0 + $0x3b0] sm:$0xff]
  %v133 = vld [vmem:[%s0 + $0x3b8] sm:$0xff]
  %v134 = vld [vmem:[%s0 + $0x3c0] sm:$0xff]
  %v135 = vld [vmem:[%s0 + $0x3c8] sm:$0xff]
  %v136 = vld [vmem:[%s0 + $0x3d0] sm:$0xff]
  %v137 = vld [vmem:[%s0 + $0x3d8] sm:$0xff]
  %v138 = vld [vmem:[%s0 + $0x3e0] sm:$0xff]
  %v139 = vld [vmem:[%s0 + $0x3e8] sm:$0xff]
  %v140 = vld [vmem:[%s0 + $0x3f0] sm:$0xff]
  %v141 = vld [vmem:[%s0 + $0x3f8] sm:$0xff]
  %v142 = vld [vmem:[%s1] sm:$0xff]
  %v143 = vld [vmem:[%s1 + $0x8] sm:$0xff]
  %v144 = vld [vmem:[%s1 + $0x10] sm:$0xff]
  %v145 = vld [vmem:[%s1 + $0x18] sm:$0xff]
  %v146 = vld [vmem:[%s1 + $0x20] sm:$0xff]
  %v147 = vld [vmem:[%s1 + $0x28] sm:$0xff]
  %v148 = vld [vmem:[%s1 + $0x30] sm:$0xff]
  %v149 = vld [vmem:[%s1 + $0x38] sm:$0xff]
  %v150 = vld [vmem:[%s1 + $0x40] sm:$0xff]
  %v151 = vld [vmem:[%s1 + $0x48] sm:$0xff]
  %v152 = vld [vmem:[%s1 + $0x50] sm:$0xff]
  %v153 = vld [vmem:[%s1 + $0x58] sm:$0xff]
  %v154 = vld [vmem:[%s1 + $0x60] sm:$0xff]
  %v155 = vld [vmem:[%s1 + $0x68] sm:$0xff]
  %v156 = vld [vmem:[%s1 + $0x70] sm:$0xff]
  %v157 = vld [vmem:[%s1 + $0x78] sm:$0xff]
  %v158 = vld [vmem:[%s1 + $0x80] sm:$0xff]
  %v159 = vld [vmem:[%s1 + $0x88] sm:$0xff]
  %v160 = vld [vmem:[%s1 + $0x90] sm:$0xff]
  %v161 = vld [vmem:[%s1 + $0x98] sm:$0xff]
  %v162 = vld [vmem:[%s1 + $0xa0] sm:$0xff]
  %v163 = vld [vmem:[%s1 + $0xa8] sm:$0xff]
  %v164 = vld [vmem:[%s1 + $0xb0] sm:$0xff]
  %v165 = vld [vmem:[%s1 + $0xb8] sm:$0xff]
  %v166 = vld [vmem:[%s1 + $0xc0] sm:$0xff]
  %v167 = vld [vmem:[%s1 + $0xc8] sm:$0xff]
  %v168 = vld [vmem:[%s1 + $0xd0] sm:$0xff]
  %v169 = vld [vmem:[%s1 + $0xd8] sm:$0xff]
  %v170 = vld [vmem:[%s1 + $0xe0] sm:$0xff]
  %v171 = vld [vmem:[%s1 + $0xe8] sm:$0xff]
  %v172 = vld [vmem:[%s1 + $0xf0] sm:$0xff]
  %v173 = vld [vmem:[%s1 + $0xf8] sm:$0xff]
  %v174 = vld [vmem:[%s1 + $0x100] sm:$0xff]
  %v175 = vld [vmem:[%s1 + $0x108] sm:$0xff]
  %v176 = vld [vmem:[%s1 + $0x110] sm:$0xff]
  %v177 = vld [vmem:[%s1 + $0x118] sm:$0xff]
  %v178 = vld [vmem:[%s1 + $0x120] sm:$0xff]
  %v179 = vld [vmem:[%s1 + $0x128] sm:$0xff]
  %v180 = vld [vmem:[%s1 + $0x130] sm:$0xff]
  %v181 = vld [vmem:[%s1 + $0x138] sm:$0xff]
  %v182 = vld [vmem:[%s1 + $0x140] sm:$0xff]
  %v183 = vld [vmem:[%s1 + $0x148] sm:$0xff]
  %v184 = vld [vmem:[%s1 + $0x150] sm:$0xff]
  %v185 = vld [vmem:[%s1 + $0x158] sm:$0xff]
  %v186 = vld [vmem:[%s1 + $0x160] sm:$0xff]
  %v187 = vld [vmem:[%s1 + $0x168] sm:$0xff]
  %v188 = vld [vmem:[%s1 + $0x170] sm:$0xff]
  %v189 = vld [vmem:[%s1 + $0x178] sm:$0xff]
  %v190 = vld [vmem:[%s1 + $0x180] sm:$0xff]
  %v191 = vld [vmem:[%s1 + $0x188] sm:$0xff]
  %v192 = vld [vmem:[%s1 + $0x190] sm:$0xff]
  %v193 = vld [vmem:[%s1 + $0x198] sm:$0xff]
  %v194 = vld [vmem:[%s1 + $0x1a0] sm:$0xff]
  %v195 = vld [vmem:[%s1 + $0x1a8] sm:$0xff]
  %v196 = vld [vmem:[%s1 + $0x1b0] sm:$0xff]
  %v197 = vld [vmem:[%s1 + $0x1b8] sm:$0xff]
  %v198 = vld [vmem:[%s1 + $0x1c0] sm:$0xff]
  %v199 = vld [vmem:[%s1 + $0x1c8] sm:$0xff]
  %v200 = vld [vmem:[%s1 + $0x1d0] sm:$0xff]
  %v201 = vld [vmem:[%s1 + $0x1d8] sm:$0xff]
  %v202 = vld [vmem:[%s1 + $0x1e0] sm:$0xff]
  %v203 = vld [vmem:[%s1 + $0x1e8] sm:$0xff]
  %v204 = vld [vmem:[%s1 + $0x1f0] sm:$0xff]
  %v205 = vld [vmem:[%s1 + $0x1f8] sm:$0xff]
  %v206 = vld [vmem:[%s2] sm:$0x1]
  %v208 = vperm.slane %v206, 0
  %210 = vmatpush.msra.mxu0 %v157
  %211 = vmatpush.msra.mxu0 %v156
  %212 = vmatpush.msra.mxu0 %v155
  %213 = vmatpush.msra.mxu0 %v154
  %214 = vmatpush.msra.mxu0 %v153
  %215 = vmatpush.msra.mxu0 %v152
  %216 = vmatpush.msra.mxu0 %v151
  %217 = vmatpush.msra.mxu0 %v150
  %218 = vmatpush.msra.mxu0 %v149
  %219 = vmatpush.msra.mxu0 %v148
  %220 = vmatpush.msra.mxu0 %v147
  %221 = vmatpush.msra.mxu0 %v146
  %222 = vmatpush.msra.mxu0 %v145
  %223 = vmatpush.msra.mxu0 %v144
  %224 = vmatpush.msra.mxu0 %v143
  %225 = vmatpush.msra.mxu0 %v142
  %226 = vmatmul.f32.gmra.mxu0 %v14
  %v227 = vpop.f32.mrf.mxu0
  %v228 = vadd.f32 %v208, %v227
  %229 = vmatmul.f32.gmra.mxu0 %v18
  %v230 = vpop.f32.mrf.mxu0
  %v231 = vadd.f32 %v208, %v230
  %232 = vmatmul.f32.gmra.mxu0 %v22
  %v233 = vpop.f32.mrf.mxu0
  %v234 = vadd.f32 %v208, %v233
  %235 = vmatmul.f32.gmra.mxu0 %v26
  %v236 = vpop.f32.mrf.mxu0
  %v237 = vadd.f32 %v208, %v236
  %238 = vmatmul.f32.gmra.mxu0 %v30
  %v239 = vpop.f32.mrf.mxu0
  %v240 = vadd.f32 %v208, %v239
  %241 = vmatmul.f32.gmra.mxu0 %v34
  %v242 = vpop.f32.mrf.mxu0
  %v243 = vadd.f32 %v208, %v242
  %244 = vmatmul.f32.gmra.mxu0 %v38
  %v245 = vpop.f32.mrf.mxu0
  %v246 = vadd.f32 %v208, %v245
  %247 = vmatmul.f32.gmra.mxu0 %v42
  %v248 = vpop.f32.mrf.mxu0
  %v249 = vadd.f32 %v208, %v248
  %250 = vmatmul.f32.gmra.mxu0 %v46
  %v251 = vpop.f32.mrf.mxu0
  %v252 = vadd.f32 %v208, %v251
  %253 = vmatmul.f32.gmra.mxu0 %v50
  %v254 = vpop.f32.mrf.mxu0
  %v255 = vadd.f32 %v208, %v254
  %256 = vmatmul.f32.gmra.mxu0 %v54
  %v257 = vpop.f32.mrf.mxu0
  %v258 = vadd.f32 %v208, %v257
  %259 = vmatmul.f32.gmra.mxu0 %v58
  %v260 = vpop.f32.mrf.mxu0
  %v261 = vadd.f32 %v208, %v260
  %262 = vmatmul.f32.gmra.mxu0 %v62
  %v263 = vpop.f32.mrf.mxu0
  %v264 = vadd.f32 %v208, %v263
  %265 = vmatmul.f32.gmra.mxu0 %v66
  %v266 = vpop.f32.mrf.mxu0
  %v267 = vadd.f32 %v208, %v266
  %268 = vmatmul.f32.gmra.mxu0 %v70
  %v269 = vpop.f32.mrf.mxu0
  %v270 = vadd.f32 %v208, %v269
  %271 = vmatmul.f32.gmra.mxu0 %v74
  %v272 = vpop.f32.mrf.mxu0
  %v273 = vadd.f32 %v208, %v272
  %274 = vmatmul.f32.gmra.mxu0 %v78
  %v275 = vpop.f32.mrf.mxu0
  %v276 = vadd.f32 %v208, %v275
  %277 = vmatmul.f32.gmra.mxu0 %v82
  %v278 = vpop.f32.mrf.mxu0
  %v279 = vadd.f32 %v208, %v278
  %280 = vmatmul.f32.gmra.mxu0 %v86
  %v281 = vpop.f32.mrf.mxu0
  %v282 = vadd.f32 %v208, %v281
  %283 = vmatmul.f32.gmra.mxu0 %v90
  %v284 = vpop.f32.mrf.mxu0
  %v285 = vadd.f32 %v208, %v284
  %286 = vmatmul.f32.gmra.mxu0 %v94
  %v287 = vpop.f32.mrf.mxu0
  %v288 = vadd.f32 %v208, %v287
  %289 = vmatmul.f32.gmra.mxu0 %v98
  %v290 = vpop.f32.mrf.mxu0
  %v291 = vadd.f32 %v208, %v290
  %292 = vmatmul.f32.gmra.mxu0 %v102
  %v293 = vpop.f32.mrf.mxu0
  %v294 = vadd.f32 %v208, %v293
  %295 = vmatmul.f32.gmra.mxu0 %v106
  %v296 = vpop.f32.mrf.mxu0
  %v297 = vadd.f32 %v208, %v296
  %298 = vmatmul.f32.gmra.mxu0 %v110
  %v299 = vpop.f32.mrf.mxu0
  %v300 = vadd.f32 %v208, %v299
  %301 = vmatmul.f32.gmra.mxu0 %v114
  %v302 = vpop.f32.mrf.mxu0
  %v303 = vadd.f32 %v208, %v302
  %304 = vmatmul.f32.gmra.mxu0 %v118
  %v305 = vpop.f32.mrf.mxu0
  %v306 = vadd.f32 %v208, %v305
  %307 = vmatmul.f32.gmra.mxu0 %v122
  %v308 = vpop.f32.mrf.mxu0
  %v309 = vadd.f32 %v208, %v308
  %310 = vmatmul.f32.gmra.mxu0 %v126
  %v311 = vpop.f32.mrf.mxu0
  %v312 = vadd.f32 %v208, %v311
  %313 = vmatmul.f32.gmra.mxu0 %v130
  %v314 = vpop.f32.mrf.mxu0
  %v315 = vadd.f32 %v208, %v314
  %316 = vmatmul.f32.gmra.mxu0 %v134
  %v317 = vpop.f32.mrf.mxu0
  %v318 = vadd.f32 %v208, %v317
  %319 = vmatmul.f32.gmra.mxu0 %v138
  %v320 = vpop.f32.mrf.mxu0
  %v321 = vadd.f32 %v208, %v320
  %322 = vdwg.mxu0
  %323 = vmatpush.msra.mxu0 %v173
  %324 = vmatpush.msra.mxu0 %v172
  %325 = vmatpush.msra.mxu0 %v171
  %326 = vmatpush.msra.mxu0 %v170
  %327 = vmatpush.msra.mxu0 %v169
  %328 = vmatpush.msra.mxu0 %v168
  %329 = vmatpush.msra.mxu0 %v167
  %330 = vmatpush.msra.mxu0 %v166
  %331 = vmatpush.msra.mxu0 %v165
  %332 = vmatpush.msra.mxu0 %v164
  %333 = vmatpush.msra.mxu0 %v163
  %334 = vmatpush.msra.mxu0 %v162
  %335 = vmatpush.msra.mxu0 %v161
  %336 = vmatpush.msra.mxu0 %v160
  %337 = vmatpush.msra.mxu0 %v159
  %338 = vmatpush.msra.mxu0 %v158
  %339 = vmatmul.f32.gmra.mxu0 %v15
  %v340 = vpop.f32.mrf.mxu0
  %v341 = vadd.f32 %v228, %v340
  %342 = vmatmul.f32.gmra.mxu0 %v19
  %v343 = vpop.f32.mrf.mxu0
  %v344 = vadd.f32 %v231, %v343
  %345 = vmatmul.f32.gmra.mxu0 %v23
  %v346 = vpop.f32.mrf.mxu0
  %v347 = vadd.f32 %v234, %v346
  %348 = vmatmul.f32.gmra.mxu0 %v27
  %v349 = vpop.f32.mrf.mxu0
  %v350 = vadd.f32 %v237, %v349
  %351 = vmatmul.f32.gmra.mxu0 %v31
  %v352 = vpop.f32.mrf.mxu0
  %v353 = vadd.f32 %v240, %v352
  %354 = vmatmul.f32.gmra.mxu0 %v35
  %v355 = vpop.f32.mrf.mxu0
  %v356 = vadd.f32 %v243, %v355
  %357 = vmatmul.f32.gmra.mxu0 %v39
  %v358 = vpop.f32.mrf.mxu0
  %v359 = vadd.f32 %v246, %v358
  %360 = vmatmul.f32.gmra.mxu0 %v43
  %v361 = vpop.f32.mrf.mxu0
  %v362 = vadd.f32 %v249, %v361
  %363 = vmatmul.f32.gmra.mxu0 %v47
  %v364 = vpop.f32.mrf.mxu0
  %v365 = vadd.f32 %v252, %v364
  %366 = vmatmul.f32.gmra.mxu0 %v51
  %v367 = vpop.f32.mrf.mxu0
  %v368 = vadd.f32 %v255, %v367
  %369 = vmatmul.f32.gmra.mxu0 %v55
  %v370 = vpop.f32.mrf.mxu0
  %v371 = vadd.f32 %v258, %v370
  %372 = vmatmul.f32.gmra.mxu0 %v59
  %v373 = vpop.f32.mrf.mxu0
  %v374 = vadd.f32 %v261, %v373
  %375 = vmatmul.f32.gmra.mxu0 %v63
  %v376 = vpop.f32.mrf.mxu0
  %v377 = vadd.f32 %v264, %v376
  %378 = vmatmul.f32.gmra.mxu0 %v67
  %v379 = vpop.f32.mrf.mxu0
  %v380 = vadd.f32 %v267, %v379
  %381 = vmatmul.f32.gmra.mxu0 %v71
  %v382 = vpop.f32.mrf.mxu0
  %v383 = vadd.f32 %v270, %v382
  %384 = vmatmul.f32.gmra.mxu0 %v75
  %v385 = vpop.f32.mrf.mxu0
  %v386 = vadd.f32 %v273, %v385
  %387 = vmatmul.f32.gmra.mxu0 %v79
  %v388 = vpop.f32.mrf.mxu0
  %v389 = vadd.f32 %v276, %v388
  %390 = vmatmul.f32.gmra.mxu0 %v83
  %v391 = vpop.f32.mrf.mxu0
  %v392 = vadd.f32 %v279, %v391
  %393 = vmatmul.f32.gmra.mxu0 %v87
  %v394 = vpop.f32.mrf.mxu0
  %v395 = vadd.f32 %v282, %v394
  %396 = vmatmul.f32.gmra.mxu0 %v91
  %v397 = vpop.f32.mrf.mxu0
  %v398 = vadd.f32 %v285, %v397
  %399 = vmatmul.f32.gmra.mxu0 %v95
  %v400 = vpop.f32.mrf.mxu0
  %v401 = vadd.f32 %v288, %v400
  %402 = vmatmul.f32.gmra.mxu0 %v99
  %v403 = vpop.f32.mrf.mxu0
  %v404 = vadd.f32 %v291, %v403
  %405 = vmatmul.f32.gmra.mxu0 %v103
  %v406 = vpop.f32.mrf.mxu0
  %v407 = vadd.f32 %v294, %v406
  %408 = vmatmul.f32.gmra.mxu0 %v107
  %v409 = vpop.f32.mrf.mxu0
  %v410 = vadd.f32 %v297, %v409
  %411 = vmatmul.f32.gmra.mxu0 %v111
  %v412 = vpop.f32.mrf.mxu0
  %v413 = vadd.f32 %v300, %v412
  %414 = vmatmul.f32.gmra.mxu0 %v115
  %v415 = vpop.f32.mrf.mxu0
  %v416 = vadd.f32 %v303, %v415
  %417 = vmatmul.f32.gmra.mxu0 %v119
  %v418 = vpop.f32.mrf.mxu0
  %v419 = vadd.f32 %v306, %v418
  %420 = vmatmul.f32.gmra.mxu0 %v123
  %v421 = vpop.f32.mrf.mxu0
  %v422 = vadd.f32 %v309, %v421
  %423 = vmatmul.f32.gmra.mxu0 %v127
  %v424 = vpop.f32.mrf.mxu0
  %v425 = vadd.f32 %v312, %v424
  %426 = vmatmul.f32.gmra.mxu0 %v131
  %v427 = vpop.f32.mrf.mxu0
  %v428 = vadd.f32 %v315, %v427
  %429 = vmatmul.f32.gmra.mxu0 %v135
  %v430 = vpop.f32.mrf.mxu0
  %v431 = vadd.f32 %v318, %v430
  %432 = vmatmul.f32.gmra.mxu0 %v139
  %v433 = vpop.f32.mrf.mxu0
  %v434 = vadd.f32 %v321, %v433
  %435 = vdwg.mxu0
  %436 = vmatpush.msra.mxu0 %v189
  %437 = vmatpush.msra.mxu0 %v188
  %438 = vmatpush.msra.mxu0 %v187
  %439 = vmatpush.msra.mxu0 %v186
  %440 = vmatpush.msra.mxu0 %v185
  %441 = vmatpush.msra.mxu0 %v184
  %442 = vmatpush.msra.mxu0 %v183
  %443 = vmatpush.msra.mxu0 %v182
  %444 = vmatpush.msra.mxu0 %v181
  %445 = vmatpush.msra.mxu0 %v180
  %446 = vmatpush.msra.mxu0 %v179
  %447 = vmatpush.msra.mxu0 %v178
  %448 = vmatpush.msra.mxu0 %v177
  %449 = vmatpush.msra.mxu0 %v176
  %450 = vmatpush.msra.mxu0 %v175
  %451 = vmatpush.msra.mxu0 %v174
  %452 = vmatmul.f32.gmra.mxu0 %v16
  %v453 = vpop.f32.mrf.mxu0
  %v454 = vadd.f32 %v341, %v453
  %455 = vmatmul.f32.gmra.mxu0 %v20
  %v456 = vpop.f32.mrf.mxu0
  %v457 = vadd.f32 %v344, %v456
  %458 = vmatmul.f32.gmra.mxu0 %v24
  %v459 = vpop.f32.mrf.mxu0
  %v460 = vadd.f32 %v347, %v459
  %461 = vmatmul.f32.gmra.mxu0 %v28
  %v462 = vpop.f32.mrf.mxu0
  %v463 = vadd.f32 %v350, %v462
  %464 = vmatmul.f32.gmra.mxu0 %v32
  %v465 = vpop.f32.mrf.mxu0
  %v466 = vadd.f32 %v353, %v465
  %467 = vmatmul.f32.gmra.mxu0 %v36
  %v468 = vpop.f32.mrf.mxu0
  %v469 = vadd.f32 %v356, %v468
  %470 = vmatmul.f32.gmra.mxu0 %v40
  %v471 = vpop.f32.mrf.mxu0
  %v472 = vadd.f32 %v359, %v471
  %473 = vmatmul.f32.gmra.mxu0 %v44
  %v474 = vpop.f32.mrf.mxu0
  %v475 = vadd.f32 %v362, %v474
  %476 = vmatmul.f32.gmra.mxu0 %v48
  %v477 = vpop.f32.mrf.mxu0
  %v478 = vadd.f32 %v365, %v477
  %479 = vmatmul.f32.gmra.mxu0 %v52
  %v480 = vpop.f32.mrf.mxu0
  %v481 = vadd.f32 %v368, %v480
  %482 = vmatmul.f32.gmra.mxu0 %v56
  %v483 = vpop.f32.mrf.mxu0
  %v484 = vadd.f32 %v371, %v483
  %485 = vmatmul.f32.gmra.mxu0 %v60
  %v486 = vpop.f32.mrf.mxu0
  %v487 = vadd.f32 %v374, %v486
  %488 = vmatmul.f32.gmra.mxu0 %v64
  %v489 = vpop.f32.mrf.mxu0
  %v490 = vadd.f32 %v377, %v489
  %491 = vmatmul.f32.gmra.mxu0 %v68
  %v492 = vpop.f32.mrf.mxu0
  %v493 = vadd.f32 %v380, %v492
  %494 = vmatmul.f32.gmra.mxu0 %v72
  %v495 = vpop.f32.mrf.mxu0
  %v496 = vadd.f32 %v383, %v495
  %497 = vmatmul.f32.gmra.mxu0 %v76
  %v498 = vpop.f32.mrf.mxu0
  %v499 = vadd.f32 %v386, %v498
  %500 = vmatmul.f32.gmra.mxu0 %v80
  %v501 = vpop.f32.mrf.mxu0
  %v502 = vadd.f32 %v389, %v501
  %503 = vmatmul.f32.gmra.mxu0 %v84
  %v504 = vpop.f32.mrf.mxu0
  %v505 = vadd.f32 %v392, %v504
  %506 = vmatmul.f32.gmra.mxu0 %v88
  %v507 = vpop.f32.mrf.mxu0
  %v508 = vadd.f32 %v395, %v507
  %509 = vmatmul.f32.gmra.mxu0 %v92
  %v510 = vpop.f32.mrf.mxu0
  %v511 = vadd.f32 %v398, %v510
  %512 = vmatmul.f32.gmra.mxu0 %v96
  %v513 = vpop.f32.mrf.mxu0
  %v514 = vadd.f32 %v401, %v513
  %515 = vmatmul.f32.gmra.mxu0 %v100
  %v516 = vpop.f32.mrf.mxu0
  %v517 = vadd.f32 %v404, %v516
  %518 = vmatmul.f32.gmra.mxu0 %v104
  %v519 = vpop.f32.mrf.mxu0
  %v520 = vadd.f32 %v407, %v519
  %521 = vmatmul.f32.gmra.mxu0 %v108
  %v522 = vpop.f32.mrf.mxu0
  %v523 = vadd.f32 %v410, %v522
  %524 = vmatmul.f32.gmra.mxu0 %v112
  %v525 = vpop.f32.mrf.mxu0
  %v526 = vadd.f32 %v413, %v525
  %527 = vmatmul.f32.gmra.mxu0 %v116
  %v528 = vpop.f32.mrf.mxu0
  %v529 = vadd.f32 %v416, %v528
  %530 = vmatmul.f32.gmra.mxu0 %v120
  %v531 = vpop.f32.mrf.mxu0
  %v532 = vadd.f32 %v419, %v531
  %533 = vmatmul.f32.gmra.mxu0 %v124
  %v534 = vpop.f32.mrf.mxu0
  %v535 = vadd.f32 %v422, %v534
  %536 = vmatmul.f32.gmra.mxu0 %v128
  %v537 = vpop.f32.mrf.mxu0
  %v538 = vadd.f32 %v425, %v537
  %539 = vmatmul.f32.gmra.mxu0 %v132
  %v540 = vpop.f32.mrf.mxu0
  %v541 = vadd.f32 %v428, %v540
  %542 = vmatmul.f32.gmra.mxu0 %v136
  %v543 = vpop.f32.mrf.mxu0
  %v544 = vadd.f32 %v431, %v543
  %545 = vmatmul.f32.gmra.mxu0 %v140
  %v546 = vpop.f32.mrf.mxu0
  %v547 = vadd.f32 %v434, %v546
  %548 = vdwg.mxu0
  %549 = vmatpush.msra.mxu0 %v205
  %550 = vmatpush.msra.mxu0 %v204
  %551 = vmatpush.msra.mxu0 %v203
  %552 = vmatpush.msra.mxu0 %v202
  %553 = vmatpush.msra.mxu0 %v201
  %554 = vmatpush.msra.mxu0 %v200
  %555 = vmatpush.msra.mxu0 %v199
  %556 = vmatpush.msra.mxu0 %v198
  %557 = vmatpush.msra.mxu0 %v197
  %558 = vmatpush.msra.mxu0 %v196
  %559 = vmatpush.msra.mxu0 %v195
  %560 = vmatpush.msra.mxu0 %v194
  %561 = vmatpush.msra.mxu0 %v193
  %562 = vmatpush.msra.mxu0 %v192
  %563 = vmatpush.msra.mxu0 %v191
  %564 = vmatpush.msra.mxu0 %v190
  %565 = vmatmul.f32.gmra.mxu0 %v17
  %v566 = vpop.f32.mrf.mxu0
  %v567 = vadd.f32 %v454, %v566
  %568 = vmatmul.f32.gmra.mxu0 %v21
  %v569 = vpop.f32.mrf.mxu0
  %v570 = vadd.f32 %v457, %v569
  %571 = vmatmul.f32.gmra.mxu0 %v25
  %v572 = vpop.f32.mrf.mxu0
  %v573 = vadd.f32 %v460, %v572
  %574 = vmatmul.f32.gmra.mxu0 %v29
  %v575 = vpop.f32.mrf.mxu0
  %v576 = vadd.f32 %v463, %v575
  %577 = vmatmul.f32.gmra.mxu0 %v33
  %v578 = vpop.f32.mrf.mxu0
  %v579 = vadd.f32 %v466, %v578
  %580 = vmatmul.f32.gmra.mxu0 %v37
  %v581 = vpop.f32.mrf.mxu0
  %v582 = vadd.f32 %v469, %v581
  %583 = vmatmul.f32.gmra.mxu0 %v41
  %v584 = vpop.f32.mrf.mxu0
  %v585 = vadd.f32 %v472, %v584
  %586 = vmatmul.f32.gmra.mxu0 %v45
  %v587 = vpop.f32.mrf.mxu0
  %v588 = vadd.f32 %v475, %v587
  %589 = vmatmul.f32.gmra.mxu0 %v49
  %v590 = vpop.f32.mrf.mxu0
  %v591 = vadd.f32 %v478, %v590
  %592 = vmatmul.f32.gmra.mxu0 %v53
  %v593 = vpop.f32.mrf.mxu0
  %v594 = vadd.f32 %v481, %v593
  %595 = vmatmul.f32.gmra.mxu0 %v57
  %v596 = vpop.f32.mrf.mxu0
  %v597 = vadd.f32 %v484, %v596
  %598 = vmatmul.f32.gmra.mxu0 %v61
  %v599 = vpop.f32.mrf.mxu0
  %v600 = vadd.f32 %v487, %v599
  %601 = vmatmul.f32.gmra.mxu0 %v65
  %v602 = vpop.f32.mrf.mxu0
  %v603 = vadd.f32 %v490, %v602
  %604 = vmatmul.f32.gmra.mxu0 %v69
  %v605 = vpop.f32.mrf.mxu0
  %v606 = vadd.f32 %v493, %v605
  %607 = vmatmul.f32.gmra.mxu0 %v73
  %v608 = vpop.f32.mrf.mxu0
  %v609 = vadd.f32 %v496, %v608
  %610 = vmatmul.f32.gmra.mxu0 %v77
  %v611 = vpop.f32.mrf.mxu0
  %v612 = vadd.f32 %v499, %v611
  %613 = vmatmul.f32.gmra.mxu0 %v81
  %v614 = vpop.f32.mrf.mxu0
  %v615 = vadd.f32 %v502, %v614
  %616 = vmatmul.f32.gmra.mxu0 %v85
  %v617 = vpop.f32.mrf.mxu0
  %v618 = vadd.f32 %v505, %v617
  %619 = vmatmul.f32.gmra.mxu0 %v89
  %v620 = vpop.f32.mrf.mxu0
  %v621 = vadd.f32 %v508, %v620
  %622 = vmatmul.f32.gmra.mxu0 %v93
  %v623 = vpop.f32.mrf.mxu0
  %v624 = vadd.f32 %v511, %v623
  %625 = vmatmul.f32.gmra.mxu0 %v97
  %v626 = vpop.f32.mrf.mxu0
  %v627 = vadd.f32 %v514, %v626
  %628 = vmatmul.f32.gmra.mxu0 %v101
  %v629 = vpop.f32.mrf.mxu0
  %v630 = vadd.f32 %v517, %v629
  %631 = vmatmul.f32.gmra.mxu0 %v105
  %v632 = vpop.f32.mrf.mxu0
  %v633 = vadd.f32 %v520, %v632
  %634 = vmatmul.f32.gmra.mxu0 %v109
  %v635 = vpop.f32.mrf.mxu0
  %v636 = vadd.f32 %v523, %v635
  %637 = vmatmul.f32.gmra.mxu0 %v113
  %v638 = vpop.f32.mrf.mxu0
  %v639 = vadd.f32 %v526, %v638
  %640 = vmatmul.f32.gmra.mxu0 %v117
  %v641 = vpop.f32.mrf.mxu0
  %v642 = vadd.f32 %v529, %v641
  %643 = vmatmul.f32.gmra.mxu0 %v121
  %v644 = vpop.f32.mrf.mxu0
  %v645 = vadd.f32 %v532, %v644
  %646 = vmatmul.f32.gmra.mxu0 %v125
  %v647 = vpop.f32.mrf.mxu0
  %v648 = vadd.f32 %v535, %v647
  %649 = vmatmul.f32.gmra.mxu0 %v129
  %v650 = vpop.f32.mrf.mxu0
  %v651 = vadd.f32 %v538, %v650
  %652 = vmatmul.f32.gmra.mxu0 %v133
  %v653 = vpop.f32.mrf.mxu0
  %v654 = vadd.f32 %v541, %v653
  %655 = vmatmul.f32.gmra.mxu0 %v137
  %v656 = vpop.f32.mrf.mxu0
  %v657 = vadd.f32 %v544, %v656
  %658 = vmatmul.f32.gmra.mxu0 %v141
  %v659 = vpop.f32.mrf.mxu0
  %v660 = vadd.f32 %v547, %v659
  %661 = vdwg.mxu0
  %vm662 = vcmask 261120
  %663 = vst.msk [vmem:[%s3] sm:$0xff] %vm662, %v567
  %664 = vst.msk [vmem:[%s3 + $0x8] sm:$0xff] %vm662, %v570
  %665 = vst.msk [vmem:[%s3 + $0x10] sm:$0xff] %vm662, %v573
  %666 = vst.msk [vmem:[%s3 + $0x18] sm:$0xff] %vm662, %v576
  %667 = vst.msk [vmem:[%s3 + $0x20] sm:$0xff] %vm662, %v579
  %668 = vst.msk [vmem:[%s3 + $0x28] sm:$0xff] %vm662, %v582
  %669 = vst.msk [vmem:[%s3 + $0x30] sm:$0xff] %vm662, %v585
  %670 = vst.msk [vmem:[%s3 + $0x38] sm:$0xff] %vm662, %v588
  %671 = vst.msk [vmem:[%s3 + $0x40] sm:$0xff] %vm662, %v591
  %672 = vst.msk [vmem:[%s3 + $0x48] sm:$0xff] %vm662, %v594
  %673 = vst.msk [vmem:[%s3 + $0x50] sm:$0xff] %vm662, %v597
  %674 = vst.msk [vmem:[%s3 + $0x58] sm:$0xff] %vm662, %v600
  %675 = vst.msk [vmem:[%s3 + $0x60] sm:$0xff] %vm662, %v603
  %676 = vst.msk [vmem:[%s3 + $0x68] sm:$0xff] %vm662, %v606
  %677 = vst.msk [vmem:[%s3 + $0x70] sm:$0xff] %vm662, %v609
  %678 = vst.msk [vmem:[%s3 + $0x78] sm:$0xff] %vm662, %v612
  %679 = vst.msk [vmem:[%s3 + $0x80] sm:$0xff] %vm662, %v615
  %680 = vst.msk [vmem:[%s3 + $0x88] sm:$0xff] %vm662, %v618
  %681 = vst.msk [vmem:[%s3 + $0x90] sm:$0xff] %vm662, %v621
  %682 = vst.msk [vmem:[%s3 + $0x98] sm:$0xff] %vm662, %v624
  %683 = vst.msk [vmem:[%s3 + $0xa0] sm:$0xff] %vm662, %v627
  %684 = vst.msk [vmem:[%s3 + $0xa8] sm:$0xff] %vm662, %v630
  %685 = vst.msk [vmem:[%s3 + $0xb0] sm:$0xff] %vm662, %v633
  %686 = vst.msk [vmem:[%s3 + $0xb8] sm:$0xff] %vm662, %v636
  %687 = vst.msk [vmem:[%s3 + $0xc0] sm:$0xff] %vm662, %v639
  %688 = vst.msk [vmem:[%s3 + $0xc8] sm:$0xff] %vm662, %v642
  %689 = vst.msk [vmem:[%s3 + $0xd0] sm:$0xff] %vm662, %v645
  %690 = vst.msk [vmem:[%s3 + $0xd8] sm:$0xff] %vm662, %v648
  %691 = vst.msk [vmem:[%s3 + $0xe0] sm:$0xff] %vm662, %v651
  %692 = vst.msk [vmem:[%s3 + $0xe8] sm:$0xff] %vm662, %v654
  %693 = vst.msk [vmem:[%s3 + $0xf0] sm:$0xff] %vm662, %v657
  %694 = vst.msk [vmem:[%s3 + $0xf8] sm:$0xff] %vm662, %v660
  // Predicated region
  $region14: #{vision_attention_forward.5} parent=0 // pred_check
    _
  $region15: #{vision_attention_forward.5} parent=0 // pred_check_branch
    %696 = sbr.rel (0) target = $region17
  $region16: #{vision_attention_forward.5} parent=0 // pred_region
    _
  $region17: #{vision_attention_forward.5} parent=0 // pred_fallthru
    _
  // Predicated region
  $region18: #{vision_attention_forward.5} parent=0 // pred_check
    _
  $region19: #{vision_attention_forward.5} parent=0 // pred_check_branch
    %698 = sbr.rel (0) target = $region21
  $region20: #{vision_attention_forward.5} parent=0 // pred_region
    _
  $region21: #{vision_attention_forward.5} parent=0 // pred_fallthru
    _

// kernel: vision_attention_forward.3
$region0: #{vision_attention_forward.3}
  #allocation0 [shape = 'u32[]', space=smem, size = 0x4, offset = 0x4, fixed_abs, tag = 'smem constant byte address 0x4 - core index']
  #allocation1 [shape = 'u32[72,128]{1,0:T(1,128)}', space=vmem, size = 0x9000, scoped, tag = 'internal scratch']
  %s0 = inlined_call_operand.vmem [shape: f32[256,32], index: 0, kind: input, shape index: {}]
  %s1 = inlined_call_operand.vmem [shape: f32[32,1536], index: 1, kind: input, shape index: {}]
  %s2 = inlined_call_operand.vmem [shape: f32[1,1536], index: 2, kind: input, shape index: {}]
  %s3 = inlined_call_operand.vmem [shape: f32[256,128], index: 3, kind: input, shape index: {}]
  %s4 = inlined_call_operand.vmem [shape: f32[256,128], index: 4, kind: input, shape index: {}]
  %s5 = inlined_call_operand.vmem [shape: f32[4,256,128], index: 5, kind: output, shape index: {0}]
  %s6 = inlined_call_operand.vmem [shape: f32[4,128,256], index: 6, kind: output, shape index: {1}]
  %s7 = inlined_call_operand.vmem [shape: f32[4,256,128], index: 7, kind: output, shape index: {2}]
  %8 = xla_tuple %s5, %s6, %s7
  %s9 = sld [smem:[#allocation0]]
  $region46: #{vision_attention_forward.3} parent=0
    _
  %s11 = ssub.s32 1, %s9
  %s12 = scalar_select 0, %s11, %s9
  // Predicated region
  $region2: #{vision_attention_forward.3} parent=0 // pred_check
    _
  $region3: #{vision_attention_forward.3} parent=0 // pred_check_branch
    %14 = sbr.rel (0) target = $region5
  $region4: #{vision_attention_forward.3} parent=0 // pred_region
    _
  $region5: #{vision_attention_forward.3} parent=0 // pred_fallthru
    _
  // Predicated region
  $region6: #{vision_attention_forward.3} parent=0 // pred_check
    _
  $region7: #{vision_attention_forward.3} parent=0 // pred_check_branch
    %16 = sbr.rel (0) target = $region9
  $region8: #{vision_attention_forward.3} parent=0 // pred_region
    _
  $region9: #{vision_attention_forward.3} parent=0 // pred_fallthru
    _
  // Predicated region
  $region10: #{vision_attention_forward.3} parent=0 // pred_check
    _
  $region11: #{vision_attention_forward.3} parent=0 // pred_check_branch
    %18 = sbr.rel (0) target = $region13
  $region12: #{vision_attention_forward.3} parent=0 // pred_region
    _
  $region13: #{vision_attention_forward.3} parent=0 // pred_fallthru
    _
  // Predicated region
  $region14: #{vision_attention_forward.3} parent=0 // pred_check
    _
  $region15: #{vision_attention_forward.3} parent=0 // pred_check_branch
    %20 = sbr.rel (0) target = $region17
  $region16: #{vision_attention_forward.3} parent=0 // pred_region
    _
  $region17: #{vision_attention_forward.3} parent=0 // pred_fallthru
    _
  // Predicated region
  $region18: #{vision_attention_forward.3} parent=0 // pred_check
    _
  $region19: #{vision_attention_forward.3} parent=0 // pred_check_branch
    %22 = sbr.rel (0) target = $region21
  $region20: #{vision_attention_forward.3} parent=0 // pred_region
    _
  $region21: #{vision_attention_forward.3} parent=0 // pred_fallthru
    _
  %v23 = vld [vmem:[%s0] sm:$0xff]
  %v24 = vld [vmem:[%s0 + $0x8] sm:$0xff]
  %v25 = vld [vmem:[%s0 + $0x10] sm:$0xff]
  %v26 = vld [vmem:[%s0 + $0x18] sm:$0xff]
  %v27 = vld [vmem:[%s0 + $0x20] sm:$0xff]
  %v28 = vld [vmem:[%s0 + $0x28] sm:$0xff]
  %v29 = vld [vmem:[%s0 + $0x30] sm:$0xff]
  %v30 = vld [vmem:[%s0 + $0x38] sm:$0xff]
  %v31 = vld [vmem:[%s0 + $0x40] sm:$0xff]
  %v32 = vld [vmem:[%s0 + $0x48] sm:$0xff]
  %v33 = vld [vmem:[%s0 + $0x50] sm:$0xff]
  %v34 = vld [vmem:[%s0 + $0x58] sm:$0xff]
  %v35 = vld [vmem:[%s0 + $0x60] sm:$0xff]
  %v36 = vld [vmem:[%s0 + $0x68] sm:$0xff]
  %v37 = vld [vmem:[%s0 + $0x70] sm:$0xff]
  %v38 = vld [vmem:[%s0 + $0x78] sm:$0xff]
  %v39 = vld [vmem:[%s0 + $0x80] sm:$0xff]
  %v40 = vld [vmem:[%s0 + $0x88] sm:$0xff]
  %v41 = vld [vmem:[%s0 + $0x90] sm:$0xff]
  %v42 = vld [vmem:[%s0 + $0x98] sm:$0xff]
  %v43 = vld [vmem:[%s0 + $0xa0] sm:$0xff]
  %v44 = vld [vmem:[%s0 + $0xa8] sm:$0xff]
  %v45 = vld [vmem:[%s0 + $0xb0] sm:$0xff]
  %v46 = vld [vmem:[%s0 + $0xb8] sm:$0xff]
  %v47 = vld [vmem:[%s0 + $0xc0] sm:$0xff]
  %v48 = vld [vmem:[%s0 + $0xc8] sm:$0xff]
  %v49 = vld [vmem:[%s0 + $0xd0] sm:$0xff]
  %v50 = vld [vmem:[%s0 + $0xd8] sm:$0xff]
  %v51 = vld [vmem:[%s0 + $0xe0] sm:$0xff]
  %v52 = vld [vmem:[%s0 + $0xe8] sm:$0xff]
  %v53 = vld [vmem:[%s0 + $0xf0] sm:$0xff]
  %v54 = vld [vmem:[%s0 + $0xf8] sm:$0xff]
  %v55 = vld [vmem:[%s1] sm:$0xff]
  %v56 = vld [vmem:[%s1 + $0x8] sm:$0xff]
  %v57 = vld [vmem:[%s1 + $0x10] sm:$0xff]
  %v58 = vld [vmem:[%s1 + $0x18] sm:$0xff]
  %v59 = vld [vmem:[%s1 + $0x20] sm:$0xff]
  %v60 = vld [vmem:[%s1 + $0x28] sm:$0xff]
  %v61 = vld [vmem:[%s1 + $0x30] sm:$0xff]
  %v62 = vld [vmem:[%s1 + $0x38] sm:$0xff]
  %v63 = vld [vmem:[%s1 + $0x40] sm:$0xff]
  %v64 = vld [vmem:[%s1 + $0x48] sm:$0xff]
  %v65 = vld [vmem:[%s1 + $0x50] sm:$0xff]
  %v66 = vld [vmem:[%s1 + $0x58] sm:$0xff]
  %v67 = vld [vmem:[%s1 + $0x60] sm:$0xff]
  %v68 = vld [vmem:[%s1 + $0x68] sm:$0xff]
  %v69 = vld [vmem:[%s1 + $0x70] sm:$0xff]
  %v70 = vld [vmem:[%s1 + $0x78] sm:$0xff]
  %v71 = vld [vmem:[%s1 + $0x80] sm:$0xff]
  %v72 = vld [vmem:[%s1 + $0x88] sm:$0xff]
  %v73 = vld [vmem:[%s1 + $0x90] sm:$0xff]
  %v74 = vld [vmem:[%s1 + $0x98] sm:$0xff]
  %v75 = vld [vmem:[%s1 + $0xa0] sm:$0xff]
  %v76 = vld [vmem:[%s1 + $0xa8] sm:$0xff]
  %v77 = vld [vmem:[%s1 + $0xb0] sm:$0xff]
  %v78 = vld [vmem:[%s1 + $0xb8] sm:$0xff]
  %v79 = vld [vmem:[%s1 + $0xc0] sm:$0xff]
  %v80 = vld [vmem:[%s1 + $0xc8] sm:$0xff]
  %v81 = vld [vmem:[%s1 + $0xd0] sm:$0xff]
  %v82 = vld [vmem:[%s1 + $0xd8] sm:$0xff]
  %v83 = vld [vmem:[%s1 + $0xe0] sm:$0xff]
  %v84 = vld [vmem:[%s1 + $0xe8] sm:$0xff]
  %v85 = vld [vmem:[%s1 + $0xf0] sm:$0xff]
  %v86 = vld [vmem:[%s1 + $0xf8] sm:$0xff]
  %v87 = vld [vmem:[%s1 + $0x100] sm:$0xff]
  %v88 = vld [vmem:[%s1 + $0x108] sm:$0xff]
  %v89 = vld [vmem:[%s1 + $0x110] sm:$0xff]
  %v90 = vld [vmem:[%s1 + $0x118] sm:$0xff]
  %v91 = vld [vmem:[%s1 + $0x120] sm:$0xff]
  %v92 = vld [vmem:[%s1 + $0x128] sm:$0xff]
  %v93 = vld [vmem:[%s1 + $0x130] sm:$0xff]
  %v94 = vld [vmem:[%s1 + $0x138] sm:$0xff]
  %v95 = vld [vmem:[%s1 + $0x140] sm:$0xff]
  %v96 = vld [vmem:[%s1 + $0x148] sm:$0xff]
  %v97 = vld [vmem:[%s1 + $0x150] sm:$0xff]
  %v98 = vld [vmem:[%s1 + $0x158] sm:$0xff]
  %v99 = vld [vmem:[%s1 + $0x160] sm:$0xff]
  %v100 = vld [vmem:[%s1 + $0x168] sm:$0xff]
  %v101 = vld [vmem:[%s1 + $0x170] sm:$0xff]
  %v102 = vld [vmem:[%s1 + $0x178] sm:$0xff]
  %v103 = vld [vmem:[%s2] sm:$0xff]
  %v104 = vld [vmem:[%s2 + $0x8] sm:$0xf]
  %v107 = vperm.slane %v103, 0
  %v108 = vperm.slane %v103, 1
  %v109 = vperm.slane %v103, 2
  %v110 = vperm.slane %v103, 3
  %v111 = vperm.slane %v103, 4
  %v112 = vperm.slane %v103, 5
  %v113 = vperm.slane %v103, 6
  %v114 = vperm.slane %v103, 7
  %v115 = vperm.slane %v104, 0
  %v116 = vperm.slane %v104, 1
  %v117 = vperm.slane %v104, 2
  %v118 = vperm.slane %v104, 3
  %vm131 = vcmask 261120
  %v133 = vsel %vm131, %v23, 0
  %v136 = vsel %vm131, %v24, 0
  %v139 = vsel %vm131, %v25, 0
  %v142 = vsel %vm131, %v26, 0
  %v145 = vsel %vm131, %v27, 0
  %v148 = vsel %vm131, %v28, 0
  %v151 = vsel %vm131, %v29, 0
  %v154 = vsel %vm131, %v30, 0
  %v157 = vsel %vm131, %v31, 0
  %v160 = vsel %vm131, %v32, 0
  %v163 = vsel %vm131, %v33, 0
  %v166 = vsel %vm131, %v34, 0
  %v169 = vsel %vm131, %v35, 0
  %v172 = vsel %vm131, %v36, 0
  %v175 = vsel %vm131, %v37, 0
  %v178 = vsel %vm131, %v38, 0
  %v181 = vsel %vm131, %v39, 0
  %v184 = vsel %vm131, %v40, 0
  %v187 = vsel %vm131, %v41, 0
  %v190 = vsel %vm131, %v42, 0
  %v193 = vsel %vm131, %v43, 0
  %v196 = vsel %vm131, %v44, 0
  %v199 = vsel %vm131, %v45, 0
  %v202 = vsel %vm131, %v46, 0
  %v205 = vsel %vm131, %v47, 0
  %v208 = vsel %vm131, %v48, 0
  %v211 = vsel %vm131, %v49, 0
  %v214 = vsel %vm131, %v50, 0
  %v217 = vsel %vm131, %v51, 0
  %v220 = vsel %vm131, %v52, 0
  %v223 = vsel %vm131, %v53, 0
  %v226 = vsel %vm131, %v54, 0
  %228 = vmatpush.msra.mxu0 0.0
  %229 = vmatpush.msra.mxu0 0.0
  %230 = vmatpush.msra.mxu0 0.0
  %231 = vmatpush.msra.mxu0 0.0
  %232 = vmatpush.msra.mxu0 0.0
  %233 = vmatpush.msra.mxu0 0.0
  %234 = vmatpush.msra.mxu0 0.0
  %235 = vmatpush.msra.mxu0 0.0
  %236 = vmatpush.msra.mxu0 0.0
  %237 = vmatpush.msra.mxu0 0.0
  %238 = vmatpush.msra.mxu0 0.0
  %239 = vmatpush.msra.mxu0 0.0
  %240 = vmatpush.msra.mxu0 %v91
  %241 = vmatpush.msra.mxu0 %v79
  %242 = vmatpush.msra.mxu0 %v67
  %243 = vmatpush.msra.mxu0 %v55
  %244 = vmatmul.f32.gmra.mxu0 %v133
  %v245 = vpop.f32.mrf.mxu0
  %v246 = vadd.f32 %v107, %v245
  %247 = vmatmul.f32.gmra.mxu0 %v136
  %v248 = vpop.f32.mrf.mxu0
  %v249 = vadd.f32 %v107, %v248
  %250 = vmatmul.f32.gmra.mxu0 %v139
  %v251 = vpop.f32.mrf.mxu0
  %v252 = vadd.f32 %v107, %v251
  %253 = vmatmul.f32.gmra.mxu0 %v142
  %v254 = vpop.f32.mrf.mxu0
  %v255 = vadd.f32 %v107, %v254
  %256 = vmatmul.f32.gmra.mxu0 %v145
  %v257 = vpop.f32.mrf.mxu0
  %v258 = vadd.f32 %v107, %v257
  %259 = vmatmul.f32.gmra.mxu0 %v148
  %v260 = vpop.f32.mrf.mxu0
  %v261 = vadd.f32 %v107, %v260
  %262 = vmatmul.f32.gmra.mxu0 %v151
  %v263 = vpop.f32.mrf.mxu0
  %v264 = vadd.f32 %v107, %v263
  %265 = vmatmul.f32.gmra.mxu0 %v154
  %v266 = vpop.f32.mrf.mxu0
  %v267 = vadd.f32 %v107, %v266
  %268 = vmatmul.f32.gmra.mxu0 %v157
  %v269 = vpop.f32.mrf.mxu0
  %v270 = vadd.f32 %v107, %v269
  %271 = vmatmul.f32.gmra.mxu0 %v160
  %v272 = vpop.f32.mrf.mxu0
  %v273 = vadd.f32 %v107, %v272
  %274 = vmatmul.f32.gmra.mxu0 %v163
  %v275 = vpop.f32.mrf.mxu0
  %v276 = vadd.f32 %v107, %v275
  %277 = vmatmul.f32.gmra.mxu0 %v166
  %v278 = vpop.f32.mrf.mxu0
  %v279 = vadd.f32 %v107, %v278
  %280 = vmatmul.f32.gmra.mxu0 %v169
  %v281 = vpop.f32.mrf.mxu0
  %v282 = vadd.f32 %v107, %v281
  %283 = vmatmul.f32.gmra.mxu0 %v172
  %v284 = vpop.f32.mrf.mxu0
  %v285 = vadd.f32 %v107, %v284
  %286 = vmatmul.f32.gmra.mxu0 %v175
  %v287 = vpop.f32.mrf.mxu0
  %v288 = vadd.f32 %v107, %v287
  %289 = vmatmul.f32.gmra.mxu0 %v178
  %v290 = vpop.f32.mrf.mxu0
  %v291 = vadd.f32 %v107, %v290
  %292 = vmatmul.f32.gmra.mxu0 %v181
  %v293 = vpop.f32.mrf.mxu0
  %v294 = vadd.f32 %v107, %v293
  %295 = vmatmul.f32.gmra.mxu0 %v184
  %v296 = vpop.f32.mrf.mxu0
  %v297 = vadd.f32 %v107, %v296
  %298 = vmatmul.f32.gmra.mxu0 %v187
  %v299 = vpop.f32.mrf.mxu0
  %v300 = vadd.f32 %v107, %v299
  %301 = vmatmul.f32.gmra.mxu0 %v190
  %v302 = vpop.f32.mrf.mxu0
  %v303 = vadd.f32 %v107, %v302
  %304 = vmatmul.f32.gmra.mxu0 %v193
  %v305 = vpop.f32.mrf.mxu0
  %v306 = vadd.f32 %v107, %v305
  %307 = vmatmul.f32.gmra.mxu0 %v196
  %v308 = vpop.f32.mrf.mxu0
  %v309 = vadd.f32 %v107, %v308
  %310 = vmatmul.f32.gmra.mxu0 %v199
  %v311 = vpop.f32.mrf.mxu0
  %v312 = vadd.f32 %v107, %v311
  %313 = vmatmul.f32.gmra.mxu0 %v202
  %v314 = vpop.f32.mrf.mxu0
  %v315 = vadd.f32 %v107, %v314
  %316 = vmatmul.f32.gmra.mxu0 %v205
  %v317 = vpop.f32.mrf.mxu0
  %v318 = vadd.f32 %v107, %v317
  %319 = vmatmul.f32.gmra.mxu0 %v208
  %v320 = vpop.f32.mrf.mxu0
  %v321 = vadd.f32 %v107, %v320
  %322 = vmatmul.f32.gmra.mxu0 %v211
  %v323 = vpop.f32.mrf.mxu0
  %v324 = vadd.f32 %v107, %v323
  %325 = vmatmul.f32.gmra.mxu0 %v214
  %v326 = vpop.f32.mrf.mxu0
  %v327 = vadd.f32 %v107, %v326
  %328 = vmatmul.f32.gmra.mxu0 %v217
  %v329 = vpop.f32.mrf.mxu0
  %v330 = vadd.f32 %v107, %v329
  %331 = vmatmul.f32.gmra.mxu0 %v220
  %v332 = vpop.f32.mrf.mxu0
  %v333 = vadd.f32 %v107, %v332
  %334 = vmatmul.f32.gmra.mxu0 %v223
  %v335 = vpop.f32.mrf.mxu0
  %v336 = vadd.f32 %v107, %v335
  %337 = vmatmul.f32.gmra.mxu0 %v226
  %v338 = vpop.f32.mrf.mxu0
  %v339 = vadd.f32 %v107, %v338
  %340 = vdwg.mxu0
  %341 = vmatpush.msra.mxu0 0.0
  %342 = vmatpush.msra.mxu0 0.0
  %343 = vmatpush.msra.mxu0 0.0
  %344 = vmatpush.msra.mxu0 0.0
  %345 = vmatpush.msra.mxu0 0.0
  %346 = vmatpush.msra.mxu0 0.0
  %347 = vmatpush.msra.mxu0 0.0
  %348 = vmatpush.msra.mxu0 0.0
  %349 = vmatpush.msra.mxu0 0.0
  %350 = vmatpush.msra.mxu0 0.0
  %351 = vmatpush.msra.mxu0 0.0
  %352 = vmatpush.msra.mxu0 0.0
  %353 = vmatpush.msra.mxu0 %v92
  %354 = vmatpush.msra.mxu0 %v80
  %355 = vmatpush.msra.mxu0 %v68
  %356 = vmatpush.msra.mxu0 %v56
  %357 = vmatmul.f32.gmra.mxu0 %v133
  %v358 = vpop.f32.mrf.mxu0
  %v359 = vadd.f32 %v108, %v358
  %360 = vmatmul.f32.gmra.mxu0 %v136
  %v361 = vpop.f32.mrf.mxu0
  %v362 = vadd.f32 %v108, %v361
  %363 = vmatmul.f32.gmra.mxu0 %v139
  %v364 = vpop.f32.mrf.mxu0
  %v365 = vadd.f32 %v108, %v364
  %366 = vmatmul.f32.gmra.mxu0 %v142
  %v367 = vpop.f32.mrf.mxu0
  %v368 = vadd.f32 %v108, %v367
  %369 = vmatmul.f32.gmra.mxu0 %v145
  %v370 = vpop.f32.mrf.mxu0
  %v371 = vadd.f32 %v108, %v370
  %372 = vmatmul.f32.gmra.mxu0 %v148
  %v373 = vpop.f32.mrf.mxu0
  %v374 = vadd.f32 %v108, %v373
  %375 = vmatmul.f32.gmra.mxu0 %v151
  %v376 = vpop.f32.mrf.mxu0
  %v377 = vadd.f32 %v108, %v376
  %378 = vmatmul.f32.gmra.mxu0 %v154
  %v379 = vpop.f32.mrf.mxu0
  %v380 = vadd.f32 %v108, %v379
  %381 = vmatmul.f32.gmra.mxu0 %v157
  %v382 = vpop.f32.mrf.mxu0
  %v383 = vadd.f32 %v108, %v382
  %384 = vmatmul.f32.gmra.mxu0 %v160
  %v385 = vpop.f32.mrf.mxu0
  %v386 = vadd.f32 %v108, %v385
  %387 = vmatmul.f32.gmra.mxu0 %v163
  %v388 = vpop.f32.mrf.mxu0
  %v389 = vadd.f32 %v108, %v388
  %390 = vmatmul.f32.gmra.mxu0 %v166
  %v391 = vpop.f32.mrf.mxu0
  %v392 = vadd.f32 %v108, %v391
  %393 = vmatmul.f32.gmra.mxu0 %v169
  %v394 = vpop.f32.mrf.mxu0
  %v395 = vadd.f32 %v108, %v394
  %396 = vmatmul.f32.gmra.mxu0 %v172
  %v397 = vpop.f32.mrf.mxu0
  %v398 = vadd.f32 %v108, %v397
  %399 = vmatmul.f32.gmra.mxu0 %v175
  %v400 = vpop.f32.mrf.mxu0
  %v401 = vadd.f32 %v108, %v400
  %402 = vmatmul.f32.gmra.mxu0 %v178
  %v403 = vpop.f32.mrf.mxu0
  %v404 = vadd.f32 %v108, %v403
  %405 = vmatmul.f32.gmra.mxu0 %v181
  %v406 = vpop.f32.mrf.mxu0
  %v407 = vadd.f32 %v108, %v406
  %408 = vmatmul.f32.gmra.mxu0 %v184
  %v409 = vpop.f32.mrf.mxu0
  %v410 = vadd.f32 %v108, %v409
  %411 = vmatmul.f32.gmra.mxu0 %v187
  %v412 = vpop.f32.mrf.mxu0
  %v413 = vadd.f32 %v108, %v412
  %414 = vmatmul.f32.gmra.mxu0 %v190
  %v415 = vpop.f32.mrf.mxu0
  %v416 = vadd.f32 %v108, %v415
  %417 = vmatmul.f32.gmra.mxu0 %v193
  %v418 = vpop.f32.mrf.mxu0
  %v419 = vadd.f32 %v108, %v418
  %420 = vmatmul.f32.gmra.mxu0 %v196
  %v421 = vpop.f32.mrf.mxu0
  %v422 = vadd.f32 %v108, %v421
  %423 = vmatmul.f32.gmra.mxu0 %v199
  %v424 = vpop.f32.mrf.mxu0
  %v425 = vadd.f32 %v108, %v424
  %426 = vmatmul.f32.gmra.mxu0 %v202
  %v427 = vpop.f32.mrf.mxu0
  %v428 = vadd.f32 %v108, %v427
  %429 = vmatmul.f32.gmra.mxu0 %v205
  %v430 = vpop.f32.mrf.mxu0
  %v431 = vadd.f32 %v108, %v430
  %432 = vmatmul.f32.gmra.mxu0 %v208
  %v433 = vpop.f32.mrf.mxu0
  %v434 = vadd.f32 %v108, %v433
  %435 = vmatmul.f32.gmra.mxu0 %v211
  %v436 = vpop.f32.mrf.mxu0
  %v437 = vadd.f32 %v108, %v436
  %438 = vmatmul.f32.gmra.mxu0 %v214
  %v439 = vpop.f32.mrf.mxu0
  %v440 = vadd.f32 %v108, %v439
  %441 = vmatmul.f32.gmra.mxu0 %v217
  %v442 = vpop.f32.mrf.mxu0
  %v443 = vadd.f32 %v108, %v442
  %444 = vmatmul.f32.gmra.mxu0 %v220
  %v445 = vpop.f32.mrf.mxu0
  %v446 = vadd.f32 %v108, %v445
  %447 = vmatmul.f32.gmra.mxu0 %v223
  %v448 = vpop.f32.mrf.mxu0
  %v449 = vadd.f32 %v108, %v448
  %450 = vmatmul.f32.gmra.mxu0 %v226
  %v451 = vpop.f32.mrf.mxu0
  %v452 = vadd.f32 %v108, %v451
  %453 = vdwg.mxu0
  %454 = vmatpush.msra.mxu0 0.0
  %455 = vmatpush.msra.mxu0 0.0
  %456 = vmatpush.msra.mxu0 0.0
  %457 = vmatpush.msra.mxu0 0.0
  %458 = vmatpush.msra.mxu0 0.0
  %459 = vmatpush.msra.mxu0 0.0
  %460 = vmatpush.msra.mxu0 0.0
  %461 = vmatpush.msra.mxu0 0.0
  %462 = vmatpush.msra.mxu0 0.0
  %463 = vmatpush.msra.mxu0 0.0
  %464 = vmatpush.msra.mxu0 0.0
  %465 = vmatpush.msra.mxu0 0.0
  %466 = vmatpush.msra.mxu0 %v93
  %467 = vmatpush.msra.mxu0 %v81
  %468 = vmatpush.msra.mxu0 %v69
  %469 = vmatpush.msra.mxu0 %v57
  %470 = vmatmul.f32.gmra.mxu0 %v133
  %v471 = vpop.f32.mrf.mxu0
  %v472 = vadd.f32 %v109, %v471
  %473 = vmatmul.f32.gmra.mxu0 %v136
  %v474 = vpop.f32.mrf.mxu0
  %v475 = vadd.f32 %v109, %v474
  %476 = vmatmul.f32.gmra.mxu0 %v139
  %v477 = vpop.f32.mrf.mxu0
  %v478 = vadd.f32 %v109, %v477
  %479 = vmatmul.f32.gmra.mxu0 %v142
  %v480 = vpop.f32.mrf.mxu0
  %v481 = vadd.f32 %v109, %v480
  %482 = vmatmul.f32.gmra.mxu0 %v145
  %v483 = vpop.f32.mrf.mxu0
  %v484 = vadd.f32 %v109, %v483
  %485 = vmatmul.f32.gmra.mxu0 %v148
  %v486 = vpop.f32.mrf.mxu0
  %v487 = vadd.f32 %v109, %v486
  %488 = vmatmul.f32.gmra.mxu0 %v151
  %v489 = vpop.f32.mrf.mxu0
  %v490 = vadd.f32 %v109, %v489
  %491 = vmatmul.f32.gmra.mxu0 %v154
  %v492 = vpop.f32.mrf.mxu0
  %v493 = vadd.f32 %v109, %v492
  %494 = vmatmul.f32.gmra.mxu0 %v157
  %v495 = vpop.f32.mrf.mxu0
  %v496 = vadd.f32 %v109, %v495
  %497 = vmatmul.f32.gmra.mxu0 %v160
  %v498 = vpop.f32.mrf.mxu0
  %v499 = vadd.f32 %v109, %v498
  %500 = vmatmul.f32.gmra.mxu0 %v163
  %v501 = vpop.f32.mrf.mxu0
  %v502 = vadd.f32 %v109, %v501
  %503 = vmatmul.f32.gmra.mxu0 %v166
  %v504 = vpop.f32.mrf.mxu0
  %v505 = vadd.f32 %v109, %v504
  %506 = vmatmul.f32.gmra.mxu0 %v169
  %v507 = vpop.f32.mrf.mxu0
  %v508 = vadd.f32 %v109, %v507
  %509 = vmatmul.f32.gmra.mxu0 %v172
  %v510 = vpop.f32.mrf.mxu0
  %v511 = vadd.f32 %v109, %v510
  %512 = vmatmul.f32.gmra.mxu0 %v175
  %v513 = vpop.f32.mrf.mxu0
  %v514 = vadd.f32 %v109, %v513
  %515 = vmatmul.f32.gmra.mxu0 %v178
  %v516 = vpop.f32.mrf.mxu0
  %v517 = vadd.f32 %v109, %v516
  %518 = vmatmul.f32.gmra.mxu0 %v181
  %v519 = vpop.f32.mrf.mxu0
  %v520 = vadd.f32 %v109, %v519
  %521 = vmatmul.f32.gmra.mxu0 %v184
  %v522 = vpop.f32.mrf.mxu0
  %v523 = vadd.f32 %v109, %v522
  %524 = vmatmul.f32.gmra.mxu0 %v187
  %v525 = vpop.f32.mrf.mxu0
  %v526 = vadd.f32 %v109, %v525
  %527 = vmatmul.f32.gmra.mxu0 %v190
  %v528 = vpop.f32.mrf.mxu0
  %v529 = vadd.f32 %v109, %v528
  %530 = vmatmul.f32.gmra.mxu0 %v193
  %v531 = vpop.f32.mrf.mxu0
  %v532 = vadd.f32 %v109, %v531
  %533 = vmatmul.f32.gmra.mxu0 %v196
  %v534 = vpop.f32.mrf.mxu0
  %v535 = vadd.f32 %v109, %v534
  %536 = vmatmul.f32.gmra.mxu0 %v199
  %v537 = vpop.f32.mrf.mxu0
  %v538 = vadd.f32 %v109, %v537
  %539 = vmatmul.f32.gmra.mxu0 %v202
  %v540 = vpop.f32.mrf.mxu0
  %v541 = vadd.f32 %v109, %v540
  %542 = vmatmul.f32.gmra.mxu0 %v205
  %v543 = vpop.f32.mrf.mxu0
  %v544 = vadd.f32 %v109, %v543
  %545 = vmatmul.f32.gmra.mxu0 %v208
  %v546 = vpop.f32.mrf.mxu0
  %v547 = vadd.f32 %v109, %v546
  %548 = vmatmul.f32.gmra.mxu0 %v211
  %v549 = vpop.f32.mrf.mxu0
  %v550 = vadd.f32 %v109, %v549
  %551 = vmatmul.f32.gmra.mxu0 %v214
  %v552 = vpop.f32.mrf.mxu0
  %v553 = vadd.f32 %v109, %v552
  %554 = vmatmul.f32.gmra.mxu0 %v217
  %v555 = vpop.f32.mrf.mxu0
  %v556 = vadd.f32 %v109, %v555
  %557 = vmatmul.f32.gmra.mxu0 %v220
  %v558 = vpop.f32.mrf.mxu0
  %v559 = vadd.f32 %v109, %v558
  %560 = vmatmul.f32.gmra.mxu0 %v223
  %v561 = vpop.f32.mrf.mxu0
  %v562 = vadd.f32 %v109, %v561
  %563 = vmatmul.f32.gmra.mxu0 %v226
  %v564 = vpop.f32.mrf.mxu0
  %v565 = vadd.f32 %v109, %v564
  %566 = vdwg.mxu0
  %567 = vmatpush.msra.mxu0 0.0
  %568 = vmatpush.msra.mxu0 0.0
  %569 = vmatpush.msra.mxu0 0.0
  %570 = vmatpush.msra.mxu0 0.0
  %571 = vmatpush.msra.mxu0 0.0
  %572 = vmatpush.msra.mxu0 0.0
  %573 = vmatpush.msra.mxu0 0.0
  %574 = vmatpush.msra.mxu0 0.0
  %575 = vmatpush.msra.mxu0 0.0
  %576 = vmatpush.msra.mxu0 0.0
  %577 = vmatpush.msra.mxu0 0.0
  %578 = vmatpush.msra.mxu0 0.0
  %579 = vmatpush.msra.mxu0 %v94
  %580 = vmatpush.msra.mxu0 %v82
  %581 = vmatpush.msra.mxu0 %v70
  %582 = vmatpush.msra.mxu0 %v58
  %583 = vmatmul.f32.gmra.mxu0 %v133
  %v584 = vpop.f32.mrf.mxu0
  %v585 = vadd.f32 %v110, %v584
  %586 = vmatmul.f32.gmra.mxu0 %v136
  %v587 = vpop.f32.mrf.mxu0
  %v588 = vadd.f32 %v110, %v587
  %589 = vmatmul.f32.gmra.mxu0 %v139
  %v590 = vpop.f32.mrf.mxu0
  %v591 = vadd.f32 %v110, %v590
  %592 = vmatmul.f32.gmra.mxu0 %v142
  %v593 = vpop.f32.mrf.mxu0
  %v594 = vadd.f32 %v110, %v593
  %595 = vmatmul.f32.gmra.mxu0 %v145
  %v596 = vpop.f32.mrf.mxu0
  %v597 = vadd.f32 %v110, %v596
  %598 = vmatmul.f32.gmra.mxu0 %v148
  %v599 = vpop.f32.mrf.mxu0
  %v600 = vadd.f32 %v110, %v599
  %601 = vmatmul.f32.gmra.mxu0 %v151
  %v602 = vpop.f32.mrf.mxu0
  %v603 = vadd.f32 %v110, %v602
  %604 = vmatmul.f32.gmra.mxu0 %v154
  %v605 = vpop.f32.mrf.mxu0
  %v606 = vadd.f32 %v110, %v605
  %607 = vmatmul.f32.gmra.mxu0 %v157
  %v608 = vpop.f32.mrf.mxu0
  %v609 = vadd.f32 %v110, %v608
  %610 = vmatmul.f32.gmra.mxu0 %v160
  %v611 = vpop.f32.mrf.mxu0
  %v612 = vadd.f32 %v110, %v611
  %613 = vmatmul.f32.gmra.mxu0 %v163
  %v614 = vpop.f32.mrf.mxu0
  %v615 = vadd.f32 %v110, %v614
  %616 = vmatmul.f32.gmra.mxu0 %v166
  %v617 = vpop.f32.mrf.mxu0
  %v618 = vadd.f32 %v110, %v617
  %619 = vmatmul.f32.gmra.mxu0 %v169
  %v620 = vpop.f32.mrf.mxu0
  %v621 = vadd.f32 %v110, %v620
  %622 = vmatmul.f32.gmra.mxu0 %v172
  %v623 = vpop.f32.mrf.mxu0
  %v624 = vadd.f32 %v110, %v623
  %625 = vmatmul.f32.gmra.mxu0 %v175
  %v626 = vpop.f32.mrf.mxu0
  %v627 = vadd.f32 %v110, %v626
  %628 = vmatmul.f32.gmra.mxu0 %v178
  %v629 = vpop.f32.mrf.mxu0
  %v630 = vadd.f32 %v110, %v629
  %631 = vmatmul.f32.gmra.mxu0 %v181
  %v632 = vpop.f32.mrf.mxu0
  %v633 = vadd.f32 %v110, %v632
  %634 = vmatmul.f32.gmra.mxu0 %v184
  %v635 = vpop.f32.mrf.mxu0
  %v636 = vadd.f32 %v110, %v635
  %637 = vmatmul.f32.gmra.mxu0 %v187
  %v638 = vpop.f32.mrf.mxu0
  %v639 = vadd.f32 %v110, %v638
  %640 = vmatmul.f32.gmra.mxu0 %v190
  %v641 = vpop.f32.mrf.mxu0
  %v642 = vadd.f32 %v110, %v641
  %643 = vmatmul.f32.gmra.mxu0 %v193
  %v644 = vpop.f32.mrf.mxu0
  %v645 = vadd.f32 %v110, %v644
  %646 = vmatmul.f32.gmra.mxu0 %v196
  %v647 = vpop.f32.mrf.mxu0
  %v648 = vadd.f32 %v110, %v647
  %649 = vmatmul.f32.gmra.mxu0 %v199
  %v650 = vpop.f32.mrf.mxu0
  %v651 = vadd.f32 %v110, %v650
  %652 = vmatmul.f32.gmra.mxu0 %v202
  %v653 = vpop.f32.mrf.mxu0
  %v654 = vadd.f32 %v110, %v653
  %655 = vmatmul.f32.gmra.mxu0 %v205
  %v656 = vpop.f32.mrf.mxu0
  %v657 = vadd.f32 %v110, %v656
  %658 = vmatmul.f32.gmra.mxu0 %v208
  %v659 = vpop.f32.mrf.mxu0
  %v660 = vadd.f32 %v110, %v659
  %661 = vmatmul.f32.gmra.mxu0 %v211
  %v662 = vpop.f32.mrf.mxu0
  %v663 = vadd.f32 %v110, %v662
  %664 = vmatmul.f32.gmra.mxu0 %v214
  %v665 = vpop.f32.mrf.mxu0
  %v666 = vadd.f32 %v110, %v665
  %667 = vmatmul.f32.gmra.mxu0 %v217
  %v668 = vpop.f32.mrf.mxu0
  %v669 = vadd.f32 %v110, %v668
  %670 = vmatmul.f32.gmra.mxu0 %v220
  %v671 = vpop.f32.mrf.mxu0
  %v672 = vadd.f32 %v110, %v671
  %673 = vmatmul.f32.gmra.mxu0 %v223
  %v674 = vpop.f32.mrf.mxu0
  %v675 = vadd.f32 %v110, %v674
  %676 = vmatmul.f32.gmra.mxu0 %v226
  %v677 = vpop.f32.mrf.mxu0
  %v678 = vadd.f32 %v110, %v677
  %679 = vdwg.mxu0
  %680 = vmatpush.msra.mxu0 0.0
  %681 = vmatpush.msra.mxu0 0.0
  %682 = vmatpush.msra.mxu0 0.0
  %683 = vmatpush.msra.mxu0 0.0
  %684 = vmatpush.msra.mxu0 0.0
  %685 = vmatpush.msra.mxu0 0.0
  %686 = vmatpush.msra.mxu0 0.0
  %687 = vmatpush.msra.mxu0 0.0
  %688 = vmatpush.msra.mxu0 0.0
  %689 = vmatpush.msra.mxu0 0.0
  %690 = vmatpush.msra.mxu0 0.0
  %691 = vmatpush.msra.mxu0 0.0
  %692 = vmatpush.msra.mxu0 %v95
  %693 = vmatpush.msra.mxu0 %v83
  %694 = vmatpush.msra.mxu0 %v71
  %695 = vmatpush.msra.mxu0 %v59
  %696 = vmatmul.f32.gmra.mxu0 %v133
  %v697 = vpop.f32.mrf.mxu0
  %v698 = vadd.f32 %v111, %v697
  %699 = vmatmul.f32.gmra.mxu0 %v136
  %v700 = vpop.f32.mrf.mxu0
  %v701 = vadd.f32 %v111, %v700
  %702 = vmatmul.f32.gmra.mxu0 %v139
  %v703 = vpop.f32.mrf.mxu0
  %v704 = vadd.f32 %v111, %v703
  %705 = vmatmul.f32.gmra.mxu0 %v142
  %v706 = vpop.f32.mrf.mxu0
  %v707 = vadd.f32 %v111, %v706
  %708 = vmatmul.f32.gmra.mxu0 %v145
  %v709 = vpop.f32.mrf.mxu0
  %v710 = vadd.f32 %v111, %v709
  %711 = vmatmul.f32.gmra.mxu0 %v148
  %v712 = vpop.f32.mrf.mxu0
  %v713 = vadd.f32 %v111, %v712
  %714 = vmatmul.f32.gmra.mxu0 %v151
  %v715 = vpop.f32.mrf.mxu0
  %v716 = vadd.f32 %v111, %v715
  %717 = vmatmul.f32.gmra.mxu0 %v154
  %v718 = vpop.f32.mrf.mxu0
  %v719 = vadd.f32 %v111, %v718
  %720 = vmatmul.f32.gmra.mxu0 %v157
  %v721 = vpop.f32.mrf.mxu0
  %v722 = vadd.f32 %v111, %v721
  %723 = vmatmul.f32.gmra.mxu0 %v160
  %v724 = vpop.f32.mrf.mxu0
  %v725 = vadd.f32 %v111, %v724
  %726 = vmatmul.f32.gmra.mxu0 %v163
  %v727 = vpop.f32.mrf.mxu0
  %v728 = vadd.f32 %v111, %v727
  %729 = vmatmul.f32.gmra.mxu0 %v166
  %v730 = vpop.f32.mrf.mxu0
  %v731 = vadd.f32 %v111, %v730
  %732 = vmatmul.f32.gmra.mxu0 %v169
  %v733 = vpop.f32.mrf.mxu0
  %v734 = vadd.f32 %v111, %v733
  %735 = vmatmul.f32.gmra.mxu0 %v172
  %v736 = vpop.f32.mrf.mxu0
  %v737 = vadd.f32 %v111, %v736
  %738 = vmatmul.f32.gmra.mxu0 %v175
  %v739 = vpop.f32.mrf.mxu0
  %v740 = vadd.f32 %v111, %v739
  %741 = vmatmul.f32.gmra.mxu0 %v178
  %v742 = vpop.f32.mrf.mxu0
  %v743 = vadd.f32 %v111, %v742
  %744 = vmatmul.f32.gmra.mxu0 %v181
  %v745 = vpop.f32.mrf.mxu0
  %v746 = vadd.f32 %v111, %v745
  %747 = vmatmul.f32.gmra.mxu0 %v184
  %v748 = vpop.f32.mrf.mxu0
  %v749 = vadd.f32 %v111, %v748
  %750 = vmatmul.f32.gmra.mxu0 %v187
  %v751 = vpop.f32.mrf.mxu0
  %v752 = vadd.f32 %v111, %v751
  %753 = vmatmul.f32.gmra.mxu0 %v190
  %v754 = vpop.f32.mrf.mxu0
  %v755 = vadd.f32 %v111, %v754
  %756 = vmatmul.f32.gmra.mxu0 %v193
  %v757 = vpop.f32.mrf.mxu0
  %v758 = vadd.f32 %v111, %v757
  %759 = vmatmul.f32.gmra.mxu0 %v196
  %v760 = vpop.f32.mrf.mxu0
  %v761 = vadd.f32 %v111, %v760
  %762 = vmatmul.f32.gmra.mxu0 %v199
  %v763 = vpop.f32.mrf.mxu0
  %v764 = vadd.f32 %v111, %v763
  %765 = vmatmul.f32.gmra.mxu0 %v202
  %v766 = vpop.f32.mrf.mxu0
  %v767 = vadd.f32 %v111, %v766
  %768 = vmatmul.f32.gmra.mxu0 %v205
  %v769 = vpop.f32.mrf.mxu0
  %v770 = vadd.f32 %v111, %v769
  %771 = vmatmul.f32.gmra.mxu0 %v208
  %v772 = vpop.f32.mrf.mxu0
  %v773 = vadd.f32 %v111, %v772
  %774 = vmatmul.f32.gmra.mxu0 %v211
  %v775 = vpop.f32.mrf.mxu0
  %v776 = vadd.f32 %v111, %v775
  %777 = vmatmul.f32.gmra.mxu0 %v214
  %v778 = vpop.f32.mrf.mxu0
  %v779 = vadd.f32 %v111, %v778
  %780 = vmatmul.f32.gmra.mxu0 %v217
  %v781 = vpop.f32.mrf.mxu0
  %v782 = vadd.f32 %v111, %v781
  %783 = vmatmul.f32.gmra.mxu0 %v220
  %v784 = vpop.f32.mrf.mxu0
  %v785 = vadd.f32 %v111, %v784
  %786 = vmatmul.f32.gmra.mxu0 %v223
  %v787 = vpop.f32.mrf.mxu0
  %v788 = vadd.f32 %v111, %v787
  %789 = vmatmul.f32.gmra.mxu0 %v226
  %v790 = vpop.f32.mrf.mxu0
  %v791 = vadd.f32 %v111, %v790
  %792 = vdwg.mxu0
  %793 = vmatpush.msra.mxu0 0.0
  %794 = vmatpush.msra.mxu0 0.0
  %795 = vmatpush.msra.mxu0 0.0
  %796 = vmatpush.msra.mxu0 0.0
  %797 = vmatpush.msra.mxu0 0.0
  %798 = vmatpush.msra.mxu0 0.0
  %799 = vmatpush.msra.mxu0 0.0
  %800 = vmatpush.msra.mxu0 0.0
  %801 = vmatpush.msra.mxu0 0.0
  %802 = vmatpush.msra.mxu0 0.0
  %803 = vmatpush.msra.mxu0 0.0
  %804 = vmatpush.msra.mxu0 0.0
  %805 = vmatpush.msra.mxu0 %v96
  %806 = vmatpush.msra.mxu0 %v84
  %807 = vmatpush.msra.mxu0 %v72
  %808 = vmatpush.msra.mxu0 %v60
  %809 = vmatmul.f32.gmra.mxu0 %v133
  %v810 = vpop.f32.mrf.mxu0
  %v811 = vadd.f32 %v112, %v810
  %812 = vmatmul.f32.gmra.mxu0 %v136
  %v813 = vpop.f32.mrf.mxu0
  %v814 = vadd.f32 %v112, %v813
  %815 = vmatmul.f32.gmra.mxu0 %v139
  %v816 = vpop.f32.mrf.mxu0
  %v817 = vadd.f32 %v112, %v816
  %818 = vmatmul.f32.gmra.mxu0 %v142
  %v819 = vpop.f32.mrf.mxu0
  %v820 = vadd.f32 %v112, %v819
  %821 = vmatmul.f32.gmra.mxu0 %v145
  %v822 = vpop.f32.mrf.mxu0
  %v823 = vadd.f32 %v112, %v822
  %824 = vmatmul.f32.gmra.mxu0 %v148
  %v825 = vpop.f32.mrf.mxu0
  %v826 = vadd.f32 %v112, %v825
  %827 = vmatmul.f32.gmra.mxu0 %v151
  %v828 = vpop.f32.mrf.mxu0
  %v829 = vadd.f32 %v112, %v828
  %830 = vmatmul.f32.gmra.mxu0 %v154
  %v831 = vpop.f32.mrf.mxu0
  %v832 = vadd.f32 %v112, %v831
  %833 = vmatmul.f32.gmra.mxu0 %v157
  %v834 = vpop.f32.mrf.mxu0
  %v835 = vadd.f32 %v112, %v834
  %836 = vmatmul.f32.gmra.mxu0 %v160
  %v837 = vpop.f32.mrf.mxu0
  %v838 = vadd.f32 %v112, %v837
  %839 = vmatmul.f32.gmra.mxu0 %v163
  %v840 = vpop.f32.mrf.mxu0
  %v841 = vadd.f32 %v112, %v840
  %842 = vmatmul.f32.gmra.mxu0 %v166
  %v843 = vpop.f32.mrf.mxu0
  %v844 = vadd.f32 %v112, %v843
  %845 = vmatmul.f32.gmra.mxu0 %v169
  %v846 = vpop.f32.mrf.mxu0
  %v847 = vadd.f32 %v112, %v846
  %848 = vmatmul.f32.gmra.mxu0 %v172
  %v849 = vpop.f32.mrf.mxu0
  %v850 = vadd.f32 %v112, %v849
  %851 = vmatmul.f32.gmra.mxu0 %v175
  %v852 = vpop.f32.mrf.mxu0
  %v853 = vadd.f32 %v112, %v852
  %854 = vmatmul.f32.gmra.mxu0 %v178
  %v855 = vpop.f32.mrf.mxu0
  %v856 = vadd.f32 %v112, %v855
  %857 = vmatmul.f32.gmra.mxu0 %v181
  %v858 = vpop.f32.mrf.mxu0
  %v859 = vadd.f32 %v112, %v858
  %860 = vmatmul.f32.gmra.mxu0 %v184
  %v861 = vpop.f32.mrf.mxu0
  %v862 = vadd.f32 %v112, %v861
  %863 = vmatmul.f32.gmra.mxu0 %v187
  %v864 = vpop.f32.mrf.mxu0
  %v865 = vadd.f32 %v112, %v864
  %866 = vmatmul.f32.gmra.mxu0 %v190
  %v867 = vpop.f32.mrf.mxu0
  %v868 = vadd.f32 %v112, %v867
  %869 = vmatmul.f32.gmra.mxu0 %v193
  %v870 = vpop.f32.mrf.mxu0
  %v871 = vadd.f32 %v112, %v870
  %872 = vmatmul.f32.gmra.mxu0 %v196
  %v873 = vpop.f32.mrf.mxu0
  %v874 = vadd.f32 %v112, %v873
  %875 = vmatmul.f32.gmra.mxu0 %v199
  %v876 = vpop.f32.mrf.mxu0
  %v877 = vadd.f32 %v112, %v876
  %878 = vmatmul.f32.gmra.mxu0 %v202
  %v879 = vpop.f32.mrf.mxu0
  %v880 = vadd.f32 %v112, %v879
  %881 = vmatmul.f32.gmra.mxu0 %v205
  %v882 = vpop.f32.mrf.mxu0
  %v883 = vadd.f32 %v112, %v882
  %884 = vmatmul.f32.gmra.mxu0 %v208
  %v885 = vpop.f32.mrf.mxu0
  %v886 = vadd.f32 %v112, %v885
  %887 = vmatmul.f32.gmra.mxu0 %v211
  %v888 = vpop.f32.mrf.mxu0
  %v889 = vadd.f32 %v112, %v888
  %890 = vmatmul.f32.gmra.mxu0 %v214
  %v891 = vpop.f32.mrf.mxu0
  %v892 = vadd.f32 %v112, %v891
  %893 = vmatmul.f32.gmra.mxu0 %v217
  %v894 = vpop.f32.mrf.mxu0
  %v895 = vadd.f32 %v112, %v894
  %896 = vmatmul.f32.gmra.mxu0 %v220
  %v897 = vpop.f32.mrf.mxu0
  %v898 = vadd.f32 %v112, %v897
  %899 = vmatmul.f32.gmra.mxu0 %v223
  %v900 = vpop.f32.mrf.mxu0
  %v901 = vadd.f32 %v112, %v900
  %902 = vmatmul.f32.gmra.mxu0 %v226
  %v903 = vpop.f32.mrf.mxu0
  %v904 = vadd.f32 %v112, %v903
  %905 = vdwg.mxu0
  %906 = vmatpush.msra.mxu0 0.0
  %907 = vmatpush.msra.mxu0 0.0
  %908 = vmatpush.msra.mxu0 0.0
  %909 = vmatpush.msra.mxu0 0.0
  %910 = vmatpush.msra.mxu0 0.0
  %911 = vmatpush.msra.mxu0 0.0
  %912 = vmatpush.msra.mxu0 0.0
  %913 = vmatpush.msra.mxu0 0.0
  %914 = vmatpush.msra.mxu0 0.0
  %915 = vmatpush.msra.mxu0 0.0
  %916 = vmatpush.msra.mxu0 0.0
  %917 = vmatpush.msra.mxu0 0.0
  %918 = vmatpush.msra.mxu0 %v97
  %919 = vmatpush.msra.mxu0 %v85
  %920 = vmatpush.msra.mxu0 %v73
  %921 = vmatpush.msra.mxu0 %v61
  %922 = vmatmul.f32.gmra.mxu0 %v133
  %v923 = vpop.f32.mrf.mxu0
  %v924 = vadd.f32 %v113, %v923
  %925 = vmatmul.f32.gmra.mxu0 %v136
  %v926 = vpop.f32.mrf.mxu0
  %v927 = vadd.f32 %v113, %v926
  %928 = vmatmul.f32.gmra.mxu0 %v139
  %v929 = vpop.f32.mrf.mxu0
  %v930 = vadd.f32 %v113, %v929
  %931 = vmatmul.f32.gmra.mxu0 %v142
  %v932 = vpop.f32.mrf.mxu0
  %v933 = vadd.f32 %v113, %v932
  %934 = vmatmul.f32.gmra.mxu0 %v145
  %v935 = vpop.f32.mrf.mxu0
  %v936 = vadd.f32 %v113, %v935
  %937 = vmatmul.f32.gmra.mxu0 %v148
  %v938 = vpop.f32.mrf.mxu0
  %v939 = vadd.f32 %v113, %v938
  %940 = vmatmul.f32.gmra.mxu0 %v151
  %v941 = vpop.f32.mrf.mxu0
  %v942 = vadd.f32 %v113, %v941
  %943 = vmatmul.f32.gmra.mxu0 %v154
  %v944 = vpop.f32.mrf.mxu0
  %v945 = vadd.f32 %v113, %v944
  %946 = vmatmul.f32.gmra.mxu0 %v157
  %v947 = vpop.f32.mrf.mxu0
  %v948 = vadd.f32 %v113, %v947
  %949 = vmatmul.f32.gmra.mxu0 %v160
  %v950 = vpop.f32.mrf.mxu0
  %v951 = vadd.f32 %v113, %v950
  %952 = vmatmul.f32.gmra.mxu0 %v163
  %v953 = vpop.f32.mrf.mxu0
  %v954 = vadd.f32 %v113, %v953
  %955 = vmatmul.f32.gmra.mxu0 %v166
  %v956 = vpop.f32.mrf.mxu0
  %v957 = vadd.f32 %v113, %v956
  %958 = vmatmul.f32.gmra.mxu0 %v169
  %v959 = vpop.f32.mrf.mxu0
  %v960 = vadd.f32 %v113, %v959
  %961 = vmatmul.f32.gmra.mxu0 %v172
  %v962 = vpop.f32.mrf.mxu0
  %v963 = vadd.f32 %v113, %v962
  %964 = vmatmul.f32.gmra.mxu0 %v175
  %v965 = vpop.f32.mrf.mxu0
  %v966 = vadd.f32 %v113, %v965
  %967 = vmatmul.f32.gmra.mxu0 %v178
  %v968 = vpop.f32.mrf.mxu0
  %v969 = vadd.f32 %v113, %v968
  %970 = vmatmul.f32.gmra.mxu0 %v181
  %v971 = vpop.f32.mrf.mxu0
  %v972 = vadd.f32 %v113, %v971
  %973 = vmatmul.f32.gmra.mxu0 %v184
  %v974 = vpop.f32.mrf.mxu0
  %v975 = vadd.f32 %v113, %v974
  %976 = vmatmul.f32.gmra.mxu0 %v187
  %v977 = vpop.f32.mrf.mxu0
  %v978 = vadd.f32 %v113, %v977
  %979 = vmatmul.f32.gmra.mxu0 %v190
  %v980 = vpop.f32.mrf.mxu0
  %v981 = vadd.f32 %v113, %v980
  %982 = vmatmul.f32.gmra.mxu0 %v193
  %v983 = vpop.f32.mrf.mxu0
  %v984 = vadd.f32 %v113, %v983
  %985 = vmatmul.f32.gmra.mxu0 %v196
  %v986 = vpop.f32.mrf.mxu0
  %v987 = vadd.f32 %v113, %v986
  %988 = vmatmul.f32.gmra.mxu0 %v199
  %v989 = vpop.f32.mrf.mxu0
  %v990 = vadd.f32 %v113, %v989
  %991 = vmatmul.f32.gmra.mxu0 %v202
  %v992 = vpop.f32.mrf.mxu0
  %v993 = vadd.f32 %v113, %v992
  %994 = vmatmul.f32.gmra.mxu0 %v205
  %v995 = vpop.f32.mrf.mxu0
  %v996 = vadd.f32 %v113, %v995
  %997 = vmatmul.f32.gmra.mxu0 %v208
  %v998 = vpop.f32.mrf.mxu0
  %v999 = vadd.f32 %v113, %v998
  %1000 = vmatmul.f32.gmra.mxu0 %v211
  %v1001 = vpop.f32.mrf.mxu0
  %v1002 = vadd.f32 %v113, %v1001
  %1003 = vmatmul.f32.gmra.mxu0 %v214
  %v1004 = vpop.f32.mrf.mxu0
  %v1005 = vadd.f32 %v113, %v1004
  %1006 = vmatmul.f32.gmra.mxu0 %v217
  %v1007 = vpop.f32.mrf.mxu0
  %v1008 = vadd.f32 %v113, %v1007
  %1009 = vmatmul.f32.gmra.mxu0 %v220
  %v1010 = vpop.f32.mrf.mxu0
  %v1011 = vadd.f32 %v113, %v1010
  %1012 = vmatmul.f32.gmra.mxu0 %v223
  %v1013 = vpop.f32.mrf.mxu0
  %v1014 = vadd.f32 %v113, %v1013
  %1015 = vmatmul.f32.gmra.mxu0 %v226
  %v1016 = vpop.f32.mrf.mxu0
  %v1017 = vadd.f32 %v113, %v1016
  %1018 = vdwg.mxu0
  %1019 = vmatpush.msra.mxu0 0.0
  %1020 = vmatpush.msra.mxu0 0.0
  %1021 = vmatpush.msra.mxu0 0.0
  %1022 = vmatpush.msra.mxu0 0.0
  %1023 = vmatpush.msra.mxu0 0.0
  %1024 = vmatpush.msra.mxu0 0.0
  %1025 = vmatpush.msra.mxu0 0.0
  %1026 = vmatpush.msra.mxu0 0.0
  %1027 = vmatpush.msra.mxu0 0.0
  %1028 = vmatpush.msra.mxu0 0.0
  %1029 = vmatpush.msra.mxu0 0.0
  %1030 = vmatpush.msra.mxu0 0.0
  %1031 = vmatpush.msra.mxu0 %v98
  %1032 = vmatpush.msra.mxu0 %v86
  %1033 = vmatpush.msra.mxu0 %v74
  %1034 = vmatpush.msra.mxu0 %v62
  %1035 = vmatmul.f32.gmra.mxu0 %v133
  %v1036 = vpop.f32.mrf.mxu0
  %v1037 = vadd.f32 %v114, %v1036
  %1038 = vmatmul.f32.gmra.mxu0 %v136
  %v1039 = vpop.f32.mrf.mxu0
  %v1040 = vadd.f32 %v114, %v1039
  %1041 = vmatmul.f32.gmra.mxu0 %v139
  %v1042 = vpop.f32.mrf.mxu0
  %v1043 = vadd.f32 %v114, %v1042
  %1044 = vmatmul.f32.gmra.mxu0 %v142
  %v1045 = vpop.f32.mrf.mxu0
  %v1046 = vadd.f32 %v114, %v1045
  %1047 = vmatmul.f32.gmra.mxu0 %v145
  %v1048 = vpop.f32.mrf.mxu0
  %v1049 = vadd.f32 %v114, %v1048
  %1050 = vmatmul.f32.gmra.mxu0 %v148
  %v1051 = vpop.f32.mrf.mxu0
  %v1052 = vadd.f32 %v114, %v1051
  %1053 = vmatmul.f32.gmra.mxu0 %v151
  %v1054 = vpop.f32.mrf.mxu0
  %v1055 = vadd.f32 %v114, %v1054
  %1056 = vmatmul.f32.gmra.mxu0 %v154
  %v1057 = vpop.f32.mrf.mxu0
  %v1058 = vadd.f32 %v114, %v1057
  %1059 = vmatmul.f32.gmra.mxu0 %v157
  %v1060 = vpop.f32.mrf.mxu0
  %v1061 = vadd.f32 %v114, %v1060
  %1062 = vmatmul.f32.gmra.mxu0 %v160
  %v1063 = vpop.f32.mrf.mxu0
  %v1064 = vadd.f32 %v114, %v1063
  %1065 = vmatmul.f32.gmra.mxu0 %v163
  %v1066 = vpop.f32.mrf.mxu0
  %v1067 = vadd.f32 %v114, %v1066
  %1068 = vmatmul.f32.gmra.mxu0 %v166
  %v1069 = vpop.f32.mrf.mxu0
  %v1070 = vadd.f32 %v114, %v1069
  %1071 = vmatmul.f32.gmra.mxu0 %v169
  %v1072 = vpop.f32.mrf.mxu0
  %v1073 = vadd.f32 %v114, %v1072
  %1074 = vmatmul.f32.gmra.mxu0 %v172
  %v1075 = vpop.f32.mrf.mxu0
  %v1076 = vadd.f32 %v114, %v1075
  %1077 = vmatmul.f32.gmra.mxu0 %v175
  %v1078 = vpop.f32.mrf.mxu0
  %v1079 = vadd.f32 %v114, %v1078
  %1080 = vmatmul.f32.gmra.mxu0 %v178
  %v1081 = vpop.f32.mrf.mxu0
  %v1082 = vadd.f32 %v114, %v1081
  %1083 = vmatmul.f32.gmra.mxu0 %v181
  %v1084 = vpop.f32.mrf.mxu0
  %v1085 = vadd.f32 %v114, %v1084
  %1086 = vmatmul.f32.gmra.mxu0 %v184
  %v1087 = vpop.f32.mrf.mxu0
  %v1088 = vadd.f32 %v114, %v1087
  %1089 = vmatmul.f32.gmra.mxu0 %v187
  %v1090 = vpop.f32.mrf.mxu0
  %v1091 = vadd.f32 %v114, %v1090
  %1092 = vmatmul.f32.gmra.mxu0 %v190
  %v1093 = vpop.f32.mrf.mxu0
  %v1094 = vadd.f32 %v114, %v1093
  %1095 = vmatmul.f32.gmra.mxu0 %v193
  %v1096 = vpop.f32.mrf.mxu0
  %v1097 = vadd.f32 %v114, %v1096
  %1098 = vmatmul.f32.gmra.mxu0 %v196
  %v1099 = vpop.f32.mrf.mxu0
  %v1100 = vadd.f32 %v114, %v1099
  %1101 = vmatmul.f32.gmra.mxu0 %v199
  %v1102 = vpop.f32.mrf.mxu0
  %v1103 = vadd.f32 %v114, %v1102
  %1104 = vmatmul.f32.gmra.mxu0 %v202
  %v1105 = vpop.f32.mrf.mxu0
  %v1106 = vadd.f32 %v114, %v1105
  %1107 = vmatmul.f32.gmra.mxu0 %v205
  %v1108 = vpop.f32.mrf.mxu0
  %v1109 = vadd.f32 %v114, %v1108
  %1110 = vmatmul.f32.gmra.mxu0 %v208
  %v1111 = vpop.f32.mrf.mxu0
  %v1112 = vadd.f32 %v114, %v1111
  %1113 = vmatmul.f32.gmra.mxu0 %v211
  %v1114 = vpop.f32.mrf.mxu0
  %v1115 = vadd.f32 %v114, %v1114
  %1116 = vmatmul.f32.gmra.mxu0 %v214
  %v1117 = vpop.f32.mrf.mxu0
  %v1118 = vadd.f32 %v114, %v1117
  %1119 = vmatmul.f32.gmra.mxu0 %v217
  %v1120 = vpop.f32.mrf.mxu0
  %v1121 = vadd.f32 %v114, %v1120
  %1122 = vmatmul.f32.gmra.mxu0 %v220
  %v1123 = vpop.f32.mrf.mxu0
  %v1124 = vadd.f32 %v114, %v1123
  %1125 = vmatmul.f32.gmra.mxu0 %v223
  %v1126 = vpop.f32.mrf.mxu0
  %v1127 = vadd.f32 %v114, %v1126
  %1128 = vmatmul.f32.gmra.mxu0 %v226
  %v1129 = vpop.f32.mrf.mxu0
  %v1130 = vadd.f32 %v114, %v1129
  %1131 = vdwg.mxu0
  %1132 = vmatpush.msra.mxu0 0.0
  %1133 = vmatpush.msra.mxu0 0.0
  %1134 = vmatpush.msra.mxu0 0.0
  %1135 = vmatpush.msra.mxu0 0.0
  %1136 = vmatpush.msra.mxu0 0.0
  %1137 = vmatpush.msra.mxu0 0.0
  %1138 = vmatpush.msra.mxu0 0.0
  %1139 = vmatpush.msra.mxu0 0.0
  %1140 = vmatpush.msra.mxu0 0.0
  %1141 = vmatpush.msra.mxu0 0.0
  %1142 = vmatpush.msra.mxu0 0.0
  %1143 = vmatpush.msra.mxu0 0.0
  %1144 = vmatpush.msra.mxu0 %v99
  %1145 = vmatpush.msra.mxu0 %v87
  %1146 = vmatpush.msra.mxu0 %v75
  %1147 = vmatpush.msra.mxu0 %v63
  %1148 = vmatmul.f32.gmra.mxu0 %v133
  %v1149 = vpop.f32.mrf.mxu0
  %v1150 = vadd.f32 %v115, %v1149
  %1151 = vmatmul.f32.gmra.mxu0 %v136
  %v1152 = vpop.f32.mrf.mxu0
  %v1153 = vadd.f32 %v115, %v1152
  %1154 = vmatmul.f32.gmra.mxu0 %v139
  %v1155 = vpop.f32.mrf.mxu0
  %v1156 = vadd.f32 %v115, %v1155
  %1157 = vmatmul.f32.gmra.mxu0 %v142
  %v1158 = vpop.f32.mrf.mxu0
  %v1159 = vadd.f32 %v115, %v1158
  %1160 = vmatmul.f32.gmra.mxu0 %v145
  %v1161 = vpop.f32.mrf.mxu0
  %v1162 = vadd.f32 %v115, %v1161
  %1163 = vmatmul.f32.gmra.mxu0 %v148
  %v1164 = vpop.f32.mrf.mxu0
  %v1165 = vadd.f32 %v115, %v1164
  %1166 = vmatmul.f32.gmra.mxu0 %v151
  %v1167 = vpop.f32.mrf.mxu0
  %v1168 = vadd.f32 %v115, %v1167
  %1169 = vmatmul.f32.gmra.mxu0 %v154
  %v1170 = vpop.f32.mrf.mxu0
  %v1171 = vadd.f32 %v115, %v1170
  %1172 = vmatmul.f32.gmra.mxu0 %v157
  %v1173 = vpop.f32.mrf.mxu0
  %v1174 = vadd.f32 %v115, %v1173
  %1175 = vmatmul.f32.gmra.mxu0 %v160
  %v1176 = vpop.f32.mrf.mxu0
  %v1177 = vadd.f32 %v115, %v1176
  %1178 = vmatmul.f32.gmra.mxu0 %v163
  %v1179 = vpop.f32.mrf.mxu0
  %v1180 = vadd.f32 %v115, %v1179
  %1181 = vmatmul.f32.gmra.mxu0 %v166
  %v1182 = vpop.f32.mrf.mxu0
  %v1183 = vadd.f32 %v115, %v1182
  %1184 = vmatmul.f32.gmra.mxu0 %v169
  %v1185 = vpop.f32.mrf.mxu0
  %v1186 = vadd.f32 %v115, %v1185
  %1187 = vmatmul.f32.gmra.mxu0 %v172
  %v1188 = vpop.f32.mrf.mxu0
  %v1189 = vadd.f32 %v115, %v1188
  %1190 = vmatmul.f32.gmra.mxu0 %v175
  %v1191 = vpop.f32.mrf.mxu0
  %v1192 = vadd.f32 %v115, %v1191
  %1193 = vmatmul.f32.gmra.mxu0 %v178
  %v1194 = vpop.f32.mrf.mxu0
  %v1195 = vadd.f32 %v115, %v1194
  %1196 = vmatmul.f32.gmra.mxu0 %v181
  %v1197 = vpop.f32.mrf.mxu0
  %v1198 = vadd.f32 %v115, %v1197
  %1199 = vmatmul.f32.gmra.mxu0 %v184
  %v1200 = vpop.f32.mrf.mxu0
  %v1201 = vadd.f32 %v115, %v1200
  %1202 = vmatmul.f32.gmra.mxu0 %v187
  %v1203 = vpop.f32.mrf.mxu0
  %v1204 = vadd.f32 %v115, %v1203
  %1205 = vmatmul.f32.gmra.mxu0 %v190
  %v1206 = vpop.f32.mrf.mxu0
  %v1207 = vadd.f32 %v115, %v1206
  %1208 = vmatmul.f32.gmra.mxu0 %v193
  %v1209 = vpop.f32.mrf.mxu0
  %v1210 = vadd.f32 %v115, %v1209
  %1211 = vmatmul.f32.gmra.mxu0 %v196
  %v1212 = vpop.f32.mrf.mxu0
  %v1213 = vadd.f32 %v115, %v1212
  %1214 = vmatmul.f32.gmra.mxu0 %v199
  %v1215 = vpop.f32.mrf.mxu0
  %v1216 = vadd.f32 %v115, %v1215
  %1217 = vmatmul.f32.gmra.mxu0 %v202
  %v1218 = vpop.f32.mrf.mxu0
  %v1219 = vadd.f32 %v115, %v1218
  %1220 = vmatmul.f32.gmra.mxu0 %v205
  %v1221 = vpop.f32.mrf.mxu0
  %v1222 = vadd.f32 %v115, %v1221
  %1223 = vmatmul.f32.gmra.mxu0 %v208
  %v1224 = vpop.f32.mrf.mxu0
  %v1225 = vadd.f32 %v115, %v1224
  %1226 = vmatmul.f32.gmra.mxu0 %v211
  %v1227 = vpop.f32.mrf.mxu0
  %v1228 = vadd.f32 %v115, %v1227
  %1229 = vmatmul.f32.gmra.mxu0 %v214
  %v1230 = vpop.f32.mrf.mxu0
  %v1231 = vadd.f32 %v115, %v1230
  %1232 = vmatmul.f32.gmra.mxu0 %v217
  %v1233 = vpop.f32.mrf.mxu0
  %v1234 = vadd.f32 %v115, %v1233
  %1235 = vmatmul.f32.gmra.mxu0 %v220
  %v1236 = vpop.f32.mrf.mxu0
  %v1237 = vadd.f32 %v115, %v1236
  %1238 = vmatmul.f32.gmra.mxu0 %v223
  %v1239 = vpop.f32.mrf.mxu0
  %v1240 = vadd.f32 %v115, %v1239
  %1241 = vmatmul.f32.gmra.mxu0 %v226
  %v1242 = vpop.f32.mrf.mxu0
  %v1243 = vadd.f32 %v115, %v1242
  %1244 = vdwg.mxu0
  %1245 = vmatpush.msra.mxu0 0.0
  %1246 = vmatpush.msra.mxu0 0.0
  %1247 = vmatpush.msra.mxu0 0.0
  %1248 = vmatpush.msra.mxu0 0.0
  %1249 = vmatpush.msra.mxu0 0.0
  %1250 = vmatpush.msra.mxu0 0.0
  %1251 = vmatpush.msra.mxu0 0.0
  %1252 = vmatpush.msra.mxu0 0.0
  %1253 = vmatpush.msra.mxu0 0.0
  %1254 = vmatpush.msra.mxu0 0.0
  %1255 = vmatpush.msra.mxu0 0.0
  %1256 = vmatpush.msra.mxu0 0.0
  %1257 = vmatpush.msra.mxu0 %v100
  %1258 = vmatpush.msra.mxu0 %v88
  %1259 = vmatpush.msra.mxu0 %v76
  %1260 = vmatpush.msra.mxu0 %v64
  %1261 = vmatmul.f32.gmra.mxu0 %v133
  %v1262 = vpop.f32.mrf.mxu0
  %v1263 = vadd.f32 %v116, %v1262
  %1264 = vmatmul.f32.gmra.mxu0 %v136
  %v1265 = vpop.f32.mrf.mxu0
  %v1266 = vadd.f32 %v116, %v1265
  %1267 = vmatmul.f32.gmra.mxu0 %v139
  %v1268 = vpop.f32.mrf.mxu0
  %v1269 = vadd.f32 %v116, %v1268
  %1270 = vmatmul.f32.gmra.mxu0 %v142
  %v1271 = vpop.f32.mrf.mxu0
  %v1272 = vadd.f32 %v116, %v1271
  %1273 = vmatmul.f32.gmra.mxu0 %v145
  %v1274 = vpop.f32.mrf.mxu0
  %v1275 = vadd.f32 %v116, %v1274
  %1276 = vmatmul.f32.gmra.mxu0 %v148
  %v1277 = vpop.f32.mrf.mxu0
  %v1278 = vadd.f32 %v116, %v1277
  %1279 = vmatmul.f32.gmra.mxu0 %v151
  %v1280 = vpop.f32.mrf.mxu0
  %v1281 = vadd.f32 %v116, %v1280
  %1282 = vmatmul.f32.gmra.mxu0 %v154
  %v1283 = vpop.f32.mrf.mxu0
  %v1284 = vadd.f32 %v116, %v1283
  %1285 = vmatmul.f32.gmra.mxu0 %v157
  %v1286 = vpop.f32.mrf.mxu0
  %v1287 = vadd.f32 %v116, %v1286
  %1288 = vmatmul.f32.gmra.mxu0 %v160
  %v1289 = vpop.f32.mrf.mxu0
  %v1290 = vadd.f32 %v116, %v1289
  %1291 = vmatmul.f32.gmra.mxu0 %v163
  %v1292 = vpop.f32.mrf.mxu0
  %v1293 = vadd.f32 %v116, %v1292
  %1294 = vmatmul.f32.gmra.mxu0 %v166
  %v1295 = vpop.f32.mrf.mxu0
  %v1296 = vadd.f32 %v116, %v1295
  %1297 = vmatmul.f32.gmra.mxu0 %v169
  %v1298 = vpop.f32.mrf.mxu0
  %v1299 = vadd.f32 %v116, %v1298
  %1300 = vmatmul.f32.gmra.mxu0 %v172
  %v1301 = vpop.f32.mrf.mxu0
  %v1302 = vadd.f32 %v116, %v1301
  %1303 = vmatmul.f32.gmra.mxu0 %v175
  %v1304 = vpop.f32.mrf.mxu0
  %v1305 = vadd.f32 %v116, %v1304
  %1306 = vmatmul.f32.gmra.mxu0 %v178
  %v1307 = vpop.f32.mrf.mxu0
  %v1308 = vadd.f32 %v116, %v1307
  %1309 = vmatmul.f32.gmra.mxu0 %v181
  %v1310 = vpop.f32.mrf.mxu0
  %v1311 = vadd.f32 %v116, %v1310
  %1312 = vmatmul.f32.gmra.mxu0 %v184
  %v1313 = vpop.f32.mrf.mxu0
  %v1314 = vadd.f32 %v116, %v1313
  %1315 = vmatmul.f32.gmra.mxu0 %v187
  %v1316 = vpop.f32.mrf.mxu0
  %v1317 = vadd.f32 %v116, %v1316
  %1318 = vmatmul.f32.gmra.mxu0 %v190
  %v1319 = vpop.f32.mrf.mxu0
  %v1320 = vadd.f32 %v116, %v1319
  %1321 = vmatmul.f32.gmra.mxu0 %v193
  %v1322 = vpop.f32.mrf.mxu0
  %v1323 = vadd.f32 %v116, %v1322
  %1324 = vmatmul.f32.gmra.mxu0 %v196
  %v1325 = vpop.f32.mrf.mxu0
  %v1326 = vadd.f32 %v116, %v1325
  %1327 = vmatmul.f32.gmra.mxu0 %v199
  %v1328 = vpop.f32.mrf.mxu0
  %v1329 = vadd.f32 %v116, %v1328
  %1330 = vmatmul.f32.gmra.mxu0 %v202
  %v1331 = vpop.f32.mrf.mxu0
  %v1332 = vadd.f32 %v116, %v1331
  %1333 = vmatmul.f32.gmra.mxu0 %v205
  %v1334 = vpop.f32.mrf.mxu0
  %v1335 = vadd.f32 %v116, %v1334
  %1336 = vmatmul.f32.gmra.mxu0 %v208
  %v1337 = vpop.f32.mrf.mxu0
  %v1338 = vadd.f32 %v116, %v1337
  %1339 = vmatmul.f32.gmra.mxu0 %v211
  %v1340 = vpop.f32.mrf.mxu0
  %v1341 = vadd.f32 %v116, %v1340
  %1342 = vmatmul.f32.gmra.mxu0 %v214
  %v1343 = vpop.f32.mrf.mxu0
  %v1344 = vadd.f32 %v116, %v1343
  %1345 = vmatmul.f32.gmra.mxu0 %v217
  %v1346 = vpop.f32.mrf.mxu0
  %v1347 = vadd.f32 %v116, %v1346
  %1348 = vmatmul.f32.gmra.mxu0 %v220
  %v1349 = vpop.f32.mrf.mxu0
  %v1350 = vadd.f32 %v116, %v1349
  %1351 = vmatmul.f32.gmra.mxu0 %v223
  %v1352 = vpop.f32.mrf.mxu0
  %v1353 = vadd.f32 %v116, %v1352
  %1354 = vmatmul.f32.gmra.mxu0 %v226
  %v1355 = vpop.f32.mrf.mxu0
  %v1356 = vadd.f32 %v116, %v1355
  %1357 = vdwg.mxu0
  %1358 = vmatpush.msra.mxu0 0.0
  %1359 = vmatpush.msra.mxu0 0.0
  %1360 = vmatpush.msra.mxu0 0.0
  %1361 = vmatpush.msra.mxu0 0.0
  %1362 = vmatpush.msra.mxu0 0.0
  %1363 = vmatpush.msra.mxu0 0.0
  %1364 = vmatpush.msra.mxu0 0.0
  %1365 = vmatpush.msra.mxu0 0.0
  %1366 = vmatpush.msra.mxu0 0.0
  %1367 = vmatpush.msra.mxu0 0.0
  %1368 = vmatpush.msra.mxu0 0.0
  %1369 = vmatpush.msra.mxu0 0.0
  %1370 = vmatpush.msra.mxu0 %v101
  %1371 = vmatpush.msra.mxu0 %v89
  %1372 = vmatpush.msra.mxu0 %v77
  %1373 = vmatpush.msra.mxu0 %v65
  %1374 = vmatmul.f32.gmra.mxu0 %v133
  %v1375 = vpop.f32.mrf.mxu0
  %v1376 = vadd.f32 %v117, %v1375
  %1377 = vmatmul.f32.gmra.mxu0 %v136
  %v1378 = vpop.f32.mrf.mxu0
  %v1379 = vadd.f32 %v117, %v1378
  %1380 = vmatmul.f32.gmra.mxu0 %v139
  %v1381 = vpop.f32.mrf.mxu0
  %v1382 = vadd.f32 %v117, %v1381
  %1383 = vmatmul.f32.gmra.mxu0 %v142
  %v1384 = vpop.f32.mrf.mxu0
  %v1385 = vadd.f32 %v117, %v1384
  %1386 = vmatmul.f32.gmra.mxu0 %v145
  %v1387 = vpop.f32.mrf.mxu0
  %v1388 = vadd.f32 %v117, %v1387
  %1389 = vmatmul.f32.gmra.mxu0 %v148
  %v1390 = vpop.f32.mrf.mxu0
  %v1391 = vadd.f32 %v117, %v1390
  %1392 = vmatmul.f32.gmra.mxu0 %v151
  %v1393 = vpop.f32.mrf.mxu0
  %v1394 = vadd.f32 %v117, %v1393
  %1395 = vmatmul.f32.gmra.mxu0 %v154
  %v1396 = vpop.f32.mrf.mxu0
  %v1397 = vadd.f32 %v117, %v1396
  %1398 = vmatmul.f32.gmra.mxu0 %v157
  %v1399 = vpop.f32.mrf.mxu0
  %v1400 = vadd.f32 %v117, %v1399
  %1401 = vmatmul.f32.gmra.mxu0 %v160
  %v1402 = vpop.f32.mrf.mxu0
  %v1403 = vadd.f32 %v117, %v1402
  %1404 = vmatmul.f32.gmra.mxu0 %v163
  %v1405 = vpop.f32.mrf.mxu0
  %v1406 = vadd.f32 %v117, %v1405
  %1407 = vmatmul.f32.gmra.mxu0 %v166
  %v1408 = vpop.f32.mrf.mxu0
  %v1409 = vadd.f32 %v117, %v1408
  %1410 = vmatmul.f32.gmra.mxu0 %v169
  %v1411 = vpop.f32.mrf.mxu0
  %v1412 = vadd.f32 %v117, %v1411
  %1413 = vmatmul.f32.gmra.mxu0 %v172
  %v1414 = vpop.f32.mrf.mxu0
  %v1415 = vadd.f32 %v117, %v1414
  %1416 = vmatmul.f32.gmra.mxu0 %v175
  %v1417 = vpop.f32.mrf.mxu0
  %v1418 = vadd.f32 %v117, %v1417
  %1419 = vmatmul.f32.gmra.mxu0 %v178
  %v1420 = vpop.f32.mrf.mxu0
  %v1421 = vadd.f32 %v117, %v1420
  %1422 = vmatmul.f32.gmra.mxu0 %v181
  %v1423 = vpop.f32.mrf.mxu0
  %v1424 = vadd.f32 %v117, %v1423
  %1425 = vmatmul.f32.gmra.mxu0 %v184
  %v1426 = vpop.f32.mrf.mxu0
  %v1427 = vadd.f32 %v117, %v1426
  %1428 = vmatmul.f32.gmra.mxu0 %v187
  %v1429 = vpop.f32.mrf.mxu0
  %v1430 = vadd.f32 %v117, %v1429
  %1431 = vmatmul.f32.gmra.mxu0 %v190
  %v1432 = vpop.f32.mrf.mxu0
  %v1433 = vadd.f32 %v117, %v1432
  %1434 = vmatmul.f32.gmra.mxu0 %v193
  %v1435 = vpop.f32.mrf.mxu0
  %v1436 = vadd.f32 %v117, %v1435
  %1437 = vmatmul.f32.gmra.mxu0 %v196
  %v1438 = vpop.f32.mrf.mxu0
  %v1439 = vadd.f32 %v117, %v1438
  %1440 = vmatmul.f32.gmra.mxu0 %v199
  %v1441 = vpop.f32.mrf.mxu0
  %v1442 = vadd.f32 %v117, %v1441
  %1443 = vmatmul.f32.gmra.mxu0 %v202
  %v1444 = vpop.f32.mrf.mxu0
  %v1445 = vadd.f32 %v117, %v1444
  %1446 = vmatmul.f32.gmra.mxu0 %v205
  %v1447 = vpop.f32.mrf.mxu0
  %v1448 = vadd.f32 %v117, %v1447
  %1449 = vmatmul.f32.gmra.mxu0 %v208
  %v1450 = vpop.f32.mrf.mxu0
  %v1451 = vadd.f32 %v117, %v1450
  %1452 = vmatmul.f32.gmra.mxu0 %v211
  %v1453 = vpop.f32.mrf.mxu0
  %v1454 = vadd.f32 %v117, %v1453
  %1455 = vmatmul.f32.gmra.mxu0 %v214
  %v1456 = vpop.f32.mrf.mxu0
  %v1457 = vadd.f32 %v117, %v1456
  %1458 = vmatmul.f32.gmra.mxu0 %v217
  %v1459 = vpop.f32.mrf.mxu0
  %v1460 = vadd.f32 %v117, %v1459
  %1461 = vmatmul.f32.gmra.mxu0 %v220
  %v1462 = vpop.f32.mrf.mxu0
  %v1463 = vadd.f32 %v117, %v1462
  %1464 = vmatmul.f32.gmra.mxu0 %v223
  %v1465 = vpop.f32.mrf.mxu0
  %v1466 = vadd.f32 %v117, %v1465
  %1467 = vmatmul.f32.gmra.mxu0 %v226
  %v1468 = vpop.f32.mrf.mxu0
  %v1469 = vadd.f32 %v117, %v1468
  %1470 = vdwg.mxu0
  %1471 = vmatpush.msra.mxu0 0.0
  %1472 = vmatpush.msra.mxu0 0.0
  %1473 = vmatpush.msra.mxu0 0.0
  %1474 = vmatpush.msra.mxu0 0.0
  %1475 = vmatpush.msra.mxu0 0.0
  %1476 = vmatpush.msra.mxu0 0.0
  %1477 = vmatpush.msra.mxu0 0.0
  %1478 = vmatpush.msra.mxu0 0.0
  %1479 = vmatpush.msra.mxu0 0.0
  %1480 = vmatpush.msra.mxu0 0.0
  %1481 = vmatpush.msra.mxu0 0.0
  %1482 = vmatpush.msra.mxu0 0.0
  %1483 = vmatpush.msra.mxu0 %v102
  %1484 = vmatpush.msra.mxu0 %v90
  %1485 = vmatpush.msra.mxu0 %v78
  %1486 = vmatpush.msra.mxu0 %v66
  %1487 = vmatmul.f32.gmra.mxu0 %v133
  %v1488 = vpop.f32.mrf.mxu0
  %v1489 = vadd.f32 %v118, %v1488
  %1490 = vmatmul.f32.gmra.mxu0 %v136
  %v1491 = vpop.f32.mrf.mxu0
  %v1492 = vadd.f32 %v118, %v1491
  %1493 = vmatmul.f32.gmra.mxu0 %v139
  %v1494 = vpop.f32.mrf.mxu0
  %v1495 = vadd.f32 %v118, %v1494
  %1496 = vmatmul.f32.gmra.mxu0 %v142
  %v1497 = vpop.f32.mrf.mxu0
  %v1498 = vadd.f32 %v118, %v1497
  %1499 = vmatmul.f32.gmra.mxu0 %v145
  %v1500 = vpop.f32.mrf.mxu0
  %v1501 = vadd.f32 %v118, %v1500
  %1502 = vmatmul.f32.gmra.mxu0 %v148
  %v1503 = vpop.f32.mrf.mxu0
  %v1504 = vadd.f32 %v118, %v1503
  %1505 = vmatmul.f32.gmra.mxu0 %v151
  %v1506 = vpop.f32.mrf.mxu0
  %v1507 = vadd.f32 %v118, %v1506
  %1508 = vmatmul.f32.gmra.mxu0 %v154
  %v1509 = vpop.f32.mrf.mxu0
  %v1510 = vadd.f32 %v118, %v1509
  %1511 = vmatmul.f32.gmra.mxu0 %v157
  %v1512 = vpop.f32.mrf.mxu0
  %v1513 = vadd.f32 %v118, %v1512
  %1514 = vmatmul.f32.gmra.mxu0 %v160
  %v1515 = vpop.f32.mrf.mxu0
  %v1516 = vadd.f32 %v118, %v1515
  %1517 = vmatmul.f32.gmra.mxu0 %v163
  %v1518 = vpop.f32.mrf.mxu0
  %v1519 = vadd.f32 %v118, %v1518
  %1520 = vmatmul.f32.gmra.mxu0 %v166
  %v1521 = vpop.f32.mrf.mxu0
  %v1522 = vadd.f32 %v118, %v1521
  %1523 = vmatmul.f32.gmra.mxu0 %v169
  %v1524 = vpop.f32.mrf.mxu0
  %v1525 = vadd.f32 %v118, %v1524
  %1526 = vmatmul.f32.gmra.mxu0 %v172
  %v1527 = vpop.f32.mrf.mxu0
  %v1528 = vadd.f32 %v118, %v1527
  %1529 = vmatmul.f32.gmra.mxu0 %v175
  %v1530 = vpop.f32.mrf.mxu0
  %v1531 = vadd.f32 %v118, %v1530
  %1532 = vmatmul.f32.gmra.mxu0 %v178
  %v1533 = vpop.f32.mrf.mxu0
  %v1534 = vadd.f32 %v118, %v1533
  %1535 = vmatmul.f32.gmra.mxu0 %v181
  %v1536 = vpop.f32.mrf.mxu0
  %v1537 = vadd.f32 %v118, %v1536
  %1538 = vmatmul.f32.gmra.mxu0 %v184
  %v1539 = vpop.f32.mrf.mxu0
  %v1540 = vadd.f32 %v118, %v1539
  %1541 = vmatmul.f32.gmra.mxu0 %v187
  %v1542 = vpop.f32.mrf.mxu0
  %v1543 = vadd.f32 %v118, %v1542
  %1544 = vmatmul.f32.gmra.mxu0 %v190
  %v1545 = vpop.f32.mrf.mxu0
  %v1546 = vadd.f32 %v118, %v1545
  %1547 = vmatmul.f32.gmra.mxu0 %v193
  %v1548 = vpop.f32.mrf.mxu0
  %v1549 = vadd.f32 %v118, %v1548
  %1550 = vmatmul.f32.gmra.mxu0 %v196
  %v1551 = vpop.f32.mrf.mxu0
  %v1552 = vadd.f32 %v118, %v1551
  %1553 = vmatmul.f32.gmra.mxu0 %v199
  %v1554 = vpop.f32.mrf.mxu0
  %v1555 = vadd.f32 %v118, %v1554
  %1556 = vmatmul.f32.gmra.mxu0 %v202
  %v1557 = vpop.f32.mrf.mxu0
  %v1558 = vadd.f32 %v118, %v1557
  %1559 = vmatmul.f32.gmra.mxu0 %v205
  %v1560 = vpop.f32.mrf.mxu0
  %v1561 = vadd.f32 %v118, %v1560
  %1562 = vmatmul.f32.gmra.mxu0 %v208
  %v1563 = vpop.f32.mrf.mxu0
  %v1564 = vadd.f32 %v118, %v1563
  %1565 = vmatmul.f32.gmra.mxu0 %v211
  %v1566 = vpop.f32.mrf.mxu0
  %v1567 = vadd.f32 %v118, %v1566
  %1568 = vmatmul.f32.gmra.mxu0 %v214
  %v1569 = vpop.f32.mrf.mxu0
  %v1570 = vadd.f32 %v118, %v1569
  %1571 = vmatmul.f32.gmra.mxu0 %v217
  %v1572 = vpop.f32.mrf.mxu0
  %v1573 = vadd.f32 %v118, %v1572
  %1574 = vmatmul.f32.gmra.mxu0 %v220
  %v1575 = vpop.f32.mrf.mxu0
  %v1576 = vadd.f32 %v118, %v1575
  %1577 = vmatmul.f32.gmra.mxu0 %v223
  %v1578 = vpop.f32.mrf.mxu0
  %v1579 = vadd.f32 %v118, %v1578
  %1580 = vmatmul.f32.gmra.mxu0 %v226
  %v1581 = vpop.f32.mrf.mxu0
  %v1582 = vadd.f32 %v118, %v1581
  %1583 = vdwg.mxu0
  %v1584 = vld [vmem:[%s3] sm:$0xff]
  %v1585 = vld [vmem:[%s3 + $0x8] sm:$0xff]
  %v1586 = vld [vmem:[%s3 + $0x10] sm:$0xff]
  %v1587 = vld [vmem:[%s3 + $0x18] sm:$0xff]
  %v1588 = vld [vmem:[%s3 + $0x20] sm:$0xff]
  %v1589 = vld [vmem:[%s3 + $0x28] sm:$0xff]
  %v1590 = vld [vmem:[%s3 + $0x30] sm:$0xff]
  %v1591 = vld [vmem:[%s3 + $0x38] sm:$0xff]
  %v1592 = vld [vmem:[%s3 + $0x40] sm:$0xff]
  %v1593 = vld [vmem:[%s3 + $0x48] sm:$0xff]
  %v1594 = vld [vmem:[%s3 + $0x50] sm:$0xff]
  %v1595 = vld [vmem:[%s3 + $0x58] sm:$0xff]
  %v1596 = vld [vmem:[%s3 + $0x60] sm:$0xff]
  %v1597 = vld [vmem:[%s3 + $0x68] sm:$0xff]
  %v1598 = vld [vmem:[%s3 + $0x70] sm:$0xff]
  %v1599 = vld [vmem:[%s3 + $0x78] sm:$0xff]
  %v1600 = vld [vmem:[%s3 + $0x80] sm:$0xff]
  %v1601 = vld [vmem:[%s3 + $0x88] sm:$0xff]
  %v1602 = vld [vmem:[%s3 + $0x90] sm:$0xff]
  %v1603 = vld [vmem:[%s3 + $0x98] sm:$0xff]
  %v1604 = vld [vmem:[%s3 + $0xa0] sm:$0xff]
  %v1605 = vld [vmem:[%s3 + $0xa8] sm:$0xff]
  %v1606 = vld [vmem:[%s3 + $0xb0] sm:$0xff]
  %v1607 = vld [vmem:[%s3 + $0xb8] sm:$0xff]
  %v1608 = vld [vmem:[%s3 + $0xc0] sm:$0xff]
  %v1609 = vld [vmem:[%s3 + $0xc8] sm:$0xff]
  %v1610 = vld [vmem:[%s3 + $0xd0] sm:$0xff]
  %v1611 = vld [vmem:[%s3 + $0xd8] sm:$0xff]
  %v1612 = vld [vmem:[%s3 + $0xe0] sm:$0xff]
  %v1613 = vld [vmem:[%s3 + $0xe8] sm:$0xff]
  %v1614 = vld [vmem:[%s3 + $0xf0] sm:$0xff]
  %v1615 = vld [vmem:[%s3 + $0xf8] sm:$0xff]
  %v1616 = vld [vmem:[%s4] sm:$0xff]
  %v1617 = vld [vmem:[%s4 + $0x8] sm:$0xff]
  %v1618 = vld [vmem:[%s4 + $0x10] sm:$0xff]
  %v1619 = vld [vmem:[%s4 + $0x18] sm:$0xff]
  %v1620 = vld [vmem:[%s4 + $0x20] sm:$0xff]
  %v1621 = vld [vmem:[%s4 + $0x28] sm:$0xff]
  %v1622 = vld [vmem:[%s4 + $0x30] sm:$0xff]
  %v1623 = vld [vmem:[%s4 + $0x38] sm:$0xff]
  %v1624 = vld [vmem:[%s4 + $0x40] sm:$0xff]
  %v1625 = vld [vmem:[%s4 + $0x48] sm:$0xff]
  %v1626 = vld [vmem:[%s4 + $0x50] sm:$0xff]
  %v1627 = vld [vmem:[%s4 + $0x58] sm:$0xff]
  %v1628 = vld [vmem:[%s4 + $0x60] sm:$0xff]
  %v1629 = vld [vmem:[%s4 + $0x68] sm:$0xff]
  %v1630 = vld [vmem:[%s4 + $0x70] sm:$0xff]
  %v1631 = vld [vmem:[%s4 + $0x78] sm:$0xff]
  %v1632 = vld [vmem:[%s4 + $0x80] sm:$0xff]
  %v1633 = vld [vmem:[%s4 + $0x88] sm:$0xff]
  %v1634 = vld [vmem:[%s4 + $0x90] sm:$0xff]
  %v1635 = vld [vmem:[%s4 + $0x98] sm:$0xff]
  %v1636 = vld [vmem:[%s4 + $0xa0] sm:$0xff]
  %v1637 = vld [vmem:[%s4 + $0xa8] sm:$0xff]
  %v1638 = vld [vmem:[%s4 + $0xb0] sm:$0xff]
  %v1639 = vld [vmem:[%s4 + $0xb8] sm:$0xff]
  %v1640 = vld [vmem:[%s4 + $0xc0] sm:$0xff]
  %v1641 = vld [vmem:[%s4 + $0xc8] sm:$0xff]
  %v1642 = vld [vmem:[%s4 + $0xd0] sm:$0xff]
  %v1643 = vld [vmem:[%s4 + $0xd8] sm:$0xff]
  %v1644 = vld [vmem:[%s4 + $0xe0] sm:$0xff]
  %v1645 = vld [vmem:[%s4 + $0xe8] sm:$0xff]
  %v1646 = vld [vmem:[%s4 + $0xf0] sm:$0xff]
  %v1647 = vld [vmem:[%s4 + $0xf8] sm:$0xff]
  %v1648 = vsub.f32 0.0, %v246
  %v1649 = vsub.f32 0.0, %v249
  %v1650 = vsub.f32 0.0, %v252
  %v1651 = vsub.f32 0.0, %v255
  %v1652 = vsub.f32 0.0, %v258
  %v1653 = vsub.f32 0.0, %v261
  %v1654 = vsub.f32 0.0, %v264
  %v1655 = vsub.f32 0.0, %v267
  %v1656 = vsub.f32 0.0, %v270
  %v1657 = vsub.f32 0.0, %v273
  %v1658 = vsub.f32 0.0, %v276
  %v1659 = vsub.f32 0.0, %v279
  %v1660 = vsub.f32 0.0, %v282
  %v1661 = vsub.f32 0.0, %v285
  %v1662 = vsub.f32 0.0, %v288
  %v1663 = vsub.f32 0.0, %v291
  %v1664 = vsub.f32 0.0, %v294
  %v1665 = vsub.f32 0.0, %v297
  %v1666 = vsub.f32 0.0, %v300
  %v1667 = vsub.f32 0.0, %v303
  %v1668 = vsub.f32 0.0, %v306
  %v1669 = vsub.f32 0.0, %v309
  %v1670 = vsub.f32 0.0, %v312
  %v1671 = vsub.f32 0.0, %v315
  %v1672 = vsub.f32 0.0, %v318
  %v1673 = vsub.f32 0.0, %v321
  %v1674 = vsub.f32 0.0, %v324
  %v1675 = vsub.f32 0.0, %v327
  %v1676 = vsub.f32 0.0, %v330
  %v1677 = vsub.f32 0.0, %v333
  %v1678 = vsub.f32 0.0, %v336
  %v1679 = vsub.f32 0.0, %v339
  %1712 = vrot.lane.b32.xlu0 %v1648, 124
  %v1713 = vpop.permute.xlu0 %1712
  %1714 = vrot.lane.b32.xlu0 %v1649, 124
  %v1715 = vpop.permute.xlu0 %1714
  %1716 = vrot.lane.b32.xlu0 %v1650, 124
  %v1717 = vpop.permute.xlu0 %1716
  %1718 = vrot.lane.b32.xlu0 %v1651, 124
  %v1719 = vpop.permute.xlu0 %1718
  %1720 = vrot.lane.b32.xlu0 %v1652, 124
  %v1721 = vpop.permute.xlu0 %1720
  %1722 = vrot.lane.b32.xlu0 %v1653, 124
  %v1723 = vpop.permute.xlu0 %1722
  %1724 = vrot.lane.b32.xlu0 %v1654, 124
  %v1725 = vpop.permute.xlu0 %1724
  %1726 = vrot.lane.b32.xlu0 %v1655, 124
  %v1727 = vpop.permute.xlu0 %1726
  %1728 = vrot.lane.b32.xlu0 %v1656, 124
  %v1729 = vpop.permute.xlu0 %1728
  %1730 = vrot.lane.b32.xlu0 %v1657, 124
  %v1731 = vpop.permute.xlu0 %1730
  %1732 = vrot.lane.b32.xlu0 %v1658, 124
  %v1733 = vpop.permute.xlu0 %1732
  %1734 = vrot.lane.b32.xlu0 %v1659, 124
  %v1735 = vpop.permute.xlu0 %1734
  %1736 = vrot.lane.b32.xlu0 %v1660, 124
  %v1737 = vpop.permute.xlu0 %1736
  %1738 = vrot.lane.b32.xlu0 %v1661, 124
  %v1739 = vpop.permute.xlu0 %1738
  %1740 = vrot.lane.b32.xlu0 %v1662, 124
  %v1741 = vpop.permute.xlu0 %1740
  %1742 = vrot.lane.b32.xlu0 %v1663, 124
  %v1743 = vpop.permute.xlu0 %1742
  %1744 = vrot.lane.b32.xlu0 %v1664, 124
  %v1745 = vpop.permute.xlu0 %1744
  %1746 = vrot.lane.b32.xlu0 %v1665, 124
  %v1747 = vpop.permute.xlu0 %1746
  %1748 = vrot.lane.b32.xlu0 %v1666, 124
  %v1749 = vpop.permute.xlu0 %1748
  %1750 = vrot.lane.b32.xlu0 %v1667, 124
  %v1751 = vpop.permute.xlu0 %1750
  %1752 = vrot.lane.b32.xlu0 %v1668, 124
  %v1753 = vpop.permute.xlu0 %1752
  %1754 = vrot.lane.b32.xlu0 %v1669, 124
  %v1755 = vpop.permute.xlu0 %1754
  %1756 = vrot.lane.b32.xlu0 %v1670, 124
  %v1757 = vpop.permute.xlu0 %1756
  %1758 = vrot.lane.b32.xlu0 %v1671, 124
  %v1759 = vpop.permute.xlu0 %1758
  %1760 = vrot.lane.b32.xlu0 %v1672, 124
  %v1761 = vpop.permute.xlu0 %1760
  %1762 = vrot.lane.b32.xlu0 %v1673, 124
  %v1763 = vpop.permute.xlu0 %1762
  %1764 = vrot.lane.b32.xlu0 %v1674, 124
  %v1765 = vpop.permute.xlu0 %1764
  %1766 = vrot.lane.b32.xlu0 %v1675, 124
  %v1767 = vpop.permute.xlu0 %1766
  %1768 = vrot.lane.b32.xlu0 %v1676, 124
  %v1769 = vpop.permute.xlu0 %1768
  %1770 = vrot.lane.b32.xlu0 %v1677, 124
  %v1771 = vpop.permute.xlu0 %1770
  %1772 = vrot.lane.b32.xlu0 %v1678, 124
  %v1773 = vpop.permute.xlu0 %1772
  %1774 = vrot.lane.b32.xlu0 %v1679, 124
  %v1775 = vpop.permute.xlu0 %1774
  %1840 = vrot.lane.b32.xlu0 %v246, 4
  %v1841 = vpop.permute.xlu0 %1840
  %1842 = vrot.lane.b32.xlu0 %v249, 4
  %v1843 = vpop.permute.xlu0 %1842
  %1844 = vrot.lane.b32.xlu0 %v252, 4
  %v1845 = vpop.permute.xlu0 %1844
  %1846 = vrot.lane.b32.xlu0 %v255, 4
  %v1847 = vpop.permute.xlu0 %1846
  %1848 = vrot.lane.b32.xlu0 %v258, 4
  %v1849 = vpop.permute.xlu0 %1848
  %1850 = vrot.lane.b32.xlu0 %v261, 4
  %v1851 = vpop.permute.xlu0 %1850
  %1852 = vrot.lane.b32.xlu0 %v264, 4
  %v1853 = vpop.permute.xlu0 %1852
  %1854 = vrot.lane.b32.xlu0 %v267, 4
  %v1855 = vpop.permute.xlu0 %1854
  %1856 = vrot.lane.b32.xlu0 %v270, 4
  %v1857 = vpop.permute.xlu0 %1856
  %1858 = vrot.lane.b32.xlu0 %v273, 4
  %v1859 = vpop.permute.xlu0 %1858
  %1860 = vrot.lane.b32.xlu0 %v276, 4
  %v1861 = vpop.permute.xlu0 %1860
  %1862 = vrot.lane.b32.xlu0 %v279, 4
  %v1863 = vpop.permute.xlu0 %1862
  %1864 = vrot.lane.b32.xlu0 %v282, 4
  %v1865 = vpop.permute.xlu0 %1864
  %1866 = vrot.lane.b32.xlu0 %v285, 4
  %v1867 = vpop.permute.xlu0 %1866
  %1868 = vrot.lane.b32.xlu0 %v288, 4
  %v1869 = vpop.permute.xlu0 %1868
  %1870 = vrot.lane.b32.xlu0 %v291, 4
  %v1871 = vpop.permute.xlu0 %1870
  %1872 = vrot.lane.b32.xlu0 %v294, 4
  %v1873 = vpop.permute.xlu0 %1872
  %1874 = vrot.lane.b32.xlu0 %v297, 4
  %v1875 = vpop.permute.xlu0 %1874
  %1876 = vrot.lane.b32.xlu0 %v300, 4
  %v1877 = vpop.permute.xlu0 %1876
  %1878 = vrot.lane.b32.xlu0 %v303, 4
  %v1879 = vpop.permute.xlu0 %1878
  %1880 = vrot.lane.b32.xlu0 %v306, 4
  %v1881 = vpop.permute.xlu0 %1880
  %1882 = vrot.lane.b32.xlu0 %v309, 4
  %v1883 = vpop.permute.xlu0 %1882
  %1884 = vrot.lane.b32.xlu0 %v312, 4
  %v1885 = vpop.permute.xlu0 %1884
  %1886 = vrot.lane.b32.xlu0 %v315, 4
  %v1887 = vpop.permute.xlu0 %1886
  %1888 = vrot.lane.b32.xlu0 %v318, 4
  %v1889 = vpop.permute.xlu0 %1888
  %1890 = vrot.lane.b32.xlu0 %v321, 4
  %v1891 = vpop.permute.xlu0 %1890
  %1892 = vrot.lane.b32.xlu0 %v324, 4
  %v1893 = vpop.permute.xlu0 %1892
  %1894 = vrot.lane.b32.xlu0 %v327, 4
  %v1895 = vpop.permute.xlu0 %1894
  %1896 = vrot.lane.b32.xlu0 %v330, 4
  %v1897 = vpop.permute.xlu0 %1896
  %1898 = vrot.lane.b32.xlu0 %v333, 4
  %v1899 = vpop.permute.xlu0 %1898
  %1900 = vrot.lane.b32.xlu0 %v336, 4
  %v1901 = vpop.permute.xlu0 %1900
  %1902 = vrot.lane.b32.xlu0 %v339, 4
  %v1903 = vpop.permute.xlu0 %1902
  %vm1936 = vcmask 31744
  %v1937 = vsel %vm1936, %v1713, %v1841
  %v1938 = vsel %vm1936, %v1715, %v1843
  %v1939 = vsel %vm1936, %v1717, %v1845
  %v1940 = vsel %vm1936, %v1719, %v1847
  %v1941 = vsel %vm1936, %v1721, %v1849
  %v1942 = vsel %vm1936, %v1723, %v1851
  %v1943 = vsel %vm1936, %v1725, %v1853
  %v1944 = vsel %vm1936, %v1727, %v1855
  %v1945 = vsel %vm1936, %v1729, %v1857
  %v1946 = vsel %vm1936, %v1731, %v1859
  %v1947 = vsel %vm1936, %v1733, %v1861
  %v1948 = vsel %vm1936, %v1735, %v1863
  %v1949 = vsel %vm1936, %v1737, %v1865
  %v1950 = vsel %vm1936, %v1739, %v1867
  %v1951 = vsel %vm1936, %v1741, %v1869
  %v1952 = vsel %vm1936, %v1743, %v1871
  %v1953 = vsel %vm1936, %v1745, %v1873
  %v1954 = vsel %vm1936, %v1747, %v1875
  %v1955 = vsel %vm1936, %v1749, %v1877
  %v1956 = vsel %vm1936, %v1751, %v1879
  %v1957 = vsel %vm1936, %v1753, %v1881
  %v1958 = vsel %vm1936, %v1755, %v1883
  %v1959 = vsel %vm1936, %v1757, %v1885
  %v1960 = vsel %vm1936, %v1759, %v1887
  %v1961 = vsel %vm1936, %v1761, %v1889
  %v1962 = vsel %vm1936, %v1763, %v1891
  %v1963 = vsel %vm1936, %v1765, %v1893
  %v1964 = vsel %vm1936, %v1767, %v1895
  %v1965 = vsel %vm1936, %v1769, %v1897
  %v1966 = vsel %vm1936, %v1771, %v1899
  %v1967 = vsel %vm1936, %v1773, %v1901
  %v1968 = vsel %vm1936, %v1775, %v1903
  %vm1969 = vcmask 64512
  %v1970 = vsel %vm1969, %v1937, 0.0
  %v1971 = vsel %vm1969, %v1938, 0.0
  %v1972 = vsel %vm1969, %v1939, 0.0
  %v1973 = vsel %vm1969, %v1940, 0.0
  %v1974 = vsel %vm1969, %v1941, 0.0
  %v1975 = vsel %vm1969, %v1942, 0.0
  %v1976 = vsel %vm1969, %v1943, 0.0
  %v1977 = vsel %vm1969, %v1944, 0.0
  %v1978 = vsel %vm1969, %v1945, 0.0
  %v1979 = vsel %vm1969, %v1946, 0.0
  %v1980 = vsel %vm1969, %v1947, 0.0
  %v1981 = vsel %vm1969, %v1948, 0.0
  %v1982 = vsel %vm1969, %v1949, 0.0
  %v1983 = vsel %vm1969, %v1950, 0.0
  %v1984 = vsel %vm1969, %v1951, 0.0
  %v1985 = vsel %vm1969, %v1952, 0.0
  %v1986 = vsel %vm1969, %v1953, 0.0
  %v1987 = vsel %vm1969, %v1954, 0.0
  %v1988 = vsel %vm1969, %v1955, 0.0
  %v1989 = vsel %vm1969, %v1956, 0.0
  %v1990 = vsel %vm1969, %v1957, 0.0
  %v1991 = vsel %vm1969, %v1958, 0.0
  %v1992 = vsel %vm1969, %v1959, 0.0
  %v1993 = vsel %vm1969, %v1960, 0.0
  %v1994 = vsel %vm1969, %v1961, 0.0
  %v1995 = vsel %vm1969, %v1962, 0.0
  %v1996 = vsel %vm1969, %v1963, 0.0
  %v1997 = vsel %vm1969, %v1964, 0.0
  %v1998 = vsel %vm1969, %v1965, 0.0
  %v1999 = vsel %vm1969, %v1966, 0.0
  %v2000 = vsel %vm1969, %v1967, 0.0
  %v2001 = vsel %vm1969, %v1968, 0.0
  %v2002 = vmul.f32 %v246, %v1584
  %v2003 = vmul.f32 %v249, %v1585
  %v2004 = vmul.f32 %v252, %v1586
  %v2005 = vmul.f32 %v255, %v1587
  %v2006 = vmul.f32 %v258, %v1588
  %v2007 = vmul.f32 %v261, %v1589
  %v2008 = vmul.f32 %v264, %v1590
  %v2009 = vmul.f32 %v267, %v1591
  %v2010 = vmul.f32 %v270, %v1592
  %v2011 = vmul.f32 %v273, %v1593
  %v2012 = vmul.f32 %v276, %v1594
  %v2013 = vmul.f32 %v279, %v1595
  %v2014 = vmul.f32 %v282, %v1596
  %v2015 = vmul.f32 %v285, %v1597
  %v2016 = vmul.f32 %v288, %v1598
  %v2017 = vmul.f32 %v291, %v1599
  %v2018 = vmul.f32 %v294, %v1600
  %v2019 = vmul.f32 %v297, %v1601
  %v2020 = vmul.f32 %v300, %v1602
  %v2021 = vmul.f32 %v303, %v1603
  %v2022 = vmul.f32 %v306, %v1604
  %v2023 = vmul.f32 %v309, %v1605
  %v2024 = vmul.f32 %v312, %v1606
  %v2025 = vmul.f32 %v315, %v1607
  %v2026 = vmul.f32 %v318, %v1608
  %v2027 = vmul.f32 %v321, %v1609
  %v2028 = vmul.f32 %v324, %v1610
  %v2029 = vmul.f32 %v327, %v1611
  %v2030 = vmul.f32 %v330, %v1612
  %v2031 = vmul.f32 %v333, %v1613
  %v2032 = vmul.f32 %v336, %v1614
  %v2033 = vmul.f32 %v339, %v1615
  %v2034 = vmul.f32 %v1970, %v1616
  %v2035 = vmul.f32 %v1971, %v1617
  %v2036 = vmul.f32 %v1972, %v1618
  %v2037 = vmul.f32 %v1973, %v1619
  %v2038 = vmul.f32 %v1974, %v1620
  %v2039 = vmul.f32 %v1975, %v1621
  %v2040 = vmul.f32 %v1976, %v1622
  %v2041 = vmul.f32 %v1977, %v1623
  %v2042 = vmul.f32 %v1978, %v1624
  %v2043 = vmul.f32 %v1979, %v1625
  %v2044 = vmul.f32 %v1980, %v1626
  %v2045 = vmul.f32 %v1981, %v1627
  %v2046 = vmul.f32 %v1982, %v1628
  %v2047 = vmul.f32 %v1983, %v1629
  %v2048 = vmul.f32 %v1984, %v1630
  %v2049 = vmul.f32 %v1985, %v1631
  %v2050 = vmul.f32 %v1986, %v1632
  %v2051 = vmul.f32 %v1987, %v1633
  %v2052 = vmul.f32 %v1988, %v1634
  %v2053 = vmul.f32 %v1989, %v1635
  %v2054 = vmul.f32 %v1990, %v1636
  %v2055 = vmul.f32 %v1991, %v1637
  %v2056 = vmul.f32 %v1992, %v1638
  %v2057 = vmul.f32 %v1993, %v1639
  %v2058 = vmul.f32 %v1994, %v1640
  %v2059 = vmul.f32 %v1995, %v1641
  %v2060 = vmul.f32 %v1996, %v1642
  %v2061 = vmul.f32 %v1997, %v1643
  %v2062 = vmul.f32 %v1998, %v1644
  %v2063 = vmul.f32 %v1999, %v1645
  %v2064 = vmul.f32 %v2000, %v1646
  %v2065 = vmul.f32 %v2001, %v1647
  %v2066 = vadd.f32 %v2002, %v2034
  %v2067 = vadd.f32 %v2003, %v2035
  %v2068 = vadd.f32 %v2004, %v2036
  %v2069 = vadd.f32 %v2005, %v2037
  %v2070 = vadd.f32 %v2006, %v2038
  %v2071 = vadd.f32 %v2007, %v2039
  %v2072 = vadd.f32 %v2008, %v2040
  %v2073 = vadd.f32 %v2009, %v2041
  %v2074 = vadd.f32 %v2010, %v2042
  %v2075 = vadd.f32 %v2011, %v2043
  %v2076 = vadd.f32 %v2012, %v2044
  %v2077 = vadd.f32 %v2013, %v2045
  %v2078 = vadd.f32 %v2014, %v2046
  %v2079 = vadd.f32 %v2015, %v2047
  %v2080 = vadd.f32 %v2016, %v2048
  %v2081 = vadd.f32 %v2017, %v2049
  %v2082 = vadd.f32 %v2018, %v2050
  %v2083 = vadd.f32 %v2019, %v2051
  %v2084 = vadd.f32 %v2020, %v2052
  %v2085 = vadd.f32 %v2021, %v2053
  %v2086 = vadd.f32 %v2022, %v2054
  %v2087 = vadd.f32 %v2023, %v2055
  %v2088 = vadd.f32 %v2024, %v2056
  %v2089 = vadd.f32 %v2025, %v2057
  %v2090 = vadd.f32 %v2026, %v2058
  %v2091 = vadd.f32 %v2027, %v2059
  %v2092 = vadd.f32 %v2028, %v2060
  %v2093 = vadd.f32 %v2029, %v2061
  %v2094 = vadd.f32 %v2030, %v2062
  %v2095 = vadd.f32 %v2031, %v2063
  %v2096 = vadd.f32 %v2032, %v2064
  %v2097 = vadd.f32 %v2033, %v2065
  %2098 = vst [vmem:[%s5] sm:$0xff] %v2066
  %2099 = vst [vmem:[%s5 + $0x8] sm:$0xff] %v2067
  %2100 = vst [vmem:[%s5 + $0x10] sm:$0xff] %v2068
  %2101 = vst [vmem:[%s5 + $0x18] sm:$0xff] %v2069
  %2102 = vst [vmem:[%s5 + $0x20] sm:$0xff] %v2070
  %2103 = vst [vmem:[%s5 + $0x28] sm:$0xff] %v2071
  %2104 = vst [vmem:[%s5 + $0x30] sm:$0xff] %v2072
  %2105 = vst [vmem:[%s5 + $0x38] sm:$0xff] %v2073
  %2106 = vst [vmem:[%s5 + $0x40] sm:$0xff] %v2074
  %2107 = vst [vmem:[%s5 + $0x48] sm:$0xff] %v2075
  %2108 = vst [vmem:[%s5 + $0x50] sm:$0xff] %v2076
  %2109 = vst [vmem:[%s5 + $0x58] sm:$0xff] %v2077
  %2110 = vst [vmem:[%s5 + $0x60] sm:$0xff] %v2078
  %2111 = vst [vmem:[%s5 + $0x68] sm:$0xff] %v2079
  %2112 = vst [vmem:[%s5 + $0x70] sm:$0xff] %v2080
  %2113 = vst [vmem:[%s5 + $0x78] sm:$0xff] %v2081
  %2114 = vst [vmem:[%s5 + $0x80] sm:$0xff] %v2082
  %2115 = vst [vmem:[%s5 + $0x88] sm:$0xff] %v2083
  %2116 = vst [vmem:[%s5 + $0x90] sm:$0xff] %v2084
  %2117 = vst [vmem:[%s5 + $0x98] sm:$0xff] %v2085
  %2118 = vst [vmem:[%s5 + $0xa0] sm:$0xff] %v2086
  %2119 = vst [vmem:[%s5 + $0xa8] sm:$0xff] %v2087
  %2120 = vst [vmem:[%s5 + $0xb0] sm:$0xff] %v2088
  %2121 = vst [vmem:[%s5 + $0xb8] sm:$0xff] %v2089
  %2122 = vst [vmem:[%s5 + $0xc0] sm:$0xff] %v2090
  %2123 = vst [vmem:[%s5 + $0xc8] sm:$0xff] %v2091
  %2124 = vst [vmem:[%s5 + $0xd0] sm:$0xff] %v2092
  %2125 = vst [vmem:[%s5 + $0xd8] sm:$0xff] %v2093
  %2126 = vst [vmem:[%s5 + $0xe0] sm:$0xff] %v2094
  %2127 = vst [vmem:[%s5 + $0xe8] sm:$0xff] %v2095
  %2128 = vst [vmem:[%s5 + $0xf0] sm:$0xff] %v2096
  %2129 = vst [vmem:[%s5 + $0xf8] sm:$0xff] %v2097
  %v2130 = vsub.f32 0.0, %v698
  %v2131 = vsub.f32 0.0, %v701
  %v2132 = vsub.f32 0.0, %v704
  %v2133 = vsub.f32 0.0, %v707
  %v2134 = vsub.f32 0.0, %v710
  %v2135 = vsub.f32 0.0, %v713
  %v2136 = vsub.f32 0.0, %v716
  %v2137 = vsub.f32 0.0, %v719
  %v2138 = vsub.f32 0.0, %v722
  %v2139 = vsub.f32 0.0, %v725
  %v2140 = vsub.f32 0.0, %v728
  %v2141 = vsub.f32 0.0, %v731
  %v2142 = vsub.f32 0.0, %v734
  %v2143 = vsub.f32 0.0, %v737
  %v2144 = vsub.f32 0.0, %v740
  %v2145 = vsub.f32 0.0, %v743
  %v2146 = vsub.f32 0.0, %v746
  %v2147 = vsub.f32 0.0, %v749
  %v2148 = vsub.f32 0.0, %v752
  %v2149 = vsub.f32 0.0, %v755
  %v2150 = vsub.f32 0.0, %v758
  %v2151 = vsub.f32 0.0, %v761
  %v2152 = vsub.f32 0.0, %v764
  %v2153 = vsub.f32 0.0, %v767
  %v2154 = vsub.f32 0.0, %v770
  %v2155 = vsub.f32 0.0, %v773
  %v2156 = vsub.f32 0.0, %v776
  %v2157 = vsub.f32 0.0, %v779
  %v2158 = vsub.f32 0.0, %v782
  %v2159 = vsub.f32 0.0, %v785
  %v2160 = vsub.f32 0.0, %v788
  %v2161 = vsub.f32 0.0, %v791
  %2194 = vrot.lane.b32.xlu0 %v2130, 124
  %v2195 = vpop.permute.xlu0 %2194
  %2196 = vrot.lane.b32.xlu0 %v2131, 124
  %v2197 = vpop.permute.xlu0 %2196
  %2198 = vrot.lane.b32.xlu0 %v2132, 124
  %v2199 = vpop.permute.xlu0 %2198
  %2200 = vrot.lane.b32.xlu0 %v2133, 124
  %v2201 = vpop.permute.xlu0 %2200
  %2202 = vrot.lane.b32.xlu0 %v2134, 124
  %v2203 = vpop.permute.xlu0 %2202
  %2204 = vrot.lane.b32.xlu0 %v2135, 124
  %v2205 = vpop.permute.xlu0 %2204
  %2206 = vrot.lane.b32.xlu0 %v2136, 124
  %v2207 = vpop.permute.xlu0 %2206
  %2208 = vrot.lane.b32.xlu0 %v2137, 124
  %v2209 = vpop.permute.xlu0 %2208
  %2210 = vrot.lane.b32.xlu0 %v2138, 124
  %v2211 = vpop.permute.xlu0 %2210
  %2212 = vrot.lane.b32.xlu0 %v2139, 124
  %v2213 = vpop.permute.xlu0 %2212
  %2214 = vrot.lane.b32.xlu0 %v2140, 124
  %v2215 = vpop.permute.xlu0 %2214
  %2216 = vrot.lane.b32.xlu0 %v2141, 124
  %v2217 = vpop.permute.xlu0 %2216
  %2218 = vrot.lane.b32.xlu0 %v2142, 124
  %v2219 = vpop.permute.xlu0 %2218
  %2220 = vrot.lane.b32.xlu0 %v2143, 124
  %v2221 = vpop.permute.xlu0 %2220
  %2222 = vrot.lane.b32.xlu0 %v2144, 124
  %v2223 = vpop.permute.xlu0 %2222
  %2224 = vrot.lane.b32.xlu0 %v2145, 124
  %v2225 = vpop.permute.xlu0 %2224
  %2226 = vrot.lane.b32.xlu0 %v2146, 124
  %v2227 = vpop.permute.xlu0 %2226
  %2228 = vrot.lane.b32.xlu0 %v2147, 124
  %v2229 = vpop.permute.xlu0 %2228
  %2230 = vrot.lane.b32.xlu0 %v2148, 124
  %v2231 = vpop.permute.xlu0 %2230
  %2232 = vrot.lane.b32.xlu0 %v2149, 124
  %v2233 = vpop.permute.xlu0 %2232
  %2234 = vrot.lane.b32.xlu0 %v2150, 124
  %v2235 = vpop.permute.xlu0 %2234
  %2236 = vrot.lane.b32.xlu0 %v2151, 124
  %v2237 = vpop.permute.xlu0 %2236
  %2238 = vrot.lane.b32.xlu0 %v2152, 124
  %v2239 = vpop.permute.xlu0 %2238
  %2240 = vrot.lane.b32.xlu0 %v2153, 124
  %v2241 = vpop.permute.xlu0 %2240
  %2242 = vrot.lane.b32.xlu0 %v2154, 124
  %v2243 = vpop.permute.xlu0 %2242
  %2244 = vrot.lane.b32.xlu0 %v2155, 124
  %v2245 = vpop.permute.xlu0 %2244
  %2246 = vrot.lane.b32.xlu0 %v2156, 124
  %v2247 = vpop.permute.xlu0 %2246
  %2248 = vrot.lane.b32.xlu0 %v2157, 124
  %v2249 = vpop.permute.xlu0 %2248
  %2250 = vrot.lane.b32.xlu0 %v2158, 124
  %v2251 = vpop.permute.xlu0 %2250
  %2252 = vrot.lane.b32.xlu0 %v2159, 124
  %v2253 = vpop.permute.xlu0 %2252
  %2254 = vrot.lane.b32.xlu0 %v2160, 124
  %v2255 = vpop.permute.xlu0 %2254
  %2256 = vrot.lane.b32.xlu0 %v2161, 124
  %v2257 = vpop.permute.xlu0 %2256
  %2322 = vrot.lane.b32.xlu0 %v698, 4
  %v2323 = vpop.permute.xlu0 %2322
  %2324 = vrot.lane.b32.xlu0 %v701, 4
  %v2325 = vpop.permute.xlu0 %2324
  %2326 = vrot.lane.b32.xlu0 %v704, 4
  %v2327 = vpop.permute.xlu0 %2326
  %2328 = vrot.lane.b32.xlu0 %v707, 4
  %v2329 = vpop.permute.xlu0 %2328
  %2330 = vrot.lane.b32.xlu0 %v710, 4
  %v2331 = vpop.permute.xlu0 %2330
  %2332 = vrot.lane.b32.xlu0 %v713, 4
  %v2333 = vpop.permute.xlu0 %2332
  %2334 = vrot.lane.b32.xlu0 %v716, 4
  %v2335 = vpop.permute.xlu0 %2334
  %2336 = vrot.lane.b32.xlu0 %v719, 4
  %v2337 = vpop.permute.xlu0 %2336
  %2338 = vrot.lane.b32.xlu0 %v722, 4
  %v2339 = vpop.permute.xlu0 %2338
  %2340 = vrot.lane.b32.xlu0 %v725, 4
  %v2341 = vpop.permute.xlu0 %2340
  %2342 = vrot.lane.b32.xlu0 %v728, 4
  %v2343 = vpop.permute.xlu0 %2342
  %2344 = vrot.lane.b32.xlu0 %v731, 4
  %v2345 = vpop.permute.xlu0 %2344
  %2346 = vrot.lane.b32.xlu0 %v734, 4
  %v2347 = vpop.permute.xlu0 %2346
  %2348 = vrot.lane.b32.xlu0 %v737, 4
  %v2349 = vpop.permute.xlu0 %2348
  %2350 = vrot.lane.b32.xlu0 %v740, 4
  %v2351 = vpop.permute.xlu0 %2350
  %2352 = vrot.lane.b32.xlu0 %v743, 4
  %v2353 = vpop.permute.xlu0 %2352
  %2354 = vrot.lane.b32.xlu0 %v746, 4
  %v2355 = vpop.permute.xlu0 %2354
  %2356 = vrot.lane.b32.xlu0 %v749, 4
  %v2357 = vpop.permute.xlu0 %2356
  %2358 = vrot.lane.b32.xlu0 %v752, 4
  %v2359 = vpop.permute.xlu0 %2358
  %2360 = vrot.lane.b32.xlu0 %v755, 4
  %v2361 = vpop.permute.xlu0 %2360
  %2362 = vrot.lane.b32.xlu0 %v758, 4
  %v2363 = vpop.permute.xlu0 %2362
  %2364 = vrot.lane.b32.xlu0 %v761, 4
  %v2365 = vpop.permute.xlu0 %2364
  %2366 = vrot.lane.b32.xlu0 %v764, 4
  %v2367 = vpop.permute.xlu0 %2366
  %2368 = vrot.lane.b32.xlu0 %v767, 4
  %v2369 = vpop.permute.xlu0 %2368
  %2370 = vrot.lane.b32.xlu0 %v770, 4
  %v2371 = vpop.permute.xlu0 %2370
  %2372 = vrot.lane.b32.xlu0 %v773, 4
  %v2373 = vpop.permute.xlu0 %2372
  %2374 = vrot.lane.b32.xlu0 %v776, 4
  %v2375 = vpop.permute.xlu0 %2374
  %2376 = vrot.lane.b32.xlu0 %v779, 4
  %v2377 = vpop.permute.xlu0 %2376
  %2378 = vrot.lane.b32.xlu0 %v782, 4
  %v2379 = vpop.permute.xlu0 %2378
  %2380 = vrot.lane.b32.xlu0 %v785, 4
  %v2381 = vpop.permute.xlu0 %2380
  %2382 = vrot.lane.b32.xlu0 %v788, 4
  %v2383 = vpop.permute.xlu0 %2382
  %2384 = vrot.lane.b32.xlu0 %v791, 4
  %v2385 = vpop.permute.xlu0 %2384
  %v2418 = vsel %vm1936, %v2195, %v2323
  %v2419 = vsel %vm1936, %v2197, %v2325
  %v2420 = vsel %vm1936, %v2199, %v2327
  %v2421 = vsel %vm1936, %v2201, %v2329
  %v2422 = vsel %vm1936, %v2203, %v2331
  %v2423 = vsel %vm1936, %v2205, %v2333
  %v2424 = vsel %vm1936, %v2207, %v2335
  %v2425 = vsel %vm1936, %v2209, %v2337
  %v2426 = vsel %vm1936, %v2211, %v2339
  %v2427 = vsel %vm1936, %v2213, %v2341
  %v2428 = vsel %vm1936, %v2215, %v2343
  %v2429 = vsel %vm1936, %v2217, %v2345
  %v2430 = vsel %vm1936, %v2219, %v2347
  %v2431 = vsel %vm1936, %v2221, %v2349
  %v2432 = vsel %vm1936, %v2223, %v2351
  %v2433 = vsel %vm1936, %v2225, %v2353
  %v2434 = vsel %vm1936, %v2227, %v2355
  %v2435 = vsel %vm1936, %v2229, %v2357
  %v2436 = vsel %vm1936, %v2231, %v2359
  %v2437 = vsel %vm1936, %v2233, %v2361
  %v2438 = vsel %vm1936, %v2235, %v2363
  %v2439 = vsel %vm1936, %v2237, %v2365
  %v2440 = vsel %vm1936, %v2239, %v2367
  %v2441 = vsel %vm1936, %v2241, %v2369
  %v2442 = vsel %vm1936, %v2243, %v2371
  %v2443 = vsel %vm1936, %v2245, %v2373
  %v2444 = vsel %vm1936, %v2247, %v2375
  %v2445 = vsel %vm1936, %v2249, %v2377
  %v2446 = vsel %vm1936, %v2251, %v2379
  %v2447 = vsel %vm1936, %v2253, %v2381
  %v2448 = vsel %vm1936, %v2255, %v2383
  %v2449 = vsel %vm1936, %v2257, %v2385
  %v2450 = vsel %vm1969, %v2418, 0.0
  %v2451 = vsel %vm1969, %v2419, 0.0
  %v2452 = vsel %vm1969, %v2420, 0.0
  %v2453 = vsel %vm1969, %v2421, 0.0
  %v2454 = vsel %vm1969, %v2422, 0.0
  %v2455 = vsel %vm1969, %v2423, 0.0
  %v2456 = vsel %vm1969, %v2424, 0.0
  %v2457 = vsel %vm1969, %v2425, 0.0
  %v2458 = vsel %vm1969, %v2426, 0.0
  %v2459 = vsel %vm1969, %v2427, 0.0
  %v2460 = vsel %vm1969, %v2428, 0.0
  %v2461 = vsel %vm1969, %v2429, 0.0
  %v2462 = vsel %vm1969, %v2430, 0.0
  %v2463 = vsel %vm1969, %v2431, 0.0
  %v2464 = vsel %vm1969, %v2432, 0.0
  %v2465 = vsel %vm1969, %v2433, 0.0
  %v2466 = vsel %vm1969, %v2434, 0.0
  %v2467 = vsel %vm1969, %v2435, 0.0
  %v2468 = vsel %vm1969, %v2436, 0.0
  %v2469 = vsel %vm1969, %v2437, 0.0
  %v2470 = vsel %vm1969, %v2438, 0.0
  %v2471 = vsel %vm1969, %v2439, 0.0
  %v2472 = vsel %vm1969, %v2440, 0.0
  %v2473 = vsel %vm1969, %v2441, 0.0
  %v2474 = vsel %vm1969, %v2442, 0.0
  %v2475 = vsel %vm1969, %v2443, 0.0
  %v2476 = vsel %vm1969, %v2444, 0.0
  %v2477 = vsel %vm1969, %v2445, 0.0
  %v2478 = vsel %vm1969, %v2446, 0.0
  %v2479 = vsel %vm1969, %v2447, 0.0
  %v2480 = vsel %vm1969, %v2448, 0.0
  %v2481 = vsel %vm1969, %v2449, 0.0
  %v2482 = vmul.f32 %v698, %v1584
  %v2483 = vmul.f32 %v701, %v1585
  %v2484 = vmul.f32 %v704, %v1586
  %v2485 = vmul.f32 %v707, %v1587
  %v2486 = vmul.f32 %v710, %v1588
  %v2487 = vmul.f32 %v713, %v1589
  %v2488 = vmul.f32 %v716, %v1590
  %v2489 = vmul.f32 %v719, %v1591
  %v2490 = vmul.f32 %v722, %v1592
  %v2491 = vmul.f32 %v725, %v1593
  %v2492 = vmul.f32 %v728, %v1594
  %v2493 = vmul.f32 %v731, %v1595
  %v2494 = vmul.f32 %v734, %v1596
  %v2495 = vmul.f32 %v737, %v1597
  %v2496 = vmul.f32 %v740, %v1598
  %v2497 = vmul.f32 %v743, %v1599
  %v2498 = vmul.f32 %v746, %v1600
  %v2499 = vmul.f32 %v749, %v1601
  %v2500 = vmul.f32 %v752, %v1602
  %v2501 = vmul.f32 %v755, %v1603
  %v2502 = vmul.f32 %v758, %v1604
  %v2503 = vmul.f32 %v761, %v1605
  %v2504 = vmul.f32 %v764, %v1606
  %v2505 = vmul.f32 %v767, %v1607
  %v2506 = vmul.f32 %v770, %v1608
  %v2507 = vmul.f32 %v773, %v1609
  %v2508 = vmul.f32 %v776, %v1610
  %v2509 = vmul.f32 %v779, %v1611
  %v2510 = vmul.f32 %v782, %v1612
  %v2511 = vmul.f32 %v785, %v1613
  %v2512 = vmul.f32 %v788, %v1614
  %v2513 = vmul.f32 %v791, %v1615
  %v2514 = vmul.f32 %v2450, %v1616
  %v2515 = vmul.f32 %v2451, %v1617
  %v2516 = vmul.f32 %v2452, %v1618
  %v2517 = vmul.f32 %v2453, %v1619
  %v2518 = vmul.f32 %v2454, %v1620
  %v2519 = vmul.f32 %v2455, %v1621
  %v2520 = vmul.f32 %v2456, %v1622
  %v2521 = vmul.f32 %v2457, %v1623
  %v2522 = vmul.f32 %v2458, %v1624
  %v2523 = vmul.f32 %v2459, %v1625
  %v2524 = vmul.f32 %v2460, %v1626
  %v2525 = vmul.f32 %v2461, %v1627
  %v2526 = vmul.f32 %v2462, %v1628
  %v2527 = vmul.f32 %v2463, %v1629
  %v2528 = vmul.f32 %v2464, %v1630
  %v2529 = vmul.f32 %v2465, %v1631
  %v2530 = vmul.f32 %v2466, %v1632
  %v2531 = vmul.f32 %v2467, %v1633
  %v2532 = vmul.f32 %v2468, %v1634
  %v2533 = vmul.f32 %v2469, %v1635
  %v2534 = vmul.f32 %v2470, %v1636
  %v2535 = vmul.f32 %v2471, %v1637
  %v2536 = vmul.f32 %v2472, %v1638
  %v2537 = vmul.f32 %v2473, %v1639
  %v2538 = vmul.f32 %v2474, %v1640
  %v2539 = vmul.f32 %v2475, %v1641
  %v2540 = vmul.f32 %v2476, %v1642
  %v2541 = vmul.f32 %v2477, %v1643
  %v2542 = vmul.f32 %v2478, %v1644
  %v2543 = vmul.f32 %v2479, %v1645
  %v2544 = vmul.f32 %v2480, %v1646
  %v2545 = vmul.f32 %v2481, %v1647
  %v2546 = vadd.f32 %v2482, %v2514
  %v2547 = vadd.f32 %v2483, %v2515
  %v2548 = vadd.f32 %v2484, %v2516
  %v2549 = vadd.f32 %v2485, %v2517
  %v2550 = vadd.f32 %v2486, %v2518
  %v2551 = vadd.f32 %v2487, %v2519
  %v2552 = vadd.f32 %v2488, %v2520
  %v2553 = vadd.f32 %v2489, %v2521
  %v2554 = vadd.f32 %v2490, %v2522
  %v2555 = vadd.f32 %v2491, %v2523
  %v2556 = vadd.f32 %v2492, %v2524
  %v2557 = vadd.f32 %v2493, %v2525
  %v2558 = vadd.f32 %v2494, %v2526
  %v2559 = vadd.f32 %v2495, %v2527
  %v2560 = vadd.f32 %v2496, %v2528
  %v2561 = vadd.f32 %v2497, %v2529
  %v2562 = vadd.f32 %v2498, %v2530
  %v2563 = vadd.f32 %v2499, %v2531
  %v2564 = vadd.f32 %v2500, %v2532
  %v2565 = vadd.f32 %v2501, %v2533
  %v2566 = vadd.f32 %v2502, %v2534
  %v2567 = vadd.f32 %v2503, %v2535
  %v2568 = vadd.f32 %v2504, %v2536
  %v2569 = vadd.f32 %v2505, %v2537
  %v2570 = vadd.f32 %v2506, %v2538
  %v2571 = vadd.f32 %v2507, %v2539
  %v2572 = vadd.f32 %v2508, %v2540
  %v2573 = vadd.f32 %v2509, %v2541
  %v2574 = vadd.f32 %v2510, %v2542
  %v2575 = vadd.f32 %v2511, %v2543
  %v2576 = vadd.f32 %v2512, %v2544
  %v2577 = vadd.f32 %v2513, %v2545
  %2578 = vxpose.xlu0.b32.start [1/16] %v2546, 128
  %2579 = vxpose.xlu0.b32.cont [2/16] %v2547, 128
  %2580 = vxpose.xlu0.b32.cont [3/16] %v2548, 128
  %2581 = vxpose.xlu0.b32.cont [4/16] %v2549, 128
  %2582 = vxpose.xlu0.b32.cont [5/16] %v2550, 128
  %2583 = vxpose.xlu0.b32.cont [6/16] %v2551, 128
  %2584 = vxpose.xlu0.b32.cont [7/16] %v2552, 128
  %2585 = vxpose.xlu0.b32.cont [8/16] %v2553, 128
  %2586 = vxpose.xlu0.b32.cont [9/16] %v2554, 128
  %2587 = vxpose.xlu0.b32.cont [10/16] %v2555, 128
  %2588 = vxpose.xlu0.b32.cont [11/16] %v2556, 128
  %2589 = vxpose.xlu0.b32.cont [12/16] %v2557, 128
  %2590 = vxpose.xlu0.b32.cont [13/16] %v2558, 128
  %2591 = vxpose.xlu0.b32.cont [14/16] %v2559, 128
  %2592 = vxpose.xlu0.b32.cont [15/16] %v2560, 128
  %2593 = vxpose.xlu0.b32.end [16/16] %v2561, 128
  %v2594 = vpop.trf.xlu0
  %v2595 = vpop.trf.xlu0
  %v2596 = vpop.trf.xlu0
  %v2597 = vpop.trf.xlu0
  %v2598 = vpop.trf.xlu0
  %v2599 = vpop.trf.xlu0
  %v2600 = vpop.trf.xlu0
  %v2601 = vpop.trf.xlu0
  %v2602 = vpop.trf.xlu0
  %v2603 = vpop.trf.xlu0
  %v2604 = vpop.trf.xlu0
  %v2605 = vpop.trf.xlu0
  %v2606 = vpop.trf.xlu0
  %v2607 = vpop.trf.xlu0
  %v2608 = vpop.trf.xlu0
  %v2609 = vpop.trf.xlu0
  %2610 = vxpose.xlu0.b32.start [1/16] %v2562, 128
  %2611 = vxpose.xlu0.b32.cont [2/16] %v2563, 128
  %2612 = vxpose.xlu0.b32.cont [3/16] %v2564, 128
  %2613 = vxpose.xlu0.b32.cont [4/16] %v2565, 128
  %2614 = vxpose.xlu0.b32.cont [5/16] %v2566, 128
  %2615 = vxpose.xlu0.b32.cont [6/16] %v2567, 128
  %2616 = vxpose.xlu0.b32.cont [7/16] %v2568, 128
  %2617 = vxpose.xlu0.b32.cont [8/16] %v2569, 128
  %2618 = vxpose.xlu0.b32.cont [9/16] %v2570, 128
  %2619 = vxpose.xlu0.b32.cont [10/16] %v2571, 128
  %2620 = vxpose.xlu0.b32.cont [11/16] %v2572, 128
  %2621 = vxpose.xlu0.b32.cont [12/16] %v2573, 128
  %2622 = vxpose.xlu0.b32.cont [13/16] %v2574, 128
  %2623 = vxpose.xlu0.b32.cont [14/16] %v2575, 128
  %2624 = vxpose.xlu0.b32.cont [15/16] %v2576, 128
  %2625 = vxpose.xlu0.b32.end [16/16] %v2577, 128
  %v2626 = vpop.trf.xlu0
  %v2627 = vpop.trf.xlu0
  %v2628 = vpop.trf.xlu0
  %v2629 = vpop.trf.xlu0
  %v2630 = vpop.trf.xlu0
  %v2631 = vpop.trf.xlu0
  %v2632 = vpop.trf.xlu0
  %v2633 = vpop.trf.xlu0
  %v2634 = vpop.trf.xlu0
  %v2635 = vpop.trf.xlu0
  %v2636 = vpop.trf.xlu0
  %v2637 = vpop.trf.xlu0
  %v2638 = vpop.trf.xlu0
  %v2639 = vpop.trf.xlu0
  %v2640 = vpop.trf.xlu0
  %v2641 = vpop.trf.xlu0
  %2642 = vst [vmem:[%s6] sm:$0xff] %v2594
  %2643 = vst [vmem:[%s6 + $0x8] sm:$0xff] %v2626
  %2644 = vst [vmem:[%s6 + $0x10] sm:$0xff] %v2595
  %2645 = vst [vmem:[%s6 + $0x18] sm:$0xff] %v2627
  %2646 = vst [vmem:[%s6 + $0x20] sm:$0xff] %v2596
  %2647 = vst [vmem:[%s6 + $0x28] sm:$0xff] %v2628
  %2648 = vst [vmem:[%s6 + $0x30] sm:$0xff] %v2597
  %2649 = vst [vmem:[%s6 + $0x38] sm:$0xff] %v2629
  %2650 = vst [vmem:[%s6 + $0x40] sm:$0xff] %v2598
  %2651 = vst [vmem:[%s6 + $0x48] sm:$0xff] %v2630
  %2652 = vst [vmem:[%s6 + $0x50] sm:$0xff] %v2599
  %2653 = vst [vmem:[%s6 + $0x58] sm:$0xff] %v2631
  %2654 = vst [vmem:[%s6 + $0x60] sm:$0xff] %v2600
  %2655 = vst [vmem:[%s6 + $0x68] sm:$0xff] %v2632
  %2656 = vst [vmem:[%s6 + $0x70] sm:$0xff] %v2601
  %2657 = vst [vmem:[%s6 + $0x78] sm:$0xff] %v2633
  %2658 = vst [vmem:[%s6 + $0x80] sm:$0xff] %v2602
  %2659 = vst [vmem:[%s6 + $0x88] sm:$0xff] %v2634
  %2660 = vst [vmem:[%s6 + $0x90] sm:$0xff] %v2603
  %2661 = vst [vmem:[%s6 + $0x98] sm:$0xff] %v2635
  %2662 = vst [vmem:[%s6 + $0xa0] sm:$0xff] %v2604
  %2663 = vst [vmem:[%s6 + $0xa8] sm:$0xff] %v2636
  %2664 = vst [vmem:[%s6 + $0xb0] sm:$0xff] %v2605
  %2665 = vst [vmem:[%s6 + $0xb8] sm:$0xff] %v2637
  %2666 = vst [vmem:[%s6 + $0xc0] sm:$0xff] %v2606
  %2667 = vst [vmem:[%s6 + $0xc8] sm:$0xff] %v2638
  %2668 = vst [vmem:[%s6 + $0xd0] sm:$0xff] %v2607
  %2669 = vst [vmem:[%s6 + $0xd8] sm:$0xff] %v2639
  %2670 = vst [vmem:[%s6 + $0xe0] sm:$0xff] %v2608
  %2671 = vst [vmem:[%s6 + $0xe8] sm:$0xff] %v2640
  %2672 = vst [vmem:[%s6 + $0xf0] sm:$0xff] %v2609
  %2673 = vst [vmem:[%s6 + $0xf8] sm:$0xff] %v2641
  %2674 = vst [vmem:[%s7] sm:$0xff] %v1150
  %2675 = vst [vmem:[%s7 + $0x8] sm:$0xff] %v1153
  %2676 = vst [vmem:[%s7 + $0x10] sm:$0xff] %v1156
  %2677 = vst [vmem:[%s7 + $0x18] sm:$0xff] %v1159
  %2678 = vst [vmem:[%s7 + $0x20] sm:$0xff] %v1162
  %2679 = vst [vmem:[%s7 + $0x28] sm:$0xff] %v1165
  %2680 = vst [vmem:[%s7 + $0x30] sm:$0xff] %v1168
  %2681 = vst [vmem:[%s7 + $0x38] sm:$0xff] %v1171
  %2682 = vst [vmem:[%s7 + $0x40] sm:$0xff] %v1174
  %2683 = vst [vmem:[%s7 + $0x48] sm:$0xff] %v1177
  %2684 = vst [vmem:[%s7 + $0x50] sm:$0xff] %v1180
  %2685 = vst [vmem:[%s7 + $0x58] sm:$0xff] %v1183
  %2686 = vst [vmem:[%s7 + $0x60] sm:$0xff] %v1186
  %2687 = vst [vmem:[%s7 + $0x68] sm:$0xff] %v1189
  %2688 = vst [vmem:[%s7 + $0x70] sm:$0xff] %v1192
  %2689 = vst [vmem:[%s7 + $0x78] sm:$0xff] %v1195
  %2690 = vst [vmem:[%s7 + $0x80] sm:$0xff] %v1198
  %2691 = vst [vmem:[%s7 + $0x88] sm:$0xff] %v1201
  %2692 = vst [vmem:[%s7 + $0x90] sm:$0xff] %v1204
  %2693 = vst [vmem:[%s7 + $0x98] sm:$0xff] %v1207
  %2694 = vst [vmem:[%s7 + $0xa0] sm:$0xff] %v1210
  %2695 = vst [vmem:[%s7 + $0xa8] sm:$0xff] %v1213
  %2696 = vst [vmem:[%s7 + $0xb0] sm:$0xff] %v1216
  %2697 = vst [vmem:[%s7 + $0xb8] sm:$0xff] %v1219
  %2698 = vst [vmem:[%s7 + $0xc0] sm:$0xff] %v1222
  %2699 = vst [vmem:[%s7 + $0xc8] sm:$0xff] %v1225
  %2700 = vst [vmem:[%s7 + $0xd0] sm:$0xff] %v1228
  %2701 = vst [vmem:[%s7 + $0xd8] sm:$0xff] %v1231
  %2702 = vst [vmem:[%s7 + $0xe0] sm:$0xff] %v1234
  %2703 = vst [vmem:[%s7 + $0xe8] sm:$0xff] %v1237
  %2704 = vst [vmem:[%s7 + $0xf0] sm:$0xff] %v1240
  %2705 = vst [vmem:[%s7 + $0xf8] sm:$0xff] %v1243
  %v2706 = vsub.f32 0.0, %v359
  %v2707 = vsub.f32 0.0, %v362
  %v2708 = vsub.f32 0.0, %v365
  %v2709 = vsub.f32 0.0, %v368
  %v2710 = vsub.f32 0.0, %v371
  %v2711 = vsub.f32 0.0, %v374
  %v2712 = vsub.f32 0.0, %v377
  %v2713 = vsub.f32 0.0, %v380
  %v2714 = vsub.f32 0.0, %v383
  %v2715 = vsub.f32 0.0, %v386
  %v2716 = vsub.f32 0.0, %v389
  %v2717 = vsub.f32 0.0, %v392
  %v2718 = vsub.f32 0.0, %v395
  %v2719 = vsub.f32 0.0, %v398
  %v2720 = vsub.f32 0.0, %v401
  %v2721 = vsub.f32 0.0, %v404
  %v2722 = vsub.f32 0.0, %v407
  %v2723 = vsub.f32 0.0, %v410
  %v2724 = vsub.f32 0.0, %v413
  %v2725 = vsub.f32 0.0, %v416
  %v2726 = vsub.f32 0.0, %v419
  %v2727 = vsub.f32 0.0, %v422
  %v2728 = vsub.f32 0.0, %v425
  %v2729 = vsub.f32 0.0, %v428
  %v2730 = vsub.f32 0.0, %v431
  %v2731 = vsub.f32 0.0, %v434
  %v2732 = vsub.f32 0.0, %v437
  %v2733 = vsub.f32 0.0, %v440
  %v2734 = vsub.f32 0.0, %v443
  %v2735 = vsub.f32 0.0, %v446
  %v2736 = vsub.f32 0.0, %v449
  %v2737 = vsub.f32 0.0, %v452
  %2770 = vrot.lane.b32.xlu0 %v2706, 124
  %v2771 = vpop.permute.xlu0 %2770
  %2772 = vrot.lane.b32.xlu0 %v2707, 124
  %v2773 = vpop.permute.xlu0 %2772
  %2774 = vrot.lane.b32.xlu0 %v2708, 124
  %v2775 = vpop.permute.xlu0 %2774
  %2776 = vrot.lane.b32.xlu0 %v2709, 124
  %v2777 = vpop.permute.xlu0 %2776
  %2778 = vrot.lane.b32.xlu0 %v2710, 124
  %v2779 = vpop.permute.xlu0 %2778
  %2780 = vrot.lane.b32.xlu0 %v2711, 124
  %v2781 = vpop.permute.xlu0 %2780
  %2782 = vrot.lane.b32.xlu0 %v2712, 124
  %v2783 = vpop.permute.xlu0 %2782
  %2784 = vrot.lane.b32.xlu0 %v2713, 124
  %v2785 = vpop.permute.xlu0 %2784
  %2786 = vrot.lane.b32.xlu0 %v2714, 124
  %v2787 = vpop.permute.xlu0 %2786
  %2788 = vrot.lane.b32.xlu0 %v2715, 124
  %v2789 = vpop.permute.xlu0 %2788
  %2790 = vrot.lane.b32.xlu0 %v2716, 124
  %v2791 = vpop.permute.xlu0 %2790
  %2792 = vrot.lane.b32.xlu0 %v2717, 124
  %v2793 = vpop.permute.xlu0 %2792
  %2794 = vrot.lane.b32.xlu0 %v2718, 124
  %v2795 = vpop.permute.xlu0 %2794
  %2796 = vrot.lane.b32.xlu0 %v2719, 124
  %v2797 = vpop.permute.xlu0 %2796
  %2798 = vrot.lane.b32.xlu0 %v2720, 124
  %v2799 = vpop.permute.xlu0 %2798
  %2800 = vrot.lane.b32.xlu0 %v2721, 124
  %v2801 = vpop.permute.xlu0 %2800
  %2802 = vrot.lane.b32.xlu0 %v2722, 124
  %v2803 = vpop.permute.xlu0 %2802
  %2804 = vrot.lane.b32.xlu0 %v2723, 124
  %v2805 = vpop.permute.xlu0 %2804
  %2806 = vrot.lane.b32.xlu0 %v2724, 124
  %v2807 = vpop.permute.xlu0 %2806
  %2808 = vrot.lane.b32.xlu0 %v2725, 124
  %v2809 = vpop.permute.xlu0 %2808
  %2810 = vrot.lane.b32.xlu0 %v2726, 124
  %v2811 = vpop.permute.xlu0 %2810
  %2812 = vrot.lane.b32.xlu0 %v2727, 124
  %v2813 = vpop.permute.xlu0 %2812
  %2814 = vrot.lane.b32.xlu0 %v2728, 124
  %v2815 = vpop.permute.xlu0 %2814
  %2816 = vrot.lane.b32.xlu0 %v2729, 124
  %v2817 = vpop.permute.xlu0 %2816
  %2818 = vrot.lane.b32.xlu0 %v2730, 124
  %v2819 = vpop.permute.xlu0 %2818
  %2820 = vrot.lane.b32.xlu0 %v2731, 124
  %v2821 = vpop.permute.xlu0 %2820
  %2822 = vrot.lane.b32.xlu0 %v2732, 124
  %v2823 = vpop.permute.xlu0 %2822
  %2824 = vrot.lane.b32.xlu0 %v2733, 124
  %v2825 = vpop.permute.xlu0 %2824
  %2826 = vrot.lane.b32.xlu0 %v2734, 124
  %v2827 = vpop.permute.xlu0 %2826
  %2828 = vrot.lane.b32.xlu0 %v2735, 124
  %v2829 = vpop.permute.xlu0 %2828
  %2830 = vrot.lane.b32.xlu0 %v2736, 124
  %v2831 = vpop.permute.xlu0 %2830
  %2832 = vrot.lane.b32.xlu0 %v2737, 124
  %v2833 = vpop.permute.xlu0 %2832
  %2898 = vrot.lane.b32.xlu0 %v359, 4
  %v2899 = vpop.permute.xlu0 %2898
  %2900 = vrot.lane.b32.xlu0 %v362, 4
  %v2901 = vpop.permute.xlu0 %2900
  %2902 = vrot.lane.b32.xlu0 %v365, 4
  %v2903 = vpop.permute.xlu0 %2902
  %2904 = vrot.lane.b32.xlu0 %v368, 4
  %v2905 = vpop.permute.xlu0 %2904
  %2906 = vrot.lane.b32.xlu0 %v371, 4
  %v2907 = vpop.permute.xlu0 %2906
  %2908 = vrot.lane.b32.xlu0 %v374, 4
  %v2909 = vpop.permute.xlu0 %2908
  %2910 = vrot.lane.b32.xlu0 %v377, 4
  %v2911 = vpop.permute.xlu0 %2910
  %2912 = vrot.lane.b32.xlu0 %v380, 4
  %v2913 = vpop.permute.xlu0 %2912
  %2914 = vrot.lane.b32.xlu0 %v383, 4
  %v2915 = vpop.permute.xlu0 %2914
  %2916 = vrot.lane.b32.xlu0 %v386, 4
  %v2917 = vpop.permute.xlu0 %2916
  %2918 = vrot.lane.b32.xlu0 %v389, 4
  %v2919 = vpop.permute.xlu0 %2918
  %2920 = vrot.lane.b32.xlu0 %v392, 4
  %v2921 = vpop.permute.xlu0 %2920
  %2922 = vrot.lane.b32.xlu0 %v395, 4
  %v2923 = vpop.permute.xlu0 %2922
  %2924 = vrot.lane.b32.xlu0 %v398, 4
  %v2925 = vpop.permute.xlu0 %2924
  %2926 = vrot.lane.b32.xlu0 %v401, 4
  %v2927 = vpop.permute.xlu0 %2926
  %2928 = vrot.lane.b32.xlu0 %v404, 4
  %v2929 = vpop.permute.xlu0 %2928
  %2930 = vrot.lane.b32.xlu0 %v407, 4
  %v2931 = vpop.permute.xlu0 %2930
  %2932 = vrot.lane.b32.xlu0 %v410, 4
  %v2933 = vpop.permute.xlu0 %2932
  %2934 = vrot.lane.b32.xlu0 %v413, 4
  %v2935 = vpop.permute.xlu0 %2934
  %2936 = vrot.lane.b32.xlu0 %v416, 4
  %v2937 = vpop.permute.xlu0 %2936
  %2938 = vrot.lane.b32.xlu0 %v419, 4
  %v2939 = vpop.permute.xlu0 %2938
  %2940 = vrot.lane.b32.xlu0 %v422, 4
  %v2941 = vpop.permute.xlu0 %2940
  %2942 = vrot.lane.b32.xlu0 %v425, 4
  %v2943 = vpop.permute.xlu0 %2942
  %2944 = vrot.lane.b32.xlu0 %v428, 4
  %v2945 = vpop.permute.xlu0 %2944
  %2946 = vrot.lane.b32.xlu0 %v431, 4
  %v2947 = vpop.permute.xlu0 %2946
  %2948 = vrot.lane.b32.xlu0 %v434, 4
  %v2949 = vpop.permute.xlu0 %2948
  %2950 = vrot.lane.b32.xlu0 %v437, 4
  %v2951 = vpop.permute.xlu0 %2950
  %2952 = vrot.lane.b32.xlu0 %v440, 4
  %v2953 = vpop.permute.xlu0 %2952
  %2954 = vrot.lane.b32.xlu0 %v443, 4
  %v2955 = vpop.permute.xlu0 %2954
  %2956 = vrot.lane.b32.xlu0 %v446, 4
  %v2957 = vpop.permute.xlu0 %2956
  %2958 = vrot.lane.b32.xlu0 %v449, 4
  %v2959 = vpop.permute.xlu0 %2958
  %2960 = vrot.lane.b32.xlu0 %v452, 4
  %v2961 = vpop.permute.xlu0 %2960
  %v2994 = vsel %vm1936, %v2771, %v2899
  %v2995 = vsel %vm1936, %v2773, %v2901
  %v2996 = vsel %vm1936, %v2775, %v2903
  %v2997 = vsel %vm1936, %v2777, %v2905
  %v2998 = vsel %vm1936, %v2779, %v2907
  %v2999 = vsel %vm1936, %v2781, %v2909
  %v3000 = vsel %vm1936, %v2783, %v2911
  %v3001 = vsel %vm1936, %v2785, %v2913
  %v3002 = vsel %vm1936, %v2787, %v2915
  %v3003 = vsel %vm1936, %v2789, %v2917
  %v3004 = vsel %vm1936, %v2791, %v2919
  %v3005 = vsel %vm1936, %v2793, %v2921
  %v3006 = vsel %vm1936, %v2795, %v2923
  %v3007 = vsel %vm1936, %v2797, %v2925
  %v3008 = vsel %vm1936, %v2799, %v2927
  %v3009 = vsel %vm1936, %v2801, %v2929
  %v3010 = vsel %vm1936, %v2803, %v2931
  %v3011 = vsel %vm1936, %v2805, %v2933
  %v3012 = vsel %vm1936, %v2807, %v2935
  %v3013 = vsel %vm1936, %v2809, %v2937
  %v3014 = vsel %vm1936, %v2811, %v2939
  %v3015 = vsel %vm1936, %v2813, %v2941
  %v3016 = vsel %vm1936, %v2815, %v2943
  %v3017 = vsel %vm1936, %v2817, %v2945
  %v3018 = vsel %vm1936, %v2819, %v2947
  %v3019 = vsel %vm1936, %v2821, %v2949
  %v3020 = vsel %vm1936, %v2823, %v2951
  %v3021 = vsel %vm1936, %v2825, %v2953
  %v3022 = vsel %vm1936, %v2827, %v2955
  %v3023 = vsel %vm1936, %v2829, %v2957
  %v3024 = vsel %vm1936, %v2831, %v2959
  %v3025 = vsel %vm1936, %v2833, %v2961
  %v3026 = vsel %vm1969, %v2994, 0.0
  %v3027 = vsel %vm1969, %v2995, 0.0
  %v3028 = vsel %vm1969, %v2996, 0.0
  %v3029 = vsel %vm1969, %v2997, 0.0
  %v3030 = vsel %vm1969, %v2998, 0.0
  %v3031 = vsel %vm1969, %v2999, 0.0
  %v3032 = vsel %vm1969, %v3000, 0.0
  %v3033 = vsel %vm1969, %v3001, 0.0
  %v3034 = vsel %vm1969, %v3002, 0.0
  %v3035 = vsel %vm1969, %v3003, 0.0
  %v3036 = vsel %vm1969, %v3004, 0.0
  %v3037 = vsel %vm1969, %v3005, 0.0
  %v3038 = vsel %vm1969, %v3006, 0.0
  %v3039 = vsel %vm1969, %v3007, 0.0
  %v3040 = vsel %vm1969, %v3008, 0.0
  %v3041 = vsel %vm1969, %v3009, 0.0
  %v3042 = vsel %vm1969, %v3010, 0.0
  %v3043 = vsel %vm1969, %v3011, 0.0
  %v3044 = vsel %vm1969, %v3012, 0.0
  %v3045 = vsel %vm1969, %v3013, 0.0
  %v3046 = vsel %vm1969, %v3014, 0.0
  %v3047 = vsel %vm1969, %v3015, 0.0
  %v3048 = vsel %vm1969, %v3016, 0.0
  %v3049 = vsel %vm1969, %v3017, 0.0
  %v3050 = vsel %vm1969, %v3018, 0.0
  %v3051 = vsel %vm1969, %v3019, 0.0
  %v3052 = vsel %vm1969, %v3020, 0.0
  %v3053 = vsel %vm1969, %v3021, 0.0
  %v3054 = vsel %vm1969, %v3022, 0.0
  %v3055 = vsel %vm1969, %v3023, 0.0
  %v3056 = vsel %vm1969, %v3024, 0.0
  %v3057 = vsel %vm1969, %v3025, 0.0
  %v3058 = vmul.f32 %v359, %v1584
  %v3059 = vmul.f32 %v362, %v1585
  %v3060 = vmul.f32 %v365, %v1586
  %v3061 = vmul.f32 %v368, %v1587
  %v3062 = vmul.f32 %v371, %v1588
  %v3063 = vmul.f32 %v374, %v1589
  %v3064 = vmul.f32 %v377, %v1590
  %v3065 = vmul.f32 %v380, %v1591
  %v3066 = vmul.f32 %v383, %v1592
  %v3067 = vmul.f32 %v386, %v1593
  %v3068 = vmul.f32 %v389, %v1594
  %v3069 = vmul.f32 %v392, %v1595
  %v3070 = vmul.f32 %v395, %v1596
  %v3071 = vmul.f32 %v398, %v1597
  %v3072 = vmul.f32 %v401, %v1598
  %v3073 = vmul.f32 %v404, %v1599
  %v3074 = vmul.f32 %v407, %v1600
  %v3075 = vmul.f32 %v410, %v1601
  %v3076 = vmul.f32 %v413, %v1602
  %v3077 = vmul.f32 %v416, %v1603
  %v3078 = vmul.f32 %v419, %v1604
  %v3079 = vmul.f32 %v422, %v1605
  %v3080 = vmul.f32 %v425, %v1606
  %v3081 = vmul.f32 %v428, %v1607
  %v3082 = vmul.f32 %v431, %v1608
  %v3083 = vmul.f32 %v434, %v1609
  %v3084 = vmul.f32 %v437, %v1610
  %v3085 = vmul.f32 %v440, %v1611
  %v3086 = vmul.f32 %v443, %v1612
  %v3087 = vmul.f32 %v446, %v1613
  %v3088 = vmul.f32 %v449, %v1614
  %v3089 = vmul.f32 %v452, %v1615
  %v3090 = vmul.f32 %v3026, %v1616
  %v3091 = vmul.f32 %v3027, %v1617
  %v3092 = vmul.f32 %v3028, %v1618
  %v3093 = vmul.f32 %v3029, %v1619
  %v3094 = vmul.f32 %v3030, %v1620
  %v3095 = vmul.f32 %v3031, %v1621
  %v3096 = vmul.f32 %v3032, %v1622
  %v3097 = vmul.f32 %v3033, %v1623
  %v3098 = vmul.f32 %v3034, %v1624
  %v3099 = vmul.f32 %v3035, %v1625
  %v3100 = vmul.f32 %v3036, %v1626
  %v3101 = vmul.f32 %v3037, %v1627
  %v3102 = vmul.f32 %v3038, %v1628
  %v3103 = vmul.f32 %v3039, %v1629
  %v3104 = vmul.f32 %v3040, %v1630
  %v3105 = vmul.f32 %v3041, %v1631
  %v3106 = vmul.f32 %v3042, %v1632
  %v3107 = vmul.f32 %v3043, %v1633
  %v3108 = vmul.f32 %v3044, %v1634
  %v3109 = vmul.f32 %v3045, %v1635
  %v3110 = vmul.f32 %v3046, %v1636
  %v3111 = vmul.f32 %v3047, %v1637
  %v3112 = vmul.f32 %v3048, %v1638
  %v3113 = vmul.f32 %v3049, %v1639
  %v3114 = vmul.f32 %v3050, %v1640
  %v3115 = vmul.f32 %v3051, %v1641
  %v3116 = vmul.f32 %v3052, %v1642
  %v3117 = vmul.f32 %v3053, %v1643
  %v3118 = vmul.f32 %v3054, %v1644
  %v3119 = vmul.f32 %v3055, %v1645
  %v3120 = vmul.f32 %v3056, %v1646
  %v3121 = vmul.f32 %v3057, %v1647
  %v3122 = vadd.f32 %v3058, %v3090
  %v3123 = vadd.f32 %v3059, %v3091
  %v3124 = vadd.f32 %v3060, %v3092
  %v3125 = vadd.f32 %v3061, %v3093
  %v3126 = vadd.f32 %v3062, %v3094
  %v3127 = vadd.f32 %v3063, %v3095
  %v3128 = vadd.f32 %v3064, %v3096
  %v3129 = vadd.f32 %v3065, %v3097
  %v3130 = vadd.f32 %v3066, %v3098
  %v3131 = vadd.f32 %v3067, %v3099
  %v3132 = vadd.f32 %v3068, %v3100
  %v3133 = vadd.f32 %v3069, %v3101
  %v3134 = vadd.f32 %v3070, %v3102
  %v3135 = vadd.f32 %v3071, %v3103
  %v3136 = vadd.f32 %v3072, %v3104
  %v3137 = vadd.f32 %v3073, %v3105
  %v3138 = vadd.f32 %v3074, %v3106
  %v3139 = vadd.f32 %v3075, %v3107
  %v3140 = vadd.f32 %v3076, %v3108
  %v3141 = vadd.f32 %v3077, %v3109
  %v3142 = vadd.f32 %v3078, %v3110
  %v3143 = vadd.f32 %v3079, %v3111
  %v3144 = vadd.f32 %v3080, %v3112
  %v3145 = vadd.f32 %v3081, %v3113
  %v3146 = vadd.f32 %v3082, %v3114
  %v3147 = vadd.f32 %v3083, %v3115
  %v3148 = vadd.f32 %v3084, %v3116
  %v3149 = vadd.f32 %v3085, %v3117
  %v3150 = vadd.f32 %v3086, %v3118
  %v3151 = vadd.f32 %v3087, %v3119
  %v3152 = vadd.f32 %v3088, %v3120
  %v3153 = vadd.f32 %v3089, %v3121
  %s3154 = scalar_lea.vmem %s5, 256
  %3155 = vst [vmem:[%s3154] sm:$0xff] %v3122
  %3156 = vst [vmem:[%s3154 + $0x8] sm:$0xff] %v3123
  %3157 = vst [vmem:[%s3154 + $0x10] sm:$0xff] %v3124
  %3158 = vst [vmem:[%s3154 + $0x18] sm:$0xff] %v3125
  %3159 = vst [vmem:[%s3154 + $0x20] sm:$0xff] %v3126
  %3160 = vst [vmem:[%s3154 + $0x28] sm:$0xff] %v3127
  %3161 = vst [vmem:[%s3154 + $0x30] sm:$0xff] %v3128
  %3162 = vst [vmem:[%s3154 + $0x38] sm:$0xff] %v3129
  %3163 = vst [vmem:[%s3154 + $0x40] sm:$0xff] %v3130
  %3164 = vst [vmem:[%s3154 + $0x48] sm:$0xff] %v3131
  %3165 = vst [vmem:[%s3154 + $0x50] sm:$0xff] %v3132
  %3166 = vst [vmem:[%s3154 + $0x58] sm:$0xff] %v3133
  %3167 = vst [vmem:[%s3154 + $0x60] sm:$0xff] %v3134
  %3168 = vst [vmem:[%s3154 + $0x68] sm:$0xff] %v3135
  %3169 = vst [vmem:[%s3154 + $0x70] sm:$0xff] %v3136
  %3170 = vst [vmem:[%s3154 + $0x78] sm:$0xff] %v3137
  %3171 = vst [vmem:[%s3154 + $0x80] sm:$0xff] %v3138
  %3172 = vst [vmem:[%s3154 + $0x88] sm:$0xff] %v3139
  %3173 = vst [vmem:[%s3154 + $0x90] sm:$0xff] %v3140
  %3174 = vst [vmem:[%s3154 + $0x98] sm:$0xff] %v3141
  %3175 = vst [vmem:[%s3154 + $0xa0] sm:$0xff] %v3142
  %3176 = vst [vmem:[%s3154 + $0xa8] sm:$0xff] %v3143
  %3177 = vst [vmem:[%s3154 + $0xb0] sm:$0xff] %v3144
  %3178 = vst [vmem:[%s3154 + $0xb8] sm:$0xff] %v3145
  %3179 = vst [vmem:[%s3154 + $0xc0] sm:$0xff] %v3146
  %3180 = vst [vmem:[%s3154 + $0xc8] sm:$0xff] %v3147
  %3181 = vst [vmem:[%s3154 + $0xd0] sm:$0xff] %v3148
  %3182 = vst [vmem:[%s3154 + $0xd8] sm:$0xff] %v3149
  %3183 = vst [vmem:[%s3154 + $0xe0] sm:$0xff] %v3150
  %3184 = vst [vmem:[%s3154 + $0xe8] sm:$0xff] %v3151
  %3185 = vst [vmem:[%s3154 + $0xf0] sm:$0xff] %v3152
  %3186 = vst [vmem:[%s3154 + $0xf8] sm:$0xff] %v3153
  %v3187 = vsub.f32 0.0, %v811
  %v3188 = vsub.f32 0.0, %v814
  %v3189 = vsub.f32 0.0, %v817
  %v3190 = vsub.f32 0.0, %v820
  %v3191 = vsub.f32 0.0, %v823
  %v3192 = vsub.f32 0.0, %v826
  %v3193 = vsub.f32 0.0, %v829
  %v3194 = vsub.f32 0.0, %v832
  %v3195 = vsub.f32 0.0, %v835
  %v3196 = vsub.f32 0.0, %v838
  %v3197 = vsub.f32 0.0, %v841
  %v3198 = vsub.f32 0.0, %v844
  %v3199 = vsub.f32 0.0, %v847
  %v3200 = vsub.f32 0.0, %v850
  %v3201 = vsub.f32 0.0, %v853
  %v3202 = vsub.f32 0.0, %v856
  %v3203 = vsub.f32 0.0, %v859
  %v3204 = vsub.f32 0.0, %v862
  %v3205 = vsub.f32 0.0, %v865
  %v3206 = vsub.f32 0.0, %v868
  %v3207 = vsub.f32 0.0, %v871
  %v3208 = vsub.f32 0.0, %v874
  %v3209 = vsub.f32 0.0, %v877
  %v3210 = vsub.f32 0.0, %v880
  %v3211 = vsub.f32 0.0, %v883
  %v3212 = vsub.f32 0.0, %v886
  %v3213 = vsub.f32 0.0, %v889
  %v3214 = vsub.f32 0.0, %v892
  %v3215 = vsub.f32 0.0, %v895
  %v3216 = vsub.f32 0.0, %v898
  %v3217 = vsub.f32 0.0, %v901
  %v3218 = vsub.f32 0.0, %v904
  %3251 = vrot.lane.b32.xlu0 %v3187, 124
  %v3252 = vpop.permute.xlu0 %3251
  %3253 = vrot.lane.b32.xlu0 %v3188, 124
  %v3254 = vpop.permute.xlu0 %3253
  %3255 = vrot.lane.b32.xlu0 %v3189, 124
  %v3256 = vpop.permute.xlu0 %3255
  %3257 = vrot.lane.b32.xlu0 %v3190, 124
  %v3258 = vpop.permute.xlu0 %3257
  %3259 = vrot.lane.b32.xlu0 %v3191, 124
  %v3260 = vpop.permute.xlu0 %3259
  %3261 = vrot.lane.b32.xlu0 %v3192, 124
  %v3262 = vpop.permute.xlu0 %3261
  %3263 = vrot.lane.b32.xlu0 %v3193, 124
  %v3264 = vpop.permute.xlu0 %3263
  %3265 = vrot.lane.b32.xlu0 %v3194, 124
  %v3266 = vpop.permute.xlu0 %3265
  %3267 = vrot.lane.b32.xlu0 %v3195, 124
  %v3268 = vpop.permute.xlu0 %3267
  %3269 = vrot.lane.b32.xlu0 %v3196, 124
  %v3270 = vpop.permute.xlu0 %3269
  %3271 = vrot.lane.b32.xlu0 %v3197, 124
  %v3272 = vpop.permute.xlu0 %3271
  %3273 = vrot.lane.b32.xlu0 %v3198, 124
  %v3274 = vpop.permute.xlu0 %3273
  %3275 = vrot.lane.b32.xlu0 %v3199, 124
  %v3276 = vpop.permute.xlu0 %3275
  %3277 = vrot.lane.b32.xlu0 %v3200, 124
  %v3278 = vpop.permute.xlu0 %3277
  %3279 = vrot.lane.b32.xlu0 %v3201, 124
  %v3280 = vpop.permute.xlu0 %3279
  %3281 = vrot.lane.b32.xlu0 %v3202, 124
  %v3282 = vpop.permute.xlu0 %3281
  %3283 = vrot.lane.b32.xlu0 %v3203, 124
  %v3284 = vpop.permute.xlu0 %3283
  %3285 = vrot.lane.b32.xlu0 %v3204, 124
  %v3286 = vpop.permute.xlu0 %3285
  %3287 = vrot.lane.b32.xlu0 %v3205, 124
  %v3288 = vpop.permute.xlu0 %3287
  %3289 = vrot.lane.b32.xlu0 %v3206, 124
  %v3290 = vpop.permute.xlu0 %3289
  %3291 = vrot.lane.b32.xlu0 %v3207, 124
  %v3292 = vpop.permute.xlu0 %3291
  %3293 = vrot.lane.b32.xlu0 %v3208, 124
  %v3294 = vpop.permute.xlu0 %3293
  %3295 = vrot.lane.b32.xlu0 %v3209, 124
  %v3296 = vpop.permute.xlu0 %3295
  %3297 = vrot.lane.b32.xlu0 %v3210, 124
  %v3298 = vpop.permute.xlu0 %3297
  %3299 = vrot.lane.b32.xlu0 %v3211, 124
  %v3300 = vpop.permute.xlu0 %3299
  %3301 = vrot.lane.b32.xlu0 %v3212, 124
  %v3302 = vpop.permute.xlu0 %3301
  %3303 = vrot.lane.b32.xlu0 %v3213, 124
  %v3304 = vpop.permute.xlu0 %3303
  %3305 = vrot.lane.b32.xlu0 %v3214, 124
  %v3306 = vpop.permute.xlu0 %3305
  %3307 = vrot.lane.b32.xlu0 %v3215, 124
  %v3308 = vpop.permute.xlu0 %3307
  %3309 = vrot.lane.b32.xlu0 %v3216, 124
  %v3310 = vpop.permute.xlu0 %3309
  %3311 = vrot.lane.b32.xlu0 %v3217, 124
  %v3312 = vpop.permute.xlu0 %3311
  %3313 = vrot.lane.b32.xlu0 %v3218, 124
  %v3314 = vpop.permute.xlu0 %3313
  %3379 = vrot.lane.b32.xlu0 %v811, 4
  %v3380 = vpop.permute.xlu0 %3379
  %3381 = vrot.lane.b32.xlu0 %v814, 4
  %v3382 = vpop.permute.xlu0 %3381
  %3383 = vrot.lane.b32.xlu0 %v817, 4
  %v3384 = vpop.permute.xlu0 %3383
  %3385 = vrot.lane.b32.xlu0 %v820, 4
  %v3386 = vpop.permute.xlu0 %3385
  %3387 = vrot.lane.b32.xlu0 %v823, 4
  %v3388 = vpop.permute.xlu0 %3387
  %3389 = vrot.lane.b32.xlu0 %v826, 4
  %v3390 = vpop.permute.xlu0 %3389
  %3391 = vrot.lane.b32.xlu0 %v829, 4
  %v3392 = vpop.permute.xlu0 %3391
  %3393 = vrot.lane.b32.xlu0 %v832, 4
  %v3394 = vpop.permute.xlu0 %3393
  %3395 = vrot.lane.b32.xlu0 %v835, 4
  %v3396 = vpop.permute.xlu0 %3395
  %3397 = vrot.lane.b32.xlu0 %v838, 4
  %v3398 = vpop.permute.xlu0 %3397
  %3399 = vrot.lane.b32.xlu0 %v841, 4
  %v3400 = vpop.permute.xlu0 %3399
  %3401 = vrot.lane.b32.xlu0 %v844, 4
  %v3402 = vpop.permute.xlu0 %3401
  %3403 = vrot.lane.b32.xlu0 %v847, 4
  %v3404 = vpop.permute.xlu0 %3403
  %3405 = vrot.lane.b32.xlu0 %v850, 4
  %v3406 = vpop.permute.xlu0 %3405
  %3407 = vrot.lane.b32.xlu0 %v853, 4
  %v3408 = vpop.permute.xlu0 %3407
  %3409 = vrot.lane.b32.xlu0 %v856, 4
  %v3410 = vpop.permute.xlu0 %3409
  %3411 = vrot.lane.b32.xlu0 %v859, 4
  %v3412 = vpop.permute.xlu0 %3411
  %3413 = vrot.lane.b32.xlu0 %v862, 4
  %v3414 = vpop.permute.xlu0 %3413
  %3415 = vrot.lane.b32.xlu0 %v865, 4
  %v3416 = vpop.permute.xlu0 %3415
  %3417 = vrot.lane.b32.xlu0 %v868, 4
  %v3418 = vpop.permute.xlu0 %3417
  %3419 = vrot.lane.b32.xlu0 %v871, 4
  %v3420 = vpop.permute.xlu0 %3419
  %3421 = vrot.lane.b32.xlu0 %v874, 4
  %v3422 = vpop.permute.xlu0 %3421
  %3423 = vrot.lane.b32.xlu0 %v877, 4
  %v3424 = vpop.permute.xlu0 %3423
  %3425 = vrot.lane.b32.xlu0 %v880, 4
  %v3426 = vpop.permute.xlu0 %3425
  %3427 = vrot.lane.b32.xlu0 %v883, 4
  %v3428 = vpop.permute.xlu0 %3427
  %3429 = vrot.lane.b32.xlu0 %v886, 4
  %v3430 = vpop.permute.xlu0 %3429
  %3431 = vrot.lane.b32.xlu0 %v889, 4
  %v3432 = vpop.permute.xlu0 %3431
  %3433 = vrot.lane.b32.xlu0 %v892, 4
  %v3434 = vpop.permute.xlu0 %3433
  %3435 = vrot.lane.b32.xlu0 %v895, 4
  %v3436 = vpop.permute.xlu0 %3435
  %3437 = vrot.lane.b32.xlu0 %v898, 4
  %v3438 = vpop.permute.xlu0 %3437
  %3439 = vrot.lane.b32.xlu0 %v901, 4
  %v3440 = vpop.permute.xlu0 %3439
  %3441 = vrot.lane.b32.xlu0 %v904, 4
  %v3442 = vpop.permute.xlu0 %3441
  %v3475 = vsel %vm1936, %v3252, %v3380
  %v3476 = vsel %vm1936, %v3254, %v3382
  %v3477 = vsel %vm1936, %v3256, %v3384
  %v3478 = vsel %vm1936, %v3258, %v3386
  %v3479 = vsel %vm1936, %v3260, %v3388
  %v3480 = vsel %vm1936, %v3262, %v3390
  %v3481 = vsel %vm1936, %v3264, %v3392
  %v3482 = vsel %vm1936, %v3266, %v3394
  %v3483 = vsel %vm1936, %v3268, %v3396
  %v3484 = vsel %vm1936, %v3270, %v3398
  %v3485 = vsel %vm1936, %v3272, %v3400
  %v3486 = vsel %vm1936, %v3274, %v3402
  %v3487 = vsel %vm1936, %v3276, %v3404
  %v3488 = vsel %vm1936, %v3278, %v3406
  %v3489 = vsel %vm1936, %v3280, %v3408
  %v3490 = vsel %vm1936, %v3282, %v3410
  %v3491 = vsel %vm1936, %v3284, %v3412
  %v3492 = vsel %vm1936, %v3286, %v3414
  %v3493 = vsel %vm1936, %v3288, %v3416
  %v3494 = vsel %vm1936, %v3290, %v3418
  %v3495 = vsel %vm1936, %v3292, %v3420
  %v3496 = vsel %vm1936, %v3294, %v3422
  %v3497 = vsel %vm1936, %v3296, %v3424
  %v3498 = vsel %vm1936, %v3298, %v3426
  %v3499 = vsel %vm1936, %v3300, %v3428
  %v3500 = vsel %vm1936, %v3302, %v3430
  %v3501 = vsel %vm1936, %v3304, %v3432
  %v3502 = vsel %vm1936, %v3306, %v3434
  %v3503 = vsel %vm1936, %v3308, %v3436
  %v3504 = vsel %vm1936, %v3310, %v3438
  %v3505 = vsel %vm1936, %v3312, %v3440
  %v3506 = vsel %vm1936, %v3314, %v3442
  %v3507 = vsel %vm1969, %v3475, 0.0
  %v3508 = vsel %vm1969, %v3476, 0.0
  %v3509 = vsel %vm1969, %v3477, 0.0
  %v3510 = vsel %vm1969, %v3478, 0.0
  %v3511 = vsel %vm1969, %v3479, 0.0
  %v3512 = vsel %vm1969, %v3480, 0.0
  %v3513 = vsel %vm1969, %v3481, 0.0
  %v3514 = vsel %vm1969, %v3482, 0.0
  %v3515 = vsel %vm1969, %v3483, 0.0
  %v3516 = vsel %vm1969, %v3484, 0.0
  %v3517 = vsel %vm1969, %v3485, 0.0
  %v3518 = vsel %vm1969, %v3486, 0.0
  %v3519 = vsel %vm1969, %v3487, 0.0
  %v3520 = vsel %vm1969, %v3488, 0.0
  %v3521 = vsel %vm1969, %v3489, 0.0
  %v3522 = vsel %vm1969, %v3490, 0.0
  %v3523 = vsel %vm1969, %v3491, 0.0
  %v3524 = vsel %vm1969, %v3492, 0.0
  %v3525 = vsel %vm1969, %v3493, 0.0
  %v3526 = vsel %vm1969, %v3494, 0.0
  %v3527 = vsel %vm1969, %v3495, 0.0
  %v3528 = vsel %vm1969, %v3496, 0.0
  %v3529 = vsel %vm1969, %v3497, 0.0
  %v3530 = vsel %vm1969, %v3498, 0.0
  %v3531 = vsel %vm1969, %v3499, 0.0
  %v3532 = vsel %vm1969, %v3500, 0.0
  %v3533 = vsel %vm1969, %v3501, 0.0
  %v3534 = vsel %vm1969, %v3502, 0.0
  %v3535 = vsel %vm1969, %v3503, 0.0
  %v3536 = vsel %vm1969, %v3504, 0.0
  %v3537 = vsel %vm1969, %v3505, 0.0
  %v3538 = vsel %vm1969, %v3506, 0.0
  %v3539 = vmul.f32 %v811, %v1584
  %v3540 = vmul.f32 %v814, %v1585
  %v3541 = vmul.f32 %v817, %v1586
  %v3542 = vmul.f32 %v820, %v1587
  %v3543 = vmul.f32 %v823, %v1588
  %v3544 = vmul.f32 %v826, %v1589
  %v3545 = vmul.f32 %v829, %v1590
  %v3546 = vmul.f32 %v832, %v1591
  %v3547 = vmul.f32 %v835, %v1592
  %v3548 = vmul.f32 %v838, %v1593
  %v3549 = vmul.f32 %v841, %v1594
  %v3550 = vmul.f32 %v844, %v1595
  %v3551 = vmul.f32 %v847, %v1596
  %v3552 = vmul.f32 %v850, %v1597
  %v3553 = vmul.f32 %v853, %v1598
  %v3554 = vmul.f32 %v856, %v1599
  %v3555 = vmul.f32 %v859, %v1600
  %v3556 = vmul.f32 %v862, %v1601
  %v3557 = vmul.f32 %v865, %v1602
  %v3558 = vmul.f32 %v868, %v1603
  %v3559 = vmul.f32 %v871, %v1604
  %v3560 = vmul.f32 %v874, %v1605
  %v3561 = vmul.f32 %v877, %v1606
  %v3562 = vmul.f32 %v880, %v1607
  %v3563 = vmul.f32 %v883, %v1608
  %v3564 = vmul.f32 %v886, %v1609
  %v3565 = vmul.f32 %v889, %v1610
  %v3566 = vmul.f32 %v892, %v1611
  %v3567 = vmul.f32 %v895, %v1612
  %v3568 = vmul.f32 %v898, %v1613
  %v3569 = vmul.f32 %v901, %v1614
  %v3570 = vmul.f32 %v904, %v1615
  %v3571 = vmul.f32 %v3507, %v1616
  %v3572 = vmul.f32 %v3508, %v1617
  %v3573 = vmul.f32 %v3509, %v1618
  %v3574 = vmul.f32 %v3510, %v1619
  %v3575 = vmul.f32 %v3511, %v1620
  %v3576 = vmul.f32 %v3512, %v1621
  %v3577 = vmul.f32 %v3513, %v1622
  %v3578 = vmul.f32 %v3514, %v1623
  %v3579 = vmul.f32 %v3515, %v1624
  %v3580 = vmul.f32 %v3516, %v1625
  %v3581 = vmul.f32 %v3517, %v1626
  %v3582 = vmul.f32 %v3518, %v1627
  %v3583 = vmul.f32 %v3519, %v1628
  %v3584 = vmul.f32 %v3520, %v1629
  %v3585 = vmul.f32 %v3521, %v1630
  %v3586 = vmul.f32 %v3522, %v1631
  %v3587 = vmul.f32 %v3523, %v1632
  %v3588 = vmul.f32 %v3524, %v1633
  %v3589 = vmul.f32 %v3525, %v1634
  %v3590 = vmul.f32 %v3526, %v1635
  %v3591 = vmul.f32 %v3527, %v1636
  %v3592 = vmul.f32 %v3528, %v1637
  %v3593 = vmul.f32 %v3529, %v1638
  %v3594 = vmul.f32 %v3530, %v1639
  %v3595 = vmul.f32 %v3531, %v1640
  %v3596 = vmul.f32 %v3532, %v1641
  %v3597 = vmul.f32 %v3533, %v1642
  %v3598 = vmul.f32 %v3534, %v1643
  %v3599 = vmul.f32 %v3535, %v1644
  %v3600 = vmul.f32 %v3536, %v1645
  %v3601 = vmul.f32 %v3537, %v1646
  %v3602 = vmul.f32 %v3538, %v1647
  %v3603 = vadd.f32 %v3539, %v3571
  %v3604 = vadd.f32 %v3540, %v3572
  %v3605 = vadd.f32 %v3541, %v3573
  %v3606 = vadd.f32 %v3542, %v3574
  %v3607 = vadd.f32 %v3543, %v3575
  %v3608 = vadd.f32 %v3544, %v3576
  %v3609 = vadd.f32 %v3545, %v3577
  %v3610 = vadd.f32 %v3546, %v3578
  %v3611 = vadd.f32 %v3547, %v3579
  %v3612 = vadd.f32 %v3548, %v3580
  %v3613 = vadd.f32 %v3549, %v3581
  %v3614 = vadd.f32 %v3550, %v3582
  %v3615 = vadd.f32 %v3551, %v3583
  %v3616 = vadd.f32 %v3552, %v3584
  %v3617 = vadd.f32 %v3553, %v3585
  %v3618 = vadd.f32 %v3554, %v3586
  %v3619 = vadd.f32 %v3555, %v3587
  %v3620 = vadd.f32 %v3556, %v3588
  %v3621 = vadd.f32 %v3557, %v3589
  %v3622 = vadd.f32 %v3558, %v3590
  %v3623 = vadd.f32 %v3559, %v3591
  %v3624 = vadd.f32 %v3560, %v3592
  %v3625 = vadd.f32 %v3561, %v3593
  %v3626 = vadd.f32 %v3562, %v3594
  %v3627 = vadd.f32 %v3563, %v3595
  %v3628 = vadd.f32 %v3564, %v3596
  %v3629 = vadd.f32 %v3565, %v3597
  %v3630 = vadd.f32 %v3566, %v3598
  %v3631 = vadd.f32 %v3567, %v3599
  %v3632 = vadd.f32 %v3568, %v3600
  %v3633 = vadd.f32 %v3569, %v3601
  %v3634 = vadd.f32 %v3570, %v3602
  %3635 = vxpose.xlu0.b32.start [1/16] %v3603, 128
  %3636 = vxpose.xlu0.b32.cont [2/16] %v3604, 128
  %3637 = vxpose.xlu0.b32.cont [3/16] %v3605, 128
  %3638 = vxpose.xlu0.b32.cont [4/16] %v3606, 128
  %3639 = vxpose.xlu0.b32.cont [5/16] %v3607, 128
  %3640 = vxpose.xlu0.b32.cont [6/16] %v3608, 128
  %3641 = vxpose.xlu0.b32.cont [7/16] %v3609, 128
  %3642 = vxpose.xlu0.b32.cont [8/16] %v3610, 128
  %3643 = vxpose.xlu0.b32.cont [9/16] %v3611, 128
  %3644 = vxpose.xlu0.b32.cont [10/16] %v3612, 128
  %3645 = vxpose.xlu0.b32.cont [11/16] %v3613, 128
  %3646 = vxpose.xlu0.b32.cont [12/16] %v3614, 128
  %3647 = vxpose.xlu0.b32.cont [13/16] %v3615, 128
  %3648 = vxpose.xlu0.b32.cont [14/16] %v3616, 128
  %3649 = vxpose.xlu0.b32.cont [15/16] %v3617, 128
  %3650 = vxpose.xlu0.b32.end [16/16] %v3618, 128
  %v3651 = vpop.trf.xlu0
  %v3652 = vpop.trf.xlu0
  %v3653 = vpop.trf.xlu0
  %v3654 = vpop.trf.xlu0
  %v3655 = vpop.trf.xlu0
  %v3656 = vpop.trf.xlu0
  %v3657 = vpop.trf.xlu0
  %v3658 = vpop.trf.xlu0
  %v3659 = vpop.trf.xlu0
  %v3660 = vpop.trf.xlu0
  %v3661 = vpop.trf.xlu0
  %v3662 = vpop.trf.xlu0
  %v3663 = vpop.trf.xlu0
  %v3664 = vpop.trf.xlu0
  %v3665 = vpop.trf.xlu0
  %v3666 = vpop.trf.xlu0
  %3667 = vxpose.xlu0.b32.start [1/16] %v3619, 128
  %3668 = vxpose.xlu0.b32.cont [2/16] %v3620, 128
  %3669 = vxpose.xlu0.b32.cont [3/16] %v3621, 128
  %3670 = vxpose.xlu0.b32.cont [4/16] %v3622, 128
  %3671 = vxpose.xlu0.b32.cont [5/16] %v3623, 128
  %3672 = vxpose.xlu0.b32.cont [6/16] %v3624, 128
  %3673 = vxpose.xlu0.b32.cont [7/16] %v3625, 128
  %3674 = vxpose.xlu0.b32.cont [8/16] %v3626, 128
  %3675 = vxpose.xlu0.b32.cont [9/16] %v3627, 128
  %3676 = vxpose.xlu0.b32.cont [10/16] %v3628, 128
  %3677 = vxpose.xlu0.b32.cont [11/16] %v3629, 128
  %3678 = vxpose.xlu0.b32.cont [12/16] %v3630, 128
  %3679 = vxpose.xlu0.b32.cont [13/16] %v3631, 128
  %3680 = vxpose.xlu0.b32.cont [14/16] %v3632, 128
  %3681 = vxpose.xlu0.b32.cont [15/16] %v3633, 128
  %3682 = vxpose.xlu0.b32.end [16/16] %v3634, 128
  %v3683 = vpop.trf.xlu0
  %v3684 = vpop.trf.xlu0
  %v3685 = vpop.trf.xlu0
  %v3686 = vpop.trf.xlu0
  %v3687 = vpop.trf.xlu0
  %v3688 = vpop.trf.xlu0
  %v3689 = vpop.trf.xlu0
  %v3690 = vpop.trf.xlu0
  %v3691 = vpop.trf.xlu0
  %v3692 = vpop.trf.xlu0
  %v3693 = vpop.trf.xlu0
  %v3694 = vpop.trf.xlu0
  %v3695 = vpop.trf.xlu0
  %v3696 = vpop.trf.xlu0
  %v3697 = vpop.trf.xlu0
  %v3698 = vpop.trf.xlu0
  %s3699 = scalar_lea.vmem %s6, 256
  %3700 = vst [vmem:[%s3699] sm:$0xff] %v3651
  %3701 = vst [vmem:[%s3699 + $0x8] sm:$0xff] %v3683
  %3702 = vst [vmem:[%s3699 + $0x10] sm:$0xff] %v3652
  %3703 = vst [vmem:[%s3699 + $0x18] sm:$0xff] %v3684
  %3704 = vst [vmem:[%s3699 + $0x20] sm:$0xff] %v3653
  %3705 = vst [vmem:[%s3699 + $0x28] sm:$0xff] %v3685
  %3706 = vst [vmem:[%s3699 + $0x30] sm:$0xff] %v3654
  %3707 = vst [vmem:[%s3699 + $0x38] sm:$0xff] %v3686
  %3708 = vst [vmem:[%s3699 + $0x40] sm:$0xff] %v3655
  %3709 = vst [vmem:[%s3699 + $0x48] sm:$0xff] %v3687
  %3710 = vst [vmem:[%s3699 + $0x50] sm:$0xff] %v3656
  %3711 = vst [vmem:[%s3699 + $0x58] sm:$0xff] %v3688
  %3712 = vst [vmem:[%s3699 + $0x60] sm:$0xff] %v3657
  %3713 = vst [vmem:[%s3699 + $0x68] sm:$0xff] %v3689
  %3714 = vst [vmem:[%s3699 + $0x70] sm:$0xff] %v3658
  %3715 = vst [vmem:[%s3699 + $0x78] sm:$0xff] %v3690
  %3716 = vst [vmem:[%s3699 + $0x80] sm:$0xff] %v3659
  %3717 = vst [vmem:[%s3699 + $0x88] sm:$0xff] %v3691
  %3718 = vst [vmem:[%s3699 + $0x90] sm:$0xff] %v3660
  %3719 = vst [vmem:[%s3699 + $0x98] sm:$0xff] %v3692
  %3720 = vst [vmem:[%s3699 + $0xa0] sm:$0xff] %v3661
  %3721 = vst [vmem:[%s3699 + $0xa8] sm:$0xff] %v3693
  %3722 = vst [vmem:[%s3699 + $0xb0] sm:$0xff] %v3662
  %3723 = vst [vmem:[%s3699 + $0xb8] sm:$0xff] %v3694
  %3724 = vst [vmem:[%s3699 + $0xc0] sm:$0xff] %v3663
  %3725 = vst [vmem:[%s3699 + $0xc8] sm:$0xff] %v3695
  %3726 = vst [vmem:[%s3699 + $0xd0] sm:$0xff] %v3664
  %3727 = vst [vmem:[%s3699 + $0xd8] sm:$0xff] %v3696
  %3728 = vst [vmem:[%s3699 + $0xe0] sm:$0xff] %v3665
  %3729 = vst [vmem:[%s3699 + $0xe8] sm:$0xff] %v3697
  %3730 = vst [vmem:[%s3699 + $0xf0] sm:$0xff] %v3666
  %3731 = vst [vmem:[%s3699 + $0xf8] sm:$0xff] %v3698
  %s3732 = scalar_lea.vmem %s7, 256
  %3733 = vst [vmem:[%s3732] sm:$0xff] %v1263
  %3734 = vst [vmem:[%s3732 + $0x8] sm:$0xff] %v1266
  %3735 = vst [vmem:[%s3732 + $0x10] sm:$0xff] %v1269
  %3736 = vst [vmem:[%s3732 + $0x18] sm:$0xff] %v1272
  %3737 = vst [vmem:[%s3732 + $0x20] sm:$0xff] %v1275
  %3738 = vst [vmem:[%s3732 + $0x28] sm:$0xff] %v1278
  %3739 = vst [vmem:[%s3732 + $0x30] sm:$0xff] %v1281
  %3740 = vst [vmem:[%s3732 + $0x38] sm:$0xff] %v1284
  %3741 = vst [vmem:[%s3732 + $0x40] sm:$0xff] %v1287
  %3742 = vst [vmem:[%s3732 + $0x48] sm:$0xff] %v1290
  %3743 = vst [vmem:[%s3732 + $0x50] sm:$0xff] %v1293
  %3744 = vst [vmem:[%s3732 + $0x58] sm:$0xff] %v1296
  %3745 = vst [vmem:[%s3732 + $0x60] sm:$0xff] %v1299
  %3746 = vst [vmem:[%s3732 + $0x68] sm:$0xff] %v1302
  %3747 = vst [vmem:[%s3732 + $0x70] sm:$0xff] %v1305
  %3748 = vst [vmem:[%s3732 + $0x78] sm:$0xff] %v1308
  %3749 = vst [vmem:[%s3732 + $0x80] sm:$0xff] %v1311
  %3750 = vst [vmem:[%s3732 + $0x88] sm:$0xff] %v1314
  %3751 = vst [vmem:[%s3732 + $0x90] sm:$0xff] %v1317
  %3752 = vst [vmem:[%s3732 + $0x98] sm:$0xff] %v1320
  %3753 = vst [vmem:[%s3732 + $0xa0] sm:$0xff] %v1323
  %3754 = vst [vmem:[%s3732 + $0xa8] sm:$0xff] %v1326
  %3755 = vst [vmem:[%s3732 + $0xb0] sm:$0xff] %v1329
  %3756 = vst [vmem:[%s3732 + $0xb8] sm:$0xff] %v1332
  %3757 = vst [vmem:[%s3732 + $0xc0] sm:$0xff] %v1335
  %3758 = vst [vmem:[%s3732 + $0xc8] sm:$0xff] %v1338
  %3759 = vst [vmem:[%s3732 + $0xd0] sm:$0xff] %v1341
  %3760 = vst [vmem:[%s3732 + $0xd8] sm:$0xff] %v1344
  %3761 = vst [vmem:[%s3732 + $0xe0] sm:$0xff] %v1347
  %3762 = vst [vmem:[%s3732 + $0xe8] sm:$0xff] %v1350
  %3763 = vst [vmem:[%s3732 + $0xf0] sm:$0xff] %v1353
  %3764 = vst [vmem:[%s3732 + $0xf8] sm:$0xff] %v1356
  %v3765 = vsub.f32 0.0, %v472
  %v3766 = vsub.f32 0.0, %v475
  %v3767 = vsub.f32 0.0, %v478
  %v3768 = vsub.f32 0.0, %v481
  %v3769 = vsub.f32 0.0, %v484
  %v3770 = vsub.f32 0.0, %v487
  %v3771 = vsub.f32 0.0, %v490
  %v3772 = vsub.f32 0.0, %v493
  %v3773 = vsub.f32 0.0, %v496
  %v3774 = vsub.f32 0.0, %v499
  %v3775 = vsub.f32 0.0, %v502
  %v3776 = vsub.f32 0.0, %v505
  %v3777 = vsub.f32 0.0, %v508
  %v3778 = vsub.f32 0.0, %v511
  %v3779 = vsub.f32 0.0, %v514
  %v3780 = vsub.f32 0.0, %v517
  %v3781 = vsub.f32 0.0, %v520
  %v3782 = vsub.f32 0.0, %v523
  %v3783 = vsub.f32 0.0, %v526
  %v3784 = vsub.f32 0.0, %v529
  %v3785 = vsub.f32 0.0, %v532
  %v3786 = vsub.f32 0.0, %v535
  %v3787 = vsub.f32 0.0, %v538
  %v3788 = vsub.f32 0.0, %v541
  %v3789 = vsub.f32 0.0, %v544
  %v3790 = vsub.f32 0.0, %v547
  %v3791 = vsub.f32 0.0, %v550
  %v3792 = vsub.f32 0.0, %v553
  %v3793 = vsub.f32 0.0, %v556
  %v3794 = vsub.f32 0.0, %v559
  %v3795 = vsub.f32 0.0, %v562
  %v3796 = vsub.f32 0.0, %v565
  %3829 = vrot.lane.b32.xlu0 %v3765, 124
  %v3830 = vpop.permute.xlu0 %3829
  %3831 = vrot.lane.b32.xlu0 %v3766, 124
  %v3832 = vpop.permute.xlu0 %3831
  %3833 = vrot.lane.b32.xlu0 %v3767, 124
  %v3834 = vpop.permute.xlu0 %3833
  %3835 = vrot.lane.b32.xlu0 %v3768, 124
  %v3836 = vpop.permute.xlu0 %3835
  %3837 = vrot.lane.b32.xlu0 %v3769, 124
  %v3838 = vpop.permute.xlu0 %3837
  %3839 = vrot.lane.b32.xlu0 %v3770, 124
  %v3840 = vpop.permute.xlu0 %3839
  %3841 = vrot.lane.b32.xlu0 %v3771, 124
  %v3842 = vpop.permute.xlu0 %3841
  %3843 = vrot.lane.b32.xlu0 %v3772, 124
  %v3844 = vpop.permute.xlu0 %3843
  %3845 = vrot.lane.b32.xlu0 %v3773, 124
  %v3846 = vpop.permute.xlu0 %3845
  %3847 = vrot.lane.b32.xlu0 %v3774, 124
  %v3848 = vpop.permute.xlu0 %3847
  %3849 = vrot.lane.b32.xlu0 %v3775, 124
  %v3850 = vpop.permute.xlu0 %3849
  %3851 = vrot.lane.b32.xlu0 %v3776, 124
  %v3852 = vpop.permute.xlu0 %3851
  %3853 = vrot.lane.b32.xlu0 %v3777, 124
  %v3854 = vpop.permute.xlu0 %3853
  %3855 = vrot.lane.b32.xlu0 %v3778, 124
  %v3856 = vpop.permute.xlu0 %3855
  %3857 = vrot.lane.b32.xlu0 %v3779, 124
  %v3858 = vpop.permute.xlu0 %3857
  %3859 = vrot.lane.b32.xlu0 %v3780, 124
  %v3860 = vpop.permute.xlu0 %3859
  %3861 = vrot.lane.b32.xlu0 %v3781, 124
  %v3862 = vpop.permute.xlu0 %3861
  %3863 = vrot.lane.b32.xlu0 %v3782, 124
  %v3864 = vpop.permute.xlu0 %3863
  %3865 = vrot.lane.b32.xlu0 %v3783, 124
  %v3866 = vpop.permute.xlu0 %3865
  %3867 = vrot.lane.b32.xlu0 %v3784, 124
  %v3868 = vpop.permute.xlu0 %3867
  %3869 = vrot.lane.b32.xlu0 %v3785, 124
  %v3870 = vpop.permute.xlu0 %3869
  %3871 = vrot.lane.b32.xlu0 %v3786, 124
  %v3872 = vpop.permute.xlu0 %3871
  %3873 = vrot.lane.b32.xlu0 %v3787, 124
  %v3874 = vpop.permute.xlu0 %3873
  %3875 = vrot.lane.b32.xlu0 %v3788, 124
  %v3876 = vpop.permute.xlu0 %3875
  %3877 = vrot.lane.b32.xlu0 %v3789, 124
  %v3878 = vpop.permute.xlu0 %3877
  %3879 = vrot.lane.b32.xlu0 %v3790, 124
  %v3880 = vpop.permute.xlu0 %3879
  %3881 = vrot.lane.b32.xlu0 %v3791, 124
  %v3882 = vpop.permute.xlu0 %3881
  %3883 = vrot.lane.b32.xlu0 %v3792, 124
  %v3884 = vpop.permute.xlu0 %3883
  %3885 = vrot.lane.b32.xlu0 %v3793, 124
  %v3886 = vpop.permute.xlu0 %3885
  %3887 = vrot.lane.b32.xlu0 %v3794, 124
  %v3888 = vpop.permute.xlu0 %3887
  %3889 = vrot.lane.b32.xlu0 %v3795, 124
  %v3890 = vpop.permute.xlu0 %3889
  %3891 = vrot.lane.b32.xlu0 %v3796, 124
  %v3892 = vpop.permute.xlu0 %3891
  %3957 = vrot.lane.b32.xlu0 %v472, 4
  %v3958 = vpop.permute.xlu0 %3957
  %3959 = vrot.lane.b32.xlu0 %v475, 4
  %v3960 = vpop.permute.xlu0 %3959
  %3961 = vrot.lane.b32.xlu0 %v478, 4
  %v3962 = vpop.permute.xlu0 %3961
  %3963 = vrot.lane.b32.xlu0 %v481, 4
  %v3964 = vpop.permute.xlu0 %3963
  %3965 = vrot.lane.b32.xlu0 %v484, 4
  %v3966 = vpop.permute.xlu0 %3965
  %3967 = vrot.lane.b32.xlu0 %v487, 4
  %v3968 = vpop.permute.xlu0 %3967
  %3969 = vrot.lane.b32.xlu0 %v490, 4
  %v3970 = vpop.permute.xlu0 %3969
  %3971 = vrot.lane.b32.xlu0 %v493, 4
  %v3972 = vpop.permute.xlu0 %3971
  %3973 = vrot.lane.b32.xlu0 %v496, 4
  %v3974 = vpop.permute.xlu0 %3973
  %3975 = vrot.lane.b32.xlu0 %v499, 4
  %v3976 = vpop.permute.xlu0 %3975
  %3977 = vrot.lane.b32.xlu0 %v502, 4
  %v3978 = vpop.permute.xlu0 %3977
  %3979 = vrot.lane.b32.xlu0 %v505, 4
  %v3980 = vpop.permute.xlu0 %3979
  %3981 = vrot.lane.b32.xlu0 %v508, 4
  %v3982 = vpop.permute.xlu0 %3981
  %3983 = vrot.lane.b32.xlu0 %v511, 4
  %v3984 = vpop.permute.xlu0 %3983
  %3985 = vrot.lane.b32.xlu0 %v514, 4
  %v3986 = vpop.permute.xlu0 %3985
  %3987 = vrot.lane.b32.xlu0 %v517, 4
  %v3988 = vpop.permute.xlu0 %3987
  %3989 = vrot.lane.b32.xlu0 %v520, 4
  %v3990 = vpop.permute.xlu0 %3989
  %3991 = vrot.lane.b32.xlu0 %v523, 4
  %v3992 = vpop.permute.xlu0 %3991
  %3993 = vrot.lane.b32.xlu0 %v526, 4
  %v3994 = vpop.permute.xlu0 %3993
  %3995 = vrot.lane.b32.xlu0 %v529, 4
  %v3996 = vpop.permute.xlu0 %3995
  %3997 = vrot.lane.b32.xlu0 %v532, 4
  %v3998 = vpop.permute.xlu0 %3997
  %3999 = vrot.lane.b32.xlu0 %v535, 4
  %v4000 = vpop.permute.xlu0 %3999
  %4001 = vrot.lane.b32.xlu0 %v538, 4
  %v4002 = vpop.permute.xlu0 %4001
  %4003 = vrot.lane.b32.xlu0 %v541, 4
  %v4004 = vpop.permute.xlu0 %4003
  %4005 = vrot.lane.b32.xlu0 %v544, 4
  %v4006 = vpop.permute.xlu0 %4005
  %4007 = vrot.lane.b32.xlu0 %v547, 4
  %v4008 = vpop.permute.xlu0 %4007
  %4009 = vrot.lane.b32.xlu0 %v550, 4
  %v4010 = vpop.permute.xlu0 %4009
  %4011 = vrot.lane.b32.xlu0 %v553, 4
  %v4012 = vpop.permute.xlu0 %4011
  %4013 = vrot.lane.b32.xlu0 %v556, 4
  %v4014 = vpop.permute.xlu0 %4013
  %4015 = vrot.lane.b32.xlu0 %v559, 4
  %v4016 = vpop.permute.xlu0 %4015
  %4017 = vrot.lane.b32.xlu0 %v562, 4
  %v4018 = vpop.permute.xlu0 %4017
  %4019 = vrot.lane.b32.xlu0 %v565, 4
  %v4020 = vpop.permute.xlu0 %4019
  %v4053 = vsel %vm1936, %v3830, %v3958
  %v4054 = vsel %vm1936, %v3832, %v3960
  %v4055 = vsel %vm1936, %v3834, %v3962
  %v4056 = vsel %vm1936, %v3836, %v3964
  %v4057 = vsel %vm1936, %v3838, %v3966
  %v4058 = vsel %vm1936, %v3840, %v3968
  %v4059 = vsel %vm1936, %v3842, %v3970
  %v4060 = vsel %vm1936, %v3844, %v3972
  %v4061 = vsel %vm1936, %v3846, %v3974
  %v4062 = vsel %vm1936, %v3848, %v3976
  %v4063 = vsel %vm1936, %v3850, %v3978
  %v4064 = vsel %vm1936, %v3852, %v3980
  %v4065 = vsel %vm1936, %v3854, %v3982
  %v4066 = vsel %vm1936, %v3856, %v3984
  %v4067 = vsel %vm1936, %v3858, %v3986
  %v4068 = vsel %vm1936, %v3860, %v3988
  %v4069 = vsel %vm1936, %v3862, %v3990
  %v4070 = vsel %vm1936, %v3864, %v3992
  %v4071 = vsel %vm1936, %v3866, %v3994
  %v4072 = vsel %vm1936, %v3868, %v3996
  %v4073 = vsel %vm1936, %v3870, %v3998
  %v4074 = vsel %vm1936, %v3872, %v4000
  %v4075 = vsel %vm1936, %v3874, %v4002
  %v4076 = vsel %vm1936, %v3876, %v4004
  %v4077 = vsel %vm1936, %v3878, %v4006
  %v4078 = vsel %vm1936, %v3880, %v4008
  %v4079 = vsel %vm1936, %v3882, %v4010
  %v4080 = vsel %vm1936, %v3884, %v4012
  %v4081 = vsel %vm1936, %v3886, %v4014
  %v4082 = vsel %vm1936, %v3888, %v4016
  %v4083 = vsel %vm1936, %v3890, %v4018
  %v4084 = vsel %vm1936, %v3892, %v4020
  %v4085 = vsel %vm1969, %v4053, 0.0
  %v4086 = vsel %vm1969, %v4054, 0.0
  %v4087 = vsel %vm1969, %v4055, 0.0
  %v4088 = vsel %vm1969, %v4056, 0.0
  %v4089 = vsel %vm1969, %v4057, 0.0
  %v4090 = vsel %vm1969, %v4058, 0.0
  %v4091 = vsel %vm1969, %v4059, 0.0
  %v4092 = vsel %vm1969, %v4060, 0.0
  %v4093 = vsel %vm1969, %v4061, 0.0
  %v4094 = vsel %vm1969, %v4062, 0.0
  %v4095 = vsel %vm1969, %v4063, 0.0
  %v4096 = vsel %vm1969, %v4064, 0.0
  %v4097 = vsel %vm1969, %v4065, 0.0
  %v4098 = vsel %vm1969, %v4066, 0.0
  %v4099 = vsel %vm1969, %v4067, 0.0
  %v4100 = vsel %vm1969, %v4068, 0.0
  %v4101 = vsel %vm1969, %v4069, 0.0
  %v4102 = vsel %vm1969, %v4070, 0.0
  %v4103 = vsel %vm1969, %v4071, 0.0
  %v4104 = vsel %vm1969, %v4072, 0.0
  %v4105 = vsel %vm1969, %v4073, 0.0
  %v4106 = vsel %vm1969, %v4074, 0.0
  %v4107 = vsel %vm1969, %v4075, 0.0
  %v4108 = vsel %vm1969, %v4076, 0.0
  %v4109 = vsel %vm1969, %v4077, 0.0
  %v4110 = vsel %vm1969, %v4078, 0.0
  %v4111 = vsel %vm1969, %v4079, 0.0
  %v4112 = vsel %vm1969, %v4080, 0.0
  %v4113 = vsel %vm1969, %v4081, 0.0
  %v4114 = vsel %vm1969, %v4082, 0.0
  %v4115 = vsel %vm1969, %v4083, 0.0
  %v4116 = vsel %vm1969, %v4084, 0.0
  %v4117 = vmul.f32 %v472, %v1584
  %v4118 = vmul.f32 %v475, %v1585
  %v4119 = vmul.f32 %v478, %v1586
  %v4120 = vmul.f32 %v481, %v1587
  %v4121 = vmul.f32 %v484, %v1588
  %v4122 = vmul.f32 %v487, %v1589
  %v4123 = vmul.f32 %v490, %v1590
  %v4124 = vmul.f32 %v493, %v1591
  %v4125 = vmul.f32 %v496, %v1592
  %v4126 = vmul.f32 %v499, %v1593
  %v4127 = vmul.f32 %v502, %v1594
  %v4128 = vmul.f32 %v505, %v1595
  %v4129 = vmul.f32 %v508, %v1596
  %v4130 = vmul.f32 %v511, %v1597
  %v4131 = vmul.f32 %v514, %v1598
  %v4132 = vmul.f32 %v517, %v1599
  %v4133 = vmul.f32 %v520, %v1600
  %v4134 = vmul.f32 %v523, %v1601
  %v4135 = vmul.f32 %v526, %v1602
  %v4136 = vmul.f32 %v529, %v1603
  %v4137 = vmul.f32 %v532, %v1604
  %v4138 = vmul.f32 %v535, %v1605
  %v4139 = vmul.f32 %v538, %v1606
  %v4140 = vmul.f32 %v541, %v1607
  %v4141 = vmul.f32 %v544, %v1608
  %v4142 = vmul.f32 %v547, %v1609
  %v4143 = vmul.f32 %v550, %v1610
  %v4144 = vmul.f32 %v553, %v1611
  %v4145 = vmul.f32 %v556, %v1612
  %v4146 = vmul.f32 %v559, %v1613
  %v4147 = vmul.f32 %v562, %v1614
  %v4148 = vmul.f32 %v565, %v1615
  %v4149 = vmul.f32 %v4085, %v1616
  %v4150 = vmul.f32 %v4086, %v1617
  %v4151 = vmul.f32 %v4087, %v1618
  %v4152 = vmul.f32 %v4088, %v1619
  %v4153 = vmul.f32 %v4089, %v1620
  %v4154 = vmul.f32 %v4090, %v1621
  %v4155 = vmul.f32 %v4091, %v1622
  %v4156 = vmul.f32 %v4092, %v1623
  %v4157 = vmul.f32 %v4093, %v1624
  %v4158 = vmul.f32 %v4094, %v1625
  %v4159 = vmul.f32 %v4095, %v1626
  %v4160 = vmul.f32 %v4096, %v1627
  %v4161 = vmul.f32 %v4097, %v1628
  %v4162 = vmul.f32 %v4098, %v1629
  %v4163 = vmul.f32 %v4099, %v1630
  %v4164 = vmul.f32 %v4100, %v1631
  %v4165 = vmul.f32 %v4101, %v1632
  %v4166 = vmul.f32 %v4102, %v1633
  %v4167 = vmul.f32 %v4103, %v1634
  %v4168 = vmul.f32 %v4104, %v1635
  %v4169 = vmul.f32 %v4105, %v1636
  %v4170 = vmul.f32 %v4106, %v1637
  %v4171 = vmul.f32 %v4107, %v1638
  %v4172 = vmul.f32 %v4108, %v1639
  %v4173 = vmul.f32 %v4109, %v1640
  %v4174 = vmul.f32 %v4110, %v1641
  %v4175 = vmul.f32 %v4111, %v1642
  %v4176 = vmul.f32 %v4112, %v1643
  %v4177 = vmul.f32 %v4113, %v1644
  %v4178 = vmul.f32 %v4114, %v1645
  %v4179 = vmul.f32 %v4115, %v1646
  %v4180 = vmul.f32 %v4116, %v1647
  %v4181 = vadd.f32 %v4117, %v4149
  %v4182 = vadd.f32 %v4118, %v4150
  %v4183 = vadd.f32 %v4119, %v4151
  %v4184 = vadd.f32 %v4120, %v4152
  %v4185 = vadd.f32 %v4121, %v4153
  %v4186 = vadd.f32 %v4122, %v4154
  %v4187 = vadd.f32 %v4123, %v4155
  %v4188 = vadd.f32 %v4124, %v4156
  %v4189 = vadd.f32 %v4125, %v4157
  %v4190 = vadd.f32 %v4126, %v4158
  %v4191 = vadd.f32 %v4127, %v4159
  %v4192 = vadd.f32 %v4128, %v4160
  %v4193 = vadd.f32 %v4129, %v4161
  %v4194 = vadd.f32 %v4130, %v4162
  %v4195 = vadd.f32 %v4131, %v4163
  %v4196 = vadd.f32 %v4132, %v4164
  %v4197 = vadd.f32 %v4133, %v4165
  %v4198 = vadd.f32 %v4134, %v4166
  %v4199 = vadd.f32 %v4135, %v4167
  %v4200 = vadd.f32 %v4136, %v4168
  %v4201 = vadd.f32 %v4137, %v4169
  %v4202 = vadd.f32 %v4138, %v4170
  %v4203 = vadd.f32 %v4139, %v4171
  %v4204 = vadd.f32 %v4140, %v4172
  %v4205 = vadd.f32 %v4141, %v4173
  %v4206 = vadd.f32 %v4142, %v4174
  %v4207 = vadd.f32 %v4143, %v4175
  %v4208 = vadd.f32 %v4144, %v4176
  %v4209 = vadd.f32 %v4145, %v4177
  %v4210 = vadd.f32 %v4146, %v4178
  %v4211 = vadd.f32 %v4147, %v4179
  %v4212 = vadd.f32 %v4148, %v4180
  %s4213 = scalar_lea.vmem %s5, 512
  %4214 = vst [vmem:[%s4213] sm:$0xff] %v4181
  %4215 = vst [vmem:[%s4213 + $0x8] sm:$0xff] %v4182
  %4216 = vst [vmem:[%s4213 + $0x10] sm:$0xff] %v4183
  %4217 = vst [vmem:[%s4213 + $0x18] sm:$0xff] %v4184
  %4218 = vst [vmem:[%s4213 + $0x20] sm:$0xff] %v4185
  %4219 = vst [vmem:[%s4213 + $0x28] sm:$0xff] %v4186
  %4220 = vst [vmem:[%s4213 + $0x30] sm:$0xff] %v4187
  %4221 = vst [vmem:[%s4213 + $0x38] sm:$0xff] %v4188
  %4222 = vst [vmem:[%s4213 + $0x40] sm:$0xff] %v4189
  %4223 = vst [vmem:[%s4213 + $0x48] sm:$0xff] %v4190
  %4224 = vst [vmem:[%s4213 + $0x50] sm:$0xff] %v4191
  %4225 = vst [vmem:[%s4213 + $0x58] sm:$0xff] %v4192
  %4226 = vst [vmem:[%s4213 + $0x60] sm:$0xff] %v4193
  %4227 = vst [vmem:[%s4213 + $0x68] sm:$0xff] %v4194
  %4228 = vst [vmem:[%s4213 + $0x70] sm:$0xff] %v4195
  %4229 = vst [vmem:[%s4213 + $0x78] sm:$0xff] %v4196
  %4230 = vst [vmem:[%s4213 + $0x80] sm:$0xff] %v4197
  %4231 = vst [vmem:[%s4213 + $0x88] sm:$0xff] %v4198
  %4232 = vst [vmem:[%s4213 + $0x90] sm:$0xff] %v4199
  %4233 = vst [vmem:[%s4213 + $0x98] sm:$0xff] %v4200
  %4234 = vst [vmem:[%s4213 + $0xa0] sm:$0xff] %v4201
  %4235 = vst [vmem:[%s4213 + $0xa8] sm:$0xff] %v4202
  %4236 = vst [vmem:[%s4213 + $0xb0] sm:$0xff] %v4203
  %4237 = vst [vmem:[%s4213 + $0xb8] sm:$0xff] %v4204
  %4238 = vst [vmem:[%s4213 + $0xc0] sm:$0xff] %v4205
  %4239 = vst [vmem:[%s4213 + $0xc8] sm:$0xff] %v4206
  %4240 = vst [vmem:[%s4213 + $0xd0] sm:$0xff] %v4207
  %4241 = vst [vmem:[%s4213 + $0xd8] sm:$0xff] %v4208
  %4242 = vst [vmem:[%s4213 + $0xe0] sm:$0xff] %v4209
  %4243 = vst [vmem:[%s4213 + $0xe8] sm:$0xff] %v4210
  %4244 = vst [vmem:[%s4213 + $0xf0] sm:$0xff] %v4211
  %4245 = vst [vmem:[%s4213 + $0xf8] sm:$0xff] %v4212
  %v4246 = vsub.f32 0.0, %v924
  %v4247 = vsub.f32 0.0, %v927
  %v4248 = vsub.f32 0.0, %v930
  %v4249 = vsub.f32 0.0, %v933
  %v4250 = vsub.f32 0.0, %v936
  %v4251 = vsub.f32 0.0, %v939
  %v4252 = vsub.f32 0.0, %v942
  %v4253 = vsub.f32 0.0, %v945
  %v4254 = vsub.f32 0.0, %v948
  %v4255 = vsub.f32 0.0, %v951
  %v4256 = vsub.f32 0.0, %v954
  %v4257 = vsub.f32 0.0, %v957
  %v4258 = vsub.f32 0.0, %v960
  %v4259 = vsub.f32 0.0, %v963
  %v4260 = vsub.f32 0.0, %v966
  %v4261 = vsub.f32 0.0, %v969
  %v4262 = vsub.f32 0.0, %v972
  %v4263 = vsub.f32 0.0, %v975
  %v4264 = vsub.f32 0.0, %v978
  %v4265 = vsub.f32 0.0, %v981
  %v4266 = vsub.f32 0.0, %v984
  %v4267 = vsub.f32 0.0, %v987
  %v4268 = vsub.f32 0.0, %v990
  %v4269 = vsub.f32 0.0, %v993
  %v4270 = vsub.f32 0.0, %v996
  %v4271 = vsub.f32 0.0, %v999
  %v4272 = vsub.f32 0.0, %v1002
  %v4273 = vsub.f32 0.0, %v1005
  %v4274 = vsub.f32 0.0, %v1008
  %v4275 = vsub.f32 0.0, %v1011
  %v4276 = vsub.f32 0.0, %v1014
  %v4277 = vsub.f32 0.0, %v1017
  %4310 = vrot.lane.b32.xlu0 %v4246, 124
  %v4311 = vpop.permute.xlu0 %4310
  %4312 = vrot.lane.b32.xlu0 %v4247, 124
  %v4313 = vpop.permute.xlu0 %4312
  %4314 = vrot.lane.b32.xlu0 %v4248, 124
  %v4315 = vpop.permute.xlu0 %4314
  %4316 = vrot.lane.b32.xlu0 %v4249, 124
  %v4317 = vpop.permute.xlu0 %4316
  %4318 = vrot.lane.b32.xlu0 %v4250, 124
  %v4319 = vpop.permute.xlu0 %4318
  %4320 = vrot.lane.b32.xlu0 %v4251, 124
  %v4321 = vpop.permute.xlu0 %4320
  %4322 = vrot.lane.b32.xlu0 %v4252, 124
  %v4323 = vpop.permute.xlu0 %4322
  %4324 = vrot.lane.b32.xlu0 %v4253, 124
  %v4325 = vpop.permute.xlu0 %4324
  %4326 = vrot.lane.b32.xlu0 %v4254, 124
  %v4327 = vpop.permute.xlu0 %4326
  %4328 = vrot.lane.b32.xlu0 %v4255, 124
  %v4329 = vpop.permute.xlu0 %4328
  %4330 = vrot.lane.b32.xlu0 %v4256, 124
  %v4331 = vpop.permute.xlu0 %4330
  %4332 = vrot.lane.b32.xlu0 %v4257, 124
  %v4333 = vpop.permute.xlu0 %4332
  %4334 = vrot.lane.b32.xlu0 %v4258, 124
  %v4335 = vpop.permute.xlu0 %4334
  %4336 = vrot.lane.b32.xlu0 %v4259, 124
  %v4337 = vpop.permute.xlu0 %4336
  %4338 = vrot.lane.b32.xlu0 %v4260, 124
  %v4339 = vpop.permute.xlu0 %4338
  %4340 = vrot.lane.b32.xlu0 %v4261, 124
  %v4341 = vpop.permute.xlu0 %4340
  %4342 = vrot.lane.b32.xlu0 %v4262, 124
  %v4343 = vpop.permute.xlu0 %4342
  %4344 = vrot.lane.b32.xlu0 %v4263, 124
  %v4345 = vpop.permute.xlu0 %4344
  %4346 = vrot.lane.b32.xlu0 %v4264, 124
  %v4347 = vpop.permute.xlu0 %4346
  %4348 = vrot.lane.b32.xlu0 %v4265, 124
  %v4349 = vpop.permute.xlu0 %4348
  %4350 = vrot.lane.b32.xlu0 %v4266, 124
  %v4351 = vpop.permute.xlu0 %4350
  %4352 = vrot.lane.b32.xlu0 %v4267, 124
  %v4353 = vpop.permute.xlu0 %4352
  %4354 = vrot.lane.b32.xlu0 %v4268, 124
  %v4355 = vpop.permute.xlu0 %4354
  %4356 = vrot.lane.b32.xlu0 %v4269, 124
  %v4357 = vpop.permute.xlu0 %4356
  %4358 = vrot.lane.b32.xlu0 %v4270, 124
  %v4359 = vpop.permute.xlu0 %4358
  %4360 = vrot.lane.b32.xlu0 %v4271, 124
  %v4361 = vpop.permute.xlu0 %4360
  %4362 = vrot.lane.b32.xlu0 %v4272, 124
  %v4363 = vpop.permute.xlu0 %4362
  %4364 = vrot.lane.b32.xlu0 %v4273, 124
  %v4365 = vpop.permute.xlu0 %4364
  %4366 = vrot.lane.b32.xlu0 %v4274, 124
  %v4367 = vpop.permute.xlu0 %4366
  %4368 = vrot.lane.b32.xlu0 %v4275, 124
  %v4369 = vpop.permute.xlu0 %4368
  %4370 = vrot.lane.b32.xlu0 %v4276, 124
  %v4371 = vpop.permute.xlu0 %4370
  %4372 = vrot.lane.b32.xlu0 %v4277, 124
  %v4373 = vpop.permute.xlu0 %4372
  %4438 = vrot.lane.b32.xlu0 %v924, 4
  %v4439 = vpop.permute.xlu0 %4438
  %4440 = vrot.lane.b32.xlu0 %v927, 4
  %v4441 = vpop.permute.xlu0 %4440
  %4442 = vrot.lane.b32.xlu0 %v930, 4
  %v4443 = vpop.permute.xlu0 %4442
  %4444 = vrot.lane.b32.xlu0 %v933, 4
  %v4445 = vpop.permute.xlu0 %4444
  %4446 = vrot.lane.b32.xlu0 %v936, 4
  %v4447 = vpop.permute.xlu0 %4446
  %4448 = vrot.lane.b32.xlu0 %v939, 4
  %v4449 = vpop.permute.xlu0 %4448
  %4450 = vrot.lane.b32.xlu0 %v942, 4
  %v4451 = vpop.permute.xlu0 %4450
  %4452 = vrot.lane.b32.xlu0 %v945, 4
  %v4453 = vpop.permute.xlu0 %4452
  %4454 = vrot.lane.b32.xlu0 %v948, 4
  %v4455 = vpop.permute.xlu0 %4454
  %4456 = vrot.lane.b32.xlu0 %v951, 4
  %v4457 = vpop.permute.xlu0 %4456
  %4458 = vrot.lane.b32.xlu0 %v954, 4
  %v4459 = vpop.permute.xlu0 %4458
  %4460 = vrot.lane.b32.xlu0 %v957, 4
  %v4461 = vpop.permute.xlu0 %4460
  %4462 = vrot.lane.b32.xlu0 %v960, 4
  %v4463 = vpop.permute.xlu0 %4462
  %4464 = vrot.lane.b32.xlu0 %v963, 4
  %v4465 = vpop.permute.xlu0 %4464
  %4466 = vrot.lane.b32.xlu0 %v966, 4
  %v4467 = vpop.permute.xlu0 %4466
  %4468 = vrot.lane.b32.xlu0 %v969, 4
  %v4469 = vpop.permute.xlu0 %4468
  %4470 = vrot.lane.b32.xlu0 %v972, 4
  %v4471 = vpop.permute.xlu0 %4470
  %4472 = vrot.lane.b32.xlu0 %v975, 4
  %v4473 = vpop.permute.xlu0 %4472
  %4474 = vrot.lane.b32.xlu0 %v978, 4
  %v4475 = vpop.permute.xlu0 %4474
  %4476 = vrot.lane.b32.xlu0 %v981, 4
  %v4477 = vpop.permute.xlu0 %4476
  %4478 = vrot.lane.b32.xlu0 %v984, 4
  %v4479 = vpop.permute.xlu0 %4478
  %4480 = vrot.lane.b32.xlu0 %v987, 4
  %v4481 = vpop.permute.xlu0 %4480
  %4482 = vrot.lane.b32.xlu0 %v990, 4
  %v4483 = vpop.permute.xlu0 %4482
  %4484 = vrot.lane.b32.xlu0 %v993, 4
  %v4485 = vpop.permute.xlu0 %4484
  %4486 = vrot.lane.b32.xlu0 %v996, 4
  %v4487 = vpop.permute.xlu0 %4486
  %4488 = vrot.lane.b32.xlu0 %v999, 4
  %v4489 = vpop.permute.xlu0 %4488
  %4490 = vrot.lane.b32.xlu0 %v1002, 4
  %v4491 = vpop.permute.xlu0 %4490
  %4492 = vrot.lane.b32.xlu0 %v1005, 4
  %v4493 = vpop.permute.xlu0 %4492
  %4494 = vrot.lane.b32.xlu0 %v1008, 4
  %v4495 = vpop.permute.xlu0 %4494
  %4496 = vrot.lane.b32.xlu0 %v1011, 4
  %v4497 = vpop.permute.xlu0 %4496
  %4498 = vrot.lane.b32.xlu0 %v1014, 4
  %v4499 = vpop.permute.xlu0 %4498
  %4500 = vrot.lane.b32.xlu0 %v1017, 4
  %v4501 = vpop.permute.xlu0 %4500
  %v4534 = vsel %vm1936, %v4311, %v4439
  %v4535 = vsel %vm1936, %v4313, %v4441
  %v4536 = vsel %vm1936, %v4315, %v4443
  %v4537 = vsel %vm1936, %v4317, %v4445
  %v4538 = vsel %vm1936, %v4319, %v4447
  %v4539 = vsel %vm1936, %v4321, %v4449
  %v4540 = vsel %vm1936, %v4323, %v4451
  %v4541 = vsel %vm1936, %v4325, %v4453
  %v4542 = vsel %vm1936, %v4327, %v4455
  %v4543 = vsel %vm1936, %v4329, %v4457
  %v4544 = vsel %vm1936, %v4331, %v4459
  %v4545 = vsel %vm1936, %v4333, %v4461
  %v4546 = vsel %vm1936, %v4335, %v4463
  %v4547 = vsel %vm1936, %v4337, %v4465
  %v4548 = vsel %vm1936, %v4339, %v4467
  %v4549 = vsel %vm1936, %v4341, %v4469
  %v4550 = vsel %vm1936, %v4343, %v4471
  %v4551 = vsel %vm1936, %v4345, %v4473
  %v4552 = vsel %vm1936, %v4347, %v4475
  %v4553 = vsel %vm1936, %v4349, %v4477
  %v4554 = vsel %vm1936, %v4351, %v4479
  %v4555 = vsel %vm1936, %v4353, %v4481
  %v4556 = vsel %vm1936, %v4355, %v4483
  %v4557 = vsel %vm1936, %v4357, %v4485
  %v4558 = vsel %vm1936, %v4359, %v4487
  %v4559 = vsel %vm1936, %v4361, %v4489
  %v4560 = vsel %vm1936, %v4363, %v4491
  %v4561 = vsel %vm1936, %v4365, %v4493
  %v4562 = vsel %vm1936, %v4367, %v4495
  %v4563 = vsel %vm1936, %v4369, %v4497
  %v4564 = vsel %vm1936, %v4371, %v4499
  %v4565 = vsel %vm1936, %v4373, %v4501
  %v4566 = vsel %vm1969, %v4534, 0.0
  %v4567 = vsel %vm1969, %v4535, 0.0
  %v4568 = vsel %vm1969, %v4536, 0.0
  %v4569 = vsel %vm1969, %v4537, 0.0
  %v4570 = vsel %vm1969, %v4538, 0.0
  %v4571 = vsel %vm1969, %v4539, 0.0
  %v4572 = vsel %vm1969, %v4540, 0.0
  %v4573 = vsel %vm1969, %v4541, 0.0
  %v4574 = vsel %vm1969, %v4542, 0.0
  %v4575 = vsel %vm1969, %v4543, 0.0
  %v4576 = vsel %vm1969, %v4544, 0.0
  %v4577 = vsel %vm1969, %v4545, 0.0
  %v4578 = vsel %vm1969, %v4546, 0.0
  %v4579 = vsel %vm1969, %v4547, 0.0
  %v4580 = vsel %vm1969, %v4548, 0.0
  %v4581 = vsel %vm1969, %v4549, 0.0
  %v4582 = vsel %vm1969, %v4550, 0.0
  %v4583 = vsel %vm1969, %v4551, 0.0
  %v4584 = vsel %vm1969, %v4552, 0.0
  %v4585 = vsel %vm1969, %v4553, 0.0
  %v4586 = vsel %vm1969, %v4554, 0.0
  %v4587 = vsel %vm1969, %v4555, 0.0
  %v4588 = vsel %vm1969, %v4556, 0.0
  %v4589 = vsel %vm1969, %v4557, 0.0
  %v4590 = vsel %vm1969, %v4558, 0.0
  %v4591 = vsel %vm1969, %v4559, 0.0
  %v4592 = vsel %vm1969, %v4560, 0.0
  %v4593 = vsel %vm1969, %v4561, 0.0
  %v4594 = vsel %vm1969, %v4562, 0.0
  %v4595 = vsel %vm1969, %v4563, 0.0
  %v4596 = vsel %vm1969, %v4564, 0.0
  %v4597 = vsel %vm1969, %v4565, 0.0
  %v4598 = vmul.f32 %v924, %v1584
  %v4599 = vmul.f32 %v927, %v1585
  %v4600 = vmul.f32 %v930, %v1586
  %v4601 = vmul.f32 %v933, %v1587
  %v4602 = vmul.f32 %v936, %v1588
  %v4603 = vmul.f32 %v939, %v1589
  %v4604 = vmul.f32 %v942, %v1590
  %v4605 = vmul.f32 %v945, %v1591
  %v4606 = vmul.f32 %v948, %v1592
  %v4607 = vmul.f32 %v951, %v1593
  %v4608 = vmul.f32 %v954, %v1594
  %v4609 = vmul.f32 %v957, %v1595
  %v4610 = vmul.f32 %v960, %v1596
  %v4611 = vmul.f32 %v963, %v1597
  %v4612 = vmul.f32 %v966, %v1598
  %v4613 = vmul.f32 %v969, %v1599
  %v4614 = vmul.f32 %v972, %v1600
  %v4615 = vmul.f32 %v975, %v1601
  %v4616 = vmul.f32 %v978, %v1602
  %v4617 = vmul.f32 %v981, %v1603
  %v4618 = vmul.f32 %v984, %v1604
  %v4619 = vmul.f32 %v987, %v1605
  %v4620 = vmul.f32 %v990, %v1606
  %v4621 = vmul.f32 %v993, %v1607
  %v4622 = vmul.f32 %v996, %v1608
  %v4623 = vmul.f32 %v999, %v1609
  %v4624 = vmul.f32 %v1002, %v1610
  %v4625 = vmul.f32 %v1005, %v1611
  %v4626 = vmul.f32 %v1008, %v1612
  %v4627 = vmul.f32 %v1011, %v1613
  %v4628 = vmul.f32 %v1014, %v1614
  %v4629 = vmul.f32 %v1017, %v1615
  %v4630 = vmul.f32 %v4566, %v1616
  %v4631 = vmul.f32 %v4567, %v1617
  %v4632 = vmul.f32 %v4568, %v1618
  %v4633 = vmul.f32 %v4569, %v1619
  %v4634 = vmul.f32 %v4570, %v1620
  %v4635 = vmul.f32 %v4571, %v1621
  %v4636 = vmul.f32 %v4572, %v1622
  %v4637 = vmul.f32 %v4573, %v1623
  %v4638 = vmul.f32 %v4574, %v1624
  %v4639 = vmul.f32 %v4575, %v1625
  %v4640 = vmul.f32 %v4576, %v1626
  %v4641 = vmul.f32 %v4577, %v1627
  %v4642 = vmul.f32 %v4578, %v1628
  %v4643 = vmul.f32 %v4579, %v1629
  %v4644 = vmul.f32 %v4580, %v1630
  %v4645 = vmul.f32 %v4581, %v1631
  %v4646 = vmul.f32 %v4582, %v1632
  %v4647 = vmul.f32 %v4583, %v1633
  %v4648 = vmul.f32 %v4584, %v1634
  %v4649 = vmul.f32 %v4585, %v1635
  %v4650 = vmul.f32 %v4586, %v1636
  %v4651 = vmul.f32 %v4587, %v1637
  %v4652 = vmul.f32 %v4588, %v1638
  %v4653 = vmul.f32 %v4589, %v1639
  %v4654 = vmul.f32 %v4590, %v1640
  %v4655 = vmul.f32 %v4591, %v1641
  %v4656 = vmul.f32 %v4592, %v1642
  %v4657 = vmul.f32 %v4593, %v1643
  %v4658 = vmul.f32 %v4594, %v1644
  %v4659 = vmul.f32 %v4595, %v1645
  %v4660 = vmul.f32 %v4596, %v1646
  %v4661 = vmul.f32 %v4597, %v1647
  %v4662 = vadd.f32 %v4598, %v4630
  %v4663 = vadd.f32 %v4599, %v4631
  %v4664 = vadd.f32 %v4600, %v4632
  %v4665 = vadd.f32 %v4601, %v4633
  %v4666 = vadd.f32 %v4602, %v4634
  %v4667 = vadd.f32 %v4603, %v4635
  %v4668 = vadd.f32 %v4604, %v4636
  %v4669 = vadd.f32 %v4605, %v4637
  %v4670 = vadd.f32 %v4606, %v4638
  %v4671 = vadd.f32 %v4607, %v4639
  %v4672 = vadd.f32 %v4608, %v4640
  %v4673 = vadd.f32 %v4609, %v4641
  %v4674 = vadd.f32 %v4610, %v4642
  %v4675 = vadd.f32 %v4611, %v4643
  %v4676 = vadd.f32 %v4612, %v4644
  %v4677 = vadd.f32 %v4613, %v4645
  %v4678 = vadd.f32 %v4614, %v4646
  %v4679 = vadd.f32 %v4615, %v4647
  %v4680 = vadd.f32 %v4616, %v4648
  %v4681 = vadd.f32 %v4617, %v4649
  %v4682 = vadd.f32 %v4618, %v4650
  %v4683 = vadd.f32 %v4619, %v4651
  %v4684 = vadd.f32 %v4620, %v4652
  %v4685 = vadd.f32 %v4621, %v4653
  %v4686 = vadd.f32 %v4622, %v4654
  %v4687 = vadd.f32 %v4623, %v4655
  %v4688 = vadd.f32 %v4624, %v4656
  %v4689 = vadd.f32 %v4625, %v4657
  %v4690 = vadd.f32 %v4626, %v4658
  %v4691 = vadd.f32 %v4627, %v4659
  %v4692 = vadd.f32 %v4628, %v4660
  %v4693 = vadd.f32 %v4629, %v4661
  %4694 = vxpose.xlu0.b32.start [1/16] %v4662, 128
  %4695 = vxpose.xlu0.b32.cont [2/16] %v4663, 128
  %4696 = vxpose.xlu0.b32.cont [3/16] %v4664, 128
  %4697 = vxpose.xlu0.b32.cont [4/16] %v4665, 128
  %4698 = vxpose.xlu0.b32.cont [5/16] %v4666, 128
  %4699 = vxpose.xlu0.b32.cont [6/16] %v4667, 128
  %4700 = vxpose.xlu0.b32.cont [7/16] %v4668, 128
  %4701 = vxpose.xlu0.b32.cont [8/16] %v4669, 128
  %4702 = vxpose.xlu0.b32.cont [9/16] %v4670, 128
  %4703 = vxpose.xlu0.b32.cont [10/16] %v4671, 128
  %4704 = vxpose.xlu0.b32.cont [11/16] %v4672, 128
  %4705 = vxpose.xlu0.b32.cont [12/16] %v4673, 128
  %4706 = vxpose.xlu0.b32.cont [13/16] %v4674, 128
  %4707 = vxpose.xlu0.b32.cont [14/16] %v4675, 128
  %4708 = vxpose.xlu0.b32.cont [15/16] %v4676, 128
  %4709 = vxpose.xlu0.b32.end [16/16] %v4677, 128
  %v4710 = vpop.trf.xlu0
  %v4711 = vpop.trf.xlu0
  %v4712 = vpop.trf.xlu0
  %v4713 = vpop.trf.xlu0
  %v4714 = vpop.trf.xlu0
  %v4715 = vpop.trf.xlu0
  %v4716 = vpop.trf.xlu0
  %v4717 = vpop.trf.xlu0
  %v4718 = vpop.trf.xlu0
  %v4719 = vpop.trf.xlu0
  %v4720 = vpop.trf.xlu0
  %v4721 = vpop.trf.xlu0
  %v4722 = vpop.trf.xlu0
  %v4723 = vpop.trf.xlu0
  %v4724 = vpop.trf.xlu0
  %v4725 = vpop.trf.xlu0
  %4726 = vxpose.xlu0.b32.start [1/16] %v4678, 128
  %4727 = vxpose.xlu0.b32.cont [2/16] %v4679, 128
  %4728 = vxpose.xlu0.b32.cont [3/16] %v4680, 128
  %4729 = vxpose.xlu0.b32.cont [4/16] %v4681, 128
  %4730 = vxpose.xlu0.b32.cont [5/16] %v4682, 128
  %4731 = vxpose.xlu0.b32.cont [6/16] %v4683, 128
  %4732 = vxpose.xlu0.b32.cont [7/16] %v4684, 128
  %4733 = vxpose.xlu0.b32.cont [8/16] %v4685, 128
  %4734 = vxpose.xlu0.b32.cont [9/16] %v4686, 128
  %4735 = vxpose.xlu0.b32.cont [10/16] %v4687, 128
  %4736 = vxpose.xlu0.b32.cont [11/16] %v4688, 128
  %4737 = vxpose.xlu0.b32.cont [12/16] %v4689, 128
  %4738 = vxpose.xlu0.b32.cont [13/16] %v4690, 128
  %4739 = vxpose.xlu0.b32.cont [14/16] %v4691, 128
  %4740 = vxpose.xlu0.b32.cont [15/16] %v4692, 128
  %4741 = vxpose.xlu0.b32.end [16/16] %v4693, 128
  %v4742 = vpop.trf.xlu0
  %v4743 = vpop.trf.xlu0
  %v4744 = vpop.trf.xlu0
  %v4745 = vpop.trf.xlu0
  %v4746 = vpop.trf.xlu0
  %v4747 = vpop.trf.xlu0
  %v4748 = vpop.trf.xlu0
  %v4749 = vpop.trf.xlu0
  %v4750 = vpop.trf.xlu0
  %v4751 = vpop.trf.xlu0
  %v4752 = vpop.trf.xlu0
  %v4753 = vpop.trf.xlu0
  %v4754 = vpop.trf.xlu0
  %v4755 = vpop.trf.xlu0
  %v4756 = vpop.trf.xlu0
  %v4757 = vpop.trf.xlu0
  %s4758 = scalar_lea.vmem %s6, 512
  %4759 = vst [vmem:[%s4758] sm:$0xff] %v4710
  %4760 = vst [vmem:[%s4758 + $0x8] sm:$0xff] %v4742
  %4761 = vst [vmem:[%s4758 + $0x10] sm:$0xff] %v4711
  %4762 = vst [vmem:[%s4758 + $0x18] sm:$0xff] %v4743
  %4763 = vst [vmem:[%s4758 + $0x20] sm:$0xff] %v4712
  %4764 = vst [vmem:[%s4758 + $0x28] sm:$0xff] %v4744
  %4765 = vst [vmem:[%s4758 + $0x30] sm:$0xff] %v4713
  %4766 = vst [vmem:[%s4758 + $0x38] sm:$0xff] %v4745
  %4767 = vst [vmem:[%s4758 + $0x40] sm:$0xff] %v4714
  %4768 = vst [vmem:[%s4758 + $0x48] sm:$0xff] %v4746
  %4769 = vst [vmem:[%s4758 + $0x50] sm:$0xff] %v4715
  %4770 = vst [vmem:[%s4758 + $0x58] sm:$0xff] %v4747
  %4771 = vst [vmem:[%s4758 + $0x60] sm:$0xff] %v4716
  %4772 = vst [vmem:[%s4758 + $0x68] sm:$0xff] %v4748
  %4773 = vst [vmem:[%s4758 + $0x70] sm:$0xff] %v4717
  %4774 = vst [vmem:[%s4758 + $0x78] sm:$0xff] %v4749
  %4775 = vst [vmem:[%s4758 + $0x80] sm:$0xff] %v4718
  %4776 = vst [vmem:[%s4758 + $0x88] sm:$0xff] %v4750
  %4777 = vst [vmem:[%s4758 + $0x90] sm:$0xff] %v4719
  %4778 = vst [vmem:[%s4758 + $0x98] sm:$0xff] %v4751
  %4779 = vst [vmem:[%s4758 + $0xa0] sm:$0xff] %v4720
  %4780 = vst [vmem:[%s4758 + $0xa8] sm:$0xff] %v4752
  %4781 = vst [vmem:[%s4758 + $0xb0] sm:$0xff] %v4721
  %4782 = vst [vmem:[%s4758 + $0xb8] sm:$0xff] %v4753
  %4783 = vst [vmem:[%s4758 + $0xc0] sm:$0xff] %v4722
  %4784 = vst [vmem:[%s4758 + $0xc8] sm:$0xff] %v4754
  %4785 = vst [vmem:[%s4758 + $0xd0] sm:$0xff] %v4723
  %4786 = vst [vmem:[%s4758 + $0xd8] sm:$0xff] %v4755
  %4787 = vst [vmem:[%s4758 + $0xe0] sm:$0xff] %v4724
  %4788 = vst [vmem:[%s4758 + $0xe8] sm:$0xff] %v4756
  %4789 = vst [vmem:[%s4758 + $0xf0] sm:$0xff] %v4725
  %4790 = vst [vmem:[%s4758 + $0xf8] sm:$0xff] %v4757
  %s4791 = scalar_lea.vmem %s7, 512
  %4792 = vst [vmem:[%s4791] sm:$0xff] %v1376
  %4793 = vst [vmem:[%s4791 + $0x8] sm:$0xff] %v1379
  %4794 = vst [vmem:[%s4791 + $0x10] sm:$0xff] %v1382
  %4795 = vst [vmem:[%s4791 + $0x18] sm:$0xff] %v1385
  %4796 = vst [vmem:[%s4791 + $0x20] sm:$0xff] %v1388
  %4797 = vst [vmem:[%s4791 + $0x28] sm:$0xff] %v1391
  %4798 = vst [vmem:[%s4791 + $0x30] sm:$0xff] %v1394
  %4799 = vst [vmem:[%s4791 + $0x38] sm:$0xff] %v1397
  %4800 = vst [vmem:[%s4791 + $0x40] sm:$0xff] %v1400
  %4801 = vst [vmem:[%s4791 + $0x48] sm:$0xff] %v1403
  %4802 = vst [vmem:[%s4791 + $0x50] sm:$0xff] %v1406
  %4803 = vst [vmem:[%s4791 + $0x58] sm:$0xff] %v1409
  %4804 = vst [vmem:[%s4791 + $0x60] sm:$0xff] %v1412
  %4805 = vst [vmem:[%s4791 + $0x68] sm:$0xff] %v1415
  %4806 = vst [vmem:[%s4791 + $0x70] sm:$0xff] %v1418
  %4807 = vst [vmem:[%s4791 + $0x78] sm:$0xff] %v1421
  %4808 = vst [vmem:[%s4791 + $0x80] sm:$0xff] %v1424
  %4809 = vst [vmem:[%s4791 + $0x88] sm:$0xff] %v1427
  %4810 = vst [vmem:[%s4791 + $0x90] sm:$0xff] %v1430
  %4811 = vst [vmem:[%s4791 + $0x98] sm:$0xff] %v1433
  %4812 = vst [vmem:[%s4791 + $0xa0] sm:$0xff] %v1436
  %4813 = vst [vmem:[%s4791 + $0xa8] sm:$0xff] %v1439
  %4814 = vst [vmem:[%s4791 + $0xb0] sm:$0xff] %v1442
  %4815 = vst [vmem:[%s4791 + $0xb8] sm:$0xff] %v1445
  %4816 = vst [vmem:[%s4791 + $0xc0] sm:$0xff] %v1448
  %4817 = vst [vmem:[%s4791 + $0xc8] sm:$0xff] %v1451
  %4818 = vst [vmem:[%s4791 + $0xd0] sm:$0xff] %v1454
  %4819 = vst [vmem:[%s4791 + $0xd8] sm:$0xff] %v1457
  %4820 = vst [vmem:[%s4791 + $0xe0] sm:$0xff] %v1460
  %4821 = vst [vmem:[%s4791 + $0xe8] sm:$0xff] %v1463
  %4822 = vst [vmem:[%s4791 + $0xf0] sm:$0xff] %v1466
  %4823 = vst [vmem:[%s4791 + $0xf8] sm:$0xff] %v1469
  %v4824 = vsub.f32 0.0, %v585
  %v4825 = vsub.f32 0.0, %v588
  %v4826 = vsub.f32 0.0, %v591
  %v4827 = vsub.f32 0.0, %v594
  %v4828 = vsub.f32 0.0, %v597
  %v4829 = vsub.f32 0.0, %v600
  %v4830 = vsub.f32 0.0, %v603
  %v4831 = vsub.f32 0.0, %v606
  %v4832 = vsub.f32 0.0, %v609
  %v4833 = vsub.f32 0.0, %v612
  %v4834 = vsub.f32 0.0, %v615
  %v4835 = vsub.f32 0.0, %v618
  %v4836 = vsub.f32 0.0, %v621
  %v4837 = vsub.f32 0.0, %v624
  %v4838 = vsub.f32 0.0, %v627
  %v4839 = vsub.f32 0.0, %v630
  %v4840 = vsub.f32 0.0, %v633
  %v4841 = vsub.f32 0.0, %v636
  %v4842 = vsub.f32 0.0, %v639
  %v4843 = vsub.f32 0.0, %v642
  %v4844 = vsub.f32 0.0, %v645
  %v4845 = vsub.f32 0.0, %v648
  %v4846 = vsub.f32 0.0, %v651
  %v4847 = vsub.f32 0.0, %v654
  %v4848 = vsub.f32 0.0, %v657
  %v4849 = vsub.f32 0.0, %v660
  %v4850 = vsub.f32 0.0, %v663
  %v4851 = vsub.f32 0.0, %v666
  %v4852 = vsub.f32 0.0, %v669
  %v4853 = vsub.f32 0.0, %v672
  %v4854 = vsub.f32 0.0, %v675
  %v4855 = vsub.f32 0.0, %v678
  %4888 = vrot.lane.b32.xlu0 %v4824, 124
  %v4889 = vpop.permute.xlu0 %4888
  %4890 = vrot.lane.b32.xlu0 %v4825, 124
  %v4891 = vpop.permute.xlu0 %4890
  %4892 = vrot.lane.b32.xlu0 %v4826, 124
  %v4893 = vpop.permute.xlu0 %4892
  %4894 = vrot.lane.b32.xlu0 %v4827, 124
  %v4895 = vpop.permute.xlu0 %4894
  %4896 = vrot.lane.b32.xlu0 %v4828, 124
  %v4897 = vpop.permute.xlu0 %4896
  %4898 = vrot.lane.b32.xlu0 %v4829, 124
  %v4899 = vpop.permute.xlu0 %4898
  %4900 = vrot.lane.b32.xlu0 %v4830, 124
  %v4901 = vpop.permute.xlu0 %4900
  %4902 = vrot.lane.b32.xlu0 %v4831, 124
  %v4903 = vpop.permute.xlu0 %4902
  %4904 = vrot.lane.b32.xlu0 %v4832, 124
  %v4905 = vpop.permute.xlu0 %4904
  %4906 = vrot.lane.b32.xlu0 %v4833, 124
  %v4907 = vpop.permute.xlu0 %4906
  %4908 = vrot.lane.b32.xlu0 %v4834, 124
  %v4909 = vpop.permute.xlu0 %4908
  %4910 = vrot.lane.b32.xlu0 %v4835, 124
  %v4911 = vpop.permute.xlu0 %4910
  %4912 = vrot.lane.b32.xlu0 %v4836, 124
  %v4913 = vpop.permute.xlu0 %4912
  %4914 = vrot.lane.b32.xlu0 %v4837, 124
  %v4915 = vpop.permute.xlu0 %4914
  %4916 = vrot.lane.b32.xlu0 %v4838, 124
  %v4917 = vpop.permute.xlu0 %4916
  %4918 = vrot.lane.b32.xlu0 %v4839, 124
  %v4919 = vpop.permute.xlu0 %4918
  %4920 = vrot.lane.b32.xlu0 %v4840, 124
  %v4921 = vpop.permute.xlu0 %4920
  %4922 = vrot.lane.b32.xlu0 %v4841, 124
  %v4923 = vpop.permute.xlu0 %4922
  %4924 = vrot.lane.b32.xlu0 %v4842, 124
  %v4925 = vpop.permute.xlu0 %4924
  %4926 = vrot.lane.b32.xlu0 %v4843, 124
  %v4927 = vpop.permute.xlu0 %4926
  %4928 = vrot.lane.b32.xlu0 %v4844, 124
  %v4929 = vpop.permute.xlu0 %4928
  %4930 = vrot.lane.b32.xlu0 %v4845, 124
  %v4931 = vpop.permute.xlu0 %4930
  %4932 = vrot.lane.b32.xlu0 %v4846, 124
  %v4933 = vpop.permute.xlu0 %4932
  %4934 = vrot.lane.b32.xlu0 %v4847, 124
  %v4935 = vpop.permute.xlu0 %4934
  %4936 = vrot.lane.b32.xlu0 %v4848, 124
  %v4937 = vpop.permute.xlu0 %4936
  %4938 = vrot.lane.b32.xlu0 %v4849, 124
  %v4939 = vpop.permute.xlu0 %4938
  %4940 = vrot.lane.b32.xlu0 %v4850, 124
  %v4941 = vpop.permute.xlu0 %4940
  %4942 = vrot.lane.b32.xlu0 %v4851, 124
  %v4943 = vpop.permute.xlu0 %4942
  %4944 = vrot.lane.b32.xlu0 %v4852, 124
  %v4945 = vpop.permute.xlu0 %4944
  %4946 = vrot.lane.b32.xlu0 %v4853, 124
  %v4947 = vpop.permute.xlu0 %4946
  %4948 = vrot.lane.b32.xlu0 %v4854, 124
  %v4949 = vpop.permute.xlu0 %4948
  %4950 = vrot.lane.b32.xlu0 %v4855, 124
  %v4951 = vpop.permute.xlu0 %4950
  %5016 = vrot.lane.b32.xlu0 %v585, 4
  %v5017 = vpop.permute.xlu0 %5016
  %5018 = vrot.lane.b32.xlu0 %v588, 4
  %v5019 = vpop.permute.xlu0 %5018
  %5020 = vrot.lane.b32.xlu0 %v591, 4
  %v5021 = vpop.permute.xlu0 %5020
  %5022 = vrot.lane.b32.xlu0 %v594, 4
  %v5023 = vpop.permute.xlu0 %5022
  %5024 = vrot.lane.b32.xlu0 %v597, 4
  %v5025 = vpop.permute.xlu0 %5024
  %5026 = vrot.lane.b32.xlu0 %v600, 4
  %v5027 = vpop.permute.xlu0 %5026
  %5028 = vrot.lane.b32.xlu0 %v603, 4
  %v5029 = vpop.permute.xlu0 %5028
  %5030 = vrot.lane.b32.xlu0 %v606, 4
  %v5031 = vpop.permute.xlu0 %5030
  %5032 = vrot.lane.b32.xlu0 %v609, 4
  %v5033 = vpop.permute.xlu0 %5032
  %5034 = vrot.lane.b32.xlu0 %v612, 4
  %v5035 = vpop.permute.xlu0 %5034
  %5036 = vrot.lane.b32.xlu0 %v615, 4
  %v5037 = vpop.permute.xlu0 %5036
  %5038 = vrot.lane.b32.xlu0 %v618, 4
  %v5039 = vpop.permute.xlu0 %5038
  %5040 = vrot.lane.b32.xlu0 %v621, 4
  %v5041 = vpop.permute.xlu0 %5040
  %5042 = vrot.lane.b32.xlu0 %v624, 4
  %v5043 = vpop.permute.xlu0 %5042
  %5044 = vrot.lane.b32.xlu0 %v627, 4
  %v5045 = vpop.permute.xlu0 %5044
  %5046 = vrot.lane.b32.xlu0 %v630, 4
  %v5047 = vpop.permute.xlu0 %5046
  %5048 = vrot.lane.b32.xlu0 %v633, 4
  %v5049 = vpop.permute.xlu0 %5048
  %5050 = vrot.lane.b32.xlu0 %v636, 4
  %v5051 = vpop.permute.xlu0 %5050
  %5052 = vrot.lane.b32.xlu0 %v639, 4
  %v5053 = vpop.permute.xlu0 %5052
  %5054 = vrot.lane.b32.xlu0 %v642, 4
  %v5055 = vpop.permute.xlu0 %5054
  %5056 = vrot.lane.b32.xlu0 %v645, 4
  %v5057 = vpop.permute.xlu0 %5056
  %5058 = vrot.lane.b32.xlu0 %v648, 4
  %v5059 = vpop.permute.xlu0 %5058
  %5060 = vrot.lane.b32.xlu0 %v651, 4
  %v5061 = vpop.permute.xlu0 %5060
  %5062 = vrot.lane.b32.xlu0 %v654, 4
  %v5063 = vpop.permute.xlu0 %5062
  %5064 = vrot.lane.b32.xlu0 %v657, 4
  %v5065 = vpop.permute.xlu0 %5064
  %5066 = vrot.lane.b32.xlu0 %v660, 4
  %v5067 = vpop.permute.xlu0 %5066
  %5068 = vrot.lane.b32.xlu0 %v663, 4
  %v5069 = vpop.permute.xlu0 %5068
  %5070 = vrot.lane.b32.xlu0 %v666, 4
  %v5071 = vpop.permute.xlu0 %5070
  %5072 = vrot.lane.b32.xlu0 %v669, 4
  %v5073 = vpop.permute.xlu0 %5072
  %5074 = vrot.lane.b32.xlu0 %v672, 4
  %v5075 = vpop.permute.xlu0 %5074
  %5076 = vrot.lane.b32.xlu0 %v675, 4
  %v5077 = vpop.permute.xlu0 %5076
  %5078 = vrot.lane.b32.xlu0 %v678, 4
  %v5079 = vpop.permute.xlu0 %5078
  %v5112 = vsel %vm1936, %v4889, %v5017
  %v5113 = vsel %vm1936, %v4891, %v5019
  %v5114 = vsel %vm1936, %v4893, %v5021
  %v5115 = vsel %vm1936, %v4895, %v5023
  %v5116 = vsel %vm1936, %v4897, %v5025
  %v5117 = vsel %vm1936, %v4899, %v5027
  %v5118 = vsel %vm1936, %v4901, %v5029
  %v5119 = vsel %vm1936, %v4903, %v5031
  %v5120 = vsel %vm1936, %v4905, %v5033
  %v5121 = vsel %vm1936, %v4907, %v5035
  %v5122 = vsel %vm1936, %v4909, %v5037
  %v5123 = vsel %vm1936, %v4911, %v5039
  %v5124 = vsel %vm1936, %v4913, %v5041
  %v5125 = vsel %vm1936, %v4915, %v5043
  %v5126 = vsel %vm1936, %v4917, %v5045
  %v5127 = vsel %vm1936, %v4919, %v5047
  %v5128 = vsel %vm1936, %v4921, %v5049
  %v5129 = vsel %vm1936, %v4923, %v5051
  %v5130 = vsel %vm1936, %v4925, %v5053
  %v5131 = vsel %vm1936, %v4927, %v5055
  %v5132 = vsel %vm1936, %v4929, %v5057
  %v5133 = vsel %vm1936, %v4931, %v5059
  %v5134 = vsel %vm1936, %v4933, %v5061
  %v5135 = vsel %vm1936, %v4935, %v5063
  %v5136 = vsel %vm1936, %v4937, %v5065
  %v5137 = vsel %vm1936, %v4939, %v5067
  %v5138 = vsel %vm1936, %v4941, %v5069
  %v5139 = vsel %vm1936, %v4943, %v5071
  %v5140 = vsel %vm1936, %v4945, %v5073
  %v5141 = vsel %vm1936, %v4947, %v5075
  %v5142 = vsel %vm1936, %v4949, %v5077
  %v5143 = vsel %vm1936, %v4951, %v5079
  %v5144 = vsel %vm1969, %v5112, 0.0
  %v5145 = vsel %vm1969, %v5113, 0.0
  %v5146 = vsel %vm1969, %v5114, 0.0
  %v5147 = vsel %vm1969, %v5115, 0.0
  %v5148 = vsel %vm1969, %v5116, 0.0
  %v5149 = vsel %vm1969, %v5117, 0.0
  %v5150 = vsel %vm1969, %v5118, 0.0
  %v5151 = vsel %vm1969, %v5119, 0.0
  %v5152 = vsel %vm1969, %v5120, 0.0
  %v5153 = vsel %vm1969, %v5121, 0.0
  %v5154 = vsel %vm1969, %v5122, 0.0
  %v5155 = vsel %vm1969, %v5123, 0.0
  %v5156 = vsel %vm1969, %v5124, 0.0
  %v5157 = vsel %vm1969, %v5125, 0.0
  %v5158 = vsel %vm1969, %v5126, 0.0
  %v5159 = vsel %vm1969, %v5127, 0.0
  %v5160 = vsel %vm1969, %v5128, 0.0
  %v5161 = vsel %vm1969, %v5129, 0.0
  %v5162 = vsel %vm1969, %v5130, 0.0
  %v5163 = vsel %vm1969, %v5131, 0.0
  %v5164 = vsel %vm1969, %v5132, 0.0
  %v5165 = vsel %vm1969, %v5133, 0.0
  %v5166 = vsel %vm1969, %v5134, 0.0
  %v5167 = vsel %vm1969, %v5135, 0.0
  %v5168 = vsel %vm1969, %v5136, 0.0
  %v5169 = vsel %vm1969, %v5137, 0.0
  %v5170 = vsel %vm1969, %v5138, 0.0
  %v5171 = vsel %vm1969, %v5139, 0.0
  %v5172 = vsel %vm1969, %v5140, 0.0
  %v5173 = vsel %vm1969, %v5141, 0.0
  %v5174 = vsel %vm1969, %v5142, 0.0
  %v5175 = vsel %vm1969, %v5143, 0.0
  %v5176 = vmul.f32 %v585, %v1584
  %v5177 = vmul.f32 %v588, %v1585
  %v5178 = vmul.f32 %v591, %v1586
  %v5179 = vmul.f32 %v594, %v1587
  %v5180 = vmul.f32 %v597, %v1588
  %v5181 = vmul.f32 %v600, %v1589
  %v5182 = vmul.f32 %v603, %v1590
  %v5183 = vmul.f32 %v606, %v1591
  %v5184 = vmul.f32 %v609, %v1592
  %v5185 = vmul.f32 %v612, %v1593
  %v5186 = vmul.f32 %v615, %v1594
  %v5187 = vmul.f32 %v618, %v1595
  %v5188 = vmul.f32 %v621, %v1596
  %v5189 = vmul.f32 %v624, %v1597
  %v5190 = vmul.f32 %v627, %v1598
  %v5191 = vmul.f32 %v630, %v1599
  %v5192 = vmul.f32 %v633, %v1600
  %v5193 = vmul.f32 %v636, %v1601
  %v5194 = vmul.f32 %v639, %v1602
  %v5195 = vmul.f32 %v642, %v1603
  %v5196 = vmul.f32 %v645, %v1604
  %v5197 = vmul.f32 %v648, %v1605
  %v5198 = vmul.f32 %v651, %v1606
  %v5199 = vmul.f32 %v654, %v1607
  %v5200 = vmul.f32 %v657, %v1608
  %v5201 = vmul.f32 %v660, %v1609
  %v5202 = vmul.f32 %v663, %v1610
  %v5203 = vmul.f32 %v666, %v1611
  %v5204 = vmul.f32 %v669, %v1612
  %v5205 = vmul.f32 %v672, %v1613
  %v5206 = vmul.f32 %v675, %v1614
  %v5207 = vmul.f32 %v678, %v1615
  %v5208 = vmul.f32 %v5144, %v1616
  %v5209 = vmul.f32 %v5145, %v1617
  %v5210 = vmul.f32 %v5146, %v1618
  %v5211 = vmul.f32 %v5147, %v1619
  %v5212 = vmul.f32 %v5148, %v1620
  %v5213 = vmul.f32 %v5149, %v1621
  %v5214 = vmul.f32 %v5150, %v1622
  %v5215 = vmul.f32 %v5151, %v1623
  %v5216 = vmul.f32 %v5152, %v1624
  %v5217 = vmul.f32 %v5153, %v1625
  %v5218 = vmul.f32 %v5154, %v1626
  %v5219 = vmul.f32 %v5155, %v1627
  %v5220 = vmul.f32 %v5156, %v1628
  %v5221 = vmul.f32 %v5157, %v1629
  %v5222 = vmul.f32 %v5158, %v1630
  %v5223 = vmul.f32 %v5159, %v1631
  %v5224 = vmul.f32 %v5160, %v1632
  %v5225 = vmul.f32 %v5161, %v1633
  %v5226 = vmul.f32 %v5162, %v1634
  %v5227 = vmul.f32 %v5163, %v1635
  %v5228 = vmul.f32 %v5164, %v1636
  %v5229 = vmul.f32 %v5165, %v1637
  %v5230 = vmul.f32 %v5166, %v1638
  %v5231 = vmul.f32 %v5167, %v1639
  %v5232 = vmul.f32 %v5168, %v1640
  %v5233 = vmul.f32 %v5169, %v1641
  %v5234 = vmul.f32 %v5170, %v1642
  %v5235 = vmul.f32 %v5171, %v1643
  %v5236 = vmul.f32 %v5172, %v1644
  %v5237 = vmul.f32 %v5173, %v1645
  %v5238 = vmul.f32 %v5174, %v1646
  %v5239 = vmul.f32 %v5175, %v1647
  %v5240 = vadd.f32 %v5176, %v5208
  %v5241 = vadd.f32 %v5177, %v5209
  %v5242 = vadd.f32 %v5178, %v5210
  %v5243 = vadd.f32 %v5179, %v5211
  %v5244 = vadd.f32 %v5180, %v5212
  %v5245 = vadd.f32 %v5181, %v5213
  %v5246 = vadd.f32 %v5182, %v5214
  %v5247 = vadd.f32 %v5183, %v5215
  %v5248 = vadd.f32 %v5184, %v5216
  %v5249 = vadd.f32 %v5185, %v5217
  %v5250 = vadd.f32 %v5186, %v5218
  %v5251 = vadd.f32 %v5187, %v5219
  %v5252 = vadd.f32 %v5188, %v5220
  %v5253 = vadd.f32 %v5189, %v5221
  %v5254 = vadd.f32 %v5190, %v5222
  %v5255 = vadd.f32 %v5191, %v5223
  %v5256 = vadd.f32 %v5192, %v5224
  %v5257 = vadd.f32 %v5193, %v5225
  %v5258 = vadd.f32 %v5194, %v5226
  %v5259 = vadd.f32 %v5195, %v5227
  %v5260 = vadd.f32 %v5196, %v5228
  %v5261 = vadd.f32 %v5197, %v5229
  %v5262 = vadd.f32 %v5198, %v5230
  %v5263 = vadd.f32 %v5199, %v5231
  %v5264 = vadd.f32 %v5200, %v5232
  %v5265 = vadd.f32 %v5201, %v5233
  %v5266 = vadd.f32 %v5202, %v5234
  %v5267 = vadd.f32 %v5203, %v5235
  %v5268 = vadd.f32 %v5204, %v5236
  %v5269 = vadd.f32 %v5205, %v5237
  %v5270 = vadd.f32 %v5206, %v5238
  %v5271 = vadd.f32 %v5207, %v5239
  %s5272 = scalar_lea.vmem %s5, 768
  %5273 = vst [vmem:[%s5272] sm:$0xff] %v5240
  %5274 = vst [vmem:[%s5272 + $0x8] sm:$0xff] %v5241
  %5275 = vst [vmem:[%s5272 + $0x10] sm:$0xff] %v5242
  %5276 = vst [vmem:[%s5272 + $0x18] sm:$0xff] %v5243
  %5277 = vst [vmem:[%s5272 + $0x20] sm:$0xff] %v5244
  %5278 = vst [vmem:[%s5272 + $0x28] sm:$0xff] %v5245
  %5279 = vst [vmem:[%s5272 + $0x30] sm:$0xff] %v5246
  %5280 = vst [vmem:[%s5272 + $0x38] sm:$0xff] %v5247
  %5281 = vst [vmem:[%s5272 + $0x40] sm:$0xff] %v5248
  %5282 = vst [vmem:[%s5272 + $0x48] sm:$0xff] %v5249
  %5283 = vst [vmem:[%s5272 + $0x50] sm:$0xff] %v5250
  %5284 = vst [vmem:[%s5272 + $0x58] sm:$0xff] %v5251
  %5285 = vst [vmem:[%s5272 + $0x60] sm:$0xff] %v5252
  %5286 = vst [vmem:[%s5272 + $0x68] sm:$0xff] %v5253
  %5287 = vst [vmem:[%s5272 + $0x70] sm:$0xff] %v5254
  %5288 = vst [vmem:[%s5272 + $0x78] sm:$0xff] %v5255
  %5289 = vst [vmem:[%s5272 + $0x80] sm:$0xff] %v5256
  %5290 = vst [vmem:[%s5272 + $0x88] sm:$0xff] %v5257
  %5291 = vst [vmem:[%s5272 + $0x90] sm:$0xff] %v5258
  %5292 = vst [vmem:[%s5272 + $0x98] sm:$0xff] %v5259
  %5293 = vst [vmem:[%s5272 + $0xa0] sm:$0xff] %v5260
  %5294 = vst [vmem:[%s5272 + $0xa8] sm:$0xff] %v5261
  %5295 = vst [vmem:[%s5272 + $0xb0] sm:$0xff] %v5262
  %5296 = vst [vmem:[%s5272 + $0xb8] sm:$0xff] %v5263
  %5297 = vst [vmem:[%s5272 + $0xc0] sm:$0xff] %v5264
  %5298 = vst [vmem:[%s5272 + $0xc8] sm:$0xff] %v5265
  %5299 = vst [vmem:[%s5272 + $0xd0] sm:$0xff] %v5266
  %5300 = vst [vmem:[%s5272 + $0xd8] sm:$0xff] %v5267
  %5301 = vst [vmem:[%s5272 + $0xe0] sm:$0xff] %v5268
  %5302 = vst [vmem:[%s5272 + $0xe8] sm:$0xff] %v5269
  %5303 = vst [vmem:[%s5272 + $0xf0] sm:$0xff] %v5270
  %5304 = vst [vmem:[%s5272 + $0xf8] sm:$0xff] %v5271
  %v5305 = vsub.f32 0.0, %v1037
  %v5306 = vsub.f32 0.0, %v1040
  %v5307 = vsub.f32 0.0, %v1043
  %v5308 = vsub.f32 0.0, %v1046
  %v5309 = vsub.f32 0.0, %v1049
  %v5310 = vsub.f32 0.0, %v1052
  %v5311 = vsub.f32 0.0, %v1055
  %v5312 = vsub.f32 0.0, %v1058
  %v5313 = vsub.f32 0.0, %v1061
  %v5314 = vsub.f32 0.0, %v1064
  %v5315 = vsub.f32 0.0, %v1067
  %v5316 = vsub.f32 0.0, %v1070
  %v5317 = vsub.f32 0.0, %v1073
  %v5318 = vsub.f32 0.0, %v1076
  %v5319 = vsub.f32 0.0, %v1079
  %v5320 = vsub.f32 0.0, %v1082
  %v5321 = vsub.f32 0.0, %v1085
  %v5322 = vsub.f32 0.0, %v1088
  %v5323 = vsub.f32 0.0, %v1091
  %v5324 = vsub.f32 0.0, %v1094
  %v5325 = vsub.f32 0.0, %v1097
  %v5326 = vsub.f32 0.0, %v1100
  %v5327 = vsub.f32 0.0, %v1103
  %v5328 = vsub.f32 0.0, %v1106
  %v5329 = vsub.f32 0.0, %v1109
  %v5330 = vsub.f32 0.0, %v1112
  %v5331 = vsub.f32 0.0, %v1115
  %v5332 = vsub.f32 0.0, %v1118
  %v5333 = vsub.f32 0.0, %v1121
  %v5334 = vsub.f32 0.0, %v1124
  %v5335 = vsub.f32 0.0, %v1127
  %v5336 = vsub.f32 0.0, %v1130
  %5369 = vrot.lane.b32.xlu0 %v5305, 124
  %v5370 = vpop.permute.xlu0 %5369
  %5371 = vrot.lane.b32.xlu0 %v5306, 124
  %v5372 = vpop.permute.xlu0 %5371
  %5373 = vrot.lane.b32.xlu0 %v5307, 124
  %v5374 = vpop.permute.xlu0 %5373
  %5375 = vrot.lane.b32.xlu0 %v5308, 124
  %v5376 = vpop.permute.xlu0 %5375
  %5377 = vrot.lane.b32.xlu0 %v5309, 124
  %v5378 = vpop.permute.xlu0 %5377
  %5379 = vrot.lane.b32.xlu0 %v5310, 124
  %v5380 = vpop.permute.xlu0 %5379
  %5381 = vrot.lane.b32.xlu0 %v5311, 124
  %v5382 = vpop.permute.xlu0 %5381
  %5383 = vrot.lane.b32.xlu0 %v5312, 124
  %v5384 = vpop.permute.xlu0 %5383
  %5385 = vrot.lane.b32.xlu0 %v5313, 124
  %v5386 = vpop.permute.xlu0 %5385
  %5387 = vrot.lane.b32.xlu0 %v5314, 124
  %v5388 = vpop.permute.xlu0 %5387
  %5389 = vrot.lane.b32.xlu0 %v5315, 124
  %v5390 = vpop.permute.xlu0 %5389
  %5391 = vrot.lane.b32.xlu0 %v5316, 124
  %v5392 = vpop.permute.xlu0 %5391
  %5393 = vrot.lane.b32.xlu0 %v5317, 124
  %v5394 = vpop.permute.xlu0 %5393
  %5395 = vrot.lane.b32.xlu0 %v5318, 124
  %v5396 = vpop.permute.xlu0 %5395
  %5397 = vrot.lane.b32.xlu0 %v5319, 124
  %v5398 = vpop.permute.xlu0 %5397
  %5399 = vrot.lane.b32.xlu0 %v5320, 124
  %v5400 = vpop.permute.xlu0 %5399
  %5401 = vrot.lane.b32.xlu0 %v5321, 124
  %v5402 = vpop.permute.xlu0 %5401
  %5403 = vrot.lane.b32.xlu0 %v5322, 124
  %v5404 = vpop.permute.xlu0 %5403
  %5405 = vrot.lane.b32.xlu0 %v5323, 124
  %v5406 = vpop.permute.xlu0 %5405
  %5407 = vrot.lane.b32.xlu0 %v5324, 124
  %v5408 = vpop.permute.xlu0 %5407
  %5409 = vrot.lane.b32.xlu0 %v5325, 124
  %v5410 = vpop.permute.xlu0 %5409
  %5411 = vrot.lane.b32.xlu0 %v5326, 124
  %v5412 = vpop.permute.xlu0 %5411
  %5413 = vrot.lane.b32.xlu0 %v5327, 124
  %v5414 = vpop.permute.xlu0 %5413
  %5415 = vrot.lane.b32.xlu0 %v5328, 124
  %v5416 = vpop.permute.xlu0 %5415
  %5417 = vrot.lane.b32.xlu0 %v5329, 124
  %v5418 = vpop.permute.xlu0 %5417
  %5419 = vrot.lane.b32.xlu0 %v5330, 124
  %v5420 = vpop.permute.xlu0 %5419
  %5421 = vrot.lane.b32.xlu0 %v5331, 124
  %v5422 = vpop.permute.xlu0 %5421
  %5423 = vrot.lane.b32.xlu0 %v5332, 124
  %v5424 = vpop.permute.xlu0 %5423
  %5425 = vrot.lane.b32.xlu0 %v5333, 124
  %v5426 = vpop.permute.xlu0 %5425
  %5427 = vrot.lane.b32.xlu0 %v5334, 124
  %v5428 = vpop.permute.xlu0 %5427
  %5429 = vrot.lane.b32.xlu0 %v5335, 124
  %v5430 = vpop.permute.xlu0 %5429
  %5431 = vrot.lane.b32.xlu0 %v5336, 124
  %v5432 = vpop.permute.xlu0 %5431
  %5497 = vrot.lane.b32.xlu0 %v1037, 4
  %v5498 = vpop.permute.xlu0 %5497
  %5499 = vrot.lane.b32.xlu0 %v1040, 4
  %v5500 = vpop.permute.xlu0 %5499
  %5501 = vrot.lane.b32.xlu0 %v1043, 4
  %v5502 = vpop.permute.xlu0 %5501
  %5503 = vrot.lane.b32.xlu0 %v1046, 4
  %v5504 = vpop.permute.xlu0 %5503
  %5505 = vrot.lane.b32.xlu0 %v1049, 4
  %v5506 = vpop.permute.xlu0 %5505
  %5507 = vrot.lane.b32.xlu0 %v1052, 4
  %v5508 = vpop.permute.xlu0 %5507
  %5509 = vrot.lane.b32.xlu0 %v1055, 4
  %v5510 = vpop.permute.xlu0 %5509
  %5511 = vrot.lane.b32.xlu0 %v1058, 4
  %v5512 = vpop.permute.xlu0 %5511
  %5513 = vrot.lane.b32.xlu0 %v1061, 4
  %v5514 = vpop.permute.xlu0 %5513
  %5515 = vrot.lane.b32.xlu0 %v1064, 4
  %v5516 = vpop.permute.xlu0 %5515
  %5517 = vrot.lane.b32.xlu0 %v1067, 4
  %v5518 = vpop.permute.xlu0 %5517
  %5519 = vrot.lane.b32.xlu0 %v1070, 4
  %v5520 = vpop.permute.xlu0 %5519
  %5521 = vrot.lane.b32.xlu0 %v1073, 4
  %v5522 = vpop.permute.xlu0 %5521
  %5523 = vrot.lane.b32.xlu0 %v1076, 4
  %v5524 = vpop.permute.xlu0 %5523
  %5525 = vrot.lane.b32.xlu0 %v1079, 4
  %v5526 = vpop.permute.xlu0 %5525
  %5527 = vrot.lane.b32.xlu0 %v1082, 4
  %v5528 = vpop.permute.xlu0 %5527
  %5529 = vrot.lane.b32.xlu0 %v1085, 4
  %v5530 = vpop.permute.xlu0 %5529
  %5531 = vrot.lane.b32.xlu0 %v1088, 4
  %v5532 = vpop.permute.xlu0 %5531
  %5533 = vrot.lane.b32.xlu0 %v1091, 4
  %v5534 = vpop.permute.xlu0 %5533
  %5535 = vrot.lane.b32.xlu0 %v1094, 4
  %v5536 = vpop.permute.xlu0 %5535
  %5537 = vrot.lane.b32.xlu0 %v1097, 4
  %v5538 = vpop.permute.xlu0 %5537
  %5539 = vrot.lane.b32.xlu0 %v1100, 4
  %v5540 = vpop.permute.xlu0 %5539
  %5541 = vrot.lane.b32.xlu0 %v1103, 4
  %v5542 = vpop.permute.xlu0 %5541
  %5543 = vrot.lane.b32.xlu0 %v1106, 4
  %v5544 = vpop.permute.xlu0 %5543
  %5545 = vrot.lane.b32.xlu0 %v1109, 4
  %v5546 = vpop.permute.xlu0 %5545
  %5547 = vrot.lane.b32.xlu0 %v1112, 4
  %v5548 = vpop.permute.xlu0 %5547
  %5549 = vrot.lane.b32.xlu0 %v1115, 4
  %v5550 = vpop.permute.xlu0 %5549
  %5551 = vrot.lane.b32.xlu0 %v1118, 4
  %v5552 = vpop.permute.xlu0 %5551
  %5553 = vrot.lane.b32.xlu0 %v1121, 4
  %v5554 = vpop.permute.xlu0 %5553
  %5555 = vrot.lane.b32.xlu0 %v1124, 4
  %v5556 = vpop.permute.xlu0 %5555
  %5557 = vrot.lane.b32.xlu0 %v1127, 4
  %v5558 = vpop.permute.xlu0 %5557
  %5559 = vrot.lane.b32.xlu0 %v1130, 4
  %v5560 = vpop.permute.xlu0 %5559
  %v5593 = vsel %vm1936, %v5370, %v5498
  %v5594 = vsel %vm1936, %v5372, %v5500
  %v5595 = vsel %vm1936, %v5374, %v5502
  %v5596 = vsel %vm1936, %v5376, %v5504
  %v5597 = vsel %vm1936, %v5378, %v5506
  %v5598 = vsel %vm1936, %v5380, %v5508
  %v5599 = vsel %vm1936, %v5382, %v5510
  %v5600 = vsel %vm1936, %v5384, %v5512
  %v5601 = vsel %vm1936, %v5386, %v5514
  %v5602 = vsel %vm1936, %v5388, %v5516
  %v5603 = vsel %vm1936, %v5390, %v5518
  %v5604 = vsel %vm1936, %v5392, %v5520
  %v5605 = vsel %vm1936, %v5394, %v5522
  %v5606 = vsel %vm1936, %v5396, %v5524
  %v5607 = vsel %vm1936, %v5398, %v5526
  %v5608 = vsel %vm1936, %v5400, %v5528
  %v5609 = vsel %vm1936, %v5402, %v5530
  %v5610 = vsel %vm1936, %v5404, %v5532
  %v5611 = vsel %vm1936, %v5406, %v5534
  %v5612 = vsel %vm1936, %v5408, %v5536
  %v5613 = vsel %vm1936, %v5410, %v5538
  %v5614 = vsel %vm1936, %v5412, %v5540
  %v5615 = vsel %vm1936, %v5414, %v5542
  %v5616 = vsel %vm1936, %v5416, %v5544
  %v5617 = vsel %vm1936, %v5418, %v5546
  %v5618 = vsel %vm1936, %v5420, %v5548
  %v5619 = vsel %vm1936, %v5422, %v5550
  %v5620 = vsel %vm1936, %v5424, %v5552
  %v5621 = vsel %vm1936, %v5426, %v5554
  %v5622 = vsel %vm1936, %v5428, %v5556
  %v5623 = vsel %vm1936, %v5430, %v5558
  %v5624 = vsel %vm1936, %v5432, %v5560
  %v5625 = vsel %vm1969, %v5593, 0.0
  %v5626 = vsel %vm1969, %v5594, 0.0
  %v5627 = vsel %vm1969, %v5595, 0.0
  %v5628 = vsel %vm1969, %v5596, 0.0
  %v5629 = vsel %vm1969, %v5597, 0.0
  %v5630 = vsel %vm1969, %v5598, 0.0
  %v5631 = vsel %vm1969, %v5599, 0.0
  %v5632 = vsel %vm1969, %v5600, 0.0
  %v5633 = vsel %vm1969, %v5601, 0.0
  %v5634 = vsel %vm1969, %v5602, 0.0
  %v5635 = vsel %vm1969, %v5603, 0.0
  %v5636 = vsel %vm1969, %v5604, 0.0
  %v5637 = vsel %vm1969, %v5605, 0.0
  %v5638 = vsel %vm1969, %v5606, 0.0
  %v5639 = vsel %vm1969, %v5607, 0.0
  %v5640 = vsel %vm1969, %v5608, 0.0
  %v5641 = vsel %vm1969, %v5609, 0.0
  %v5642 = vsel %vm1969, %v5610, 0.0
  %v5643 = vsel %vm1969, %v5611, 0.0
  %v5644 = vsel %vm1969, %v5612, 0.0
  %v5645 = vsel %vm1969, %v5613, 0.0
  %v5646 = vsel %vm1969, %v5614, 0.0
  %v5647 = vsel %vm1969, %v5615, 0.0
  %v5648 = vsel %vm1969, %v5616, 0.0
  %v5649 = vsel %vm1969, %v5617, 0.0
  %v5650 = vsel %vm1969, %v5618, 0.0
  %v5651 = vsel %vm1969, %v5619, 0.0
  %v5652 = vsel %vm1969, %v5620, 0.0
  %v5653 = vsel %vm1969, %v5621, 0.0
  %v5654 = vsel %vm1969, %v5622, 0.0
  %v5655 = vsel %vm1969, %v5623, 0.0
  %v5656 = vsel %vm1969, %v5624, 0.0
  %v5657 = vmul.f32 %v1037, %v1584
  %v5658 = vmul.f32 %v1040, %v1585
  %v5659 = vmul.f32 %v1043, %v1586
  %v5660 = vmul.f32 %v1046, %v1587
  %v5661 = vmul.f32 %v1049, %v1588
  %v5662 = vmul.f32 %v1052, %v1589
  %v5663 = vmul.f32 %v1055, %v1590
  %v5664 = vmul.f32 %v1058, %v1591
  %v5665 = vmul.f32 %v1061, %v1592
  %v5666 = vmul.f32 %v1064, %v1593
  %v5667 = vmul.f32 %v1067, %v1594
  %v5668 = vmul.f32 %v1070, %v1595
  %v5669 = vmul.f32 %v1073, %v1596
  %v5670 = vmul.f32 %v1076, %v1597
  %v5671 = vmul.f32 %v1079, %v1598
  %v5672 = vmul.f32 %v1082, %v1599
  %v5673 = vmul.f32 %v1085, %v1600
  %v5674 = vmul.f32 %v1088, %v1601
  %v5675 = vmul.f32 %v1091, %v1602
  %v5676 = vmul.f32 %v1094, %v1603
  %v5677 = vmul.f32 %v1097, %v1604
  %v5678 = vmul.f32 %v1100, %v1605
  %v5679 = vmul.f32 %v1103, %v1606
  %v5680 = vmul.f32 %v1106, %v1607
  %v5681 = vmul.f32 %v1109, %v1608
  %v5682 = vmul.f32 %v1112, %v1609
  %v5683 = vmul.f32 %v1115, %v1610
  %v5684 = vmul.f32 %v1118, %v1611
  %v5685 = vmul.f32 %v1121, %v1612
  %v5686 = vmul.f32 %v1124, %v1613
  %v5687 = vmul.f32 %v1127, %v1614
  %v5688 = vmul.f32 %v1130, %v1615
  %v5689 = vmul.f32 %v5625, %v1616
  %v5690 = vmul.f32 %v5626, %v1617
  %v5691 = vmul.f32 %v5627, %v1618
  %v5692 = vmul.f32 %v5628, %v1619
  %v5693 = vmul.f32 %v5629, %v1620
  %v5694 = vmul.f32 %v5630, %v1621
  %v5695 = vmul.f32 %v5631, %v1622
  %v5696 = vmul.f32 %v5632, %v1623
  %v5697 = vmul.f32 %v5633, %v1624
  %v5698 = vmul.f32 %v5634, %v1625
  %v5699 = vmul.f32 %v5635, %v1626
  %v5700 = vmul.f32 %v5636, %v1627
  %v5701 = vmul.f32 %v5637, %v1628
  %v5702 = vmul.f32 %v5638, %v1629
  %v5703 = vmul.f32 %v5639, %v1630
  %v5704 = vmul.f32 %v5640, %v1631
  %v5705 = vmul.f32 %v5641, %v1632
  %v5706 = vmul.f32 %v5642, %v1633
  %v5707 = vmul.f32 %v5643, %v1634
  %v5708 = vmul.f32 %v5644, %v1635
  %v5709 = vmul.f32 %v5645, %v1636
  %v5710 = vmul.f32 %v5646, %v1637
  %v5711 = vmul.f32 %v5647, %v1638
  %v5712 = vmul.f32 %v5648, %v1639
  %v5713 = vmul.f32 %v5649, %v1640
  %v5714 = vmul.f32 %v5650, %v1641
  %v5715 = vmul.f32 %v5651, %v1642
  %v5716 = vmul.f32 %v5652, %v1643
  %v5717 = vmul.f32 %v5653, %v1644
  %v5718 = vmul.f32 %v5654, %v1645
  %v5719 = vmul.f32 %v5655, %v1646
  %v5720 = vmul.f32 %v5656, %v1647
  %v5721 = vadd.f32 %v5657, %v5689
  %v5722 = vadd.f32 %v5658, %v5690
  %v5723 = vadd.f32 %v5659, %v5691
  %v5724 = vadd.f32 %v5660, %v5692
  %v5725 = vadd.f32 %v5661, %v5693
  %v5726 = vadd.f32 %v5662, %v5694
  %v5727 = vadd.f32 %v5663, %v5695
  %v5728 = vadd.f32 %v5664, %v5696
  %v5729 = vadd.f32 %v5665, %v5697
  %v5730 = vadd.f32 %v5666, %v5698
  %v5731 = vadd.f32 %v5667, %v5699
  %v5732 = vadd.f32 %v5668, %v5700
  %v5733 = vadd.f32 %v5669, %v5701
  %v5734 = vadd.f32 %v5670, %v5702
  %v5735 = vadd.f32 %v5671, %v5703
  %v5736 = vadd.f32 %v5672, %v5704
  %v5737 = vadd.f32 %v5673, %v5705
  %v5738 = vadd.f32 %v5674, %v5706
  %v5739 = vadd.f32 %v5675, %v5707
  %v5740 = vadd.f32 %v5676, %v5708
  %v5741 = vadd.f32 %v5677, %v5709
  %v5742 = vadd.f32 %v5678, %v5710
  %v5743 = vadd.f32 %v5679, %v5711
  %v5744 = vadd.f32 %v5680, %v5712
  %v5745 = vadd.f32 %v5681, %v5713
  %v5746 = vadd.f32 %v5682, %v5714
  %v5747 = vadd.f32 %v5683, %v5715
  %v5748 = vadd.f32 %v5684, %v5716
  %v5749 = vadd.f32 %v5685, %v5717
  %v5750 = vadd.f32 %v5686, %v5718
  %v5751 = vadd.f32 %v5687, %v5719
  %v5752 = vadd.f32 %v5688, %v5720
  %5753 = vxpose.xlu0.b32.start [1/16] %v5721, 128
  %5754 = vxpose.xlu0.b32.cont [2/16] %v5722, 128
  %5755 = vxpose.xlu0.b32.cont [3/16] %v5723, 128
  %5756 = vxpose.xlu0.b32.cont [4/16] %v5724, 128
  %5757 = vxpose.xlu0.b32.cont [5/16] %v5725, 128
  %5758 = vxpose.xlu0.b32.cont [6/16] %v5726, 128
  %5759 = vxpose.xlu0.b32.cont [7/16] %v5727, 128
  %5760 = vxpose.xlu0.b32.cont [8/16] %v5728, 128
  %5761 = vxpose.xlu0.b32.cont [9/16] %v5729, 128
  %5762 = vxpose.xlu0.b32.cont [10/16] %v5730, 128
  %5763 = vxpose.xlu0.b32.cont [11/16] %v5731, 128
  %5764 = vxpose.xlu0.b32.cont [12/16] %v5732, 128
  %5765 = vxpose.xlu0.b32.cont [13/16] %v5733, 128
  %5766 = vxpose.xlu0.b32.cont [14/16] %v5734, 128
  %5767 = vxpose.xlu0.b32.cont [15/16] %v5735, 128
  %5768 = vxpose.xlu0.b32.end [16/16] %v5736, 128
  %v5769 = vpop.trf.xlu0
  %v5770 = vpop.trf.xlu0
  %v5771 = vpop.trf.xlu0
  %v5772 = vpop.trf.xlu0
  %v5773 = vpop.trf.xlu0
  %v5774 = vpop.trf.xlu0
  %v5775 = vpop.trf.xlu0
  %v5776 = vpop.trf.xlu0
  %v5777 = vpop.trf.xlu0
  %v5778 = vpop.trf.xlu0
  %v5779 = vpop.trf.xlu0
  %v5780 = vpop.trf.xlu0
  %v5781 = vpop.trf.xlu0
  %v5782 = vpop.trf.xlu0
  %v5783 = vpop.trf.xlu0
  %v5784 = vpop.trf.xlu0
  %5785 = vxpose.xlu0.b32.start [1/16] %v5737, 128
  %5786 = vxpose.xlu0.b32.cont [2/16] %v5738, 128
  %5787 = vxpose.xlu0.b32.cont [3/16] %v5739, 128
  %5788 = vxpose.xlu0.b32.cont [4/16] %v5740, 128
  %5789 = vxpose.xlu0.b32.cont [5/16] %v5741, 128
  %5790 = vxpose.xlu0.b32.cont [6/16] %v5742, 128
  %5791 = vxpose.xlu0.b32.cont [7/16] %v5743, 128
  %5792 = vxpose.xlu0.b32.cont [8/16] %v5744, 128
  %5793 = vxpose.xlu0.b32.cont [9/16] %v5745, 128
  %5794 = vxpose.xlu0.b32.cont [10/16] %v5746, 128
  %5795 = vxpose.xlu0.b32.cont [11/16] %v5747, 128
  %5796 = vxpose.xlu0.b32.cont [12/16] %v5748, 128
  %5797 = vxpose.xlu0.b32.cont [13/16] %v5749, 128
  %5798 = vxpose.xlu0.b32.cont [14/16] %v5750, 128
  %5799 = vxpose.xlu0.b32.cont [15/16] %v5751, 128
  %5800 = vxpose.xlu0.b32.end [16/16] %v5752, 128
  %v5801 = vpop.trf.xlu0
  %v5802 = vpop.trf.xlu0
  %v5803 = vpop.trf.xlu0
  %v5804 = vpop.trf.xlu0
  %v5805 = vpop.trf.xlu0
  %v5806 = vpop.trf.xlu0
  %v5807 = vpop.trf.xlu0
  %v5808 = vpop.trf.xlu0
  %v5809 = vpop.trf.xlu0
  %v5810 = vpop.trf.xlu0
  %v5811 = vpop.trf.xlu0
  %v5812 = vpop.trf.xlu0
  %v5813 = vpop.trf.xlu0
  %v5814 = vpop.trf.xlu0
  %v5815 = vpop.trf.xlu0
  %v5816 = vpop.trf.xlu0
  %s5817 = scalar_lea.vmem %s6, 768
  %5818 = vst [vmem:[%s5817] sm:$0xff] %v5769
  %5819 = vst [vmem:[%s5817 + $0x8] sm:$0xff] %v5801
  %5820 = vst [vmem:[%s5817 + $0x10] sm:$0xff] %v5770
  %5821 = vst [vmem:[%s5817 + $0x18] sm:$0xff] %v5802
  %5822 = vst [vmem:[%s5817 + $0x20] sm:$0xff] %v5771
  %5823 = vst [vmem:[%s5817 + $0x28] sm:$0xff] %v5803
  %5824 = vst [vmem:[%s5817 + $0x30] sm:$0xff] %v5772
  %5825 = vst [vmem:[%s5817 + $0x38] sm:$0xff] %v5804
  %5826 = vst [vmem:[%s5817 + $0x40] sm:$0xff] %v5773
  %5827 = vst [vmem:[%s5817 + $0x48] sm:$0xff] %v5805
  %5828 = vst [vmem:[%s5817 + $0x50] sm:$0xff] %v5774
  %5829 = vst [vmem:[%s5817 + $0x58] sm:$0xff] %v5806
  %5830 = vst [vmem:[%s5817 + $0x60] sm:$0xff] %v5775
  %5831 = vst [vmem:[%s5817 + $0x68] sm:$0xff] %v5807
  %5832 = vst [vmem:[%s5817 + $0x70] sm:$0xff] %v5776
  %5833 = vst [vmem:[%s5817 + $0x78] sm:$0xff] %v5808
  %5834 = vst [vmem:[%s5817 + $0x80] sm:$0xff] %v5777
  %5835 = vst [vmem:[%s5817 + $0x88] sm:$0xff] %v5809
  %5836 = vst [vmem:[%s5817 + $0x90] sm:$0xff] %v5778
  %5837 = vst [vmem:[%s5817 + $0x98] sm:$0xff] %v5810
  %5838 = vst [vmem:[%s5817 + $0xa0] sm:$0xff] %v5779
  %5839 = vst [vmem:[%s5817 + $0xa8] sm:$0xff] %v5811
  %5840 = vst [vmem:[%s5817 + $0xb0] sm:$0xff] %v5780
  %5841 = vst [vmem:[%s5817 + $0xb8] sm:$0xff] %v5812
  %5842 = vst [vmem:[%s5817 + $0xc0] sm:$0xff] %v5781
  %5843 = vst [vmem:[%s5817 + $0xc8] sm:$0xff] %v5813
  %5844 = vst [vmem:[%s5817 + $0xd0] sm:$0xff] %v5782
  %5845 = vst [vmem:[%s5817 + $0xd8] sm:$0xff] %v5814
  %5846 = vst [vmem:[%s5817 + $0xe0] sm:$0xff] %v5783
  %5847 = vst [vmem:[%s5817 + $0xe8] sm:$0xff] %v5815
  %5848 = vst [vmem:[%s5817 + $0xf0] sm:$0xff] %v5784
  %5849 = vst [vmem:[%s5817 + $0xf8] sm:$0xff] %v5816
  %s5850 = scalar_lea.vmem %s7, 768
  %5851 = vst [vmem:[%s5850] sm:$0xff] %v1489
  %5852 = vst [vmem:[%s5850 + $0x8] sm:$0xff] %v1492
  %5853 = vst [vmem:[%s5850 + $0x10] sm:$0xff] %v1495
  %5854 = vst [vmem:[%s5850 + $0x18] sm:$0xff] %v1498
  %5855 = vst [vmem:[%s5850 + $0x20] sm:$0xff] %v1501
  %5856 = vst [vmem:[%s5850 + $0x28] sm:$0xff] %v1504
  %5857 = vst [vmem:[%s5850 + $0x30] sm:$0xff] %v1507
  %5858 = vst [vmem:[%s5850 + $0x38] sm:$0xff] %v1510
  %5859 = vst [vmem:[%s5850 + $0x40] sm:$0xff] %v1513
  %5860 = vst [vmem:[%s5850 + $0x48] sm:$0xff] %v1516
  %5861 = vst [vmem:[%s5850 + $0x50] sm:$0xff] %v1519
  %5862 = vst [vmem:[%s5850 + $0x58] sm:$0xff] %v1522
  %5863 = vst [vmem:[%s5850 + $0x60] sm:$0xff] %v1525
  %5864 = vst [vmem:[%s5850 + $0x68] sm:$0xff] %v1528
  %5865 = vst [vmem:[%s5850 + $0x70] sm:$0xff] %v1531
  %5866 = vst [vmem:[%s5850 + $0x78] sm:$0xff] %v1534
  %5867 = vst [vmem:[%s5850 + $0x80] sm:$0xff] %v1537
  %5868 = vst [vmem:[%s5850 + $0x88] sm:$0xff] %v1540
  %5869 = vst [vmem:[%s5850 + $0x90] sm:$0xff] %v1543
  %5870 = vst [vmem:[%s5850 + $0x98] sm:$0xff] %v1546
  %5871 = vst [vmem:[%s5850 + $0xa0] sm:$0xff] %v1549
  %5872 = vst [vmem:[%s5850 + $0xa8] sm:$0xff] %v1552
  %5873 = vst [vmem:[%s5850 + $0xb0] sm:$0xff] %v1555
  %5874 = vst [vmem:[%s5850 + $0xb8] sm:$0xff] %v1558
  %5875 = vst [vmem:[%s5850 + $0xc0] sm:$0xff] %v1561
  %5876 = vst [vmem:[%s5850 + $0xc8] sm:$0xff] %v1564
  %5877 = vst [vmem:[%s5850 + $0xd0] sm:$0xff] %v1567
  %5878 = vst [vmem:[%s5850 + $0xd8] sm:$0xff] %v1570
  %5879 = vst [vmem:[%s5850 + $0xe0] sm:$0xff] %v1573
  %5880 = vst [vmem:[%s5850 + $0xe8] sm:$0xff] %v1576
  %5881 = vst [vmem:[%s5850 + $0xf0] sm:$0xff] %v1579
  %5882 = vst [vmem:[%s5850 + $0xf8] sm:$0xff] %v1582
  // Predicated region
  $region22: #{vision_attention_forward.3} parent=0 // pred_check
    _
  $region23: #{vision_attention_forward.3} parent=0 // pred_check_branch
    %5884 = sbr.rel (0) target = $region25
  $region24: #{vision_attention_forward.3} parent=0 // pred_region
    _
  $region25: #{vision_attention_forward.3} parent=0 // pred_fallthru
    _
  // Predicated region
  $region26: #{vision_attention_forward.3} parent=0 // pred_check
    _
  $region27: #{vision_attention_forward.3} parent=0 // pred_check_branch
    %5886 = sbr.rel (0) target = $region29
  $region28: #{vision_attention_forward.3} parent=0 // pred_region
    _
  $region29: #{vision_attention_forward.3} parent=0 // pred_fallthru
    _
  // Predicated region
  $region30: #{vision_attention_forward.3} parent=0 // pred_check
    _
  $region31: #{vision_attention_forward.3} parent=0 // pred_check_branch
    %5888 = sbr.rel (0) target = $region33
  $region32: #{vision_attention_forward.3} parent=0 // pred_region
    _
  $region33: #{vision_attention_forward.3} parent=0 // pred_fallthru
    _
  // Predicated region
  $region34: #{vision_attention_forward.3} parent=0 // pred_check
    _
  $region35: #{vision_attention_forward.3} parent=0 // pred_check_branch
    %5890 = sbr.rel (0) target = $region37
  $region36: #{vision_attention_forward.3} parent=0 // pred_region
    _
  $region37: #{vision_attention_forward.3} parent=0 // pred_fallthru
    _
  // Predicated region
  $region38: #{vision_attention_forward.3} parent=0 // pred_check
    _
  $region39: #{vision_attention_forward.3} parent=0 // pred_check_branch
    %5892 = sbr.rel (0) target = $region41
  $region40: #{vision_attention_forward.3} parent=0 // pred_region
    _
  $region41: #{vision_attention_forward.3} parent=0 // pred_fallthru
    _
  // Predicated region
  $region42: #{vision_attention_forward.3} parent=0 // pred_check
    _
  $region43: #{vision_attention_forward.3} parent=0 // pred_check_branch
    %5894 = sbr.rel (0) target = $region45
  $region44: #{vision_attention_forward.3} parent=0 // pred_region
    _
  $region45: #{vision_attention_forward.3} parent=0 // pred_fallthru
    _

</llo_original>
